<compile_context>
chip_gen: v6e
topology: v6e:2x2x1
jax: 0.10.0
libtpu: 0.0.40
codegen_flags: <defaults>
</compile_context>

<pallas_src>
import jax
import jax.numpy as jnp
import numpy as np
from jax.experimental import pallas as pl
from jax.experimental.pallas import tpu as pltpu

EPS = 1e-5                          # PyTorch BatchNorm2d default eps
CP = 128                            # padded output-channel (lane) width
TM_MAX = 1024                       # max rows per M tile
MIN_TILES = 4                       # minimum grid tiles per layer
VMEM_LIMIT = 32 * 1024 * 1024       # safe scoped-VMEM request on v5e/v6e/v7x
Y_RESIDENT_MAX_BYTES = 16 * 1024 * 1024   # cap for the resident bf16 y slab


def _cdiv(a, b):
    return -(-a // b)


def _round_up(x, m):
    return _cdiv(x, m) * m


def _pad_cols(a, cp=CP):
    pad = cp - a.shape[-1]
    return a if pad == 0 else jnp.pad(a, ((0, 0), (0, pad)))


def _pad_rows(a, mp):
    pad = mp - a.shape[0]
    return a if pad == 0 else jnp.pad(a, ((0, pad), (0, 0)))


def _tiling(m):
    """rows -> (tile_rows, padded_rows, n_tiles): >=MIN_TILES tiles, <=TM_MAX rows."""
    mp = _round_up(m, 16)
    nt = max(min(MIN_TILES, mp // 16), _cdiv(mp, TM_MAX))
    tm = _round_up(_cdiv(mp, nt), 16)
    return tm, tm * nt, nt


# ---------------------------------------------------------------------------
# Fused  matmul + BatchNorm(train) + ReLU  Pallas kernel
# ---------------------------------------------------------------------------
def _fused_matmul_bn_relu(patches, w_cols, fold, g_row, b_row,
                          m_true, ncopies, tm, nt):
    """relu(BN_train(patches @ w_cols)) with in-kernel batch statistics.

    patches : (mp, K)   bf16, zero-padded rows
    w_cols  : (K, 128)  bf16, zero-padded output lanes
    fold    : (128,128) f32 parity-pooling matrix for the BN stats
    g_row / b_row : (1, 128) f32 gamma / beta rows (parity-replicated, padded)
    Returns (mp, 128) bf16.
    """
    mp, k = patches.shape
    resident = mp * CP * 2 <= Y_RESIDENT_MAX_BYTES     # v7x 64 MiB VMEM guard
    inv_cnt = 1.0 / float(m_true * ncopies)

    def kernel(p_ref, w_ref, f_ref, g_ref, b_ref, o_ref, y_scr, s_scr, q_scr):
        ph = pl.program_id(0)
        i = pl.program_id(1)

        @pl.when(ph == 0)
        def _phase0():
            @pl.when(i == 0)
            def _init():
                s_scr[...] = jnp.zeros_like(s_scr)
                q_scr[...] = jnp.zeros_like(q_scr)

            y = jnp.dot(p_ref[...], w_ref[...],
                        preferred_element_type=jnp.float32)
            ys = y.reshape(tm // 8, 8, CP)          # sublane-preserving view
            s_scr[...] += jnp.sum(ys, axis=0)       # per-sublane column sums
            q_scr[...] += jnp.sum(ys * ys, axis=0)
            if resident:
                y_scr[i] = y.astype(y_scr.dtype)    # keep y in VMEM, no HBM

        @pl.when(ph == 1)
        def _phase1():
            if resident:
                y = y_scr[i].astype(jnp.float32)
            else:
                y = jnp.dot(p_ref[...], w_ref[...],   # recompute (v7x fallback)
                            preferred_element_type=jnp.float32)
            # Pool the 4 parity column-copies (deconv) / mask pad lanes (conv).
            s_fold = jnp.dot(s_scr[...], f_ref[...],
                             preferred_element_type=jnp.float32)
            q_fold = jnp.dot(q_scr[...], f_ref[...],
                             preferred_element_type=jnp.float32)
            mean = jnp.sum(s_fold, axis=0, keepdims=True) * inv_cnt
            msq = jnp.sum(q_fold, axis=0, keepdims=True) * inv_cnt
            var = jnp.maximum(msq - mean * mean, 0.0)   # biased var (PyTorch BN)
            scale = g_ref[...] * jax.lax.rsqrt(var + EPS)
            shift = b_ref[...] - scale * mean
            o_ref[...] = jnp.maximum(y * scale + shift, 0.0).astype(o_ref.dtype)

    if resident:
        # Phase 1 pins the patch block index at the last fetched block, so no
        # patch DMA is issued while y is replayed from the VMEM slab.
        p_map = lambda ph, i: (i * (1 - ph) + (nt - 1) * ph, 0)
        y_slab = pltpu.VMEM((nt, tm, CP), jnp.bfloat16)
    else:
        p_map = lambda ph, i: (i, 0)                 # re-stream patches
        y_slab = pltpu.VMEM((1, 16, CP), jnp.bfloat16)   # unused dummy

    return pl.pallas_call(
        kernel,
        out_shape=jax.ShapeDtypeStruct((mp, CP), jnp.bfloat16),
        grid=(2, nt),
        in_specs=[pl.BlockSpec((tm, k), p_map),
                  pl.BlockSpec((k, CP), lambda ph, i: (0, 0)),
                  pl.BlockSpec((CP, CP), lambda ph, i: (0, 0)),
                  pl.BlockSpec((1, CP), lambda ph, i: (0, 0)),
                  pl.BlockSpec((1, CP), lambda ph, i: (0, 0))],
        # Output block index is pinned at 0 during phase 0, so nothing is
        # written back to HBM until phase 1 has filled each block.
        out_specs=pl.BlockSpec((tm, CP), lambda ph, i: (ph * i, 0)),
        scratch_shapes=[y_slab,
                        pltpu.VMEM((8, CP), jnp.float32),
                        pltpu.VMEM((8, CP), jnp.float32)],
        compiler_params=pltpu.CompilerParams(
            dimension_semantics=("arbitrary", "arbitrary"),
            vmem_limit_bytes=VMEM_LIMIT),
    )(patches, w_cols, fold, g_row, b_row)


# ---------------------------------------------------------------------------
# Final layer:  matmul + bias + tanh
# ---------------------------------------------------------------------------
def _mm_bias_tanh_kernel(p_ref, w_ref, b_ref, o_ref):
    y = jnp.dot(p_ref[...], w_ref[...], preferred_element_type=jnp.float32)
    o_ref[...] = jnp.tanh(y + b_ref[...])


def _fused_matmul_bias_tanh(patches, w_cols, b_row, tm, nt):
    mp, k = patches.shape
    return pl.pallas_call(
        _mm_bias_tanh_kernel,
        out_shape=jax.ShapeDtypeStruct((mp, CP), jnp.float32),
        grid=(nt,),
        in_specs=[pl.BlockSpec((tm, k), lambda i: (i, 0)),
                  pl.BlockSpec((k, CP), lambda i: (0, 0)),
                  pl.BlockSpec((1, CP), lambda i: (0, 0))],
        out_specs=pl.BlockSpec((tm, CP), lambda i: (i, 0)),
        compiler_params=pltpu.CompilerParams(
            dimension_semantics=("parallel",),
            vmem_limit_bytes=VMEM_LIMIT),
    )(patches, w_cols, b_row)


# ---------------------------------------------------------------------------
# JAX glue: im2col (NHWC), BN fold matrix, sub-pixel ConvTranspose weights
# ---------------------------------------------------------------------------
def _im2col_nhwc(x, k, stride, pad):
    """x (N,H,W,C) -> patches (N*Ho*Wo, k*k*C), patch ordering (kh, kw, c)."""
    n, h, w, c = x.shape
    if pad:
        x = jnp.pad(x, ((0, 0), (pad, pad), (pad, pad), (0, 0)))
    ho = (h + 2 * pad - k) // stride + 1
    wo = (w + 2 * pad - k) // stride + 1
    cols = []
    for kh in range(k):
        for kw in range(k):
            cols.append(x[:, kh:kh + stride * ho:stride,
                          kw:kw + stride * wo:stride, :])
    p = jnp.stack(cols, axis=3)                      # (N, Ho, Wo, k*k, C)
    return p.reshape(n * ho * wo, k * k * c), ho, wo


def _fold_matrix(cout, ncopies):
    """(CP,CP) matrix pooling the `ncopies` parity column groups of each channel."""
    f = np.zeros((CP, CP), np.float32)
    idx = np.arange(cout)
    for p in range(ncopies):
        for q in range(ncopies):
            f[p * cout + idx, q * cout + idx] = 1.0
    return jnp.asarray(f)


# Sub-pixel selection: SEL[out_parity, 3x3-patch-offset, 4-tap-kernel-index].
# ConvTranspose2d(k=4,s=2,p=1): out[2q+0] uses (in row q-1, kh=3), (q, kh=1);
#                               out[2q+1] uses (in row q,   kh=2), (q+1, kh=0).
_SEL = np.zeros((2, 3, 4), np.float32)
_SEL[0, 0, 3] = 1.0
_SEL[0, 1, 1] = 1.0
_SEL[1, 1, 2] = 1.0
_SEL[1, 2, 0] = 1.0


def _subpixel_weight(w_iohw):
    """(Cin,Cout,4,4) transpose-conv weight -> combined (9*Cin, 4*Cout) weight
    for a stride-1 3x3 im2col of the undilated input; column = (py*2+px)*Cout+co."""
    cin, cout = w_iohw.shape[0], w_iohw.shape[1]
    sel = jnp.asarray(_SEL)
    wc = jnp.einsum('ptk,qul,iokl->tuipqo', sel, sel, w_iohw)
    return wc.reshape(9 * cin, 4 * cout)


def _subpixel_unfold(cols, n, h, w, cout):
    """(N*H*W, 4*Cout) parity columns -> NHWC (N, 2H, 2W, Cout)."""
    o = cols.reshape(n, h, w, 2, 2, cout)
    return o.transpose(0, 1, 3, 2, 4, 5).reshape(n, 2 * h, 2 * w, cout)


# ---------------------------------------------------------------------------
# Layers (NHWC bf16 in / NHWC bf16 out, final layer f32)
# ---------------------------------------------------------------------------
def conv_bn_relu(x, w_oihw, gamma, beta):
    """Conv2d(k=4,s=2,p=1) + BatchNorm2d(train) + ReLU.  Bias cancels in BN."""
    n, h, w, cin = x.shape
    cout, _, k, _ = w_oihw.shape
    patches, ho, wo = _im2col_nhwc(x, k, stride=2, pad=1)
    m = patches.shape[0]
    tm, mp, nt = _tiling(m)
    patches = _pad_rows(patches, mp).astype(jnp.bfloat16)
    w2 = _pad_cols(w_oihw.transpose(2, 3, 1, 0).reshape(k * k * cin, cout)
                   ).astype(jnp.bfloat16)
    g_row = _pad_cols(gamma.reshape(1, cout)).astype(jnp.float32)
    b_row = _pad_cols(beta.reshape(1, cout)).astype(jnp.float32)
    out = _fused_matmul_bn_relu(patches, w2, _fold_matrix(cout, 1),
                                g_row, b_row, m, 1, tm, nt)
    return out[:m, :cout].reshape(n, ho, wo, cout)


def deconv_bn_relu(x, w_iohw, gamma, beta):
    """ConvTranspose2d(k=4,s=2,p=1) + BatchNorm2d(train) + ReLU (sub-pixel)."""
    n, h, w, cin = x.shape
    cout = w_iohw.shape[1]
    patches, _, _ = _im2col_nhwc(x, 3, stride=1, pad=1)
    m = patches.shape[0]
    tm, mp, nt = _tiling(m)
    patches = _pad_rows(patches, mp).astype(jnp.bfloat16)
    wc = _pad_cols(_subpixel_weight(w_iohw)).astype(jnp.bfloat16)
    g_row = _pad_cols(jnp.tile(gamma, 4).reshape(1, 4 * cout)).astype(jnp.float32)
    b_row = _pad_cols(jnp.tile(beta, 4).reshape(1, 4 * cout)).astype(jnp.float32)
    out = _fused_matmul_bn_relu(patches, wc, _fold_matrix(cout, 4),
                                g_row, b_row, m, 4, tm, nt)
    return _subpixel_unfold(out[:m, :4 * cout], n, h, w, cout)


def deconv_tanh(x, w_iohw, b):
    """ConvTranspose2d(k=4,s=2,p=1) + bias + Tanh (final decoder layer)."""
    n, h, w, cin = x.shape
    cout = w_iohw.shape[1]
    patches, _, _ = _im2col_nhwc(x, 3, stride=1, pad=1)
    m = patches.shape[0]
    tm, mp, nt = _tiling(m)
    patches = _pad_rows(patches, mp).astype(jnp.bfloat16)
    wc = _pad_cols(_subpixel_weight(w_iohw)).astype(jnp.bfloat16)
    b_row = _pad_cols(jnp.tile(b, 4).reshape(1, 4 * cout)).astype(jnp.float32)
    out = _fused_matmul_bias_tanh(patches, wc, b_row, tm, nt)
    return _subpixel_unfold(out[:m, :4 * cout], n, h, w, cout)


def autoencoder_forward(x, params):
    """x: NCHW float32 (PyTorch convention)."""
    x = x.transpose(0, 2, 3, 1).astype(jnp.bfloat16)     # NHWC bf16 internally
    for (w, _b, g, bt) in params["enc"]:
        x = conv_bn_relu(x, w, g, bt)
    w, _b, g, bt = params["dec"][0]
    x = deconv_bn_relu(x, w, g, bt)
    w, _b, g, bt = params["dec"][1]
    x = deconv_bn_relu(x, w, g, bt)
    w, b = params["dec"][2]
    x = deconv_tanh(x, w, b)
    return x.transpose(0, 3, 1, 2).astype(jnp.float32)   # back to NCHW


# ---------------------------------------------------------------------------
# Deterministic parameter init (shapes from conv_autoencoder.__init__)
# ---------------------------------------------------------------------------
def init_params(key):
    ks = jax.random.split(key, 12)

    def uw(k_, shape, fan_in):
        bound = 1.0 / np.sqrt(fan_in)
        return jax.random.uniform(k_, shape, jnp.float32, -bound, bound)

    enc_cfg = [(3, 12), (12, 24), (24, 48)]
    dec_cfg = [(48, 24), (24, 12), (12, 3)]
    enc, dec, i = [], [], 0
    for cin, cout in enc_cfg:
        w = uw(ks[i], (cout, cin, 4, 4), cin * 16)
        bb = uw(ks[i + 1], (cout,), cin * 16)
        enc.append((w, bb, jnp.ones((cout,), jnp.float32),
                    jnp.zeros((cout,), jnp.float32)))
        i += 2
    for li, (cin, cout) in enumerate(dec_cfg):
        w = uw(ks[i], (cin, cout, 4, 4), cout * 16)      # IOHW like PyTorch
        bb = uw(ks[i + 1], (cout,), cout * 16)
        if li < 2:
            dec.append((w, bb, jnp.ones((cout,), jnp.float32),
                        jnp.zeros((cout,), jnp.float32)))
        else:
            dec.append((w, bb))                          # last layer: Tanh, no BN
        i += 2
    return {"enc": enc, "dec": dec}


# ---------------------------------------------------------------------------
# Pure-JAX reference (lax convolutions, f32 HIGHEST) for a correctness check
# ---------------------------------------------------------------------------
def _ref_bn_relu(y, g, bt):
    mean = y.mean(axis=(0, 2, 3), keepdims=True)
    var = ((y - mean) ** 2).mean(axis=(0, 2, 3), keepdims=True)
    yn = (y - mean) * jax.lax.rsqrt(var + EPS)
    return jnp.maximum(g.reshape(1, -1, 1, 1) * yn + bt.reshape(1, -1, 1, 1), 0.0)


def reference_forward(x, params):
    dn = ("NCHW", "OIHW", "NCHW")
    hp = jax.lax.Precision.HIGHEST
    for (w, b, g, bt) in params["enc"]:
        y = jax.lax.conv_general_dilated(x, w, (2, 2), [(1, 1), (1, 1)],
                                         dimension_numbers=dn, precision=hp)
        x = _ref_bn_relu(y + b.reshape(1, -1, 1, 1), g, bt)
    for li, layer in enumerate(params["dec"]):
        w, b = layer[0], layer[1]
        w_eq = jnp.flip(w, axis=(2, 3)).transpose(1, 0, 2, 3)
        y = jax.lax.conv_general_dilated(x, w_eq, (1, 1), [(2, 2), (2, 2)],
                                         lhs_dilation=(2, 2),
                                         dimension_numbers=dn, precision=hp)
        y = y + b.reshape(1, -1, 1, 1)
        x = _ref_bn_relu(y, layer[2], layer[3]) if li < 2 else jnp.tanh(y)
    return x


if __name__ == "__main__":
    key = jax.random.PRNGKey(0)
    kx, kp = jax.random.split(key)
    # 64x64 spatial (divisible by 2^3) so the M-tiling exercises multi-tile grids.
    x = jax.random.normal(kx, (2, 3, 64, 64), jnp.float32)
    params = init_params(kp)

    fwd = jax.jit(autoencoder_forward)
    out = jax.block_until_ready(fwd(x, params))
    assert out.shape == x.shape and out.dtype == jnp.float32

    ref = jax.block_until_ready(reference_forward(x, params))
    # bf16 MXU operands / activations vs an f32 HIGHEST reference.
    np.testing.assert_allclose(np.asarray(out), np.asarray(ref),
                               atol=5e-2, rtol=5e-2)
    print("KERNEL_OK")
</pallas_src>

<mosaic_0001>
module attributes {stable_mosaic.version = 11 : i64} {
  func.func @kernel(%arg0: i32, %arg1: i32, %arg2: memref<512x48xbf16, #tpu.memory_space<vmem>>, %arg3: memref<48x128xbf16, #tpu.memory_space<vmem>>, %arg4: memref<128x128xf32, #tpu.memory_space<vmem>>, %arg5: memref<1x128xf32, #tpu.memory_space<vmem>>, %arg6: memref<1x128xf32, #tpu.memory_space<vmem>>, %arg7: memref<512x128xbf16, #tpu.memory_space<vmem>>, %arg8: memref<4x512x128xbf16, #tpu.memory_space<vmem>>, %arg9: memref<8x128xf32, #tpu.memory_space<vmem>>, %arg10: memref<8x128xf32, #tpu.memory_space<vmem>>) attributes {dimension_semantics = [#tpu.dimension_semantics<arbitrary>, #tpu.dimension_semantics<arbitrary>], iteration_bounds = array<i64: 2, 4>, scalar_prefetch = 0 : i64, scratch_operands = 3 : i64, tpu.core_type = #tpu.core_type<tc>, window_params = [{transform_indices = @transform_0, window_bounds = array<i64: 512, 48>}, {pipeline_mode = #tpu.pipeline_mode<synchronous>, transform_indices = @transform_1, window_bounds = array<i64: 48, 128>}, {pipeline_mode = #tpu.pipeline_mode<synchronous>, transform_indices = @transform_2, window_bounds = array<i64: 128, 128>}, {pipeline_mode = #tpu.pipeline_mode<synchronous>, transform_indices = @transform_3, window_bounds = array<i64: 1, 128>}, {pipeline_mode = #tpu.pipeline_mode<synchronous>, transform_indices = @transform_4, window_bounds = array<i64: 1, 128>}, {transform_indices = @transform_5, window_bounds = array<i64: 512, 128>}]} {
    %c0_i32 = arith.constant 0 : i32
    %0 = arith.cmpi eq, %arg0, %c0_i32 : i32
    %1 = arith.extui %0 : i1 to i32
    %c0_i32_0 = arith.constant 0 : i32
    %2 = arith.cmpi ne, %1, %c0_i32_0 : i32
    scf.if %2 {
      %c0_i32_2 = arith.constant 0 : i32
      %6 = arith.cmpi eq, %arg1, %c0_i32_2 : i32
      %7 = arith.extui %6 : i1 to i32
      %c0_i32_3 = arith.constant 0 : i32
      %8 = arith.cmpi ne, %7, %c0_i32_3 : i32
      scf.if %8 {
        %cst_19 = arith.constant 0.000000e+00 : f32
        %27 = vector.broadcast %cst_19 : f32 to vector<8x128xf32>
        %c0_20 = arith.constant 0 : index
        %c0_21 = arith.constant 0 : index
        %28 = vector.load %arg9[%c0_20, %c0_21] : memref<8x128xf32, #tpu.memory_space<vmem>>, vector<8x128xf32>
        tpu.vector_store %arg9[%c0_20, %c0_21], %27 {strides = array<i32>} : memref<8x128xf32, #tpu.memory_space<vmem>>, vector<8x128xf32>,
        %cst_22 = arith.constant 0.000000e+00 : f32
        %29 = vector.broadcast %cst_22 : f32 to vector<8x128xf32>
        %c0_23 = arith.constant 0 : index
        %c0_24 = arith.constant 0 : index
        %30 = vector.load %arg10[%c0_23, %c0_24] : memref<8x128xf32, #tpu.memory_space<vmem>>, vector<8x128xf32>
        tpu.vector_store %arg10[%c0_23, %c0_24], %29 {strides = array<i32>} : memref<8x128xf32, #tpu.memory_space<vmem>>, vector<8x128xf32>,
      } else {
      }
      %c0 = arith.constant 0 : index
      %c0_4 = arith.constant 0 : index
      %9 = vector.load %arg2[%c0, %c0_4] : memref<512x48xbf16, #tpu.memory_space<vmem>>, vector<512x48xbf16>
      %c0_5 = arith.constant 0 : index
      %c0_6 = arith.constant 0 : index
      %10 = vector.load %arg3[%c0_5, %c0_6] : memref<48x128xbf16, #tpu.memory_space<vmem>>, vector<48x128xbf16>
      %cst = arith.constant dense<0.000000e+00> : vector<512x128xf32>
      %11 = tpu.matmul %9, %10, %cst {dimension_numbers = #tpu.dot_dimension_numbers<[1], [0], [0], [1], [0, 0, 1, 1], [], []>} : vector<512x48xbf16>, vector<48x128xbf16>, vector<512x128xf32> -> vector<512x128xf32>
      %12 = vector.shape_cast %11 : vector<512x128xf32> to vector<64x8x128xf32>
      %c0_7 = arith.constant 0 : index
      %c0_8 = arith.constant 0 : index
      %13 = vector.load %arg9[%c0_7, %c0_8] : memref<8x128xf32, #tpu.memory_space<vmem>>, vector<8x128xf32>
      %cst_9 = arith.constant dense<0.000000e+00> : vector<8x128xf32>
      %14 = vector.multi_reduction <add>, %12, %cst_9 [0] : vector<64x8x128xf32> to vector<8x128xf32>
      %15 = arith.addf %13, %14 : vector<8x128xf32>
      %c0_10 = arith.constant 0 : index
      %c0_11 = arith.constant 0 : index
      %16 = vector.load %arg9[%c0_10, %c0_11] : memref<8x128xf32, #tpu.memory_space<vmem>>, vector<8x128xf32>
      tpu.vector_store %arg9[%c0_10, %c0_11], %15 {strides = array<i32>} : memref<8x128xf32, #tpu.memory_space<vmem>>, vector<8x128xf32>,
      %c0_12 = arith.constant 0 : index
      %c0_13 = arith.constant 0 : index
      %17 = vector.load %arg10[%c0_12, %c0_13] : memref<8x128xf32, #tpu.memory_space<vmem>>, vector<8x128xf32>
      %18 = arith.mulf %12, %12 : vector<64x8x128xf32>
      %cst_14 = arith.constant dense<0.000000e+00> : vector<8x128xf32>
      %19 = vector.multi_reduction <add>, %18, %cst_14 [0] : vector<64x8x128xf32> to vector<8x128xf32>
      %20 = arith.addf %17, %19 : vector<8x128xf32>
      %c0_15 = arith.constant 0 : index
      %c0_16 = arith.constant 0 : index
      %21 = vector.load %arg10[%c0_15, %c0_16] : memref<8x128xf32, #tpu.memory_space<vmem>>, vector<8x128xf32>
      tpu.vector_store %arg10[%c0_15, %c0_16], %20 {strides = array<i32>} : memref<8x128xf32, #tpu.memory_space<vmem>>, vector<8x128xf32>,
      %22 = arith.truncf %11 : vector<512x128xf32> to vector<512x128xbf16>
      %23 = arith.index_cast %arg1 : i32 to index
      %c0_17 = arith.constant 0 : index
      %c0_18 = arith.constant 0 : index
      %24 = vector.load %arg8[%23, %c0_17, %c0_18] : memref<4x512x128xbf16, #tpu.memory_space<vmem>>, vector<1x512x128xbf16>
      %25 = vector.shape_cast %24 : vector<1x512x128xbf16> to vector<512x128xbf16>
      %26 = vector.shape_cast %22 : vector<512x128xbf16> to vector<1x512x128xbf16>
      tpu.vector_store %arg8[%23, %c0_17, %c0_18], %26 {strides = array<i32>} : memref<4x512x128xbf16, #tpu.memory_space<vmem>>, vector<1x512x128xbf16>,
    } else {
    }
    %c1_i32 = arith.constant 1 : i32
    %3 = arith.cmpi eq, %arg0, %c1_i32 : i32
    %4 = arith.extui %3 : i1 to i32
    %c0_i32_1 = arith.constant 0 : i32
    %5 = arith.cmpi ne, %4, %c0_i32_1 : i32
    scf.if %5 {
      %6 = arith.index_cast %arg1 : i32 to index
      %c0 = arith.constant 0 : index
      %c0_2 = arith.constant 0 : index
      %7 = vector.load %arg8[%6, %c0, %c0_2] : memref<4x512x128xbf16, #tpu.memory_space<vmem>>, vector<1x512x128xbf16>
      %8 = vector.shape_cast %7 : vector<1x512x128xbf16> to vector<512x128xbf16>
      %9 = arith.extf %8 : vector<512x128xbf16> to vector<512x128xf32>
      %c0_3 = arith.constant 0 : index
      %c0_4 = arith.constant 0 : index
      %10 = vector.load %arg9[%c0_3, %c0_4] : memref<8x128xf32, #tpu.memory_space<vmem>>, vector<8x128xf32>
      %c0_5 = arith.constant 0 : index
      %c0_6 = arith.constant 0 : index
      %11 = vector.load %arg4[%c0_5, %c0_6] : memref<128x128xf32, #tpu.memory_space<vmem>>, vector<128x128xf32>
      %cst = arith.constant dense<0.000000e+00> : vector<8x128xf32>
      %12 = tpu.matmul %10, %11, %cst {dimension_numbers = #tpu.dot_dimension_numbers<[1], [0], [0], [1], [0, 0, 1, 1], [], []>} : vector<8x128xf32>, vector<128x128xf32>, vector<8x128xf32> -> vector<8x128xf32>
      %c0_7 = arith.constant 0 : index
      %c0_8 = arith.constant 0 : index
      %13 = vector.load %arg10[%c0_7, %c0_8] : memref<8x128xf32, #tpu.memory_space<vmem>>, vector<8x128xf32>
      %c0_9 = arith.constant 0 : index
      %c0_10 = arith.constant 0 : index
      %14 = vector.load %arg4[%c0_9, %c0_10] : memref<128x128xf32, #tpu.memory_space<vmem>>, vector<128x128xf32>
      %cst_11 = arith.constant dense<0.000000e+00> : vector<8x128xf32>
      %15 = tpu.matmul %13, %14, %cst_11 {dimension_numbers = #tpu.dot_dimension_numbers<[1], [0], [0], [1], [0, 0, 1, 1], [], []>} : vector<8x128xf32>, vector<128x128xf32>, vector<8x128xf32> -> vector<8x128xf32>
      %cst_12 = arith.constant dense<0.000000e+00> : vector<128xf32>
      %16 = vector.multi_reduction <add>, %12, %cst_12 [0] : vector<8x128xf32> to vector<128xf32>
      %17 = vector.shape_cast %16 : vector<128xf32> to vector<1x128xf32>
      %cst_13 = arith.constant 4.8828125E-4 : f32
      %18 = vector.broadcast %cst_13 : f32 to vector<1x128xf32>
      %19 = arith.mulf %17, %18 : vector<1x128xf32>
      %cst_14 = arith.constant dense<0.000000e+00> : vector<128xf32>
      %20 = vector.multi_reduction <add>, %15, %cst_14 [0] : vector<8x128xf32> to vector<128xf32>
      %21 = vector.shape_cast %20 : vector<128xf32> to vector<1x128xf32>
      %cst_15 = arith.constant 4.8828125E-4 : f32
      %22 = vector.broadcast %cst_15 : f32 to vector<1x128xf32>
      %23 = arith.mulf %21, %22 : vector<1x128xf32>
      %24 = arith.mulf %19, %19 : vector<1x128xf32>
      %25 = arith.subf %23, %24 : vector<1x128xf32>
      %cst_16 = arith.constant 0.000000e+00 : f32
      %26 = vector.broadcast %cst_16 : f32 to vector<1x128xf32>
      %27 = arith.maximumf %25, %26 : vector<1x128xf32>
      %c0_17 = arith.constant 0 : index
      %c0_18 = arith.constant 0 : index
      %28 = vector.load %arg5[%c0_17, %c0_18] : memref<1x128xf32, #tpu.memory_space<vmem>>, vector<1x128xf32>
      %cst_19 = arith.constant 9.99999974E-6 : f32
      %29 = vector.broadcast %cst_19 : f32 to vector<1x128xf32>
      %30 = arith.addf %27, %29 : vector<1x128xf32>
      %31 = math.rsqrt %30 : vector<1x128xf32>
      %32 = arith.mulf %28, %31 : vector<1x128xf32>
      %c0_20 = arith.constant 0 : index
      %c0_21 = arith.constant 0 : index
      %33 = vector.load %arg6[%c0_20, %c0_21] : memref<1x128xf32, #tpu.memory_space<vmem>>, vector<1x128xf32>
      %34 = arith.mulf %32, %19 : vector<1x128xf32>
      %35 = arith.subf %33, %34 : vector<1x128xf32>
      %36 = vector.broadcast %32 : vector<1x128xf32> to vector<512x128xf32>
      %37 = arith.mulf %9, %36 : vector<512x128xf32>
      %38 = vector.broadcast %35 : vector<1x128xf32> to vector<512x128xf32>
      %39 = arith.addf %37, %38 : vector<512x128xf32>
      %cst_22 = arith.constant 0.000000e+00 : f32
      %40 = vector.broadcast %cst_22 : f32 to vector<512x128xf32>
      %41 = arith.maximumf %39, %40 : vector<512x128xf32>
      %42 = arith.truncf %41 : vector<512x128xf32> to vector<512x128xbf16>
      %c0_23 = arith.constant 0 : index
      %c0_24 = arith.constant 0 : index
      %43 = vector.load %arg7[%c0_23, %c0_24] : memref<512x128xbf16, #tpu.memory_space<vmem>>, vector<512x128xbf16>
      tpu.vector_store %arg7[%c0_23, %c0_24], %42 {strides = array<i32>} : memref<512x128xbf16, #tpu.memory_space<vmem>>, vector<512x128xbf16>,
    } else {
    }
    return
  }
  func.func @transform_0(%arg0: i32, %arg1: i32) -> (i32, i32) {
    %c1_i32 = arith.constant 1 : i32
    %0 = arith.subi %c1_i32, %arg0 : i32
    %1 = arith.muli %arg1, %0 : i32
    %c3_i32 = arith.constant 3 : i32
    %2 = arith.muli %c3_i32, %arg0 : i32
    %3 = arith.addi %1, %2 : i32
    %c0_i32 = arith.constant 0 : i32
    %c0_i32_0 = arith.constant 0 : i32
    return %3, %c0_i32 : i32, i32
  }
  func.func @transform_1(%arg0: i32, %arg1: i32) -> (i32, i32) {
    %c0_i32 = arith.constant 0 : i32
    %c0_i32_0 = arith.constant 0 : i32
    %c0_i32_1 = arith.constant 0 : i32
    return %c0_i32, %c0_i32_0 : i32, i32
  }
  func.func @transform_2(%arg0: i32, %arg1: i32) -> (i32, i32) {
    %c0_i32 = arith.constant 0 : i32
    %c0_i32_0 = arith.constant 0 : i32
    %c0_i32_1 = arith.constant 0 : i32
    return %c0_i32, %c0_i32_0 : i32, i32
  }
  func.func @transform_3(%arg0: i32, %arg1: i32) -> (i32, i32) {
    %c0_i32 = arith.constant 0 : i32
    %c0_i32_0 = arith.constant 0 : i32
    %c0_i32_1 = arith.constant 0 : i32
    return %c0_i32, %c0_i32_0 : i32, i32
  }
  func.func @transform_4(%arg0: i32, %arg1: i32) -> (i32, i32) {
    %c0_i32 = arith.constant 0 : i32
    %c0_i32_0 = arith.constant 0 : i32
    %c0_i32_1 = arith.constant 0 : i32
    return %c0_i32, %c0_i32_0 : i32, i32
  }
  func.func @transform_5(%arg0: i32, %arg1: i32) -> (i32, i32) {
    %0 = arith.muli %arg0, %arg1 : i32
    %c0_i32 = arith.constant 0 : i32
    %c0_i32_0 = arith.constant 0 : i32
    return %0, %c0_i32 : i32, i32
  }
}

module attributes {stable_mosaic.version = 11 : i64} {
  func.func @kernel(%arg0: i32, %arg1: i32, %arg2: memref<128x192xbf16, #tpu.memory_space<vmem>>, %arg3: memref<192x128xbf16, #tpu.memory_space<vmem>>, %arg4: memref<128x128xf32, #tpu.memory_space<vmem>>, %arg5: memref<1x128xf32, #tpu.memory_space<vmem>>, %arg6: memref<1x128xf32, #tpu.memory_space<vmem>>, %arg7: memref<128x128xbf16, #tpu.memory_space<vmem>>, %arg8: memref<4x128x128xbf16, #tpu.memory_space<vmem>>, %arg9: memref<8x128xf32, #tpu.memory_space<vmem>>, %arg10: memref<8x128xf32, #tpu.memory_space<vmem>>) attributes {dimension_semantics = [#tpu.dimension_semantics<arbitrary>, #tpu.dimension_semantics<arbitrary>], iteration_bounds = array<i64: 2, 4>, scalar_prefetch = 0 : i64, scratch_operands = 3 : i64, tpu.core_type = #tpu.core_type<tc>, window_params = [{transform_indices = @transform_0, window_bounds = array<i64: 128, 192>}, {pipeline_mode = #tpu.pipeline_mode<synchronous>, transform_indices = @transform_1, window_bounds = array<i64: 192, 128>}, {pipeline_mode = #tpu.pipeline_mode<synchronous>, transform_indices = @transform_2, window_bounds = array<i64: 128, 128>}, {pipeline_mode = #tpu.pipeline_mode<synchronous>, transform_indices = @transform_3, window_bounds = array<i64: 1, 128>}, {pipeline_mode = #tpu.pipeline_mode<synchronous>, transform_indices = @transform_4, window_bounds = array<i64: 1, 128>}, {transform_indices = @transform_5, window_bounds = array<i64: 128, 128>}]} {
    %c0_i32 = arith.constant 0 : i32
    %0 = arith.cmpi eq, %arg0, %c0_i32 : i32
    %1 = arith.extui %0 : i1 to i32
    %c0_i32_0 = arith.constant 0 : i32
    %2 = arith.cmpi ne, %1, %c0_i32_0 : i32
    scf.if %2 {
      %c0_i32_2 = arith.constant 0 : i32
      %6 = arith.cmpi eq, %arg1, %c0_i32_2 : i32
      %7 = arith.extui %6 : i1 to i32
      %c0_i32_3 = arith.constant 0 : i32
      %8 = arith.cmpi ne, %7, %c0_i32_3 : i32
      scf.if %8 {
        %cst_19 = arith.constant 0.000000e+00 : f32
        %27 = vector.broadcast %cst_19 : f32 to vector<8x128xf32>
        %c0_20 = arith.constant 0 : index
        %c0_21 = arith.constant 0 : index
        %28 = vector.load %arg9[%c0_20, %c0_21] : memref<8x128xf32, #tpu.memory_space<vmem>>, vector<8x128xf32>
        tpu.vector_store %arg9[%c0_20, %c0_21], %27 {strides = array<i32>} : memref<8x128xf32, #tpu.memory_space<vmem>>, vector<8x128xf32>,
        %cst_22 = arith.constant 0.000000e+00 : f32
        %29 = vector.broadcast %cst_22 : f32 to vector<8x128xf32>
        %c0_23 = arith.constant 0 : index
        %c0_24 = arith.constant 0 : index
        %30 = vector.load %arg10[%c0_23, %c0_24] : memref<8x128xf32, #tpu.memory_space<vmem>>, vector<8x128xf32>
        tpu.vector_store %arg10[%c0_23, %c0_24], %29 {strides = array<i32>} : memref<8x128xf32, #tpu.memory_space<vmem>>, vector<8x128xf32>,
      } else {
      }
      %c0 = arith.constant 0 : index
      %c0_4 = arith.constant 0 : index
      %9 = vector.load %arg2[%c0, %c0_4] : memref<128x192xbf16, #tpu.memory_space<vmem>>, vector<128x192xbf16>
      %c0_5 = arith.constant 0 : index
      %c0_6 = arith.constant 0 : index
      %10 = vector.load %arg3[%c0_5, %c0_6] : memref<192x128xbf16, #tpu.memory_space<vmem>>, vector<192x128xbf16>
      %cst = arith.constant dense<0.000000e+00> : vector<128x128xf32>
      %11 = tpu.matmul %9, %10, %cst {dimension_numbers = #tpu.dot_dimension_numbers<[1], [0], [0], [1], [0, 0, 1, 1], [], []>} : vector<128x192xbf16>, vector<192x128xbf16>, vector<128x128xf32> -> vector<128x128xf32>
      %12 = vector.shape_cast %11 : vector<128x128xf32> to vector<16x8x128xf32>
      %c0_7 = arith.constant 0 : index
      %c0_8 = arith.constant 0 : index
      %13 = vector.load %arg9[%c0_7, %c0_8] : memref<8x128xf32, #tpu.memory_space<vmem>>, vector<8x128xf32>
      %cst_9 = arith.constant dense<0.000000e+00> : vector<8x128xf32>
      %14 = vector.multi_reduction <add>, %12, %cst_9 [0] : vector<16x8x128xf32> to vector<8x128xf32>
      %15 = arith.addf %13, %14 : vector<8x128xf32>
      %c0_10 = arith.constant 0 : index
      %c0_11 = arith.constant 0 : index
      %16 = vector.load %arg9[%c0_10, %c0_11] : memref<8x128xf32, #tpu.memory_space<vmem>>, vector<8x128xf32>
      tpu.vector_store %arg9[%c0_10, %c0_11], %15 {strides = array<i32>} : memref<8x128xf32, #tpu.memory_space<vmem>>, vector<8x128xf32>,
      %c0_12 = arith.constant 0 : index
      %c0_13 = arith.constant 0 : index
      %17 = vector.load %arg10[%c0_12, %c0_13] : memref<8x128xf32, #tpu.memory_space<vmem>>, vector<8x128xf32>
      %18 = arith.mulf %12, %12 : vector<16x8x128xf32>
      %cst_14 = arith.constant dense<0.000000e+00> : vector<8x128xf32>
      %19 = vector.multi_reduction <add>, %18, %cst_14 [0] : vector<16x8x128xf32> to vector<8x128xf32>
      %20 = arith.addf %17, %19 : vector<8x128xf32>
      %c0_15 = arith.constant 0 : index
      %c0_16 = arith.constant 0 : index
      %21 = vector.load %arg10[%c0_15, %c0_16] : memref<8x128xf32, #tpu.memory_space<vmem>>, vector<8x128xf32>
      tpu.vector_store %arg10[%c0_15, %c0_16], %20 {strides = array<i32>} : memref<8x128xf32, #tpu.memory_space<vmem>>, vector<8x128xf32>,
      %22 = arith.truncf %11 : vector<128x128xf32> to vector<128x128xbf16>
      %23 = arith.index_cast %arg1 : i32 to index
      %c0_17 = arith.constant 0 : index
      %c0_18 = arith.constant 0 : index
      %24 = vector.load %arg8[%23, %c0_17, %c0_18] : memref<4x128x128xbf16, #tpu.memory_space<vmem>>, vector<1x128x128xbf16>
      %25 = vector.shape_cast %24 : vector<1x128x128xbf16> to vector<128x128xbf16>
      %26 = vector.shape_cast %22 : vector<128x128xbf16> to vector<1x128x128xbf16>
      tpu.vector_store %arg8[%23, %c0_17, %c0_18], %26 {strides = array<i32>} : memref<4x128x128xbf16, #tpu.memory_space<vmem>>, vector<1x128x128xbf16>,
    } else {
    }
    %c1_i32 = arith.constant 1 : i32
    %3 = arith.cmpi eq, %arg0, %c1_i32 : i32
    %4 = arith.extui %3 : i1 to i32
    %c0_i32_1 = arith.constant 0 : i32
    %5 = arith.cmpi ne, %4, %c0_i32_1 : i32
    scf.if %5 {
      %6 = arith.index_cast %arg1 : i32 to index
      %c0 = arith.constant 0 : index
      %c0_2 = arith.constant 0 : index
      %7 = vector.load %arg8[%6, %c0, %c0_2] : memref<4x128x128xbf16, #tpu.memory_space<vmem>>, vector<1x128x128xbf16>
      %8 = vector.shape_cast %7 : vector<1x128x128xbf16> to vector<128x128xbf16>
      %9 = arith.extf %8 : vector<128x128xbf16> to vector<128x128xf32>
      %c0_3 = arith.constant 0 : index
      %c0_4 = arith.constant 0 : index
      %10 = vector.load %arg9[%c0_3, %c0_4] : memref<8x128xf32, #tpu.memory_space<vmem>>, vector<8x128xf32>
      %c0_5 = arith.constant 0 : index
      %c0_6 = arith.constant 0 : index
      %11 = vector.load %arg4[%c0_5, %c0_6] : memref<128x128xf32, #tpu.memory_space<vmem>>, vector<128x128xf32>
      %cst = arith.constant dense<0.000000e+00> : vector<8x128xf32>
      %12 = tpu.matmul %10, %11, %cst {dimension_numbers = #tpu.dot_dimension_numbers<[1], [0], [0], [1], [0, 0, 1, 1], [], []>} : vector<8x128xf32>, vector<128x128xf32>, vector<8x128xf32> -> vector<8x128xf32>
      %c0_7 = arith.constant 0 : index
      %c0_8 = arith.constant 0 : index
      %13 = vector.load %arg10[%c0_7, %c0_8] : memref<8x128xf32, #tpu.memory_space<vmem>>, vector<8x128xf32>
      %c0_9 = arith.constant 0 : index
      %c0_10 = arith.constant 0 : index
      %14 = vector.load %arg4[%c0_9, %c0_10] : memref<128x128xf32, #tpu.memory_space<vmem>>, vector<128x128xf32>
      %cst_11 = arith.constant dense<0.000000e+00> : vector<8x128xf32>
      %15 = tpu.matmul %13, %14, %cst_11 {dimension_numbers = #tpu.dot_dimension_numbers<[1], [0], [0], [1], [0, 0, 1, 1], [], []>} : vector<8x128xf32>, vector<128x128xf32>, vector<8x128xf32> -> vector<8x128xf32>
      %cst_12 = arith.constant dense<0.000000e+00> : vector<128xf32>
      %16 = vector.multi_reduction <add>, %12, %cst_12 [0] : vector<8x128xf32> to vector<128xf32>
      %17 = vector.shape_cast %16 : vector<128xf32> to vector<1x128xf32>
      %cst_13 = arith.constant 0.001953125 : f32
      %18 = vector.broadcast %cst_13 : f32 to vector<1x128xf32>
      %19 = arith.mulf %17, %18 : vector<1x128xf32>
      %cst_14 = arith.constant dense<0.000000e+00> : vector<128xf32>
      %20 = vector.multi_reduction <add>, %15, %cst_14 [0] : vector<8x128xf32> to vector<128xf32>
      %21 = vector.shape_cast %20 : vector<128xf32> to vector<1x128xf32>
      %cst_15 = arith.constant 0.001953125 : f32
      %22 = vector.broadcast %cst_15 : f32 to vector<1x128xf32>
      %23 = arith.mulf %21, %22 : vector<1x128xf32>
      %24 = arith.mulf %19, %19 : vector<1x128xf32>
      %25 = arith.subf %23, %24 : vector<1x128xf32>
      %cst_16 = arith.constant 0.000000e+00 : f32
      %26 = vector.broadcast %cst_16 : f32 to vector<1x128xf32>
      %27 = arith.maximumf %25, %26 : vector<1x128xf32>
      %c0_17 = arith.constant 0 : index
      %c0_18 = arith.constant 0 : index
      %28 = vector.load %arg5[%c0_17, %c0_18] : memref<1x128xf32, #tpu.memory_space<vmem>>, vector<1x128xf32>
      %cst_19 = arith.constant 9.99999974E-6 : f32
      %29 = vector.broadcast %cst_19 : f32 to vector<1x128xf32>
      %30 = arith.addf %27, %29 : vector<1x128xf32>
      %31 = math.rsqrt %30 : vector<1x128xf32>
      %32 = arith.mulf %28, %31 : vector<1x128xf32>
      %c0_20 = arith.constant 0 : index
      %c0_21 = arith.constant 0 : index
      %33 = vector.load %arg6[%c0_20, %c0_21] : memref<1x128xf32, #tpu.memory_space<vmem>>, vector<1x128xf32>
      %34 = arith.mulf %32, %19 : vector<1x128xf32>
      %35 = arith.subf %33, %34 : vector<1x128xf32>
      %36 = vector.broadcast %32 : vector<1x128xf32> to vector<128x128xf32>
      %37 = arith.mulf %9, %36 : vector<128x128xf32>
      %38 = vector.broadcast %35 : vector<1x128xf32> to vector<128x128xf32>
      %39 = arith.addf %37, %38 : vector<128x128xf32>
      %cst_22 = arith.constant 0.000000e+00 : f32
      %40 = vector.broadcast %cst_22 : f32 to vector<128x128xf32>
      %41 = arith.maximumf %39, %40 : vector<128x128xf32>
      %42 = arith.truncf %41 : vector<128x128xf32> to vector<128x128xbf16>
      %c0_23 = arith.constant 0 : index
      %c0_24 = arith.constant 0 : index
      %43 = vector.load %arg7[%c0_23, %c0_24] : memref<128x128xbf16, #tpu.memory_space<vmem>>, vector<128x128xbf16>
      tpu.vector_store %arg7[%c0_23, %c0_24], %42 {strides = array<i32>} : memref<128x128xbf16, #tpu.memory_space<vmem>>, vector<128x128xbf16>,
    } else {
    }
    return
  }
  func.func @transform_0(%arg0: i32, %arg1: i32) -> (i32, i32) {
    %c1_i32 = arith.constant 1 : i32
    %0 = arith.subi %c1_i32, %arg0 : i32
    %1 = arith.muli %arg1, %0 : i32
    %c3_i32 = arith.constant 3 : i32
    %2 = arith.muli %c3_i32, %arg0 : i32
    %3 = arith.addi %1, %2 : i32
    %c0_i32 = arith.constant 0 : i32
    %c0_i32_0 = arith.constant 0 : i32
    return %3, %c0_i32 : i32, i32
  }
  func.func @transform_1(%arg0: i32, %arg1: i32) -> (i32, i32) {
    %c0_i32 = arith.constant 0 : i32
    %c0_i32_0 = arith.constant 0 : i32
    %c0_i32_1 = arith.constant 0 : i32
    return %c0_i32, %c0_i32_0 : i32, i32
  }
  func.func @transform_2(%arg0: i32, %arg1: i32) -> (i32, i32) {
    %c0_i32 = arith.constant 0 : i32
    %c0_i32_0 = arith.constant 0 : i32
    %c0_i32_1 = arith.constant 0 : i32
    return %c0_i32, %c0_i32_0 : i32, i32
  }
  func.func @transform_3(%arg0: i32, %arg1: i32) -> (i32, i32) {
    %c0_i32 = arith.constant 0 : i32
    %c0_i32_0 = arith.constant 0 : i32
    %c0_i32_1 = arith.constant 0 : i32
    return %c0_i32, %c0_i32_0 : i32, i32
  }
  func.func @transform_4(%arg0: i32, %arg1: i32) -> (i32, i32) {
    %c0_i32 = arith.constant 0 : i32
    %c0_i32_0 = arith.constant 0 : i32
    %c0_i32_1 = arith.constant 0 : i32
    return %c0_i32, %c0_i32_0 : i32, i32
  }
  func.func @transform_5(%arg0: i32, %arg1: i32) -> (i32, i32) {
    %0 = arith.muli %arg0, %arg1 : i32
    %c0_i32 = arith.constant 0 : i32
    %c0_i32_0 = arith.constant 0 : i32
    return %0, %c0_i32 : i32, i32
  }
}

module attributes {stable_mosaic.version = 11 : i64} {
  func.func @kernel(%arg0: i32, %arg1: i32, %arg2: memref<32x384xbf16, #tpu.memory_space<vmem>>, %arg3: memref<384x128xbf16, #tpu.memory_space<vmem>>, %arg4: memref<128x128xf32, #tpu.memory_space<vmem>>, %arg5: memref<1x128xf32, #tpu.memory_space<vmem>>, %arg6: memref<1x128xf32, #tpu.memory_space<vmem>>, %arg7: memref<32x128xbf16, #tpu.memory_space<vmem>>, %arg8: memref<4x32x128xbf16, #tpu.memory_space<vmem>>, %arg9: memref<8x128xf32, #tpu.memory_space<vmem>>, %arg10: memref<8x128xf32, #tpu.memory_space<vmem>>) attributes {dimension_semantics = [#tpu.dimension_semantics<arbitrary>, #tpu.dimension_semantics<arbitrary>], iteration_bounds = array<i64: 2, 4>, scalar_prefetch = 0 : i64, scratch_operands = 3 : i64, tpu.core_type = #tpu.core_type<tc>, window_params = [{transform_indices = @transform_0, window_bounds = array<i64: 32, 384>}, {pipeline_mode = #tpu.pipeline_mode<synchronous>, transform_indices = @transform_1, window_bounds = array<i64: 384, 128>}, {pipeline_mode = #tpu.pipeline_mode<synchronous>, transform_indices = @transform_2, window_bounds = array<i64: 128, 128>}, {pipeline_mode = #tpu.pipeline_mode<synchronous>, transform_indices = @transform_3, window_bounds = array<i64: 1, 128>}, {pipeline_mode = #tpu.pipeline_mode<synchronous>, transform_indices = @transform_4, window_bounds = array<i64: 1, 128>}, {transform_indices = @transform_5, window_bounds = array<i64: 32, 128>}]} {
    %c0_i32 = arith.constant 0 : i32
    %0 = arith.cmpi eq, %arg0, %c0_i32 : i32
    %1 = arith.extui %0 : i1 to i32
    %c0_i32_0 = arith.constant 0 : i32
    %2 = arith.cmpi ne, %1, %c0_i32_0 : i32
    scf.if %2 {
      %c0_i32_2 = arith.constant 0 : i32
      %6 = arith.cmpi eq, %arg1, %c0_i32_2 : i32
      %7 = arith.extui %6 : i1 to i32
      %c0_i32_3 = arith.constant 0 : i32
      %8 = arith.cmpi ne, %7, %c0_i32_3 : i32
      scf.if %8 {
        %cst_19 = arith.constant 0.000000e+00 : f32
        %27 = vector.broadcast %cst_19 : f32 to vector<8x128xf32>
        %c0_20 = arith.constant 0 : index
        %c0_21 = arith.constant 0 : index
        %28 = vector.load %arg9[%c0_20, %c0_21] : memref<8x128xf32, #tpu.memory_space<vmem>>, vector<8x128xf32>
        tpu.vector_store %arg9[%c0_20, %c0_21], %27 {strides = array<i32>} : memref<8x128xf32, #tpu.memory_space<vmem>>, vector<8x128xf32>,
        %cst_22 = arith.constant 0.000000e+00 : f32
        %29 = vector.broadcast %cst_22 : f32 to vector<8x128xf32>
        %c0_23 = arith.constant 0 : index
        %c0_24 = arith.constant 0 : index
        %30 = vector.load %arg10[%c0_23, %c0_24] : memref<8x128xf32, #tpu.memory_space<vmem>>, vector<8x128xf32>
        tpu.vector_store %arg10[%c0_23, %c0_24], %29 {strides = array<i32>} : memref<8x128xf32, #tpu.memory_space<vmem>>, vector<8x128xf32>,
      } else {
      }
      %c0 = arith.constant 0 : index
      %c0_4 = arith.constant 0 : index
      %9 = vector.load %arg2[%c0, %c0_4] : memref<32x384xbf16, #tpu.memory_space<vmem>>, vector<32x384xbf16>
      %c0_5 = arith.constant 0 : index
      %c0_6 = arith.constant 0 : index
      %10 = vector.load %arg3[%c0_5, %c0_6] : memref<384x128xbf16, #tpu.memory_space<vmem>>, vector<384x128xbf16>
      %cst = arith.constant dense<0.000000e+00> : vector<32x128xf32>
      %11 = tpu.matmul %9, %10, %cst {dimension_numbers = #tpu.dot_dimension_numbers<[1], [0], [0], [1], [0, 0, 1, 1], [], []>} : vector<32x384xbf16>, vector<384x128xbf16>, vector<32x128xf32> -> vector<32x128xf32>
      %12 = vector.shape_cast %11 : vector<32x128xf32> to vector<4x8x128xf32>
      %c0_7 = arith.constant 0 : index
      %c0_8 = arith.constant 0 : index
      %13 = vector.load %arg9[%c0_7, %c0_8] : memref<8x128xf32, #tpu.memory_space<vmem>>, vector<8x128xf32>
      %cst_9 = arith.constant dense<0.000000e+00> : vector<8x128xf32>
      %14 = vector.multi_reduction <add>, %12, %cst_9 [0] : vector<4x8x128xf32> to vector<8x128xf32>
      %15 = arith.addf %13, %14 : vector<8x128xf32>
      %c0_10 = arith.constant 0 : index
      %c0_11 = arith.constant 0 : index
      %16 = vector.load %arg9[%c0_10, %c0_11] : memref<8x128xf32, #tpu.memory_space<vmem>>, vector<8x128xf32>
      tpu.vector_store %arg9[%c0_10, %c0_11], %15 {strides = array<i32>} : memref<8x128xf32, #tpu.memory_space<vmem>>, vector<8x128xf32>,
      %c0_12 = arith.constant 0 : index
      %c0_13 = arith.constant 0 : index
      %17 = vector.load %arg10[%c0_12, %c0_13] : memref<8x128xf32, #tpu.memory_space<vmem>>, vector<8x128xf32>
      %18 = arith.mulf %12, %12 : vector<4x8x128xf32>
      %cst_14 = arith.constant dense<0.000000e+00> : vector<8x128xf32>
      %19 = vector.multi_reduction <add>, %18, %cst_14 [0] : vector<4x8x128xf32> to vector<8x128xf32>
      %20 = arith.addf %17, %19 : vector<8x128xf32>
      %c0_15 = arith.constant 0 : index
      %c0_16 = arith.constant 0 : index
      %21 = vector.load %arg10[%c0_15, %c0_16] : memref<8x128xf32, #tpu.memory_space<vmem>>, vector<8x128xf32>
      tpu.vector_store %arg10[%c0_15, %c0_16], %20 {strides = array<i32>} : memref<8x128xf32, #tpu.memory_space<vmem>>, vector<8x128xf32>,
      %22 = arith.truncf %11 : vector<32x128xf32> to vector<32x128xbf16>
      %23 = arith.index_cast %arg1 : i32 to index
      %c0_17 = arith.constant 0 : index
      %c0_18 = arith.constant 0 : index
      %24 = vector.load %arg8[%23, %c0_17, %c0_18] : memref<4x32x128xbf16, #tpu.memory_space<vmem>>, vector<1x32x128xbf16>
      %25 = vector.shape_cast %24 : vector<1x32x128xbf16> to vector<32x128xbf16>
      %26 = vector.shape_cast %22 : vector<32x128xbf16> to vector<1x32x128xbf16>
      tpu.vector_store %arg8[%23, %c0_17, %c0_18], %26 {strides = array<i32>} : memref<4x32x128xbf16, #tpu.memory_space<vmem>>, vector<1x32x128xbf16>,
    } else {
    }
    %c1_i32 = arith.constant 1 : i32
    %3 = arith.cmpi eq, %arg0, %c1_i32 : i32
    %4 = arith.extui %3 : i1 to i32
    %c0_i32_1 = arith.constant 0 : i32
    %5 = arith.cmpi ne, %4, %c0_i32_1 : i32
    scf.if %5 {
      %6 = arith.index_cast %arg1 : i32 to index
      %c0 = arith.constant 0 : index
      %c0_2 = arith.constant 0 : index
      %7 = vector.load %arg8[%6, %c0, %c0_2] : memref<4x32x128xbf16, #tpu.memory_space<vmem>>, vector<1x32x128xbf16>
      %8 = vector.shape_cast %7 : vector<1x32x128xbf16> to vector<32x128xbf16>
      %9 = arith.extf %8 : vector<32x128xbf16> to vector<32x128xf32>
      %c0_3 = arith.constant 0 : index
      %c0_4 = arith.constant 0 : index
      %10 = vector.load %arg9[%c0_3, %c0_4] : memref<8x128xf32, #tpu.memory_space<vmem>>, vector<8x128xf32>
      %c0_5 = arith.constant 0 : index
      %c0_6 = arith.constant 0 : index
      %11 = vector.load %arg4[%c0_5, %c0_6] : memref<128x128xf32, #tpu.memory_space<vmem>>, vector<128x128xf32>
      %cst = arith.constant dense<0.000000e+00> : vector<8x128xf32>
      %12 = tpu.matmul %10, %11, %cst {dimension_numbers = #tpu.dot_dimension_numbers<[1], [0], [0], [1], [0, 0, 1, 1], [], []>} : vector<8x128xf32>, vector<128x128xf32>, vector<8x128xf32> -> vector<8x128xf32>
      %c0_7 = arith.constant 0 : index
      %c0_8 = arith.constant 0 : index
      %13 = vector.load %arg10[%c0_7, %c0_8] : memref<8x128xf32, #tpu.memory_space<vmem>>, vector<8x128xf32>
      %c0_9 = arith.constant 0 : index
      %c0_10 = arith.constant 0 : index
      %14 = vector.load %arg4[%c0_9, %c0_10] : memref<128x128xf32, #tpu.memory_space<vmem>>, vector<128x128xf32>
      %cst_11 = arith.constant dense<0.000000e+00> : vector<8x128xf32>
      %15 = tpu.matmul %13, %14, %cst_11 {dimension_numbers = #tpu.dot_dimension_numbers<[1], [0], [0], [1], [0, 0, 1, 1], [], []>} : vector<8x128xf32>, vector<128x128xf32>, vector<8x128xf32> -> vector<8x128xf32>
      %cst_12 = arith.constant dense<0.000000e+00> : vector<128xf32>
      %16 = vector.multi_reduction <add>, %12, %cst_12 [0] : vector<8x128xf32> to vector<128xf32>
      %17 = vector.shape_cast %16 : vector<128xf32> to vector<1x128xf32>
      %cst_13 = arith.constant 7.812500e-03 : f32
      %18 = vector.broadcast %cst_13 : f32 to vector<1x128xf32>
      %19 = arith.mulf %17, %18 : vector<1x128xf32>
      %cst_14 = arith.constant dense<0.000000e+00> : vector<128xf32>
      %20 = vector.multi_reduction <add>, %15, %cst_14 [0] : vector<8x128xf32> to vector<128xf32>
      %21 = vector.shape_cast %20 : vector<128xf32> to vector<1x128xf32>
      %cst_15 = arith.constant 7.812500e-03 : f32
      %22 = vector.broadcast %cst_15 : f32 to vector<1x128xf32>
      %23 = arith.mulf %21, %22 : vector<1x128xf32>
      %24 = arith.mulf %19, %19 : vector<1x128xf32>
      %25 = arith.subf %23, %24 : vector<1x128xf32>
      %cst_16 = arith.constant 0.000000e+00 : f32
      %26 = vector.broadcast %cst_16 : f32 to vector<1x128xf32>
      %27 = arith.maximumf %25, %26 : vector<1x128xf32>
      %c0_17 = arith.constant 0 : index
      %c0_18 = arith.constant 0 : index
      %28 = vector.load %arg5[%c0_17, %c0_18] : memref<1x128xf32, #tpu.memory_space<vmem>>, vector<1x128xf32>
      %cst_19 = arith.constant 9.99999974E-6 : f32
      %29 = vector.broadcast %cst_19 : f32 to vector<1x128xf32>
      %30 = arith.addf %27, %29 : vector<1x128xf32>
      %31 = math.rsqrt %30 : vector<1x128xf32>
      %32 = arith.mulf %28, %31 : vector<1x128xf32>
      %c0_20 = arith.constant 0 : index
      %c0_21 = arith.constant 0 : index
      %33 = vector.load %arg6[%c0_20, %c0_21] : memref<1x128xf32, #tpu.memory_space<vmem>>, vector<1x128xf32>
      %34 = arith.mulf %32, %19 : vector<1x128xf32>
      %35 = arith.subf %33, %34 : vector<1x128xf32>
      %36 = vector.broadcast %32 : vector<1x128xf32> to vector<32x128xf32>
      %37 = arith.mulf %9, %36 : vector<32x128xf32>
      %38 = vector.broadcast %35 : vector<1x128xf32> to vector<32x128xf32>
      %39 = arith.addf %37, %38 : vector<32x128xf32>
      %cst_22 = arith.constant 0.000000e+00 : f32
      %40 = vector.broadcast %cst_22 : f32 to vector<32x128xf32>
      %41 = arith.maximumf %39, %40 : vector<32x128xf32>
      %42 = arith.truncf %41 : vector<32x128xf32> to vector<32x128xbf16>
      %c0_23 = arith.constant 0 : index
      %c0_24 = arith.constant 0 : index
      %43 = vector.load %arg7[%c0_23, %c0_24] : memref<32x128xbf16, #tpu.memory_space<vmem>>, vector<32x128xbf16>
      tpu.vector_store %arg7[%c0_23, %c0_24], %42 {strides = array<i32>} : memref<32x128xbf16, #tpu.memory_space<vmem>>, vector<32x128xbf16>,
    } else {
    }
    return
  }
  func.func @transform_0(%arg0: i32, %arg1: i32) -> (i32, i32) {
    %c1_i32 = arith.constant 1 : i32
    %0 = arith.subi %c1_i32, %arg0 : i32
    %1 = arith.muli %arg1, %0 : i32
    %c3_i32 = arith.constant 3 : i32
    %2 = arith.muli %c3_i32, %arg0 : i32
    %3 = arith.addi %1, %2 : i32
    %c0_i32 = arith.constant 0 : i32
    %c0_i32_0 = arith.constant 0 : i32
    return %3, %c0_i32 : i32, i32
  }
  func.func @transform_1(%arg0: i32, %arg1: i32) -> (i32, i32) {
    %c0_i32 = arith.constant 0 : i32
    %c0_i32_0 = arith.constant 0 : i32
    %c0_i32_1 = arith.constant 0 : i32
    return %c0_i32, %c0_i32_0 : i32, i32
  }
  func.func @transform_2(%arg0: i32, %arg1: i32) -> (i32, i32) {
    %c0_i32 = arith.constant 0 : i32
    %c0_i32_0 = arith.constant 0 : i32
    %c0_i32_1 = arith.constant 0 : i32
    return %c0_i32, %c0_i32_0 : i32, i32
  }
  func.func @transform_3(%arg0: i32, %arg1: i32) -> (i32, i32) {
    %c0_i32 = arith.constant 0 : i32
    %c0_i32_0 = arith.constant 0 : i32
    %c0_i32_1 = arith.constant 0 : i32
    return %c0_i32, %c0_i32_0 : i32, i32
  }
  func.func @transform_4(%arg0: i32, %arg1: i32) -> (i32, i32) {
    %c0_i32 = arith.constant 0 : i32
    %c0_i32_0 = arith.constant 0 : i32
    %c0_i32_1 = arith.constant 0 : i32
    return %c0_i32, %c0_i32_0 : i32, i32
  }
  func.func @transform_5(%arg0: i32, %arg1: i32) -> (i32, i32) {
    %0 = arith.muli %arg0, %arg1 : i32
    %c0_i32 = arith.constant 0 : i32
    %c0_i32_0 = arith.constant 0 : i32
    return %0, %c0_i32 : i32, i32
  }
}

module attributes {stable_mosaic.version = 11 : i64} {
  func.func @kernel(%arg0: i32, %arg1: i32, %arg2: memref<32x432xbf16, #tpu.memory_space<vmem>>, %arg3: memref<432x128xbf16, #tpu.memory_space<vmem>>, %arg4: memref<128x128xf32, #tpu.memory_space<vmem>>, %arg5: memref<1x128xf32, #tpu.memory_space<vmem>>, %arg6: memref<1x128xf32, #tpu.memory_space<vmem>>, %arg7: memref<32x128xbf16, #tpu.memory_space<vmem>>, %arg8: memref<4x32x128xbf16, #tpu.memory_space<vmem>>, %arg9: memref<8x128xf32, #tpu.memory_space<vmem>>, %arg10: memref<8x128xf32, #tpu.memory_space<vmem>>) attributes {dimension_semantics = [#tpu.dimension_semantics<arbitrary>, #tpu.dimension_semantics<arbitrary>], iteration_bounds = array<i64: 2, 4>, scalar_prefetch = 0 : i64, scratch_operands = 3 : i64, tpu.core_type = #tpu.core_type<tc>, window_params = [{transform_indices = @transform_0, window_bounds = array<i64: 32, 432>}, {pipeline_mode = #tpu.pipeline_mode<synchronous>, transform_indices = @transform_1, window_bounds = array<i64: 432, 128>}, {pipeline_mode = #tpu.pipeline_mode<synchronous>, transform_indices = @transform_2, window_bounds = array<i64: 128, 128>}, {pipeline_mode = #tpu.pipeline_mode<synchronous>, transform_indices = @transform_3, window_bounds = array<i64: 1, 128>}, {pipeline_mode = #tpu.pipeline_mode<synchronous>, transform_indices = @transform_4, window_bounds = array<i64: 1, 128>}, {transform_indices = @transform_5, window_bounds = array<i64: 32, 128>}]} {
    %c0_i32 = arith.constant 0 : i32
    %0 = arith.cmpi eq, %arg0, %c0_i32 : i32
    %1 = arith.extui %0 : i1 to i32
    %c0_i32_0 = arith.constant 0 : i32
    %2 = arith.cmpi ne, %1, %c0_i32_0 : i32
    scf.if %2 {
      %c0_i32_2 = arith.constant 0 : i32
      %6 = arith.cmpi eq, %arg1, %c0_i32_2 : i32
      %7 = arith.extui %6 : i1 to i32
      %c0_i32_3 = arith.constant 0 : i32
      %8 = arith.cmpi ne, %7, %c0_i32_3 : i32
      scf.if %8 {
        %cst_19 = arith.constant 0.000000e+00 : f32
        %27 = vector.broadcast %cst_19 : f32 to vector<8x128xf32>
        %c0_20 = arith.constant 0 : index
        %c0_21 = arith.constant 0 : index
        %28 = vector.load %arg9[%c0_20, %c0_21] : memref<8x128xf32, #tpu.memory_space<vmem>>, vector<8x128xf32>
        tpu.vector_store %arg9[%c0_20, %c0_21], %27 {strides = array<i32>} : memref<8x128xf32, #tpu.memory_space<vmem>>, vector<8x128xf32>,
        %cst_22 = arith.constant 0.000000e+00 : f32
        %29 = vector.broadcast %cst_22 : f32 to vector<8x128xf32>
        %c0_23 = arith.constant 0 : index
        %c0_24 = arith.constant 0 : index
        %30 = vector.load %arg10[%c0_23, %c0_24] : memref<8x128xf32, #tpu.memory_space<vmem>>, vector<8x128xf32>
        tpu.vector_store %arg10[%c0_23, %c0_24], %29 {strides = array<i32>} : memref<8x128xf32, #tpu.memory_space<vmem>>, vector<8x128xf32>,
      } else {
      }
      %c0 = arith.constant 0 : index
      %c0_4 = arith.constant 0 : index
      %9 = vector.load %arg2[%c0, %c0_4] : memref<32x432xbf16, #tpu.memory_space<vmem>>, vector<32x432xbf16>
      %c0_5 = arith.constant 0 : index
      %c0_6 = arith.constant 0 : index
      %10 = vector.load %arg3[%c0_5, %c0_6] : memref<432x128xbf16, #tpu.memory_space<vmem>>, vector<432x128xbf16>
      %cst = arith.constant dense<0.000000e+00> : vector<32x128xf32>
      %11 = tpu.matmul %9, %10, %cst {dimension_numbers = #tpu.dot_dimension_numbers<[1], [0], [0], [1], [0, 0, 1, 1], [], []>} : vector<32x432xbf16>, vector<432x128xbf16>, vector<32x128xf32> -> vector<32x128xf32>
      %12 = vector.shape_cast %11 : vector<32x128xf32> to vector<4x8x128xf32>
      %c0_7 = arith.constant 0 : index
      %c0_8 = arith.constant 0 : index
      %13 = vector.load %arg9[%c0_7, %c0_8] : memref<8x128xf32, #tpu.memory_space<vmem>>, vector<8x128xf32>
      %cst_9 = arith.constant dense<0.000000e+00> : vector<8x128xf32>
      %14 = vector.multi_reduction <add>, %12, %cst_9 [0] : vector<4x8x128xf32> to vector<8x128xf32>
      %15 = arith.addf %13, %14 : vector<8x128xf32>
      %c0_10 = arith.constant 0 : index
      %c0_11 = arith.constant 0 : index
      %16 = vector.load %arg9[%c0_10, %c0_11] : memref<8x128xf32, #tpu.memory_space<vmem>>, vector<8x128xf32>
      tpu.vector_store %arg9[%c0_10, %c0_11], %15 {strides = array<i32>} : memref<8x128xf32, #tpu.memory_space<vmem>>, vector<8x128xf32>,
      %c0_12 = arith.constant 0 : index
      %c0_13 = arith.constant 0 : index
      %17 = vector.load %arg10[%c0_12, %c0_13] : memref<8x128xf32, #tpu.memory_space<vmem>>, vector<8x128xf32>
      %18 = arith.mulf %12, %12 : vector<4x8x128xf32>
      %cst_14 = arith.constant dense<0.000000e+00> : vector<8x128xf32>
      %19 = vector.multi_reduction <add>, %18, %cst_14 [0] : vector<4x8x128xf32> to vector<8x128xf32>
      %20 = arith.addf %17, %19 : vector<8x128xf32>
      %c0_15 = arith.constant 0 : index
      %c0_16 = arith.constant 0 : index
      %21 = vector.load %arg10[%c0_15, %c0_16] : memref<8x128xf32, #tpu.memory_space<vmem>>, vector<8x128xf32>
      tpu.vector_store %arg10[%c0_15, %c0_16], %20 {strides = array<i32>} : memref<8x128xf32, #tpu.memory_space<vmem>>, vector<8x128xf32>,
      %22 = arith.truncf %11 : vector<32x128xf32> to vector<32x128xbf16>
      %23 = arith.index_cast %arg1 : i32 to index
      %c0_17 = arith.constant 0 : index
      %c0_18 = arith.constant 0 : index
      %24 = vector.load %arg8[%23, %c0_17, %c0_18] : memref<4x32x128xbf16, #tpu.memory_space<vmem>>, vector<1x32x128xbf16>
      %25 = vector.shape_cast %24 : vector<1x32x128xbf16> to vector<32x128xbf16>
      %26 = vector.shape_cast %22 : vector<32x128xbf16> to vector<1x32x128xbf16>
      tpu.vector_store %arg8[%23, %c0_17, %c0_18], %26 {strides = array<i32>} : memref<4x32x128xbf16, #tpu.memory_space<vmem>>, vector<1x32x128xbf16>,
    } else {
    }
    %c1_i32 = arith.constant 1 : i32
    %3 = arith.cmpi eq, %arg0, %c1_i32 : i32
    %4 = arith.extui %3 : i1 to i32
    %c0_i32_1 = arith.constant 0 : i32
    %5 = arith.cmpi ne, %4, %c0_i32_1 : i32
    scf.if %5 {
      %6 = arith.index_cast %arg1 : i32 to index
      %c0 = arith.constant 0 : index
      %c0_2 = arith.constant 0 : index
      %7 = vector.load %arg8[%6, %c0, %c0_2] : memref<4x32x128xbf16, #tpu.memory_space<vmem>>, vector<1x32x128xbf16>
      %8 = vector.shape_cast %7 : vector<1x32x128xbf16> to vector<32x128xbf16>
      %9 = arith.extf %8 : vector<32x128xbf16> to vector<32x128xf32>
      %c0_3 = arith.constant 0 : index
      %c0_4 = arith.constant 0 : index
      %10 = vector.load %arg9[%c0_3, %c0_4] : memref<8x128xf32, #tpu.memory_space<vmem>>, vector<8x128xf32>
      %c0_5 = arith.constant 0 : index
      %c0_6 = arith.constant 0 : index
      %11 = vector.load %arg4[%c0_5, %c0_6] : memref<128x128xf32, #tpu.memory_space<vmem>>, vector<128x128xf32>
      %cst = arith.constant dense<0.000000e+00> : vector<8x128xf32>
      %12 = tpu.matmul %10, %11, %cst {dimension_numbers = #tpu.dot_dimension_numbers<[1], [0], [0], [1], [0, 0, 1, 1], [], []>} : vector<8x128xf32>, vector<128x128xf32>, vector<8x128xf32> -> vector<8x128xf32>
      %c0_7 = arith.constant 0 : index
      %c0_8 = arith.constant 0 : index
      %13 = vector.load %arg10[%c0_7, %c0_8] : memref<8x128xf32, #tpu.memory_space<vmem>>, vector<8x128xf32>
      %c0_9 = arith.constant 0 : index
      %c0_10 = arith.constant 0 : index
      %14 = vector.load %arg4[%c0_9, %c0_10] : memref<128x128xf32, #tpu.memory_space<vmem>>, vector<128x128xf32>
      %cst_11 = arith.constant dense<0.000000e+00> : vector<8x128xf32>
      %15 = tpu.matmul %13, %14, %cst_11 {dimension_numbers = #tpu.dot_dimension_numbers<[1], [0], [0], [1], [0, 0, 1, 1], [], []>} : vector<8x128xf32>, vector<128x128xf32>, vector<8x128xf32> -> vector<8x128xf32>
      %cst_12 = arith.constant dense<0.000000e+00> : vector<128xf32>
      %16 = vector.multi_reduction <add>, %12, %cst_12 [0] : vector<8x128xf32> to vector<128xf32>
      %17 = vector.shape_cast %16 : vector<128xf32> to vector<1x128xf32>
      %cst_13 = arith.constant 0.001953125 : f32
      %18 = vector.broadcast %cst_13 : f32 to vector<1x128xf32>
      %19 = arith.mulf %17, %18 : vector<1x128xf32>
      %cst_14 = arith.constant dense<0.000000e+00> : vector<128xf32>
      %20 = vector.multi_reduction <add>, %15, %cst_14 [0] : vector<8x128xf32> to vector<128xf32>
      %21 = vector.shape_cast %20 : vector<128xf32> to vector<1x128xf32>
      %cst_15 = arith.constant 0.001953125 : f32
      %22 = vector.broadcast %cst_15 : f32 to vector<1x128xf32>
      %23 = arith.mulf %21, %22 : vector<1x128xf32>
      %24 = arith.mulf %19, %19 : vector<1x128xf32>
      %25 = arith.subf %23, %24 : vector<1x128xf32>
      %cst_16 = arith.constant 0.000000e+00 : f32
      %26 = vector.broadcast %cst_16 : f32 to vector<1x128xf32>
      %27 = arith.maximumf %25, %26 : vector<1x128xf32>
      %c0_17 = arith.constant 0 : index
      %c0_18 = arith.constant 0 : index
      %28 = vector.load %arg5[%c0_17, %c0_18] : memref<1x128xf32, #tpu.memory_space<vmem>>, vector<1x128xf32>
      %cst_19 = arith.constant 9.99999974E-6 : f32
      %29 = vector.broadcast %cst_19 : f32 to vector<1x128xf32>
      %30 = arith.addf %27, %29 : vector<1x128xf32>
      %31 = math.rsqrt %30 : vector<1x128xf32>
      %32 = arith.mulf %28, %31 : vector<1x128xf32>
      %c0_20 = arith.constant 0 : index
      %c0_21 = arith.constant 0 : index
      %33 = vector.load %arg6[%c0_20, %c0_21] : memref<1x128xf32, #tpu.memory_space<vmem>>, vector<1x128xf32>
      %34 = arith.mulf %32, %19 : vector<1x128xf32>
      %35 = arith.subf %33, %34 : vector<1x128xf32>
      %36 = vector.broadcast %32 : vector<1x128xf32> to vector<32x128xf32>
      %37 = arith.mulf %9, %36 : vector<32x128xf32>
      %38 = vector.broadcast %35 : vector<1x128xf32> to vector<32x128xf32>
      %39 = arith.addf %37, %38 : vector<32x128xf32>
      %cst_22 = arith.constant 0.000000e+00 : f32
      %40 = vector.broadcast %cst_22 : f32 to vector<32x128xf32>
      %41 = arith.maximumf %39, %40 : vector<32x128xf32>
      %42 = arith.truncf %41 : vector<32x128xf32> to vector<32x128xbf16>
      %c0_23 = arith.constant 0 : index
      %c0_24 = arith.constant 0 : index
      %43 = vector.load %arg7[%c0_23, %c0_24] : memref<32x128xbf16, #tpu.memory_space<vmem>>, vector<32x128xbf16>
      tpu.vector_store %arg7[%c0_23, %c0_24], %42 {strides = array<i32>} : memref<32x128xbf16, #tpu.memory_space<vmem>>, vector<32x128xbf16>,
    } else {
    }
    return
  }
  func.func @transform_0(%arg0: i32, %arg1: i32) -> (i32, i32) {
    %c1_i32 = arith.constant 1 : i32
    %0 = arith.subi %c1_i32, %arg0 : i32
    %1 = arith.muli %arg1, %0 : i32
    %c3_i32 = arith.constant 3 : i32
    %2 = arith.muli %c3_i32, %arg0 : i32
    %3 = arith.addi %1, %2 : i32
    %c0_i32 = arith.constant 0 : i32
    %c0_i32_0 = arith.constant 0 : i32
    return %3, %c0_i32 : i32, i32
  }
  func.func @transform_1(%arg0: i32, %arg1: i32) -> (i32, i32) {
    %c0_i32 = arith.constant 0 : i32
    %c0_i32_0 = arith.constant 0 : i32
    %c0_i32_1 = arith.constant 0 : i32
    return %c0_i32, %c0_i32_0 : i32, i32
  }
  func.func @transform_2(%arg0: i32, %arg1: i32) -> (i32, i32) {
    %c0_i32 = arith.constant 0 : i32
    %c0_i32_0 = arith.constant 0 : i32
    %c0_i32_1 = arith.constant 0 : i32
    return %c0_i32, %c0_i32_0 : i32, i32
  }
  func.func @transform_3(%arg0: i32, %arg1: i32) -> (i32, i32) {
    %c0_i32 = arith.constant 0 : i32
    %c0_i32_0 = arith.constant 0 : i32
    %c0_i32_1 = arith.constant 0 : i32
    return %c0_i32, %c0_i32_0 : i32, i32
  }
  func.func @transform_4(%arg0: i32, %arg1: i32) -> (i32, i32) {
    %c0_i32 = arith.constant 0 : i32
    %c0_i32_0 = arith.constant 0 : i32
    %c0_i32_1 = arith.constant 0 : i32
    return %c0_i32, %c0_i32_0 : i32, i32
  }
  func.func @transform_5(%arg0: i32, %arg1: i32) -> (i32, i32) {
    %0 = arith.muli %arg0, %arg1 : i32
    %c0_i32 = arith.constant 0 : i32
    %c0_i32_0 = arith.constant 0 : i32
    return %0, %c0_i32 : i32, i32
  }
}

module attributes {stable_mosaic.version = 11 : i64} {
  func.func @kernel(%arg0: i32, %arg1: i32, %arg2: memref<128x216xbf16, #tpu.memory_space<vmem>>, %arg3: memref<216x128xbf16, #tpu.memory_space<vmem>>, %arg4: memref<128x128xf32, #tpu.memory_space<vmem>>, %arg5: memref<1x128xf32, #tpu.memory_space<vmem>>, %arg6: memref<1x128xf32, #tpu.memory_space<vmem>>, %arg7: memref<128x128xbf16, #tpu.memory_space<vmem>>, %arg8: memref<4x128x128xbf16, #tpu.memory_space<vmem>>, %arg9: memref<8x128xf32, #tpu.memory_space<vmem>>, %arg10: memref<8x128xf32, #tpu.memory_space<vmem>>) attributes {dimension_semantics = [#tpu.dimension_semantics<arbitrary>, #tpu.dimension_semantics<arbitrary>], iteration_bounds = array<i64: 2, 4>, scalar_prefetch = 0 : i64, scratch_operands = 3 : i64, tpu.core_type = #tpu.core_type<tc>, window_params = [{transform_indices = @transform_0, window_bounds = array<i64: 128, 216>}, {pipeline_mode = #tpu.pipeline_mode<synchronous>, transform_indices = @transform_1, window_bounds = array<i64: 216, 128>}, {pipeline_mode = #tpu.pipeline_mode<synchronous>, transform_indices = @transform_2, window_bounds = array<i64: 128, 128>}, {pipeline_mode = #tpu.pipeline_mode<synchronous>, transform_indices = @transform_3, window_bounds = array<i64: 1, 128>}, {pipeline_mode = #tpu.pipeline_mode<synchronous>, transform_indices = @transform_4, window_bounds = array<i64: 1, 128>}, {transform_indices = @transform_5, window_bounds = array<i64: 128, 128>}]} {
    %c0_i32 = arith.constant 0 : i32
    %0 = arith.cmpi eq, %arg0, %c0_i32 : i32
    %1 = arith.extui %0 : i1 to i32
    %c0_i32_0 = arith.constant 0 : i32
    %2 = arith.cmpi ne, %1, %c0_i32_0 : i32
    scf.if %2 {
      %c0_i32_2 = arith.constant 0 : i32
      %6 = arith.cmpi eq, %arg1, %c0_i32_2 : i32
      %7 = arith.extui %6 : i1 to i32
      %c0_i32_3 = arith.constant 0 : i32
      %8 = arith.cmpi ne, %7, %c0_i32_3 : i32
      scf.if %8 {
        %cst_19 = arith.constant 0.000000e+00 : f32
        %27 = vector.broadcast %cst_19 : f32 to vector<8x128xf32>
        %c0_20 = arith.constant 0 : index
        %c0_21 = arith.constant 0 : index
        %28 = vector.load %arg9[%c0_20, %c0_21] : memref<8x128xf32, #tpu.memory_space<vmem>>, vector<8x128xf32>
        tpu.vector_store %arg9[%c0_20, %c0_21], %27 {strides = array<i32>} : memref<8x128xf32, #tpu.memory_space<vmem>>, vector<8x128xf32>,
        %cst_22 = arith.constant 0.000000e+00 : f32
        %29 = vector.broadcast %cst_22 : f32 to vector<8x128xf32>
        %c0_23 = arith.constant 0 : index
        %c0_24 = arith.constant 0 : index
        %30 = vector.load %arg10[%c0_23, %c0_24] : memref<8x128xf32, #tpu.memory_space<vmem>>, vector<8x128xf32>
        tpu.vector_store %arg10[%c0_23, %c0_24], %29 {strides = array<i32>} : memref<8x128xf32, #tpu.memory_space<vmem>>, vector<8x128xf32>,
      } else {
      }
      %c0 = arith.constant 0 : index
      %c0_4 = arith.constant 0 : index
      %9 = vector.load %arg2[%c0, %c0_4] : memref<128x216xbf16, #tpu.memory_space<vmem>>, vector<128x216xbf16>
      %c0_5 = arith.constant 0 : index
      %c0_6 = arith.constant 0 : index
      %10 = vector.load %arg3[%c0_5, %c0_6] : memref<216x128xbf16, #tpu.memory_space<vmem>>, vector<216x128xbf16>
      %cst = arith.constant dense<0.000000e+00> : vector<128x128xf32>
      %11 = tpu.matmul %9, %10, %cst {dimension_numbers = #tpu.dot_dimension_numbers<[1], [0], [0], [1], [0, 0, 1, 1], [], []>} : vector<128x216xbf16>, vector<216x128xbf16>, vector<128x128xf32> -> vector<128x128xf32>
      %12 = vector.shape_cast %11 : vector<128x128xf32> to vector<16x8x128xf32>
      %c0_7 = arith.constant 0 : index
      %c0_8 = arith.constant 0 : index
      %13 = vector.load %arg9[%c0_7, %c0_8] : memref<8x128xf32, #tpu.memory_space<vmem>>, vector<8x128xf32>
      %cst_9 = arith.constant dense<0.000000e+00> : vector<8x128xf32>
      %14 = vector.multi_reduction <add>, %12, %cst_9 [0] : vector<16x8x128xf32> to vector<8x128xf32>
      %15 = arith.addf %13, %14 : vector<8x128xf32>
      %c0_10 = arith.constant 0 : index
      %c0_11 = arith.constant 0 : index
      %16 = vector.load %arg9[%c0_10, %c0_11] : memref<8x128xf32, #tpu.memory_space<vmem>>, vector<8x128xf32>
      tpu.vector_store %arg9[%c0_10, %c0_11], %15 {strides = array<i32>} : memref<8x128xf32, #tpu.memory_space<vmem>>, vector<8x128xf32>,
      %c0_12 = arith.constant 0 : index
      %c0_13 = arith.constant 0 : index
      %17 = vector.load %arg10[%c0_12, %c0_13] : memref<8x128xf32, #tpu.memory_space<vmem>>, vector<8x128xf32>
      %18 = arith.mulf %12, %12 : vector<16x8x128xf32>
      %cst_14 = arith.constant dense<0.000000e+00> : vector<8x128xf32>
      %19 = vector.multi_reduction <add>, %18, %cst_14 [0] : vector<16x8x128xf32> to vector<8x128xf32>
      %20 = arith.addf %17, %19 : vector<8x128xf32>
      %c0_15 = arith.constant 0 : index
      %c0_16 = arith.constant 0 : index
      %21 = vector.load %arg10[%c0_15, %c0_16] : memref<8x128xf32, #tpu.memory_space<vmem>>, vector<8x128xf32>
      tpu.vector_store %arg10[%c0_15, %c0_16], %20 {strides = array<i32>} : memref<8x128xf32, #tpu.memory_space<vmem>>, vector<8x128xf32>,
      %22 = arith.truncf %11 : vector<128x128xf32> to vector<128x128xbf16>
      %23 = arith.index_cast %arg1 : i32 to index
      %c0_17 = arith.constant 0 : index
      %c0_18 = arith.constant 0 : index
      %24 = vector.load %arg8[%23, %c0_17, %c0_18] : memref<4x128x128xbf16, #tpu.memory_space<vmem>>, vector<1x128x128xbf16>
      %25 = vector.shape_cast %24 : vector<1x128x128xbf16> to vector<128x128xbf16>
      %26 = vector.shape_cast %22 : vector<128x128xbf16> to vector<1x128x128xbf16>
      tpu.vector_store %arg8[%23, %c0_17, %c0_18], %26 {strides = array<i32>} : memref<4x128x128xbf16, #tpu.memory_space<vmem>>, vector<1x128x128xbf16>,
    } else {
    }
    %c1_i32 = arith.constant 1 : i32
    %3 = arith.cmpi eq, %arg0, %c1_i32 : i32
    %4 = arith.extui %3 : i1 to i32
    %c0_i32_1 = arith.constant 0 : i32
    %5 = arith.cmpi ne, %4, %c0_i32_1 : i32
    scf.if %5 {
      %6 = arith.index_cast %arg1 : i32 to index
      %c0 = arith.constant 0 : index
      %c0_2 = arith.constant 0 : index
      %7 = vector.load %arg8[%6, %c0, %c0_2] : memref<4x128x128xbf16, #tpu.memory_space<vmem>>, vector<1x128x128xbf16>
      %8 = vector.shape_cast %7 : vector<1x128x128xbf16> to vector<128x128xbf16>
      %9 = arith.extf %8 : vector<128x128xbf16> to vector<128x128xf32>
      %c0_3 = arith.constant 0 : index
      %c0_4 = arith.constant 0 : index
      %10 = vector.load %arg9[%c0_3, %c0_4] : memref<8x128xf32, #tpu.memory_space<vmem>>, vector<8x128xf32>
      %c0_5 = arith.constant 0 : index
      %c0_6 = arith.constant 0 : index
      %11 = vector.load %arg4[%c0_5, %c0_6] : memref<128x128xf32, #tpu.memory_space<vmem>>, vector<128x128xf32>
      %cst = arith.constant dense<0.000000e+00> : vector<8x128xf32>
      %12 = tpu.matmul %10, %11, %cst {dimension_numbers = #tpu.dot_dimension_numbers<[1], [0], [0], [1], [0, 0, 1, 1], [], []>} : vector<8x128xf32>, vector<128x128xf32>, vector<8x128xf32> -> vector<8x128xf32>
      %c0_7 = arith.constant 0 : index
      %c0_8 = arith.constant 0 : index
      %13 = vector.load %arg10[%c0_7, %c0_8] : memref<8x128xf32, #tpu.memory_space<vmem>>, vector<8x128xf32>
      %c0_9 = arith.constant 0 : index
      %c0_10 = arith.constant 0 : index
      %14 = vector.load %arg4[%c0_9, %c0_10] : memref<128x128xf32, #tpu.memory_space<vmem>>, vector<128x128xf32>
      %cst_11 = arith.constant dense<0.000000e+00> : vector<8x128xf32>
      %15 = tpu.matmul %13, %14, %cst_11 {dimension_numbers = #tpu.dot_dimension_numbers<[1], [0], [0], [1], [0, 0, 1, 1], [], []>} : vector<8x128xf32>, vector<128x128xf32>, vector<8x128xf32> -> vector<8x128xf32>
      %cst_12 = arith.constant dense<0.000000e+00> : vector<128xf32>
      %16 = vector.multi_reduction <add>, %12, %cst_12 [0] : vector<8x128xf32> to vector<128xf32>
      %17 = vector.shape_cast %16 : vector<128xf32> to vector<1x128xf32>
      %cst_13 = arith.constant 4.8828125E-4 : f32
      %18 = vector.broadcast %cst_13 : f32 to vector<1x128xf32>
      %19 = arith.mulf %17, %18 : vector<1x128xf32>
      %cst_14 = arith.constant dense<0.000000e+00> : vector<128xf32>
      %20 = vector.multi_reduction <add>, %15, %cst_14 [0] : vector<8x128xf32> to vector<128xf32>
      %21 = vector.shape_cast %20 : vector<128xf32> to vector<1x128xf32>
      %cst_15 = arith.constant 4.8828125E-4 : f32
      %22 = vector.broadcast %cst_15 : f32 to vector<1x128xf32>
      %23 = arith.mulf %21, %22 : vector<1x128xf32>
      %24 = arith.mulf %19, %19 : vector<1x128xf32>
      %25 = arith.subf %23, %24 : vector<1x128xf32>
      %cst_16 = arith.constant 0.000000e+00 : f32
      %26 = vector.broadcast %cst_16 : f32 to vector<1x128xf32>
      %27 = arith.maximumf %25, %26 : vector<1x128xf32>
      %c0_17 = arith.constant 0 : index
      %c0_18 = arith.constant 0 : index
      %28 = vector.load %arg5[%c0_17, %c0_18] : memref<1x128xf32, #tpu.memory_space<vmem>>, vector<1x128xf32>
      %cst_19 = arith.constant 9.99999974E-6 : f32
      %29 = vector.broadcast %cst_19 : f32 to vector<1x128xf32>
      %30 = arith.addf %27, %29 : vector<1x128xf32>
      %31 = math.rsqrt %30 : vector<1x128xf32>
      %32 = arith.mulf %28, %31 : vector<1x128xf32>
      %c0_20 = arith.constant 0 : index
      %c0_21 = arith.constant 0 : index
      %33 = vector.load %arg6[%c0_20, %c0_21] : memref<1x128xf32, #tpu.memory_space<vmem>>, vector<1x128xf32>
      %34 = arith.mulf %32, %19 : vector<1x128xf32>
      %35 = arith.subf %33, %34 : vector<1x128xf32>
      %36 = vector.broadcast %32 : vector<1x128xf32> to vector<128x128xf32>
      %37 = arith.mulf %9, %36 : vector<128x128xf32>
      %38 = vector.broadcast %35 : vector<1x128xf32> to vector<128x128xf32>
      %39 = arith.addf %37, %38 : vector<128x128xf32>
      %cst_22 = arith.constant 0.000000e+00 : f32
      %40 = vector.broadcast %cst_22 : f32 to vector<128x128xf32>
      %41 = arith.maximumf %39, %40 : vector<128x128xf32>
      %42 = arith.truncf %41 : vector<128x128xf32> to vector<128x128xbf16>
      %c0_23 = arith.constant 0 : index
      %c0_24 = arith.constant 0 : index
      %43 = vector.load %arg7[%c0_23, %c0_24] : memref<128x128xbf16, #tpu.memory_space<vmem>>, vector<128x128xbf16>
      tpu.vector_store %arg7[%c0_23, %c0_24], %42 {strides = array<i32>} : memref<128x128xbf16, #tpu.memory_space<vmem>>, vector<128x128xbf16>,
    } else {
    }
    return
  }
  func.func @transform_0(%arg0: i32, %arg1: i32) -> (i32, i32) {
    %c1_i32 = arith.constant 1 : i32
    %0 = arith.subi %c1_i32, %arg0 : i32
    %1 = arith.muli %arg1, %0 : i32
    %c3_i32 = arith.constant 3 : i32
    %2 = arith.muli %c3_i32, %arg0 : i32
    %3 = arith.addi %1, %2 : i32
    %c0_i32 = arith.constant 0 : i32
    %c0_i32_0 = arith.constant 0 : i32
    return %3, %c0_i32 : i32, i32
  }
  func.func @transform_1(%arg0: i32, %arg1: i32) -> (i32, i32) {
    %c0_i32 = arith.constant 0 : i32
    %c0_i32_0 = arith.constant 0 : i32
    %c0_i32_1 = arith.constant 0 : i32
    return %c0_i32, %c0_i32_0 : i32, i32
  }
  func.func @transform_2(%arg0: i32, %arg1: i32) -> (i32, i32) {
    %c0_i32 = arith.constant 0 : i32
    %c0_i32_0 = arith.constant 0 : i32
    %c0_i32_1 = arith.constant 0 : i32
    return %c0_i32, %c0_i32_0 : i32, i32
  }
  func.func @transform_3(%arg0: i32, %arg1: i32) -> (i32, i32) {
    %c0_i32 = arith.constant 0 : i32
    %c0_i32_0 = arith.constant 0 : i32
    %c0_i32_1 = arith.constant 0 : i32
    return %c0_i32, %c0_i32_0 : i32, i32
  }
  func.func @transform_4(%arg0: i32, %arg1: i32) -> (i32, i32) {
    %c0_i32 = arith.constant 0 : i32
    %c0_i32_0 = arith.constant 0 : i32
    %c0_i32_1 = arith.constant 0 : i32
    return %c0_i32, %c0_i32_0 : i32, i32
  }
  func.func @transform_5(%arg0: i32, %arg1: i32) -> (i32, i32) {
    %0 = arith.muli %arg0, %arg1 : i32
    %c0_i32 = arith.constant 0 : i32
    %c0_i32_0 = arith.constant 0 : i32
    return %0, %c0_i32 : i32, i32
  }
}

module attributes {stable_mosaic.version = 11 : i64} {
  func.func @_mm_bias_tanh_kernel(%arg0: i32, %arg1: memref<512x108xbf16, #tpu.memory_space<vmem>>, %arg2: memref<108x128xbf16, #tpu.memory_space<vmem>>, %arg3: memref<1x128xf32, #tpu.memory_space<vmem>>, %arg4: memref<512x128xf32, #tpu.memory_space<vmem>>) attributes {dimension_semantics = [#tpu.dimension_semantics<parallel>], iteration_bounds = array<i64: 4>, scalar_prefetch = 0 : i64, scratch_operands = 0 : i64, tpu.core_type = #tpu.core_type<tc>, window_params = [{transform_indices = @transform_0, window_bounds = array<i64: 512, 108>}, {pipeline_mode = #tpu.pipeline_mode<synchronous>, transform_indices = @transform_1, window_bounds = array<i64: 108, 128>}, {pipeline_mode = #tpu.pipeline_mode<synchronous>, transform_indices = @transform_2, window_bounds = array<i64: 1, 128>}, {transform_indices = @transform_3, window_bounds = array<i64: 512, 128>}]} {
    %c0 = arith.constant 0 : index
    %c0_0 = arith.constant 0 : index
    %0 = vector.load %arg1[%c0, %c0_0] : memref<512x108xbf16, #tpu.memory_space<vmem>>, vector<512x108xbf16>
    %c0_1 = arith.constant 0 : index
    %c0_2 = arith.constant 0 : index
    %1 = vector.load %arg2[%c0_1, %c0_2] : memref<108x128xbf16, #tpu.memory_space<vmem>>, vector<108x128xbf16>
    %cst = arith.constant dense<0.000000e+00> : vector<512x128xf32>
    %2 = tpu.matmul %0, %1, %cst {dimension_numbers = #tpu.dot_dimension_numbers<[1], [0], [0], [1], [0, 0, 1, 1], [], []>} : vector<512x108xbf16>, vector<108x128xbf16>, vector<512x128xf32> -> vector<512x128xf32>
    %c0_3 = arith.constant 0 : index
    %c0_4 = arith.constant 0 : index
    %3 = vector.load %arg3[%c0_3, %c0_4] : memref<1x128xf32, #tpu.memory_space<vmem>>, vector<1x128xf32>
    %4 = vector.broadcast %3 : vector<1x128xf32> to vector<512x128xf32>
    %5 = arith.addf %2, %4 : vector<512x128xf32>
    %6 = math.tanh %5 : vector<512x128xf32>
    %c0_5 = arith.constant 0 : index
    %c0_6 = arith.constant 0 : index
    %7 = vector.load %arg4[%c0_5, %c0_6] : memref<512x128xf32, #tpu.memory_space<vmem>>, vector<512x128xf32>
    tpu.vector_store %arg4[%c0_5, %c0_6], %6 {strides = array<i32>} : memref<512x128xf32, #tpu.memory_space<vmem>>, vector<512x128xf32>,
    return
  }
  func.func @transform_0(%arg0: i32) -> (i32, i32) {
    %c0_i32 = arith.constant 0 : i32
    %c0_i32_0 = arith.constant 0 : i32
    return %arg0, %c0_i32 : i32, i32
  }
  func.func @transform_1(%arg0: i32) -> (i32, i32) {
    %c0_i32 = arith.constant 0 : i32
    %c0_i32_0 = arith.constant 0 : i32
    %c0_i32_1 = arith.constant 0 : i32
    return %c0_i32, %c0_i32_0 : i32, i32
  }
  func.func @transform_2(%arg0: i32) -> (i32, i32) {
    %c0_i32 = arith.constant 0 : i32
    %c0_i32_0 = arith.constant 0 : i32
    %c0_i32_1 = arith.constant 0 : i32
    return %c0_i32, %c0_i32_0 : i32, i32
  }
  func.func @transform_3(%arg0: i32) -> (i32, i32) {
    %c0_i32 = arith.constant 0 : i32
    %c0_i32_0 = arith.constant 0 : i32
    return %arg0, %c0_i32 : i32, i32
  }
}

</mosaic_0001>

<llo_original>
// kernel: autoencoder_forward.6
$region0: #{autoencoder_forward.6}
  #allocation0 [shape = 'u32[]', space=smem, size = 0x4, offset = 0x4, fixed_abs, tag = 'smem constant byte address 0x4 - core index']
  #allocation1 [shape = 'u32[144,128]{1,0:T(1,128)}', space=vmem, size = 0x12000, scoped, tag = 'internal scratch']
  #allocation2 [shape = 'bf16[4,512,128]{2,1,0:T(8,128)(2,1)}', space=vmem, size = 0x80000, scoped, tag = 'scratch operand']
  #allocation3 [shape = 'f32[8,128]{1,0:T(8,128)}', space=vmem, size = 0x1000, scoped, tag = 'scratch operand']
  #allocation4 [shape = 'f32[8,128]{1,0:T(8,128)}', space=vmem, size = 0x1000, scoped, tag = 'scratch operand']
  %s0 = inlined_call_operand.vmem [shape: bf16[2048,48], index: 0, kind: input, shape index: {}]
  %s1 = inlined_call_operand.vmem [shape: bf16[48,128], index: 1, kind: input, shape index: {}]
  %s2 = inlined_call_operand.vmem [shape: f32[128,128], index: 2, kind: input, shape index: {}]
  %s3 = inlined_call_operand.vmem [shape: f32[1,128], index: 3, kind: input, shape index: {}]
  %s4 = inlined_call_operand.vmem [shape: f32[1,128], index: 4, kind: input, shape index: {}]
  %s5 = inlined_call_operand.vmem [shape: bf16[2048,128], index: 5, kind: output, shape index: {}]
  %s6 = sld [smem:[#allocation0]]
  $region65: #{autoencoder_forward.6} parent=0
    _
  %s8 = ssub.s32 1, %s6
  %s9 = scalar_select 0, %s8, %s6
  loop: start=0, step=1, limit=10
  $region2: #{autoencoder_forward.6} parent=0 // loop_pre_header
    _
  $region3: #{autoencoder_forward.6} parent=0 // loop_header
    %s11 = sphi 0, %s15
    %p12 = scmp.ge.s32.totalorder %s11, 10
    %s18 = sphi 0, %s30
    %s19 = sphi 0, %s26
    %s20 = sphi 0, %s18
    %s21 = sphi 0, %s19
    %s22 = sphi 0, %s20
    %s23 = sphi 0, %s21
    %s41 = sphi 0, %s43
    %s44 = sphi 0, %s41
    %s45 = sphi 0, %s44
    %s61 = sphi 0, %s45
    %s65 = sphi 0, %s65
    %s67 = sphi 0, %s65
    %s68 = sphi 0, %s67
    %s82 = sphi 0, %s68
    %s86 = sphi 0, %s86
    %s88 = sphi 0, %s86
    %s89 = sphi 0, %s88
    %s103 = sphi 0, %s89
    %s107 = sphi 0, %s107
    %s109 = sphi 0, %s107
    %s110 = sphi 0, %s109
    %s124 = sphi 0, %s110
    %s128 = sphi 0, %s128
    %s130 = sphi 0, %s128
    %s131 = sphi 0, %s130
    %s145 = sphi 0, %s131
    %s153 = sphi 0, %s155
    %s156 = sphi 0, %s153
    %s157 = sphi 0, %s156
    %s173 = sphi 0, %s157
  $region4: #{autoencoder_forward.6} parent=0 // loop_header_branch
    %14 = sbr.rel (%p12) target = $region8
  $region5: #{autoencoder_forward.6} parent=0 // loop_body
    %s16 = ssub.s32 %s11, 1
    %s17 = ssub.s32 %s11, 2
    %s24 = sadd.s32 1, %s19
    %p25 = scmp.ge.s32.totalorder %s24, 4
    %s26 = scalar_select %p25, 0, %s24
    %s27 = sadd.s32 1, %s18
    %s28 = scalar_select %p25, %s27, %s18
    %p29 = scmp.ge.s32.totalorder %s28, 2
    %s30 = scalar_select %p29, 0, %s28
    %s31 = ssub.s32 1, %s18
    %s32 = smul.u32 %s19, %s31
    %s33 = smul.u32 %s18, 3
    %s34 = sadd.s32 %s32, %s33
    %s35 = ssub.s32 1, %s30
    %s36 = smul.u32 %s26, %s35
    %s37 = smul.u32 %s30, 3
    %s38 = sadd.s32 %s36, %s37
    %s39 = ssub.s32 %s34, %s38
    %p40 = scmp.eq.s32.totalorder %s39, 0
    %s42 = sadd.s32 %s41, 1
    %s43 = scalar_select %p40, %s41, %s42
    %p46 = pneg %p40
    %p47 = scmp.eq.s32.totalorder %s11, 7
    %p48 = por %p46, %p47
    %p49 = scmp.ne.s32.totalorder %s41, %s44
    %p50 = scmp.eq.s32.totalorder %s11, 0
    %p51 = por %p49, %p50
    %p52 = scmp.ne.s32.totalorder %s41, %s44
    %p53 = scmp.eq.s32.totalorder %s16, 7
    %p54 = por %p52, %p53
    %p55 = scmp.ne.s32.totalorder %s44, %s45
    %p56 = scmp.eq.s32.totalorder %s16, 0
    %p57 = por %p55, %p56
    %p58 = scmp.ne.s32.totalorder %s44, %s45
    %p59 = scmp.eq.s32.totalorder %s17, 7
    %p60 = por %p58, %p59
    %p62 = scmp.ne.s32.totalorder %s45, %s61
    %p63 = scmp.eq.s32.totalorder %s17, 0
    %p64 = por %p62, %p63
    %s66 = sadd.s32 %s65, 1
    %p69 = scmp.eq.s32.totalorder %s11, 7
    %p70 = scmp.ne.s32.totalorder %s65, %s67
    %p71 = scmp.eq.s32.totalorder %s11, 0
    %p72 = por %p70, %p71
    %p73 = scmp.ne.s32.totalorder %s65, %s67
    %p74 = scmp.eq.s32.totalorder %s16, 7
    %p75 = por %p73, %p74
    %p76 = scmp.ne.s32.totalorder %s67, %s68
    %p77 = scmp.eq.s32.totalorder %s16, 0
    %p78 = por %p76, %p77
    %p79 = scmp.ne.s32.totalorder %s67, %s68
    %p80 = scmp.eq.s32.totalorder %s17, 7
    %p81 = por %p79, %p80
    %p83 = scmp.ne.s32.totalorder %s68, %s82
    %p84 = scmp.eq.s32.totalorder %s17, 0
    %p85 = por %p83, %p84
    %s87 = sadd.s32 %s86, 1
    %p90 = scmp.eq.s32.totalorder %s11, 7
    %p91 = scmp.ne.s32.totalorder %s86, %s88
    %p92 = scmp.eq.s32.totalorder %s11, 0
    %p93 = por %p91, %p92
    %p94 = scmp.ne.s32.totalorder %s86, %s88
    %p95 = scmp.eq.s32.totalorder %s16, 7
    %p96 = por %p94, %p95
    %p97 = scmp.ne.s32.totalorder %s88, %s89
    %p98 = scmp.eq.s32.totalorder %s16, 0
    %p99 = por %p97, %p98
    %p100 = scmp.ne.s32.totalorder %s88, %s89
    %p101 = scmp.eq.s32.totalorder %s17, 7
    %p102 = por %p100, %p101
    %p104 = scmp.ne.s32.totalorder %s89, %s103
    %p105 = scmp.eq.s32.totalorder %s17, 0
    %p106 = por %p104, %p105
    %s108 = sadd.s32 %s107, 1
    %p111 = scmp.eq.s32.totalorder %s11, 7
    %p112 = scmp.ne.s32.totalorder %s107, %s109
    %p113 = scmp.eq.s32.totalorder %s11, 0
    %p114 = por %p112, %p113
    %p115 = scmp.ne.s32.totalorder %s107, %s109
    %p116 = scmp.eq.s32.totalorder %s16, 7
    %p117 = por %p115, %p116
    %p118 = scmp.ne.s32.totalorder %s109, %s110
    %p119 = scmp.eq.s32.totalorder %s16, 0
    %p120 = por %p118, %p119
    %p121 = scmp.ne.s32.totalorder %s109, %s110
    %p122 = scmp.eq.s32.totalorder %s17, 7
    %p123 = por %p121, %p122
    %p125 = scmp.ne.s32.totalorder %s110, %s124
    %p126 = scmp.eq.s32.totalorder %s17, 0
    %p127 = por %p125, %p126
    %s129 = sadd.s32 %s128, 1
    %p132 = scmp.eq.s32.totalorder %s11, 7
    %p133 = scmp.ne.s32.totalorder %s128, %s130
    %p134 = scmp.eq.s32.totalorder %s11, 0
    %p135 = por %p133, %p134
    %p136 = scmp.ne.s32.totalorder %s128, %s130
    %p137 = scmp.eq.s32.totalorder %s16, 7
    %p138 = por %p136, %p137
    %p139 = scmp.ne.s32.totalorder %s130, %s131
    %p140 = scmp.eq.s32.totalorder %s16, 0
    %p141 = por %p139, %p140
    %p142 = scmp.ne.s32.totalorder %s130, %s131
    %p143 = scmp.eq.s32.totalorder %s17, 7
    %p144 = por %p142, %p143
    %p146 = scmp.ne.s32.totalorder %s131, %s145
    %p147 = scmp.eq.s32.totalorder %s17, 0
    %p148 = por %p146, %p147
    %s149 = smul.u32 %s18, %s19
    %s150 = smul.u32 %s30, %s26
    %s151 = ssub.s32 %s149, %s150
    %p152 = scmp.eq.s32.totalorder %s151, 0
    %s154 = sadd.s32 %s153, 1
    %s155 = scalar_select %p152, %s153, %s154
    %p158 = pneg %p152
    %p159 = scmp.eq.s32.totalorder %s11, 7
    %p160 = por %p158, %p159
    %p161 = scmp.ne.s32.totalorder %s153, %s156
    %p162 = scmp.eq.s32.totalorder %s11, 0
    %p163 = por %p161, %p162
    %p164 = scmp.ne.s32.totalorder %s153, %s156
    %p165 = scmp.eq.s32.totalorder %s16, 7
    %p166 = por %p164, %p165
    %p167 = scmp.ne.s32.totalorder %s156, %s157
    %p168 = scmp.eq.s32.totalorder %s16, 0
    %p169 = por %p167, %p168
    %p170 = scmp.ne.s32.totalorder %s156, %s157
    %p171 = scmp.eq.s32.totalorder %s17, 7
    %p172 = por %p170, %p171
    %p174 = scmp.ne.s32.totalorder %s157, %s173
    %p175 = scmp.eq.s32.totalorder %s17, 0
    %p176 = por %p174, %p175
    %p177 = scmp.le.s32.totalorder 1, %s11
    %p178 = scmp.lt.s32.totalorder %s11, 9
    %p179 = pnand %p177, %p178
    %p180 = pneg %p179
    // Predicated region
    $region9: #{autoencoder_forward.6} parent=5 // pred_check
      _
    $region10: #{autoencoder_forward.6} parent=5 // pred_check_branch
      %182 = sbr.rel (%p179) target = $region12
    $region11: #{autoencoder_forward.6} parent=5 // pred_region
      %s183 = ssub.s32 %s11, 1
      // Predicated region
      $region13: #{autoencoder_forward.6} parent=11 // pred_check
        %p184 = pneg %p78
      $region14: #{autoencoder_forward.6} parent=11 // pred_check_branch
        %186 = sbr.rel (%p184) target = $region16
      $region15: #{autoencoder_forward.6} parent=11 // pred_region
        _
      $region16: #{autoencoder_forward.6} parent=11 // pred_fallthru
        _
      // Predicated region
      $region17: #{autoencoder_forward.6} parent=11 // pred_check
        %p187 = pneg %p99
      $region18: #{autoencoder_forward.6} parent=11 // pred_check_branch
        %189 = sbr.rel (%p187) target = $region20
      $region19: #{autoencoder_forward.6} parent=11 // pred_region
        _
      $region20: #{autoencoder_forward.6} parent=11 // pred_fallthru
        _
      // Predicated region
      $region21: #{autoencoder_forward.6} parent=11 // pred_check
        %p190 = pneg %p120
      $region22: #{autoencoder_forward.6} parent=11 // pred_check_branch
        %192 = sbr.rel (%p190) target = $region24
      $region23: #{autoencoder_forward.6} parent=11 // pred_region
        _
      $region24: #{autoencoder_forward.6} parent=11 // pred_fallthru
        _
      // Predicated region
      $region25: #{autoencoder_forward.6} parent=11 // pred_check
        %p193 = pneg %p141
      $region26: #{autoencoder_forward.6} parent=11 // pred_check_branch
        %195 = sbr.rel (%p193) target = $region28
      $region27: #{autoencoder_forward.6} parent=11 // pred_region
        _
      $region28: #{autoencoder_forward.6} parent=11 // pred_fallthru
        _
    $region12: #{autoencoder_forward.6} parent=5 // pred_fallthru
      _
    %p196 = scmp.lt.s32.totalorder %s11, 8
    // Predicated region
    $region29: #{autoencoder_forward.6} parent=5 // pred_check
      %p197 = pneg %p196
    $region30: #{autoencoder_forward.6} parent=5 // pred_check_branch
      %199 = sbr.rel (%p197) target = $region32
    $region31: #{autoencoder_forward.6} parent=5 // pred_region
      // Predicated region
      $region33: #{autoencoder_forward.6} parent=31 // pred_check
        %p200 = pneg %p51
      $region34: #{autoencoder_forward.6} parent=31 // pred_check_branch
        %202 = sbr.rel (%p200) target = $region36
      $region35: #{autoencoder_forward.6} parent=31 // pred_region
        %s203 = ssub.s32 1, %s18
        %s204 = smul.u32 %s19, %s203
        %s205 = smul.u32 %s18, 3
        %s206 = sadd.s32 %s204, %s205
        %s207 = smul.u32 64, %s206
        %p208 = scmp.lt.s32.totalorder %s207, 255
        %s209 = scalar_select %p208, %s207, 255
        %s210 = smul.addr %s209, 4
        %s211 = scalar_lea.vmem %s0, %s210
        %s212 = ssub.s32 1, %s18
        %s213 = smul.u32 %s19, %s212
        %s214 = smul.u32 %s18, 3
        %s215 = sadd.s32 %s213, %s214
        %s216 = smul.u32 64, %s215
      $region36: #{autoencoder_forward.6} parent=31 // pred_fallthru
        _
    $region32: #{autoencoder_forward.6} parent=5 // pred_fallthru
      _
    %p217 = scmp.le.s32.totalorder 1, %s11
    %p218 = scmp.lt.s32.totalorder %s11, 9
    %p219 = pnand %p217, %p218
    %p220 = pneg %p219
    // Predicated region
    $region37: #{autoencoder_forward.6} parent=5 // pred_check
      _
    $region38: #{autoencoder_forward.6} parent=5 // pred_check_branch
      %222 = sbr.rel (%p219) target = $region40
    $region39: #{autoencoder_forward.6} parent=5 // pred_region
      %s223 = ssub.s32 %s11, 1
      %s224 = ssub.s32 1, %s20
      %s225 = smul.u32 %s21, %s224
      %s226 = smul.u32 %s20, 3
      %s227 = sadd.s32 %s225, %s226
      %s228 = smul.u32 64, %s227
      %p229 = scmp.lt.s32.totalorder %s228, 255
      %s230 = scalar_select %p229, %s228, 255
      %s231 = smul.addr %s230, 4
      %s232 = scalar_lea.vmem %s0, %s231
      %p233 = pneg %p57
      %p234 = pneg %p54
      %p235 = pneg %p78
      %p236 = pneg %p75
      %p237 = pneg %p99
      %p238 = pneg %p96
      %p239 = pneg %p120
      %p240 = pneg %p117
      %p241 = pneg %p141
      %p242 = pneg %p138
      %p243 = pneg %p169
      %p244 = pneg %p166
      %s245 = smul.u32 %s20, %s21
      %s246 = smul.u32 64, %s245
      %p247 = scmp.lt.s32.totalorder %s246, 255
      %s248 = scalar_select %p247, %s246, 255
      %s249 = smul.addr %s248, 4
      %s250 = scalar_lea.vmem %s5, %s249
      %s251 = ssub.s32 1, %s20
      %s252 = smul.u32 %s21, %s251
      %s253 = smul.u32 %s20, 3
      %s254 = sadd.s32 %s252, %s253
      %s255 = smul.u32 64, %s254
      %p256 = scmp.lt.s32.totalorder %s255, 255
      %s257 = scalar_select %p256, %s255, 255
      %s258 = smul.addr %s257, 4
      %s259 = scalar_lea.vmem %s0, %s258
      %s260 = ssub.s32 1, %s20
      %s261 = smul.u32 %s21, %s260
      %s262 = smul.u32 %s20, 3
      %s263 = sadd.s32 %s261, %s262
      %s264 = smul.u32 64, %s263
      %s265 = smul.u32 %s20, %s21
      %s266 = smul.u32 64, %s265
      %p267 = scmp.lt.s32.totalorder %s266, 255
      %s268 = scalar_select %p267, %s266, 255
      %s269 = smul.addr %s268, 4
      %s270 = scalar_lea.vmem %s5, %s269
      %s271 = smul.u32 %s20, %s21
      %s272 = smul.u32 64, %s271
      %p274 = scmp.eq.s32.totalorder %s20, 0
      // Predicated region
      $region41: #{autoencoder_forward.6} parent=39 // pred_check
        %p275 = pneg %p274
      $region42: #{autoencoder_forward.6} parent=39 // pred_check_branch
        %277 = sbr.rel (%p275) target = $region44
      $region43: #{autoencoder_forward.6} parent=39 // pred_region
        %p278 = scmp.eq.s32.totalorder %s21, 0
        // Predicated region
        $region45: #{autoencoder_forward.6} parent=43 // pred_check
          %p279 = pneg %p278
        $region46: #{autoencoder_forward.6} parent=43 // pred_check_branch
          %281 = sbr.rel (%p279) target = $region48
        $region47: #{autoencoder_forward.6} parent=43 // pred_region
          %282 = vst [vmem:[#allocation3] sm:$0xff] 0.0
          %283 = vst [vmem:[#allocation4] sm:$0xff] 0.0
        $region48: #{autoencoder_forward.6} parent=43 // pred_fallthru
          _
        %v284 = vld [vmem:[%s259] sm:$0xf]
        %v285 = vld [vmem:[%s259 + $0x4] sm:$0xf]
        %v286 = vld [vmem:[%s259 + $0x8] sm:$0xf]
        %v287 = vld [vmem:[%s259 + $0xc] sm:$0xf]
        %v288 = vld [vmem:[%s259 + $0x10] sm:$0xf]
        %v289 = vld [vmem:[%s259 + $0x14] sm:$0xf]
        %v290 = vld [vmem:[%s259 + $0x18] sm:$0xf]
        %v291 = vld [vmem:[%s259 + $0x1c] sm:$0xf]
        %v292 = vld [vmem:[%s259 + $0x20] sm:$0xf]
        %v293 = vld [vmem:[%s259 + $0x24] sm:$0xf]
        %v294 = vld [vmem:[%s259 + $0x28] sm:$0xf]
        %v295 = vld [vmem:[%s259 + $0x2c] sm:$0xf]
        %v296 = vld [vmem:[%s259 + $0x30] sm:$0xf]
        %v297 = vld [vmem:[%s259 + $0x34] sm:$0xf]
        %v298 = vld [vmem:[%s259 + $0x38] sm:$0xf]
        %v299 = vld [vmem:[%s259 + $0x3c] sm:$0xf]
        %v300 = vld [vmem:[%s259 + $0x40] sm:$0xf]
        %v301 = vld [vmem:[%s259 + $0x44] sm:$0xf]
        %v302 = vld [vmem:[%s259 + $0x48] sm:$0xf]
        %v303 = vld [vmem:[%s259 + $0x4c] sm:$0xf]
        %v304 = vld [vmem:[%s259 + $0x50] sm:$0xf]
        %v305 = vld [vmem:[%s259 + $0x54] sm:$0xf]
        %v306 = vld [vmem:[%s259 + $0x58] sm:$0xf]
        %v307 = vld [vmem:[%s259 + $0x5c] sm:$0xf]
        %v308 = vld [vmem:[%s259 + $0x60] sm:$0xf]
        %v309 = vld [vmem:[%s259 + $0x64] sm:$0xf]
        %v310 = vld [vmem:[%s259 + $0x68] sm:$0xf]
        %v311 = vld [vmem:[%s259 + $0x6c] sm:$0xf]
        %v312 = vld [vmem:[%s259 + $0x70] sm:$0xf]
        %v313 = vld [vmem:[%s259 + $0x74] sm:$0xf]
        %v314 = vld [vmem:[%s259 + $0x78] sm:$0xf]
        %v315 = vld [vmem:[%s259 + $0x7c] sm:$0xf]
        %v316 = vld [vmem:[%s259 + $0x80] sm:$0xf]
        %v317 = vld [vmem:[%s259 + $0x84] sm:$0xf]
        %v318 = vld [vmem:[%s259 + $0x88] sm:$0xf]
        %v319 = vld [vmem:[%s259 + $0x8c] sm:$0xf]
        %v320 = vld [vmem:[%s259 + $0x90] sm:$0xf]
        %v321 = vld [vmem:[%s259 + $0x94] sm:$0xf]
        %v322 = vld [vmem:[%s259 + $0x98] sm:$0xf]
        %v323 = vld [vmem:[%s259 + $0x9c] sm:$0xf]
        %v324 = vld [vmem:[%s259 + $0xa0] sm:$0xf]
        %v325 = vld [vmem:[%s259 + $0xa4] sm:$0xf]
        %v326 = vld [vmem:[%s259 + $0xa8] sm:$0xf]
        %v327 = vld [vmem:[%s259 + $0xac] sm:$0xf]
        %v328 = vld [vmem:[%s259 + $0xb0] sm:$0xf]
        %v329 = vld [vmem:[%s259 + $0xb4] sm:$0xf]
        %v330 = vld [vmem:[%s259 + $0xb8] sm:$0xf]
        %v331 = vld [vmem:[%s259 + $0xbc] sm:$0xf]
        %v332 = vld [vmem:[%s259 + $0xc0] sm:$0xf]
        %v333 = vld [vmem:[%s259 + $0xc4] sm:$0xf]
        %v334 = vld [vmem:[%s259 + $0xc8] sm:$0xf]
        %v335 = vld [vmem:[%s259 + $0xcc] sm:$0xf]
        %v336 = vld [vmem:[%s259 + $0xd0] sm:$0xf]
        %v337 = vld [vmem:[%s259 + $0xd4] sm:$0xf]
        %v338 = vld [vmem:[%s259 + $0xd8] sm:$0xf]
        %v339 = vld [vmem:[%s259 + $0xdc] sm:$0xf]
        %v340 = vld [vmem:[%s259 + $0xe0] sm:$0xf]
        %v341 = vld [vmem:[%s259 + $0xe4] sm:$0xf]
        %v342 = vld [vmem:[%s259 + $0xe8] sm:$0xf]
        %v343 = vld [vmem:[%s259 + $0xec] sm:$0xf]
        %v344 = vld [vmem:[%s259 + $0xf0] sm:$0xf]
        %v345 = vld [vmem:[%s259 + $0xf4] sm:$0xf]
        %v346 = vld [vmem:[%s259 + $0xf8] sm:$0xf]
        %v347 = vld [vmem:[%s259 + $0xfc] sm:$0xf]
        %v348 = vld [vmem:[%s1] sm:$0xf]
        %v349 = vld [vmem:[%s1 + $0x4] sm:$0xf]
        %v350 = vld [vmem:[%s1 + $0x8] sm:$0xf]
        %v351 = vld [vmem:[%s1 + $0xc] sm:$0xf]
        %v352 = vld [vmem:[%s1 + $0x10] sm:$0xf]
        %v353 = vld [vmem:[%s1 + $0x14] sm:$0xf]
        %v418 = vunpack.c.l.b16 %v284
        %v419 = vunpack.c.l.b16 %v285
        %v420 = vunpack.c.l.b16 %v286
        %v421 = vunpack.c.l.b16 %v287
        %v422 = vunpack.c.l.b16 %v288
        %v423 = vunpack.c.l.b16 %v289
        %v424 = vunpack.c.l.b16 %v290
        %v425 = vunpack.c.l.b16 %v291
        %v426 = vunpack.c.l.b16 %v292
        %v427 = vunpack.c.l.b16 %v293
        %v428 = vunpack.c.l.b16 %v294
        %v429 = vunpack.c.l.b16 %v295
        %v430 = vunpack.c.l.b16 %v296
        %v431 = vunpack.c.l.b16 %v297
        %v432 = vunpack.c.l.b16 %v298
        %v433 = vunpack.c.l.b16 %v299
        %v434 = vunpack.c.l.b16 %v300
        %v435 = vunpack.c.l.b16 %v301
        %v436 = vunpack.c.l.b16 %v302
        %v437 = vunpack.c.l.b16 %v303
        %v438 = vunpack.c.l.b16 %v304
        %v439 = vunpack.c.l.b16 %v305
        %v440 = vunpack.c.l.b16 %v306
        %v441 = vunpack.c.l.b16 %v307
        %v442 = vunpack.c.l.b16 %v308
        %v443 = vunpack.c.l.b16 %v309
        %v444 = vunpack.c.l.b16 %v310
        %v445 = vunpack.c.l.b16 %v311
        %v446 = vunpack.c.l.b16 %v312
        %v447 = vunpack.c.l.b16 %v313
        %v448 = vunpack.c.l.b16 %v314
        %v449 = vunpack.c.l.b16 %v315
        %v450 = vunpack.c.l.b16 %v316
        %v451 = vunpack.c.l.b16 %v317
        %v452 = vunpack.c.l.b16 %v318
        %v453 = vunpack.c.l.b16 %v319
        %v454 = vunpack.c.l.b16 %v320
        %v455 = vunpack.c.l.b16 %v321
        %v456 = vunpack.c.l.b16 %v322
        %v457 = vunpack.c.l.b16 %v323
        %v458 = vunpack.c.l.b16 %v324
        %v459 = vunpack.c.l.b16 %v325
        %v460 = vunpack.c.l.b16 %v326
        %v461 = vunpack.c.l.b16 %v327
        %v462 = vunpack.c.l.b16 %v328
        %v463 = vunpack.c.l.b16 %v329
        %v464 = vunpack.c.l.b16 %v330
        %v465 = vunpack.c.l.b16 %v331
        %v466 = vunpack.c.l.b16 %v332
        %v467 = vunpack.c.l.b16 %v333
        %v468 = vunpack.c.l.b16 %v334
        %v469 = vunpack.c.l.b16 %v335
        %v470 = vunpack.c.l.b16 %v336
        %v471 = vunpack.c.l.b16 %v337
        %v472 = vunpack.c.l.b16 %v338
        %v473 = vunpack.c.l.b16 %v339
        %v474 = vunpack.c.l.b16 %v340
        %v475 = vunpack.c.l.b16 %v341
        %v476 = vunpack.c.l.b16 %v342
        %v477 = vunpack.c.l.b16 %v343
        %v478 = vunpack.c.l.b16 %v344
        %v479 = vunpack.c.l.b16 %v345
        %v480 = vunpack.c.l.b16 %v346
        %v481 = vunpack.c.l.b16 %v347
        %v482 = vpack.c.b16 %v419, %v418
        %v483 = vpack.c.b16 %v421, %v420
        %v484 = vpack.c.b16 %v423, %v422
        %v485 = vpack.c.b16 %v425, %v424
        %v486 = vpack.c.b16 %v427, %v426
        %v487 = vpack.c.b16 %v429, %v428
        %v488 = vpack.c.b16 %v431, %v430
        %v489 = vpack.c.b16 %v433, %v432
        %v490 = vpack.c.b16 %v435, %v434
        %v491 = vpack.c.b16 %v437, %v436
        %v492 = vpack.c.b16 %v439, %v438
        %v493 = vpack.c.b16 %v441, %v440
        %v494 = vpack.c.b16 %v443, %v442
        %v495 = vpack.c.b16 %v445, %v444
        %v496 = vpack.c.b16 %v447, %v446
        %v497 = vpack.c.b16 %v449, %v448
        %v498 = vpack.c.b16 %v451, %v450
        %v499 = vpack.c.b16 %v453, %v452
        %v500 = vpack.c.b16 %v455, %v454
        %v501 = vpack.c.b16 %v457, %v456
        %v502 = vpack.c.b16 %v459, %v458
        %v503 = vpack.c.b16 %v461, %v460
        %v504 = vpack.c.b16 %v463, %v462
        %v505 = vpack.c.b16 %v465, %v464
        %v506 = vpack.c.b16 %v467, %v466
        %v507 = vpack.c.b16 %v469, %v468
        %v508 = vpack.c.b16 %v471, %v470
        %v509 = vpack.c.b16 %v473, %v472
        %v510 = vpack.c.b16 %v475, %v474
        %v511 = vpack.c.b16 %v477, %v476
        %v512 = vpack.c.b16 %v479, %v478
        %v513 = vpack.c.b16 %v481, %v480
        %v520 = vunpack.c.l.b16 %v348
        %v521 = vunpack.c.l.b16 %v349
        %v522 = vunpack.c.l.b16 %v350
        %v523 = vunpack.c.l.b16 %v351
        %v524 = vunpack.c.l.b16 %v352
        %v525 = vunpack.c.l.b16 %v353
        %v526 = vpack.c.b16 %v521, %v520
        %v527 = vpack.c.b16 %v523, %v522
        %v528 = vpack.c.b16 %v525, %v524
        %vm532 = vcmask 392192
        %v534 = vsel %vm532, %v482, 0
        %v537 = vsel %vm532, %v483, 0
        %v540 = vsel %vm532, %v484, 0
        %v543 = vsel %vm532, %v485, 0
        %v546 = vsel %vm532, %v486, 0
        %v549 = vsel %vm532, %v487, 0
        %v552 = vsel %vm532, %v488, 0
        %v555 = vsel %vm532, %v489, 0
        %v558 = vsel %vm532, %v490, 0
        %v561 = vsel %vm532, %v491, 0
        %v564 = vsel %vm532, %v492, 0
        %v567 = vsel %vm532, %v493, 0
        %v570 = vsel %vm532, %v494, 0
        %v573 = vsel %vm532, %v495, 0
        %v576 = vsel %vm532, %v496, 0
        %v579 = vsel %vm532, %v497, 0
        %v582 = vsel %vm532, %v498, 0
        %v585 = vsel %vm532, %v499, 0
        %v588 = vsel %vm532, %v500, 0
        %v591 = vsel %vm532, %v501, 0
        %v594 = vsel %vm532, %v502, 0
        %v597 = vsel %vm532, %v503, 0
        %v600 = vsel %vm532, %v504, 0
        %v603 = vsel %vm532, %v505, 0
        %v606 = vsel %vm532, %v506, 0
        %v609 = vsel %vm532, %v507, 0
        %v612 = vsel %vm532, %v508, 0
        %v615 = vsel %vm532, %v509, 0
        %v618 = vsel %vm532, %v510, 0
        %v621 = vsel %vm532, %v511, 0
        %v624 = vsel %vm532, %v512, 0
        %v627 = vsel %vm532, %v513, 0
        %629 = vmatprep.subr.bf16.mxu0 0
        %630 = vmatpush1.bf16.msra.mxu0 0
        %631 = vmatprep.subr.bf16.mxu0 0
        %632 = vmatpush1.bf16.msra.mxu0 0
        %633 = vmatprep.subr.bf16.mxu0 0
        %634 = vmatpush1.bf16.msra.mxu0 0
        %635 = vmatprep.subr.bf16.mxu0 0
        %636 = vmatpush1.bf16.msra.mxu0 0
        %637 = vmatprep.subr.bf16.mxu0 0
        %638 = vmatpush1.bf16.msra.mxu0 0
        %639 = vmatprep.subr.bf16.mxu0 0
        %640 = vmatpush1.bf16.msra.mxu0 %v528
        %641 = vmatprep.subr.bf16.mxu0 0
        %642 = vmatpush1.bf16.msra.mxu0 %v527
        %643 = vmatprep.subr.bf16.mxu0 0
        %644 = vmatpush1.bf16.msra.mxu0 %v526
        %645 = vmatprep.subr.bf16.mxu0 0
        %646 = vmatpush2.bf16.msra.mxu0 0
        %647 = vmatprep.subr.bf16.mxu0 0
        %648 = vmatpush2.bf16.msra.mxu0 0
        %649 = vmatprep.subr.bf16.mxu0 0
        %650 = vmatpush2.bf16.msra.mxu0 0
        %651 = vmatprep.subr.bf16.mxu0 0
        %652 = vmatpush2.bf16.msra.mxu0 0
        %653 = vmatprep.subr.bf16.mxu0 0
        %654 = vmatpush2.bf16.msra.mxu0 0
        %655 = vmatprep.subr.bf16.mxu0 0
        %656 = vmatpush2.bf16.msra.mxu0 0
        %657 = vmatprep.subr.bf16.mxu0 0
        %658 = vmatpush2.bf16.msra.mxu0 0
        %659 = vmatprep.subr.bf16.mxu0 0
        %660 = vmatpush2.bf16.msra.mxu0 0
        %661 = vmatprep.mubr.bf16.mxu0 0
        %662 = vmatmul.mubr.bf16.gmra.mxu0 %v534
        %v663 = vpop.f32.mrf.mxu0
        %v664 = vadd.f32 0.0, %v663
        %v665 = vpop.f32.mrf.mxu0
        %v666 = vpop.f32.mrf.mxu0
        %v667 = vadd.f32 0.0, %v666
        %v668 = vpop.f32.mrf.mxu0
        %669 = vmatprep.mubr.bf16.mxu0 0
        %670 = vmatmul.mubr.bf16.gmra.mxu0 %v537
        %v671 = vpop.f32.mrf.mxu0
        %v672 = vadd.f32 0.0, %v671
        %v673 = vpop.f32.mrf.mxu0
        %v674 = vpop.f32.mrf.mxu0
        %v675 = vadd.f32 0.0, %v674
        %v676 = vpop.f32.mrf.mxu0
        %677 = vmatprep.mubr.bf16.mxu0 0
        %678 = vmatmul.mubr.bf16.gmra.mxu0 %v540
        %v679 = vpop.f32.mrf.mxu0
        %v680 = vadd.f32 0.0, %v679
        %v681 = vpop.f32.mrf.mxu0
        %v682 = vpop.f32.mrf.mxu0
        %v683 = vadd.f32 0.0, %v682
        %v684 = vpop.f32.mrf.mxu0
        %685 = vmatprep.mubr.bf16.mxu0 0
        %686 = vmatmul.mubr.bf16.gmra.mxu0 %v543
        %v687 = vpop.f32.mrf.mxu0
        %v688 = vadd.f32 0.0, %v687
        %v689 = vpop.f32.mrf.mxu0
        %v690 = vpop.f32.mrf.mxu0
        %v691 = vadd.f32 0.0, %v690
        %v692 = vpop.f32.mrf.mxu0
        %693 = vmatprep.mubr.bf16.mxu0 0
        %694 = vmatmul.mubr.bf16.gmra.mxu0 %v546
        %v695 = vpop.f32.mrf.mxu0
        %v696 = vadd.f32 0.0, %v695
        %v697 = vpop.f32.mrf.mxu0
        %v698 = vpop.f32.mrf.mxu0
        %v699 = vadd.f32 0.0, %v698
        %v700 = vpop.f32.mrf.mxu0
        %701 = vmatprep.mubr.bf16.mxu0 0
        %702 = vmatmul.mubr.bf16.gmra.mxu0 %v549
        %v703 = vpop.f32.mrf.mxu0
        %v704 = vadd.f32 0.0, %v703
        %v705 = vpop.f32.mrf.mxu0
        %v706 = vpop.f32.mrf.mxu0
        %v707 = vadd.f32 0.0, %v706
        %v708 = vpop.f32.mrf.mxu0
        %709 = vmatprep.mubr.bf16.mxu0 0
        %710 = vmatmul.mubr.bf16.gmra.mxu0 %v552
        %v711 = vpop.f32.mrf.mxu0
        %v712 = vadd.f32 0.0, %v711
        %v713 = vpop.f32.mrf.mxu0
        %v714 = vpop.f32.mrf.mxu0
        %v715 = vadd.f32 0.0, %v714
        %v716 = vpop.f32.mrf.mxu0
        %717 = vmatprep.mubr.bf16.mxu0 0
        %718 = vmatmul.mubr.bf16.gmra.mxu0 %v555
        %v719 = vpop.f32.mrf.mxu0
        %v720 = vadd.f32 0.0, %v719
        %v721 = vpop.f32.mrf.mxu0
        %v722 = vpop.f32.mrf.mxu0
        %v723 = vadd.f32 0.0, %v722
        %v724 = vpop.f32.mrf.mxu0
        %725 = vmatprep.mubr.bf16.mxu0 0
        %726 = vmatmul.mubr.bf16.gmra.mxu0 %v558
        %v727 = vpop.f32.mrf.mxu0
        %v728 = vadd.f32 0.0, %v727
        %v729 = vpop.f32.mrf.mxu0
        %v730 = vpop.f32.mrf.mxu0
        %v731 = vadd.f32 0.0, %v730
        %v732 = vpop.f32.mrf.mxu0
        %733 = vmatprep.mubr.bf16.mxu0 0
        %734 = vmatmul.mubr.bf16.gmra.mxu0 %v561
        %v735 = vpop.f32.mrf.mxu0
        %v736 = vadd.f32 0.0, %v735
        %v737 = vpop.f32.mrf.mxu0
        %v738 = vpop.f32.mrf.mxu0
        %v739 = vadd.f32 0.0, %v738
        %v740 = vpop.f32.mrf.mxu0
        %741 = vmatprep.mubr.bf16.mxu0 0
        %742 = vmatmul.mubr.bf16.gmra.mxu0 %v564
        %v743 = vpop.f32.mrf.mxu0
        %v744 = vadd.f32 0.0, %v743
        %v745 = vpop.f32.mrf.mxu0
        %v746 = vpop.f32.mrf.mxu0
        %v747 = vadd.f32 0.0, %v746
        %v748 = vpop.f32.mrf.mxu0
        %749 = vmatprep.mubr.bf16.mxu0 0
        %750 = vmatmul.mubr.bf16.gmra.mxu0 %v567
        %v751 = vpop.f32.mrf.mxu0
        %v752 = vadd.f32 0.0, %v751
        %v753 = vpop.f32.mrf.mxu0
        %v754 = vpop.f32.mrf.mxu0
        %v755 = vadd.f32 0.0, %v754
        %v756 = vpop.f32.mrf.mxu0
        %757 = vmatprep.mubr.bf16.mxu0 0
        %758 = vmatmul.mubr.bf16.gmra.mxu0 %v570
        %v759 = vpop.f32.mrf.mxu0
        %v760 = vadd.f32 0.0, %v759
        %v761 = vpop.f32.mrf.mxu0
        %v762 = vpop.f32.mrf.mxu0
        %v763 = vadd.f32 0.0, %v762
        %v764 = vpop.f32.mrf.mxu0
        %765 = vmatprep.mubr.bf16.mxu0 0
        %766 = vmatmul.mubr.bf16.gmra.mxu0 %v573
        %v767 = vpop.f32.mrf.mxu0
        %v768 = vadd.f32 0.0, %v767
        %v769 = vpop.f32.mrf.mxu0
        %v770 = vpop.f32.mrf.mxu0
        %v771 = vadd.f32 0.0, %v770
        %v772 = vpop.f32.mrf.mxu0
        %773 = vmatprep.mubr.bf16.mxu0 0
        %774 = vmatmul.mubr.bf16.gmra.mxu0 %v576
        %v775 = vpop.f32.mrf.mxu0
        %v776 = vadd.f32 0.0, %v775
        %v777 = vpop.f32.mrf.mxu0
        %v778 = vpop.f32.mrf.mxu0
        %v779 = vadd.f32 0.0, %v778
        %v780 = vpop.f32.mrf.mxu0
        %781 = vmatprep.mubr.bf16.mxu0 0
        %782 = vmatmul.mubr.bf16.gmra.mxu0 %v579
        %v783 = vpop.f32.mrf.mxu0
        %v784 = vadd.f32 0.0, %v783
        %v785 = vpop.f32.mrf.mxu0
        %v786 = vpop.f32.mrf.mxu0
        %v787 = vadd.f32 0.0, %v786
        %v788 = vpop.f32.mrf.mxu0
        %789 = vmatprep.mubr.bf16.mxu0 0
        %790 = vmatmul.mubr.bf16.gmra.mxu0 %v582
        %v791 = vpop.f32.mrf.mxu0
        %v792 = vadd.f32 0.0, %v791
        %v793 = vpop.f32.mrf.mxu0
        %v794 = vpop.f32.mrf.mxu0
        %v795 = vadd.f32 0.0, %v794
        %v796 = vpop.f32.mrf.mxu0
        %797 = vmatprep.mubr.bf16.mxu0 0
        %798 = vmatmul.mubr.bf16.gmra.mxu0 %v585
        %v799 = vpop.f32.mrf.mxu0
        %v800 = vadd.f32 0.0, %v799
        %v801 = vpop.f32.mrf.mxu0
        %v802 = vpop.f32.mrf.mxu0
        %v803 = vadd.f32 0.0, %v802
        %v804 = vpop.f32.mrf.mxu0
        %805 = vmatprep.mubr.bf16.mxu0 0
        %806 = vmatmul.mubr.bf16.gmra.mxu0 %v588
        %v807 = vpop.f32.mrf.mxu0
        %v808 = vadd.f32 0.0, %v807
        %v809 = vpop.f32.mrf.mxu0
        %v810 = vpop.f32.mrf.mxu0
        %v811 = vadd.f32 0.0, %v810
        %v812 = vpop.f32.mrf.mxu0
        %813 = vmatprep.mubr.bf16.mxu0 0
        %814 = vmatmul.mubr.bf16.gmra.mxu0 %v591
        %v815 = vpop.f32.mrf.mxu0
        %v816 = vadd.f32 0.0, %v815
        %v817 = vpop.f32.mrf.mxu0
        %v818 = vpop.f32.mrf.mxu0
        %v819 = vadd.f32 0.0, %v818
        %v820 = vpop.f32.mrf.mxu0
        %821 = vmatprep.mubr.bf16.mxu0 0
        %822 = vmatmul.mubr.bf16.gmra.mxu0 %v594
        %v823 = vpop.f32.mrf.mxu0
        %v824 = vadd.f32 0.0, %v823
        %v825 = vpop.f32.mrf.mxu0
        %v826 = vpop.f32.mrf.mxu0
        %v827 = vadd.f32 0.0, %v826
        %v828 = vpop.f32.mrf.mxu0
        %829 = vmatprep.mubr.bf16.mxu0 0
        %830 = vmatmul.mubr.bf16.gmra.mxu0 %v597
        %v831 = vpop.f32.mrf.mxu0
        %v832 = vadd.f32 0.0, %v831
        %v833 = vpop.f32.mrf.mxu0
        %v834 = vpop.f32.mrf.mxu0
        %v835 = vadd.f32 0.0, %v834
        %v836 = vpop.f32.mrf.mxu0
        %837 = vmatprep.mubr.bf16.mxu0 0
        %838 = vmatmul.mubr.bf16.gmra.mxu0 %v600
        %v839 = vpop.f32.mrf.mxu0
        %v840 = vadd.f32 0.0, %v839
        %v841 = vpop.f32.mrf.mxu0
        %v842 = vpop.f32.mrf.mxu0
        %v843 = vadd.f32 0.0, %v842
        %v844 = vpop.f32.mrf.mxu0
        %845 = vmatprep.mubr.bf16.mxu0 0
        %846 = vmatmul.mubr.bf16.gmra.mxu0 %v603
        %v847 = vpop.f32.mrf.mxu0
        %v848 = vadd.f32 0.0, %v847
        %v849 = vpop.f32.mrf.mxu0
        %v850 = vpop.f32.mrf.mxu0
        %v851 = vadd.f32 0.0, %v850
        %v852 = vpop.f32.mrf.mxu0
        %853 = vmatprep.mubr.bf16.mxu0 0
        %854 = vmatmul.mubr.bf16.gmra.mxu0 %v606
        %v855 = vpop.f32.mrf.mxu0
        %v856 = vadd.f32 0.0, %v855
        %v857 = vpop.f32.mrf.mxu0
        %v858 = vpop.f32.mrf.mxu0
        %v859 = vadd.f32 0.0, %v858
        %v860 = vpop.f32.mrf.mxu0
        %861 = vmatprep.mubr.bf16.mxu0 0
        %862 = vmatmul.mubr.bf16.gmra.mxu0 %v609
        %v863 = vpop.f32.mrf.mxu0
        %v864 = vadd.f32 0.0, %v863
        %v865 = vpop.f32.mrf.mxu0
        %v866 = vpop.f32.mrf.mxu0
        %v867 = vadd.f32 0.0, %v866
        %v868 = vpop.f32.mrf.mxu0
        %869 = vmatprep.mubr.bf16.mxu0 0
        %870 = vmatmul.mubr.bf16.gmra.mxu0 %v612
        %v871 = vpop.f32.mrf.mxu0
        %v872 = vadd.f32 0.0, %v871
        %v873 = vpop.f32.mrf.mxu0
        %v874 = vpop.f32.mrf.mxu0
        %v875 = vadd.f32 0.0, %v874
        %v876 = vpop.f32.mrf.mxu0
        %877 = vmatprep.mubr.bf16.mxu0 0
        %878 = vmatmul.mubr.bf16.gmra.mxu0 %v615
        %v879 = vpop.f32.mrf.mxu0
        %v880 = vadd.f32 0.0, %v879
        %v881 = vpop.f32.mrf.mxu0
        %v882 = vpop.f32.mrf.mxu0
        %v883 = vadd.f32 0.0, %v882
        %v884 = vpop.f32.mrf.mxu0
        %885 = vmatprep.mubr.bf16.mxu0 0
        %886 = vmatmul.mubr.bf16.gmra.mxu0 %v618
        %v887 = vpop.f32.mrf.mxu0
        %v888 = vadd.f32 0.0, %v887
        %v889 = vpop.f32.mrf.mxu0
        %v890 = vpop.f32.mrf.mxu0
        %v891 = vadd.f32 0.0, %v890
        %v892 = vpop.f32.mrf.mxu0
        %893 = vmatprep.mubr.bf16.mxu0 0
        %894 = vmatmul.mubr.bf16.gmra.mxu0 %v621
        %v895 = vpop.f32.mrf.mxu0
        %v896 = vadd.f32 0.0, %v895
        %v897 = vpop.f32.mrf.mxu0
        %v898 = vpop.f32.mrf.mxu0
        %v899 = vadd.f32 0.0, %v898
        %v900 = vpop.f32.mrf.mxu0
        %901 = vmatprep.mubr.bf16.mxu0 0
        %902 = vmatmul.mubr.bf16.gmra.mxu0 %v624
        %v903 = vpop.f32.mrf.mxu0
        %v904 = vadd.f32 0.0, %v903
        %v905 = vpop.f32.mrf.mxu0
        %v906 = vpop.f32.mrf.mxu0
        %v907 = vadd.f32 0.0, %v906
        %v908 = vpop.f32.mrf.mxu0
        %909 = vmatprep.mubr.bf16.mxu0 0
        %910 = vmatmul.mubr.bf16.gmra.mxu0 %v627
        %v911 = vpop.f32.mrf.mxu0
        %v912 = vadd.f32 0.0, %v911
        %v913 = vpop.f32.mrf.mxu0
        %v914 = vpop.f32.mrf.mxu0
        %v915 = vadd.f32 0.0, %v914
        %v916 = vpop.f32.mrf.mxu0
        %917 = vdwg.mxu0
        %v918 = vld [vmem:[#allocation3] sm:$0xff]
        %v919 = vadd.f32 %v664, %v667
        %v920 = vadd.f32 %v919, %v672
        %v921 = vadd.f32 %v920, %v675
        %v922 = vadd.f32 %v921, %v680
        %v923 = vadd.f32 %v922, %v683
        %v924 = vadd.f32 %v923, %v688
        %v925 = vadd.f32 %v924, %v691
        %v926 = vadd.f32 %v925, %v696
        %v927 = vadd.f32 %v926, %v699
        %v928 = vadd.f32 %v927, %v704
        %v929 = vadd.f32 %v928, %v707
        %v930 = vadd.f32 %v929, %v712
        %v931 = vadd.f32 %v930, %v715
        %v932 = vadd.f32 %v931, %v720
        %v933 = vadd.f32 %v932, %v723
        %v934 = vadd.f32 %v933, %v728
        %v935 = vadd.f32 %v934, %v731
        %v936 = vadd.f32 %v935, %v736
        %v937 = vadd.f32 %v936, %v739
        %v938 = vadd.f32 %v937, %v744
        %v939 = vadd.f32 %v938, %v747
        %v940 = vadd.f32 %v939, %v752
        %v941 = vadd.f32 %v940, %v755
        %v942 = vadd.f32 %v941, %v760
        %v943 = vadd.f32 %v942, %v763
        %v944 = vadd.f32 %v943, %v768
        %v945 = vadd.f32 %v944, %v771
        %v946 = vadd.f32 %v945, %v776
        %v947 = vadd.f32 %v946, %v779
        %v948 = vadd.f32 %v947, %v784
        %v949 = vadd.f32 %v948, %v787
        %v950 = vadd.f32 %v949, %v792
        %v951 = vadd.f32 %v950, %v795
        %v952 = vadd.f32 %v951, %v800
        %v953 = vadd.f32 %v952, %v803
        %v954 = vadd.f32 %v953, %v808
        %v955 = vadd.f32 %v954, %v811
        %v956 = vadd.f32 %v955, %v816
        %v957 = vadd.f32 %v956, %v819
        %v958 = vadd.f32 %v957, %v824
        %v959 = vadd.f32 %v958, %v827
        %v960 = vadd.f32 %v959, %v832
        %v961 = vadd.f32 %v960, %v835
        %v962 = vadd.f32 %v961, %v840
        %v963 = vadd.f32 %v962, %v843
        %v964 = vadd.f32 %v963, %v848
        %v965 = vadd.f32 %v964, %v851
        %v966 = vadd.f32 %v965, %v856
        %v967 = vadd.f32 %v966, %v859
        %v968 = vadd.f32 %v967, %v864
        %v969 = vadd.f32 %v968, %v867
        %v970 = vadd.f32 %v969, %v872
        %v971 = vadd.f32 %v970, %v875
        %v972 = vadd.f32 %v971, %v880
        %v973 = vadd.f32 %v972, %v883
        %v974 = vadd.f32 %v973, %v888
        %v975 = vadd.f32 %v974, %v891
        %v976 = vadd.f32 %v975, %v896
        %v977 = vadd.f32 %v976, %v899
        %v978 = vadd.f32 %v977, %v904
        %v979 = vadd.f32 %v978, %v907
        %v980 = vadd.f32 %v979, %v912
        %v981 = vadd.f32 %v980, %v915
        %v982 = vadd.f32 %v918, %v981
        %983 = vst [vmem:[#allocation3] sm:$0xff] %v982
        %v984 = vld [vmem:[#allocation4] sm:$0xff]
        %v985 = vmul.f32 %v664, %v664
        %v986 = vmul.f32 %v667, %v667
        %v987 = vmul.f32 %v672, %v672
        %v988 = vmul.f32 %v675, %v675
        %v989 = vmul.f32 %v680, %v680
        %v990 = vmul.f32 %v683, %v683
        %v991 = vmul.f32 %v688, %v688
        %v992 = vmul.f32 %v691, %v691
        %v993 = vmul.f32 %v696, %v696
        %v994 = vmul.f32 %v699, %v699
        %v995 = vmul.f32 %v704, %v704
        %v996 = vmul.f32 %v707, %v707
        %v997 = vmul.f32 %v712, %v712
        %v998 = vmul.f32 %v715, %v715
        %v999 = vmul.f32 %v720, %v720
        %v1000 = vmul.f32 %v723, %v723
        %v1001 = vmul.f32 %v728, %v728
        %v1002 = vmul.f32 %v731, %v731
        %v1003 = vmul.f32 %v736, %v736
        %v1004 = vmul.f32 %v739, %v739
        %v1005 = vmul.f32 %v744, %v744
        %v1006 = vmul.f32 %v747, %v747
        %v1007 = vmul.f32 %v752, %v752
        %v1008 = vmul.f32 %v755, %v755
        %v1009 = vmul.f32 %v760, %v760
        %v1010 = vmul.f32 %v763, %v763
        %v1011 = vmul.f32 %v768, %v768
        %v1012 = vmul.f32 %v771, %v771
        %v1013 = vmul.f32 %v776, %v776
        %v1014 = vmul.f32 %v779, %v779
        %v1015 = vmul.f32 %v784, %v784
        %v1016 = vmul.f32 %v787, %v787
        %v1017 = vmul.f32 %v792, %v792
        %v1018 = vmul.f32 %v795, %v795
        %v1019 = vmul.f32 %v800, %v800
        %v1020 = vmul.f32 %v803, %v803
        %v1021 = vmul.f32 %v808, %v808
        %v1022 = vmul.f32 %v811, %v811
        %v1023 = vmul.f32 %v816, %v816
        %v1024 = vmul.f32 %v819, %v819
        %v1025 = vmul.f32 %v824, %v824
        %v1026 = vmul.f32 %v827, %v827
        %v1027 = vmul.f32 %v832, %v832
        %v1028 = vmul.f32 %v835, %v835
        %v1029 = vmul.f32 %v840, %v840
        %v1030 = vmul.f32 %v843, %v843
        %v1031 = vmul.f32 %v848, %v848
        %v1032 = vmul.f32 %v851, %v851
        %v1033 = vmul.f32 %v856, %v856
        %v1034 = vmul.f32 %v859, %v859
        %v1035 = vmul.f32 %v864, %v864
        %v1036 = vmul.f32 %v867, %v867
        %v1037 = vmul.f32 %v872, %v872
        %v1038 = vmul.f32 %v875, %v875
        %v1039 = vmul.f32 %v880, %v880
        %v1040 = vmul.f32 %v883, %v883
        %v1041 = vmul.f32 %v888, %v888
        %v1042 = vmul.f32 %v891, %v891
        %v1043 = vmul.f32 %v896, %v896
        %v1044 = vmul.f32 %v899, %v899
        %v1045 = vmul.f32 %v904, %v904
        %v1046 = vmul.f32 %v907, %v907
        %v1047 = vmul.f32 %v912, %v912
        %v1048 = vmul.f32 %v915, %v915
        %v1049 = vadd.f32 %v985, %v986
        %v1050 = vadd.f32 %v1049, %v987
        %v1051 = vadd.f32 %v1050, %v988
        %v1052 = vadd.f32 %v1051, %v989
        %v1053 = vadd.f32 %v1052, %v990
        %v1054 = vadd.f32 %v1053, %v991
        %v1055 = vadd.f32 %v1054, %v992
        %v1056 = vadd.f32 %v1055, %v993
        %v1057 = vadd.f32 %v1056, %v994
        %v1058 = vadd.f32 %v1057, %v995
        %v1059 = vadd.f32 %v1058, %v996
        %v1060 = vadd.f32 %v1059, %v997
        %v1061 = vadd.f32 %v1060, %v998
        %v1062 = vadd.f32 %v1061, %v999
        %v1063 = vadd.f32 %v1062, %v1000
        %v1064 = vadd.f32 %v1063, %v1001
        %v1065 = vadd.f32 %v1064, %v1002
        %v1066 = vadd.f32 %v1065, %v1003
        %v1067 = vadd.f32 %v1066, %v1004
        %v1068 = vadd.f32 %v1067, %v1005
        %v1069 = vadd.f32 %v1068, %v1006
        %v1070 = vadd.f32 %v1069, %v1007
        %v1071 = vadd.f32 %v1070, %v1008
        %v1072 = vadd.f32 %v1071, %v1009
        %v1073 = vadd.f32 %v1072, %v1010
        %v1074 = vadd.f32 %v1073, %v1011
        %v1075 = vadd.f32 %v1074, %v1012
        %v1076 = vadd.f32 %v1075, %v1013
        %v1077 = vadd.f32 %v1076, %v1014
        %v1078 = vadd.f32 %v1077, %v1015
        %v1079 = vadd.f32 %v1078, %v1016
        %v1080 = vadd.f32 %v1079, %v1017
        %v1081 = vadd.f32 %v1080, %v1018
        %v1082 = vadd.f32 %v1081, %v1019
        %v1083 = vadd.f32 %v1082, %v1020
        %v1084 = vadd.f32 %v1083, %v1021
        %v1085 = vadd.f32 %v1084, %v1022
        %v1086 = vadd.f32 %v1085, %v1023
        %v1087 = vadd.f32 %v1086, %v1024
        %v1088 = vadd.f32 %v1087, %v1025
        %v1089 = vadd.f32 %v1088, %v1026
        %v1090 = vadd.f32 %v1089, %v1027
        %v1091 = vadd.f32 %v1090, %v1028
        %v1092 = vadd.f32 %v1091, %v1029
        %v1093 = vadd.f32 %v1092, %v1030
        %v1094 = vadd.f32 %v1093, %v1031
        %v1095 = vadd.f32 %v1094, %v1032
        %v1096 = vadd.f32 %v1095, %v1033
        %v1097 = vadd.f32 %v1096, %v1034
        %v1098 = vadd.f32 %v1097, %v1035
        %v1099 = vadd.f32 %v1098, %v1036
        %v1100 = vadd.f32 %v1099, %v1037
        %v1101 = vadd.f32 %v1100, %v1038
        %v1102 = vadd.f32 %v1101, %v1039
        %v1103 = vadd.f32 %v1102, %v1040
        %v1104 = vadd.f32 %v1103, %v1041
        %v1105 = vadd.f32 %v1104, %v1042
        %v1106 = vadd.f32 %v1105, %v1043
        %v1107 = vadd.f32 %v1106, %v1044
        %v1108 = vadd.f32 %v1107, %v1045
        %v1109 = vadd.f32 %v1108, %v1046
        %v1110 = vadd.f32 %v1109, %v1047
        %v1111 = vadd.f32 %v1110, %v1048
        %v1112 = vadd.f32 %v984, %v1111
        %1113 = vst [vmem:[#allocation4] sm:$0xff] %v1112
        %v1114 = vpack.c.bf16 %v667, %v664
        %v1115 = vpack.c.bf16 %v675, %v672
        %v1116 = vpack.c.bf16 %v683, %v680
        %v1117 = vpack.c.bf16 %v691, %v688
        %v1118 = vpack.c.bf16 %v699, %v696
        %v1119 = vpack.c.bf16 %v707, %v704
        %v1120 = vpack.c.bf16 %v715, %v712
        %v1121 = vpack.c.bf16 %v723, %v720
        %v1122 = vpack.c.bf16 %v731, %v728
        %v1123 = vpack.c.bf16 %v739, %v736
        %v1124 = vpack.c.bf16 %v747, %v744
        %v1125 = vpack.c.bf16 %v755, %v752
        %v1126 = vpack.c.bf16 %v763, %v760
        %v1127 = vpack.c.bf16 %v771, %v768
        %v1128 = vpack.c.bf16 %v779, %v776
        %v1129 = vpack.c.bf16 %v787, %v784
        %v1130 = vpack.c.bf16 %v795, %v792
        %v1131 = vpack.c.bf16 %v803, %v800
        %v1132 = vpack.c.bf16 %v811, %v808
        %v1133 = vpack.c.bf16 %v819, %v816
        %v1134 = vpack.c.bf16 %v827, %v824
        %v1135 = vpack.c.bf16 %v835, %v832
        %v1136 = vpack.c.bf16 %v843, %v840
        %v1137 = vpack.c.bf16 %v851, %v848
        %v1138 = vpack.c.bf16 %v859, %v856
        %v1139 = vpack.c.bf16 %v867, %v864
        %v1140 = vpack.c.bf16 %v875, %v872
        %v1141 = vpack.c.bf16 %v883, %v880
        %v1142 = vpack.c.bf16 %v891, %v888
        %v1143 = vpack.c.bf16 %v899, %v896
        %v1144 = vpack.c.bf16 %v907, %v904
        %v1145 = vpack.c.bf16 %v915, %v912
        %v1178 = vunpack.c.l.b16 %v1114
        %v1179 = vunpack.c.h.b16 %v1114
        %v1180 = vunpack.c.l.b16 %v1115
        %v1181 = vunpack.c.h.b16 %v1115
        %v1182 = vunpack.c.l.b16 %v1116
        %v1183 = vunpack.c.h.b16 %v1116
        %v1184 = vunpack.c.l.b16 %v1117
        %v1185 = vunpack.c.h.b16 %v1117
        %v1186 = vunpack.c.l.b16 %v1118
        %v1187 = vunpack.c.h.b16 %v1118
        %v1188 = vunpack.c.l.b16 %v1119
        %v1189 = vunpack.c.h.b16 %v1119
        %v1190 = vunpack.c.l.b16 %v1120
        %v1191 = vunpack.c.h.b16 %v1120
        %v1192 = vunpack.c.l.b16 %v1121
        %v1193 = vunpack.c.h.b16 %v1121
        %v1194 = vunpack.c.l.b16 %v1122
        %v1195 = vunpack.c.h.b16 %v1122
        %v1196 = vunpack.c.l.b16 %v1123
        %v1197 = vunpack.c.h.b16 %v1123
        %v1198 = vunpack.c.l.b16 %v1124
        %v1199 = vunpack.c.h.b16 %v1124
        %v1200 = vunpack.c.l.b16 %v1125
        %v1201 = vunpack.c.h.b16 %v1125
        %v1202 = vunpack.c.l.b16 %v1126
        %v1203 = vunpack.c.h.b16 %v1126
        %v1204 = vunpack.c.l.b16 %v1127
        %v1205 = vunpack.c.h.b16 %v1127
        %v1206 = vunpack.c.l.b16 %v1128
        %v1207 = vunpack.c.h.b16 %v1128
        %v1208 = vunpack.c.l.b16 %v1129
        %v1209 = vunpack.c.h.b16 %v1129
        %v1210 = vunpack.c.l.b16 %v1130
        %v1211 = vunpack.c.h.b16 %v1130
        %v1212 = vunpack.c.l.b16 %v1131
        %v1213 = vunpack.c.h.b16 %v1131
        %v1214 = vunpack.c.l.b16 %v1132
        %v1215 = vunpack.c.h.b16 %v1132
        %v1216 = vunpack.c.l.b16 %v1133
        %v1217 = vunpack.c.h.b16 %v1133
        %v1218 = vunpack.c.l.b16 %v1134
        %v1219 = vunpack.c.h.b16 %v1134
        %v1220 = vunpack.c.l.b16 %v1135
        %v1221 = vunpack.c.h.b16 %v1135
        %v1222 = vunpack.c.l.b16 %v1136
        %v1223 = vunpack.c.h.b16 %v1136
        %v1224 = vunpack.c.l.b16 %v1137
        %v1225 = vunpack.c.h.b16 %v1137
        %v1226 = vunpack.c.l.b16 %v1138
        %v1227 = vunpack.c.h.b16 %v1138
        %v1228 = vunpack.c.l.b16 %v1139
        %v1229 = vunpack.c.h.b16 %v1139
        %v1230 = vunpack.c.l.b16 %v1140
        %v1231 = vunpack.c.h.b16 %v1140
        %v1232 = vunpack.c.l.b16 %v1141
        %v1233 = vunpack.c.h.b16 %v1141
        %v1234 = vunpack.c.l.b16 %v1142
        %v1235 = vunpack.c.h.b16 %v1142
        %v1236 = vunpack.c.l.b16 %v1143
        %v1237 = vunpack.c.h.b16 %v1143
        %v1238 = vunpack.c.l.b16 %v1144
        %v1239 = vunpack.c.h.b16 %v1144
        %v1240 = vunpack.c.l.b16 %v1145
        %v1241 = vunpack.c.h.b16 %v1145
        %v1242 = vpack.c.b16 %v1178, %v1178
        %v1243 = vpack.c.b16 %v1179, %v1179
        %v1244 = vpack.c.b16 %v1180, %v1180
        %v1245 = vpack.c.b16 %v1181, %v1181
        %v1246 = vpack.c.b16 %v1182, %v1182
        %v1247 = vpack.c.b16 %v1183, %v1183
        %v1248 = vpack.c.b16 %v1184, %v1184
        %v1249 = vpack.c.b16 %v1185, %v1185
        %v1250 = vpack.c.b16 %v1186, %v1186
        %v1251 = vpack.c.b16 %v1187, %v1187
        %v1252 = vpack.c.b16 %v1188, %v1188
        %v1253 = vpack.c.b16 %v1189, %v1189
        %v1254 = vpack.c.b16 %v1190, %v1190
        %v1255 = vpack.c.b16 %v1191, %v1191
        %v1256 = vpack.c.b16 %v1192, %v1192
        %v1257 = vpack.c.b16 %v1193, %v1193
        %v1258 = vpack.c.b16 %v1194, %v1194
        %v1259 = vpack.c.b16 %v1195, %v1195
        %v1260 = vpack.c.b16 %v1196, %v1196
        %v1261 = vpack.c.b16 %v1197, %v1197
        %v1262 = vpack.c.b16 %v1198, %v1198
        %v1263 = vpack.c.b16 %v1199, %v1199
        %v1264 = vpack.c.b16 %v1200, %v1200
        %v1265 = vpack.c.b16 %v1201, %v1201
        %v1266 = vpack.c.b16 %v1202, %v1202
        %v1267 = vpack.c.b16 %v1203, %v1203
        %v1268 = vpack.c.b16 %v1204, %v1204
        %v1269 = vpack.c.b16 %v1205, %v1205
        %v1270 = vpack.c.b16 %v1206, %v1206
        %v1271 = vpack.c.b16 %v1207, %v1207
        %v1272 = vpack.c.b16 %v1208, %v1208
        %v1273 = vpack.c.b16 %v1209, %v1209
        %v1274 = vpack.c.b16 %v1210, %v1210
        %v1275 = vpack.c.b16 %v1211, %v1211
        %v1276 = vpack.c.b16 %v1212, %v1212
        %v1277 = vpack.c.b16 %v1213, %v1213
        %v1278 = vpack.c.b16 %v1214, %v1214
        %v1279 = vpack.c.b16 %v1215, %v1215
        %v1280 = vpack.c.b16 %v1216, %v1216
        %v1281 = vpack.c.b16 %v1217, %v1217
        %v1282 = vpack.c.b16 %v1218, %v1218
        %v1283 = vpack.c.b16 %v1219, %v1219
        %v1284 = vpack.c.b16 %v1220, %v1220
        %v1285 = vpack.c.b16 %v1221, %v1221
        %v1286 = vpack.c.b16 %v1222, %v1222
        %v1287 = vpack.c.b16 %v1223, %v1223
        %v1288 = vpack.c.b16 %v1224, %v1224
        %v1289 = vpack.c.b16 %v1225, %v1225
        %v1290 = vpack.c.b16 %v1226, %v1226
        %v1291 = vpack.c.b16 %v1227, %v1227
        %v1292 = vpack.c.b16 %v1228, %v1228
        %v1293 = vpack.c.b16 %v1229, %v1229
        %v1294 = vpack.c.b16 %v1230, %v1230
        %v1295 = vpack.c.b16 %v1231, %v1231
        %v1296 = vpack.c.b16 %v1232, %v1232
        %v1297 = vpack.c.b16 %v1233, %v1233
        %v1298 = vpack.c.b16 %v1234, %v1234
        %v1299 = vpack.c.b16 %v1235, %v1235
        %v1300 = vpack.c.b16 %v1236, %v1236
        %v1301 = vpack.c.b16 %v1237, %v1237
        %v1302 = vpack.c.b16 %v1238, %v1238
        %v1303 = vpack.c.b16 %v1239, %v1239
        %v1304 = vpack.c.b16 %v1240, %v1240
        %v1305 = vpack.c.b16 %v1241, %v1241
        %s1370 = smul.u32 %s21, 64
        %s1371 = smul.addr %s1370, 4
        %s1372 = scalar_lea.vmem [#allocation2], %s1371
        %1373 = vst [vmem:[%s1372] sm:$0xf] %v1242
        %1374 = vst [vmem:[%s1372 + $0x4] sm:$0xf] %v1243
        %1375 = vst [vmem:[%s1372 + $0x8] sm:$0xf] %v1244
        %1376 = vst [vmem:[%s1372 + $0xc] sm:$0xf] %v1245
        %1377 = vst [vmem:[%s1372 + $0x10] sm:$0xf] %v1246
        %1378 = vst [vmem:[%s1372 + $0x14] sm:$0xf] %v1247
        %1379 = vst [vmem:[%s1372 + $0x18] sm:$0xf] %v1248
        %1380 = vst [vmem:[%s1372 + $0x1c] sm:$0xf] %v1249
        %1381 = vst [vmem:[%s1372 + $0x20] sm:$0xf] %v1250
        %1382 = vst [vmem:[%s1372 + $0x24] sm:$0xf] %v1251
        %1383 = vst [vmem:[%s1372 + $0x28] sm:$0xf] %v1252
        %1384 = vst [vmem:[%s1372 + $0x2c] sm:$0xf] %v1253
        %1385 = vst [vmem:[%s1372 + $0x30] sm:$0xf] %v1254
        %1386 = vst [vmem:[%s1372 + $0x34] sm:$0xf] %v1255
        %1387 = vst [vmem:[%s1372 + $0x38] sm:$0xf] %v1256
        %1388 = vst [vmem:[%s1372 + $0x3c] sm:$0xf] %v1257
        %1389 = vst [vmem:[%s1372 + $0x40] sm:$0xf] %v1258
        %1390 = vst [vmem:[%s1372 + $0x44] sm:$0xf] %v1259
        %1391 = vst [vmem:[%s1372 + $0x48] sm:$0xf] %v1260
        %1392 = vst [vmem:[%s1372 + $0x4c] sm:$0xf] %v1261
        %1393 = vst [vmem:[%s1372 + $0x50] sm:$0xf] %v1262
        %1394 = vst [vmem:[%s1372 + $0x54] sm:$0xf] %v1263
        %1395 = vst [vmem:[%s1372 + $0x58] sm:$0xf] %v1264
        %1396 = vst [vmem:[%s1372 + $0x5c] sm:$0xf] %v1265
        %1397 = vst [vmem:[%s1372 + $0x60] sm:$0xf] %v1266
        %1398 = vst [vmem:[%s1372 + $0x64] sm:$0xf] %v1267
        %1399 = vst [vmem:[%s1372 + $0x68] sm:$0xf] %v1268
        %1400 = vst [vmem:[%s1372 + $0x6c] sm:$0xf] %v1269
        %1401 = vst [vmem:[%s1372 + $0x70] sm:$0xf] %v1270
        %1402 = vst [vmem:[%s1372 + $0x74] sm:$0xf] %v1271
        %1403 = vst [vmem:[%s1372 + $0x78] sm:$0xf] %v1272
        %1404 = vst [vmem:[%s1372 + $0x7c] sm:$0xf] %v1273
        %1405 = vst [vmem:[%s1372 + $0x80] sm:$0xf] %v1274
        %1406 = vst [vmem:[%s1372 + $0x84] sm:$0xf] %v1275
        %1407 = vst [vmem:[%s1372 + $0x88] sm:$0xf] %v1276
        %1408 = vst [vmem:[%s1372 + $0x8c] sm:$0xf] %v1277
        %1409 = vst [vmem:[%s1372 + $0x90] sm:$0xf] %v1278
        %1410 = vst [vmem:[%s1372 + $0x94] sm:$0xf] %v1279
        %1411 = vst [vmem:[%s1372 + $0x98] sm:$0xf] %v1280
        %1412 = vst [vmem:[%s1372 + $0x9c] sm:$0xf] %v1281
        %1413 = vst [vmem:[%s1372 + $0xa0] sm:$0xf] %v1282
        %1414 = vst [vmem:[%s1372 + $0xa4] sm:$0xf] %v1283
        %1415 = vst [vmem:[%s1372 + $0xa8] sm:$0xf] %v1284
        %1416 = vst [vmem:[%s1372 + $0xac] sm:$0xf] %v1285
        %1417 = vst [vmem:[%s1372 + $0xb0] sm:$0xf] %v1286
        %1418 = vst [vmem:[%s1372 + $0xb4] sm:$0xf] %v1287
        %1419 = vst [vmem:[%s1372 + $0xb8] sm:$0xf] %v1288
        %1420 = vst [vmem:[%s1372 + $0xbc] sm:$0xf] %v1289
        %1421 = vst [vmem:[%s1372 + $0xc0] sm:$0xf] %v1290
        %1422 = vst [vmem:[%s1372 + $0xc4] sm:$0xf] %v1291
        %1423 = vst [vmem:[%s1372 + $0xc8] sm:$0xf] %v1292
        %1424 = vst [vmem:[%s1372 + $0xcc] sm:$0xf] %v1293
        %1425 = vst [vmem:[%s1372 + $0xd0] sm:$0xf] %v1294
        %1426 = vst [vmem:[%s1372 + $0xd4] sm:$0xf] %v1295
        %1427 = vst [vmem:[%s1372 + $0xd8] sm:$0xf] %v1296
        %1428 = vst [vmem:[%s1372 + $0xdc] sm:$0xf] %v1297
        %1429 = vst [vmem:[%s1372 + $0xe0] sm:$0xf] %v1298
        %1430 = vst [vmem:[%s1372 + $0xe4] sm:$0xf] %v1299
        %1431 = vst [vmem:[%s1372 + $0xe8] sm:$0xf] %v1300
        %1432 = vst [vmem:[%s1372 + $0xec] sm:$0xf] %v1301
        %1433 = vst [vmem:[%s1372 + $0xf0] sm:$0xf] %v1302
        %1434 = vst [vmem:[%s1372 + $0xf4] sm:$0xf] %v1303
        %1435 = vst [vmem:[%s1372 + $0xf8] sm:$0xf] %v1304
        %1436 = vst [vmem:[%s1372 + $0xfc] sm:$0xf] %v1305
      $region44: #{autoencoder_forward.6} parent=39 // pred_fallthru
        _
      %p1437 = scmp.eq.s32.totalorder %s20, 1
      // Predicated region
      $region49: #{autoencoder_forward.6} parent=39 // pred_check
        %p1438 = pneg %p1437
      $region50: #{autoencoder_forward.6} parent=39 // pred_check_branch
        %1440 = sbr.rel (%p1438) target = $region52
      $region51: #{autoencoder_forward.6} parent=39 // pred_region
        %s1441 = smul.u32 %s21, 64
        %s1442 = smul.addr %s1441, 4
        %s1443 = scalar_lea.vmem [#allocation2], %s1442
        %v1444 = vld [vmem:[%s1443] sm:$0xf]
        %v1445 = vld [vmem:[%s1443 + $0x4] sm:$0xf]
        %v1446 = vld [vmem:[%s1443 + $0x8] sm:$0xf]
        %v1447 = vld [vmem:[%s1443 + $0xc] sm:$0xf]
        %v1448 = vld [vmem:[%s1443 + $0x10] sm:$0xf]
        %v1449 = vld [vmem:[%s1443 + $0x14] sm:$0xf]
        %v1450 = vld [vmem:[%s1443 + $0x18] sm:$0xf]
        %v1451 = vld [vmem:[%s1443 + $0x1c] sm:$0xf]
        %v1452 = vld [vmem:[%s1443 + $0x20] sm:$0xf]
        %v1453 = vld [vmem:[%s1443 + $0x24] sm:$0xf]
        %v1454 = vld [vmem:[%s1443 + $0x28] sm:$0xf]
        %v1455 = vld [vmem:[%s1443 + $0x2c] sm:$0xf]
        %v1456 = vld [vmem:[%s1443 + $0x30] sm:$0xf]
        %v1457 = vld [vmem:[%s1443 + $0x34] sm:$0xf]
        %v1458 = vld [vmem:[%s1443 + $0x38] sm:$0xf]
        %v1459 = vld [vmem:[%s1443 + $0x3c] sm:$0xf]
        %v1460 = vld [vmem:[%s1443 + $0x40] sm:$0xf]
        %v1461 = vld [vmem:[%s1443 + $0x44] sm:$0xf]
        %v1462 = vld [vmem:[%s1443 + $0x48] sm:$0xf]
        %v1463 = vld [vmem:[%s1443 + $0x4c] sm:$0xf]
        %v1464 = vld [vmem:[%s1443 + $0x50] sm:$0xf]
        %v1465 = vld [vmem:[%s1443 + $0x54] sm:$0xf]
        %v1466 = vld [vmem:[%s1443 + $0x58] sm:$0xf]
        %v1467 = vld [vmem:[%s1443 + $0x5c] sm:$0xf]
        %v1468 = vld [vmem:[%s1443 + $0x60] sm:$0xf]
        %v1469 = vld [vmem:[%s1443 + $0x64] sm:$0xf]
        %v1470 = vld [vmem:[%s1443 + $0x68] sm:$0xf]
        %v1471 = vld [vmem:[%s1443 + $0x6c] sm:$0xf]
        %v1472 = vld [vmem:[%s1443 + $0x70] sm:$0xf]
        %v1473 = vld [vmem:[%s1443 + $0x74] sm:$0xf]
        %v1474 = vld [vmem:[%s1443 + $0x78] sm:$0xf]
        %v1475 = vld [vmem:[%s1443 + $0x7c] sm:$0xf]
        %v1476 = vld [vmem:[%s1443 + $0x80] sm:$0xf]
        %v1477 = vld [vmem:[%s1443 + $0x84] sm:$0xf]
        %v1478 = vld [vmem:[%s1443 + $0x88] sm:$0xf]
        %v1479 = vld [vmem:[%s1443 + $0x8c] sm:$0xf]
        %v1480 = vld [vmem:[%s1443 + $0x90] sm:$0xf]
        %v1481 = vld [vmem:[%s1443 + $0x94] sm:$0xf]
        %v1482 = vld [vmem:[%s1443 + $0x98] sm:$0xf]
        %v1483 = vld [vmem:[%s1443 + $0x9c] sm:$0xf]
        %v1484 = vld [vmem:[%s1443 + $0xa0] sm:$0xf]
        %v1485 = vld [vmem:[%s1443 + $0xa4] sm:$0xf]
        %v1486 = vld [vmem:[%s1443 + $0xa8] sm:$0xf]
        %v1487 = vld [vmem:[%s1443 + $0xac] sm:$0xf]
        %v1488 = vld [vmem:[%s1443 + $0xb0] sm:$0xf]
        %v1489 = vld [vmem:[%s1443 + $0xb4] sm:$0xf]
        %v1490 = vld [vmem:[%s1443 + $0xb8] sm:$0xf]
        %v1491 = vld [vmem:[%s1443 + $0xbc] sm:$0xf]
        %v1492 = vld [vmem:[%s1443 + $0xc0] sm:$0xf]
        %v1493 = vld [vmem:[%s1443 + $0xc4] sm:$0xf]
        %v1494 = vld [vmem:[%s1443 + $0xc8] sm:$0xf]
        %v1495 = vld [vmem:[%s1443 + $0xcc] sm:$0xf]
        %v1496 = vld [vmem:[%s1443 + $0xd0] sm:$0xf]
        %v1497 = vld [vmem:[%s1443 + $0xd4] sm:$0xf]
        %v1498 = vld [vmem:[%s1443 + $0xd8] sm:$0xf]
        %v1499 = vld [vmem:[%s1443 + $0xdc] sm:$0xf]
        %v1500 = vld [vmem:[%s1443 + $0xe0] sm:$0xf]
        %v1501 = vld [vmem:[%s1443 + $0xe4] sm:$0xf]
        %v1502 = vld [vmem:[%s1443 + $0xe8] sm:$0xf]
        %v1503 = vld [vmem:[%s1443 + $0xec] sm:$0xf]
        %v1504 = vld [vmem:[%s1443 + $0xf0] sm:$0xf]
        %v1505 = vld [vmem:[%s1443 + $0xf4] sm:$0xf]
        %v1506 = vld [vmem:[%s1443 + $0xf8] sm:$0xf]
        %v1507 = vld [vmem:[%s1443 + $0xfc] sm:$0xf]
        %v1508 = vunpack.c.l.bf16 %v1444
        %v1509 = vunpack.c.l.bf16 %v1445
        %v1510 = vunpack.c.l.bf16 %v1446
        %v1511 = vunpack.c.l.bf16 %v1447
        %v1512 = vunpack.c.l.bf16 %v1448
        %v1513 = vunpack.c.l.bf16 %v1449
        %v1514 = vunpack.c.l.bf16 %v1450
        %v1515 = vunpack.c.l.bf16 %v1451
        %v1516 = vunpack.c.l.bf16 %v1452
        %v1517 = vunpack.c.l.bf16 %v1453
        %v1518 = vunpack.c.l.bf16 %v1454
        %v1519 = vunpack.c.l.bf16 %v1455
        %v1520 = vunpack.c.l.bf16 %v1456
        %v1521 = vunpack.c.l.bf16 %v1457
        %v1522 = vunpack.c.l.bf16 %v1458
        %v1523 = vunpack.c.l.bf16 %v1459
        %v1524 = vunpack.c.l.bf16 %v1460
        %v1525 = vunpack.c.l.bf16 %v1461
        %v1526 = vunpack.c.l.bf16 %v1462
        %v1527 = vunpack.c.l.bf16 %v1463
        %v1528 = vunpack.c.l.bf16 %v1464
        %v1529 = vunpack.c.l.bf16 %v1465
        %v1530 = vunpack.c.l.bf16 %v1466
        %v1531 = vunpack.c.l.bf16 %v1467
        %v1532 = vunpack.c.l.bf16 %v1468
        %v1533 = vunpack.c.l.bf16 %v1469
        %v1534 = vunpack.c.l.bf16 %v1470
        %v1535 = vunpack.c.l.bf16 %v1471
        %v1536 = vunpack.c.l.bf16 %v1472
        %v1537 = vunpack.c.l.bf16 %v1473
        %v1538 = vunpack.c.l.bf16 %v1474
        %v1539 = vunpack.c.l.bf16 %v1475
        %v1540 = vunpack.c.l.bf16 %v1476
        %v1541 = vunpack.c.l.bf16 %v1477
        %v1542 = vunpack.c.l.bf16 %v1478
        %v1543 = vunpack.c.l.bf16 %v1479
        %v1544 = vunpack.c.l.bf16 %v1480
        %v1545 = vunpack.c.l.bf16 %v1481
        %v1546 = vunpack.c.l.bf16 %v1482
        %v1547 = vunpack.c.l.bf16 %v1483
        %v1548 = vunpack.c.l.bf16 %v1484
        %v1549 = vunpack.c.l.bf16 %v1485
        %v1550 = vunpack.c.l.bf16 %v1486
        %v1551 = vunpack.c.l.bf16 %v1487
        %v1552 = vunpack.c.l.bf16 %v1488
        %v1553 = vunpack.c.l.bf16 %v1489
        %v1554 = vunpack.c.l.bf16 %v1490
        %v1555 = vunpack.c.l.bf16 %v1491
        %v1556 = vunpack.c.l.bf16 %v1492
        %v1557 = vunpack.c.l.bf16 %v1493
        %v1558 = vunpack.c.l.bf16 %v1494
        %v1559 = vunpack.c.l.bf16 %v1495
        %v1560 = vunpack.c.l.bf16 %v1496
        %v1561 = vunpack.c.l.bf16 %v1497
        %v1562 = vunpack.c.l.bf16 %v1498
        %v1563 = vunpack.c.l.bf16 %v1499
        %v1564 = vunpack.c.l.bf16 %v1500
        %v1565 = vunpack.c.l.bf16 %v1501
        %v1566 = vunpack.c.l.bf16 %v1502
        %v1567 = vunpack.c.l.bf16 %v1503
        %v1568 = vunpack.c.l.bf16 %v1504
        %v1569 = vunpack.c.l.bf16 %v1505
        %v1570 = vunpack.c.l.bf16 %v1506
        %v1571 = vunpack.c.l.bf16 %v1507
        %v1572 = vld [vmem:[#allocation3] sm:$0xff]
        %v1573 = vld [vmem:[%s2] sm:$0xff]
        %v1574 = vld [vmem:[%s2 + $0x8] sm:$0xff]
        %v1575 = vld [vmem:[%s2 + $0x10] sm:$0xff]
        %v1576 = vld [vmem:[%s2 + $0x18] sm:$0xff]
        %v1577 = vld [vmem:[%s2 + $0x20] sm:$0xff]
        %v1578 = vld [vmem:[%s2 + $0x28] sm:$0xff]
        %v1579 = vld [vmem:[%s2 + $0x30] sm:$0xff]
        %v1580 = vld [vmem:[%s2 + $0x38] sm:$0xff]
        %v1581 = vld [vmem:[%s2 + $0x40] sm:$0xff]
        %v1582 = vld [vmem:[%s2 + $0x48] sm:$0xff]
        %v1583 = vld [vmem:[%s2 + $0x50] sm:$0xff]
        %v1584 = vld [vmem:[%s2 + $0x58] sm:$0xff]
        %v1585 = vld [vmem:[%s2 + $0x60] sm:$0xff]
        %v1586 = vld [vmem:[%s2 + $0x68] sm:$0xff]
        %v1587 = vld [vmem:[%s2 + $0x70] sm:$0xff]
        %v1588 = vld [vmem:[%s2 + $0x78] sm:$0xff]
        %1589 = vmatprep.subr.mxu0 0.0
        %1590 = vmatpush1.msra.mxu0 %v1588
        %1591 = vmatprep.subr.mxu0 0.0
        %1592 = vmatpush1.msra.mxu0 %v1587
        %1593 = vmatprep.subr.mxu0 0.0
        %1594 = vmatpush1.msra.mxu0 %v1586
        %1595 = vmatprep.subr.mxu0 0.0
        %1596 = vmatpush1.msra.mxu0 %v1585
        %1597 = vmatprep.subr.mxu0 0.0
        %1598 = vmatpush1.msra.mxu0 %v1584
        %1599 = vmatprep.subr.mxu0 0.0
        %1600 = vmatpush1.msra.mxu0 %v1583
        %1601 = vmatprep.subr.mxu0 0.0
        %1602 = vmatpush1.msra.mxu0 %v1582
        %1603 = vmatprep.subr.mxu0 0.0
        %1604 = vmatpush1.msra.mxu0 %v1581
        %1605 = vmatprep.subr.mxu0 0.0
        %1606 = vmatpush1.msra.mxu0 %v1580
        %1607 = vmatprep.subr.mxu0 0.0
        %1608 = vmatpush1.msra.mxu0 %v1579
        %1609 = vmatprep.subr.mxu0 0.0
        %1610 = vmatpush1.msra.mxu0 %v1578
        %1611 = vmatprep.subr.mxu0 0.0
        %1612 = vmatpush1.msra.mxu0 %v1577
        %1613 = vmatprep.subr.mxu0 0.0
        %1614 = vmatpush1.msra.mxu0 %v1576
        %1615 = vmatprep.subr.mxu0 0.0
        %1616 = vmatpush1.msra.mxu0 %v1575
        %1617 = vmatprep.subr.mxu0 0.0
        %1618 = vmatpush1.msra.mxu0 %v1574
        %1619 = vmatprep.subr.mxu0 0.0
        %1620 = vmatpush1.msra.mxu0 %v1573
        %1621 = vmatprep.subr.mxu0 0.0
        %1622 = vmatpush2.msra.mxu0 0.0
        %1623 = vmatprep.subr.mxu0 0.0
        %1624 = vmatpush2.msra.mxu0 0.0
        %1625 = vmatprep.subr.mxu0 0.0
        %1626 = vmatpush2.msra.mxu0 0.0
        %1627 = vmatprep.subr.mxu0 0.0
        %1628 = vmatpush2.msra.mxu0 0.0
        %1629 = vmatprep.subr.mxu0 0.0
        %1630 = vmatpush2.msra.mxu0 0.0
        %1631 = vmatprep.subr.mxu0 0.0
        %1632 = vmatpush2.msra.mxu0 0.0
        %1633 = vmatprep.subr.mxu0 0.0
        %1634 = vmatpush2.msra.mxu0 0.0
        %1635 = vmatprep.subr.mxu0 0.0
        %1636 = vmatpush2.msra.mxu0 0.0
        %1637 = vmatprep.subr.mxu0 0.0
        %1638 = vmatpush2.msra.mxu0 0.0
        %1639 = vmatprep.subr.mxu0 0.0
        %1640 = vmatpush2.msra.mxu0 0.0
        %1641 = vmatprep.subr.mxu0 0.0
        %1642 = vmatpush2.msra.mxu0 0.0
        %1643 = vmatprep.subr.mxu0 0.0
        %1644 = vmatpush2.msra.mxu0 0.0
        %1645 = vmatprep.subr.mxu0 0.0
        %1646 = vmatpush2.msra.mxu0 0.0
        %1647 = vmatprep.subr.mxu0 0.0
        %1648 = vmatpush2.msra.mxu0 0.0
        %1649 = vmatprep.subr.mxu0 0.0
        %1650 = vmatpush2.msra.mxu0 0.0
        %1651 = vmatprep.subr.mxu0 0.0
        %1652 = vmatpush2.msra.mxu0 0.0
        %1653 = vmatprep.mubr.f32.mxu0 0.0
        %1654 = vmatmul.mubr.f32.gmra.mxu0 %v1572
        %v1655 = vpop.f32.mrf.mxu0
        %v1656 = vadd.f32 0.0, %v1655
        %v1657 = vpop.f32.mrf.mxu0
        %1658 = vdwg.mxu0
        %v1659 = vld [vmem:[#allocation4] sm:$0xff]
        %1660 = vmatprep.subr.mxu0 0.0
        %1661 = vmatpush1.msra.mxu0 %v1588
        %1662 = vmatprep.subr.mxu0 0.0
        %1663 = vmatpush1.msra.mxu0 %v1587
        %1664 = vmatprep.subr.mxu0 0.0
        %1665 = vmatpush1.msra.mxu0 %v1586
        %1666 = vmatprep.subr.mxu0 0.0
        %1667 = vmatpush1.msra.mxu0 %v1585
        %1668 = vmatprep.subr.mxu0 0.0
        %1669 = vmatpush1.msra.mxu0 %v1584
        %1670 = vmatprep.subr.mxu0 0.0
        %1671 = vmatpush1.msra.mxu0 %v1583
        %1672 = vmatprep.subr.mxu0 0.0
        %1673 = vmatpush1.msra.mxu0 %v1582
        %1674 = vmatprep.subr.mxu0 0.0
        %1675 = vmatpush1.msra.mxu0 %v1581
        %1676 = vmatprep.subr.mxu0 0.0
        %1677 = vmatpush1.msra.mxu0 %v1580
        %1678 = vmatprep.subr.mxu0 0.0
        %1679 = vmatpush1.msra.mxu0 %v1579
        %1680 = vmatprep.subr.mxu0 0.0
        %1681 = vmatpush1.msra.mxu0 %v1578
        %1682 = vmatprep.subr.mxu0 0.0
        %1683 = vmatpush1.msra.mxu0 %v1577
        %1684 = vmatprep.subr.mxu0 0.0
        %1685 = vmatpush1.msra.mxu0 %v1576
        %1686 = vmatprep.subr.mxu0 0.0
        %1687 = vmatpush1.msra.mxu0 %v1575
        %1688 = vmatprep.subr.mxu0 0.0
        %1689 = vmatpush1.msra.mxu0 %v1574
        %1690 = vmatprep.subr.mxu0 0.0
        %1691 = vmatpush1.msra.mxu0 %v1573
        %1692 = vmatprep.subr.mxu0 0.0
        %1693 = vmatpush2.msra.mxu0 0.0
        %1694 = vmatprep.subr.mxu0 0.0
        %1695 = vmatpush2.msra.mxu0 0.0
        %1696 = vmatprep.subr.mxu0 0.0
        %1697 = vmatpush2.msra.mxu0 0.0
        %1698 = vmatprep.subr.mxu0 0.0
        %1699 = vmatpush2.msra.mxu0 0.0
        %1700 = vmatprep.subr.mxu0 0.0
        %1701 = vmatpush2.msra.mxu0 0.0
        %1702 = vmatprep.subr.mxu0 0.0
        %1703 = vmatpush2.msra.mxu0 0.0
        %1704 = vmatprep.subr.mxu0 0.0
        %1705 = vmatpush2.msra.mxu0 0.0
        %1706 = vmatprep.subr.mxu0 0.0
        %1707 = vmatpush2.msra.mxu0 0.0
        %1708 = vmatprep.subr.mxu0 0.0
        %1709 = vmatpush2.msra.mxu0 0.0
        %1710 = vmatprep.subr.mxu0 0.0
        %1711 = vmatpush2.msra.mxu0 0.0
        %1712 = vmatprep.subr.mxu0 0.0
        %1713 = vmatpush2.msra.mxu0 0.0
        %1714 = vmatprep.subr.mxu0 0.0
        %1715 = vmatpush2.msra.mxu0 0.0
        %1716 = vmatprep.subr.mxu0 0.0
        %1717 = vmatpush2.msra.mxu0 0.0
        %1718 = vmatprep.subr.mxu0 0.0
        %1719 = vmatpush2.msra.mxu0 0.0
        %1720 = vmatprep.subr.mxu0 0.0
        %1721 = vmatpush2.msra.mxu0 0.0
        %1722 = vmatprep.subr.mxu0 0.0
        %1723 = vmatpush2.msra.mxu0 0.0
        %1724 = vmatprep.mubr.f32.mxu0 0.0
        %1725 = vmatmul.mubr.f32.gmra.mxu0 %v1659
        %v1726 = vpop.f32.mrf.mxu0
        %v1727 = vadd.f32 0.0, %v1726
        %v1728 = vpop.f32.mrf.mxu0
        %1729 = vdwg.mxu0
        %v1730 = vrot.slane %v1656, 4
        %v1731 = vadd.f32 %v1656, %v1730
        %v1732 = vrot.slane %v1731, 2
        %v1733 = vadd.f32 %v1731, %v1732
        %v1734 = vrot.slane %v1733, 1
        %v1735 = vadd.f32 %v1733, %v1734
        %v1736 = vmul.f32 %v1735, 0.00048828125
        %v1737 = vrot.slane %v1727, 4
        %v1738 = vadd.f32 %v1727, %v1737
        %v1739 = vrot.slane %v1738, 2
        %v1740 = vadd.f32 %v1738, %v1739
        %v1741 = vrot.slane %v1740, 1
        %v1742 = vadd.f32 %v1740, %v1741
        %v1743 = vmul.f32 %v1742, 0.00048828125
        %v1744 = vmul.f32 %v1736, %v1736
        %v1745 = vsub.f32 %v1743, %v1744
        %v1746 = vmax.f32 %v1745, 0.0
        %v1747 = vld [vmem:[%s3] sm:$0x1]
        %v1748 = vadd.f32 %v1746, 1e-05
        %v1749 = vrsqrt.pop %v1748
        %v1750 = vmul.f32 %v1747, %v1749
        %v1751 = vld [vmem:[%s4] sm:$0x1]
        %v1752 = vmul.f32 %v1750, %v1736
        %v1753 = vsub.f32 %v1751, %v1752
        %v1755 = vlaneseq
        %v1756 = vshrl.u32 %v1755, 7
        %v1757 = vsub.s32 0, %v1756
        %v1758 = vrot.slane %v1750, %v1757
        %v1760 = vmul.f32 %v1508, %v1758
        %v1761 = vmul.f32 %v1509, %v1758
        %v1762 = vmul.f32 %v1510, %v1758
        %v1763 = vmul.f32 %v1511, %v1758
        %v1764 = vmul.f32 %v1512, %v1758
        %v1765 = vmul.f32 %v1513, %v1758
        %v1766 = vmul.f32 %v1514, %v1758
        %v1767 = vmul.f32 %v1515, %v1758
        %v1768 = vmul.f32 %v1516, %v1758
        %v1769 = vmul.f32 %v1517, %v1758
        %v1770 = vmul.f32 %v1518, %v1758
        %v1771 = vmul.f32 %v1519, %v1758
        %v1772 = vmul.f32 %v1520, %v1758
        %v1773 = vmul.f32 %v1521, %v1758
        %v1774 = vmul.f32 %v1522, %v1758
        %v1775 = vmul.f32 %v1523, %v1758
        %v1776 = vmul.f32 %v1524, %v1758
        %v1777 = vmul.f32 %v1525, %v1758
        %v1778 = vmul.f32 %v1526, %v1758
        %v1779 = vmul.f32 %v1527, %v1758
        %v1780 = vmul.f32 %v1528, %v1758
        %v1781 = vmul.f32 %v1529, %v1758
        %v1782 = vmul.f32 %v1530, %v1758
        %v1783 = vmul.f32 %v1531, %v1758
        %v1784 = vmul.f32 %v1532, %v1758
        %v1785 = vmul.f32 %v1533, %v1758
        %v1786 = vmul.f32 %v1534, %v1758
        %v1787 = vmul.f32 %v1535, %v1758
        %v1788 = vmul.f32 %v1536, %v1758
        %v1789 = vmul.f32 %v1537, %v1758
        %v1790 = vmul.f32 %v1538, %v1758
        %v1791 = vmul.f32 %v1539, %v1758
        %v1792 = vmul.f32 %v1540, %v1758
        %v1793 = vmul.f32 %v1541, %v1758
        %v1794 = vmul.f32 %v1542, %v1758
        %v1795 = vmul.f32 %v1543, %v1758
        %v1796 = vmul.f32 %v1544, %v1758
        %v1797 = vmul.f32 %v1545, %v1758
        %v1798 = vmul.f32 %v1546, %v1758
        %v1799 = vmul.f32 %v1547, %v1758
        %v1800 = vmul.f32 %v1548, %v1758
        %v1801 = vmul.f32 %v1549, %v1758
        %v1802 = vmul.f32 %v1550, %v1758
        %v1803 = vmul.f32 %v1551, %v1758
        %v1804 = vmul.f32 %v1552, %v1758
        %v1805 = vmul.f32 %v1553, %v1758
        %v1806 = vmul.f32 %v1554, %v1758
        %v1807 = vmul.f32 %v1555, %v1758
        %v1808 = vmul.f32 %v1556, %v1758
        %v1809 = vmul.f32 %v1557, %v1758
        %v1810 = vmul.f32 %v1558, %v1758
        %v1811 = vmul.f32 %v1559, %v1758
        %v1812 = vmul.f32 %v1560, %v1758
        %v1813 = vmul.f32 %v1561, %v1758
        %v1814 = vmul.f32 %v1562, %v1758
        %v1815 = vmul.f32 %v1563, %v1758
        %v1816 = vmul.f32 %v1564, %v1758
        %v1817 = vmul.f32 %v1565, %v1758
        %v1818 = vmul.f32 %v1566, %v1758
        %v1819 = vmul.f32 %v1567, %v1758
        %v1820 = vmul.f32 %v1568, %v1758
        %v1821 = vmul.f32 %v1569, %v1758
        %v1822 = vmul.f32 %v1570, %v1758
        %v1823 = vmul.f32 %v1571, %v1758
        %v1825 = vlaneseq
        %v1826 = vshrl.u32 %v1825, 7
        %v1827 = vsub.s32 0, %v1826
        %v1828 = vrot.slane %v1753, %v1827
        %v1830 = vadd.f32 %v1760, %v1828
        %v1831 = vadd.f32 %v1761, %v1828
        %v1832 = vadd.f32 %v1762, %v1828
        %v1833 = vadd.f32 %v1763, %v1828
        %v1834 = vadd.f32 %v1764, %v1828
        %v1835 = vadd.f32 %v1765, %v1828
        %v1836 = vadd.f32 %v1766, %v1828
        %v1837 = vadd.f32 %v1767, %v1828
        %v1838 = vadd.f32 %v1768, %v1828
        %v1839 = vadd.f32 %v1769, %v1828
        %v1840 = vadd.f32 %v1770, %v1828
        %v1841 = vadd.f32 %v1771, %v1828
        %v1842 = vadd.f32 %v1772, %v1828
        %v1843 = vadd.f32 %v1773, %v1828
        %v1844 = vadd.f32 %v1774, %v1828
        %v1845 = vadd.f32 %v1775, %v1828
        %v1846 = vadd.f32 %v1776, %v1828
        %v1847 = vadd.f32 %v1777, %v1828
        %v1848 = vadd.f32 %v1778, %v1828
        %v1849 = vadd.f32 %v1779, %v1828
        %v1850 = vadd.f32 %v1780, %v1828
        %v1851 = vadd.f32 %v1781, %v1828
        %v1852 = vadd.f32 %v1782, %v1828
        %v1853 = vadd.f32 %v1783, %v1828
        %v1854 = vadd.f32 %v1784, %v1828
        %v1855 = vadd.f32 %v1785, %v1828
        %v1856 = vadd.f32 %v1786, %v1828
        %v1857 = vadd.f32 %v1787, %v1828
        %v1858 = vadd.f32 %v1788, %v1828
        %v1859 = vadd.f32 %v1789, %v1828
        %v1860 = vadd.f32 %v1790, %v1828
        %v1861 = vadd.f32 %v1791, %v1828
        %v1862 = vadd.f32 %v1792, %v1828
        %v1863 = vadd.f32 %v1793, %v1828
        %v1864 = vadd.f32 %v1794, %v1828
        %v1865 = vadd.f32 %v1795, %v1828
        %v1866 = vadd.f32 %v1796, %v1828
        %v1867 = vadd.f32 %v1797, %v1828
        %v1868 = vadd.f32 %v1798, %v1828
        %v1869 = vadd.f32 %v1799, %v1828
        %v1870 = vadd.f32 %v1800, %v1828
        %v1871 = vadd.f32 %v1801, %v1828
        %v1872 = vadd.f32 %v1802, %v1828
        %v1873 = vadd.f32 %v1803, %v1828
        %v1874 = vadd.f32 %v1804, %v1828
        %v1875 = vadd.f32 %v1805, %v1828
        %v1876 = vadd.f32 %v1806, %v1828
        %v1877 = vadd.f32 %v1807, %v1828
        %v1878 = vadd.f32 %v1808, %v1828
        %v1879 = vadd.f32 %v1809, %v1828
        %v1880 = vadd.f32 %v1810, %v1828
        %v1881 = vadd.f32 %v1811, %v1828
        %v1882 = vadd.f32 %v1812, %v1828
        %v1883 = vadd.f32 %v1813, %v1828
        %v1884 = vadd.f32 %v1814, %v1828
        %v1885 = vadd.f32 %v1815, %v1828
        %v1886 = vadd.f32 %v1816, %v1828
        %v1887 = vadd.f32 %v1817, %v1828
        %v1888 = vadd.f32 %v1818, %v1828
        %v1889 = vadd.f32 %v1819, %v1828
        %v1890 = vadd.f32 %v1820, %v1828
        %v1891 = vadd.f32 %v1821, %v1828
        %v1892 = vadd.f32 %v1822, %v1828
        %v1893 = vadd.f32 %v1823, %v1828
        %v1894 = vmax.f32 %v1830, 0.0
        %v1895 = vmax.f32 %v1831, 0.0
        %v1896 = vmax.f32 %v1832, 0.0
        %v1897 = vmax.f32 %v1833, 0.0
        %v1898 = vmax.f32 %v1834, 0.0
        %v1899 = vmax.f32 %v1835, 0.0
        %v1900 = vmax.f32 %v1836, 0.0
        %v1901 = vmax.f32 %v1837, 0.0
        %v1902 = vmax.f32 %v1838, 0.0
        %v1903 = vmax.f32 %v1839, 0.0
        %v1904 = vmax.f32 %v1840, 0.0
        %v1905 = vmax.f32 %v1841, 0.0
        %v1906 = vmax.f32 %v1842, 0.0
        %v1907 = vmax.f32 %v1843, 0.0
        %v1908 = vmax.f32 %v1844, 0.0
        %v1909 = vmax.f32 %v1845, 0.0
        %v1910 = vmax.f32 %v1846, 0.0
        %v1911 = vmax.f32 %v1847, 0.0
        %v1912 = vmax.f32 %v1848, 0.0
        %v1913 = vmax.f32 %v1849, 0.0
        %v1914 = vmax.f32 %v1850, 0.0
        %v1915 = vmax.f32 %v1851, 0.0
        %v1916 = vmax.f32 %v1852, 0.0
        %v1917 = vmax.f32 %v1853, 0.0
        %v1918 = vmax.f32 %v1854, 0.0
        %v1919 = vmax.f32 %v1855, 0.0
        %v1920 = vmax.f32 %v1856, 0.0
        %v1921 = vmax.f32 %v1857, 0.0
        %v1922 = vmax.f32 %v1858, 0.0
        %v1923 = vmax.f32 %v1859, 0.0
        %v1924 = vmax.f32 %v1860, 0.0
        %v1925 = vmax.f32 %v1861, 0.0
        %v1926 = vmax.f32 %v1862, 0.0
        %v1927 = vmax.f32 %v1863, 0.0
        %v1928 = vmax.f32 %v1864, 0.0
        %v1929 = vmax.f32 %v1865, 0.0
        %v1930 = vmax.f32 %v1866, 0.0
        %v1931 = vmax.f32 %v1867, 0.0
        %v1932 = vmax.f32 %v1868, 0.0
        %v1933 = vmax.f32 %v1869, 0.0
        %v1934 = vmax.f32 %v1870, 0.0
        %v1935 = vmax.f32 %v1871, 0.0
        %v1936 = vmax.f32 %v1872, 0.0
        %v1937 = vmax.f32 %v1873, 0.0
        %v1938 = vmax.f32 %v1874, 0.0
        %v1939 = vmax.f32 %v1875, 0.0
        %v1940 = vmax.f32 %v1876, 0.0
        %v1941 = vmax.f32 %v1877, 0.0
        %v1942 = vmax.f32 %v1878, 0.0
        %v1943 = vmax.f32 %v1879, 0.0
        %v1944 = vmax.f32 %v1880, 0.0
        %v1945 = vmax.f32 %v1881, 0.0
        %v1946 = vmax.f32 %v1882, 0.0
        %v1947 = vmax.f32 %v1883, 0.0
        %v1948 = vmax.f32 %v1884, 0.0
        %v1949 = vmax.f32 %v1885, 0.0
        %v1950 = vmax.f32 %v1886, 0.0
        %v1951 = vmax.f32 %v1887, 0.0
        %v1952 = vmax.f32 %v1888, 0.0
        %v1953 = vmax.f32 %v1889, 0.0
        %v1954 = vmax.f32 %v1890, 0.0
        %v1955 = vmax.f32 %v1891, 0.0
        %v1956 = vmax.f32 %v1892, 0.0
        %v1957 = vmax.f32 %v1893, 0.0
        %v1958 = vpack.c.bf16 %v1895, %v1894
        %v1959 = vpack.c.bf16 %v1897, %v1896
        %v1960 = vpack.c.bf16 %v1899, %v1898
        %v1961 = vpack.c.bf16 %v1901, %v1900
        %v1962 = vpack.c.bf16 %v1903, %v1902
        %v1963 = vpack.c.bf16 %v1905, %v1904
        %v1964 = vpack.c.bf16 %v1907, %v1906
        %v1965 = vpack.c.bf16 %v1909, %v1908
        %v1966 = vpack.c.bf16 %v1911, %v1910
        %v1967 = vpack.c.bf16 %v1913, %v1912
        %v1968 = vpack.c.bf16 %v1915, %v1914
        %v1969 = vpack.c.bf16 %v1917, %v1916
        %v1970 = vpack.c.bf16 %v1919, %v1918
        %v1971 = vpack.c.bf16 %v1921, %v1920
        %v1972 = vpack.c.bf16 %v1923, %v1922
        %v1973 = vpack.c.bf16 %v1925, %v1924
        %v1974 = vpack.c.bf16 %v1927, %v1926
        %v1975 = vpack.c.bf16 %v1929, %v1928
        %v1976 = vpack.c.bf16 %v1931, %v1930
        %v1977 = vpack.c.bf16 %v1933, %v1932
        %v1978 = vpack.c.bf16 %v1935, %v1934
        %v1979 = vpack.c.bf16 %v1937, %v1936
        %v1980 = vpack.c.bf16 %v1939, %v1938
        %v1981 = vpack.c.bf16 %v1941, %v1940
        %v1982 = vpack.c.bf16 %v1943, %v1942
        %v1983 = vpack.c.bf16 %v1945, %v1944
        %v1984 = vpack.c.bf16 %v1947, %v1946
        %v1985 = vpack.c.bf16 %v1949, %v1948
        %v1986 = vpack.c.bf16 %v1951, %v1950
        %v1987 = vpack.c.bf16 %v1953, %v1952
        %v1988 = vpack.c.bf16 %v1955, %v1954
        %v1989 = vpack.c.bf16 %v1957, %v1956
        %v2022 = vunpack.c.l.b16 %v1958
        %v2023 = vunpack.c.h.b16 %v1958
        %v2024 = vunpack.c.l.b16 %v1959
        %v2025 = vunpack.c.h.b16 %v1959
        %v2026 = vunpack.c.l.b16 %v1960
        %v2027 = vunpack.c.h.b16 %v1960
        %v2028 = vunpack.c.l.b16 %v1961
        %v2029 = vunpack.c.h.b16 %v1961
        %v2030 = vunpack.c.l.b16 %v1962
        %v2031 = vunpack.c.h.b16 %v1962
        %v2032 = vunpack.c.l.b16 %v1963
        %v2033 = vunpack.c.h.b16 %v1963
        %v2034 = vunpack.c.l.b16 %v1964
        %v2035 = vunpack.c.h.b16 %v1964
        %v2036 = vunpack.c.l.b16 %v1965
        %v2037 = vunpack.c.h.b16 %v1965
        %v2038 = vunpack.c.l.b16 %v1966
        %v2039 = vunpack.c.h.b16 %v1966
        %v2040 = vunpack.c.l.b16 %v1967
        %v2041 = vunpack.c.h.b16 %v1967
        %v2042 = vunpack.c.l.b16 %v1968
        %v2043 = vunpack.c.h.b16 %v1968
        %v2044 = vunpack.c.l.b16 %v1969
        %v2045 = vunpack.c.h.b16 %v1969
        %v2046 = vunpack.c.l.b16 %v1970
        %v2047 = vunpack.c.h.b16 %v1970
        %v2048 = vunpack.c.l.b16 %v1971
        %v2049 = vunpack.c.h.b16 %v1971
        %v2050 = vunpack.c.l.b16 %v1972
        %v2051 = vunpack.c.h.b16 %v1972
        %v2052 = vunpack.c.l.b16 %v1973
        %v2053 = vunpack.c.h.b16 %v1973
        %v2054 = vunpack.c.l.b16 %v1974
        %v2055 = vunpack.c.h.b16 %v1974
        %v2056 = vunpack.c.l.b16 %v1975
        %v2057 = vunpack.c.h.b16 %v1975
        %v2058 = vunpack.c.l.b16 %v1976
        %v2059 = vunpack.c.h.b16 %v1976
        %v2060 = vunpack.c.l.b16 %v1977
        %v2061 = vunpack.c.h.b16 %v1977
        %v2062 = vunpack.c.l.b16 %v1978
        %v2063 = vunpack.c.h.b16 %v1978
        %v2064 = vunpack.c.l.b16 %v1979
        %v2065 = vunpack.c.h.b16 %v1979
        %v2066 = vunpack.c.l.b16 %v1980
        %v2067 = vunpack.c.h.b16 %v1980
        %v2068 = vunpack.c.l.b16 %v1981
        %v2069 = vunpack.c.h.b16 %v1981
        %v2070 = vunpack.c.l.b16 %v1982
        %v2071 = vunpack.c.h.b16 %v1982
        %v2072 = vunpack.c.l.b16 %v1983
        %v2073 = vunpack.c.h.b16 %v1983
        %v2074 = vunpack.c.l.b16 %v1984
        %v2075 = vunpack.c.h.b16 %v1984
        %v2076 = vunpack.c.l.b16 %v1985
        %v2077 = vunpack.c.h.b16 %v1985
        %v2078 = vunpack.c.l.b16 %v1986
        %v2079 = vunpack.c.h.b16 %v1986
        %v2080 = vunpack.c.l.b16 %v1987
        %v2081 = vunpack.c.h.b16 %v1987
        %v2082 = vunpack.c.l.b16 %v1988
        %v2083 = vunpack.c.h.b16 %v1988
        %v2084 = vunpack.c.l.b16 %v1989
        %v2085 = vunpack.c.h.b16 %v1989
        %v2086 = vpack.c.b16 %v2022, %v2022
        %v2087 = vpack.c.b16 %v2023, %v2023
        %v2088 = vpack.c.b16 %v2024, %v2024
        %v2089 = vpack.c.b16 %v2025, %v2025
        %v2090 = vpack.c.b16 %v2026, %v2026
        %v2091 = vpack.c.b16 %v2027, %v2027
        %v2092 = vpack.c.b16 %v2028, %v2028
        %v2093 = vpack.c.b16 %v2029, %v2029
        %v2094 = vpack.c.b16 %v2030, %v2030
        %v2095 = vpack.c.b16 %v2031, %v2031
        %v2096 = vpack.c.b16 %v2032, %v2032
        %v2097 = vpack.c.b16 %v2033, %v2033
        %v2098 = vpack.c.b16 %v2034, %v2034
        %v2099 = vpack.c.b16 %v2035, %v2035
        %v2100 = vpack.c.b16 %v2036, %v2036
        %v2101 = vpack.c.b16 %v2037, %v2037
        %v2102 = vpack.c.b16 %v2038, %v2038
        %v2103 = vpack.c.b16 %v2039, %v2039
        %v2104 = vpack.c.b16 %v2040, %v2040
        %v2105 = vpack.c.b16 %v2041, %v2041
        %v2106 = vpack.c.b16 %v2042, %v2042
        %v2107 = vpack.c.b16 %v2043, %v2043
        %v2108 = vpack.c.b16 %v2044, %v2044
        %v2109 = vpack.c.b16 %v2045, %v2045
        %v2110 = vpack.c.b16 %v2046, %v2046
        %v2111 = vpack.c.b16 %v2047, %v2047
        %v2112 = vpack.c.b16 %v2048, %v2048
        %v2113 = vpack.c.b16 %v2049, %v2049
        %v2114 = vpack.c.b16 %v2050, %v2050
        %v2115 = vpack.c.b16 %v2051, %v2051
        %v2116 = vpack.c.b16 %v2052, %v2052
        %v2117 = vpack.c.b16 %v2053, %v2053
        %v2118 = vpack.c.b16 %v2054, %v2054
        %v2119 = vpack.c.b16 %v2055, %v2055
        %v2120 = vpack.c.b16 %v2056, %v2056
        %v2121 = vpack.c.b16 %v2057, %v2057
        %v2122 = vpack.c.b16 %v2058, %v2058
        %v2123 = vpack.c.b16 %v2059, %v2059
        %v2124 = vpack.c.b16 %v2060, %v2060
        %v2125 = vpack.c.b16 %v2061, %v2061
        %v2126 = vpack.c.b16 %v2062, %v2062
        %v2127 = vpack.c.b16 %v2063, %v2063
        %v2128 = vpack.c.b16 %v2064, %v2064
        %v2129 = vpack.c.b16 %v2065, %v2065
        %v2130 = vpack.c.b16 %v2066, %v2066
        %v2131 = vpack.c.b16 %v2067, %v2067
        %v2132 = vpack.c.b16 %v2068, %v2068
        %v2133 = vpack.c.b16 %v2069, %v2069
        %v2134 = vpack.c.b16 %v2070, %v2070
        %v2135 = vpack.c.b16 %v2071, %v2071
        %v2136 = vpack.c.b16 %v2072, %v2072
        %v2137 = vpack.c.b16 %v2073, %v2073
        %v2138 = vpack.c.b16 %v2074, %v2074
        %v2139 = vpack.c.b16 %v2075, %v2075
        %v2140 = vpack.c.b16 %v2076, %v2076
        %v2141 = vpack.c.b16 %v2077, %v2077
        %v2142 = vpack.c.b16 %v2078, %v2078
        %v2143 = vpack.c.b16 %v2079, %v2079
        %v2144 = vpack.c.b16 %v2080, %v2080
        %v2145 = vpack.c.b16 %v2081, %v2081
        %v2146 = vpack.c.b16 %v2082, %v2082
        %v2147 = vpack.c.b16 %v2083, %v2083
        %v2148 = vpack.c.b16 %v2084, %v2084
        %v2149 = vpack.c.b16 %v2085, %v2085
        %2214 = vst [vmem:[%s270] sm:$0xf] %v2086
        %2215 = vst [vmem:[%s270 + $0x4] sm:$0xf] %v2087
        %2216 = vst [vmem:[%s270 + $0x8] sm:$0xf] %v2088
        %2217 = vst [vmem:[%s270 + $0xc] sm:$0xf] %v2089
        %2218 = vst [vmem:[%s270 + $0x10] sm:$0xf] %v2090
        %2219 = vst [vmem:[%s270 + $0x14] sm:$0xf] %v2091
        %2220 = vst [vmem:[%s270 + $0x18] sm:$0xf] %v2092
        %2221 = vst [vmem:[%s270 + $0x1c] sm:$0xf] %v2093
        %2222 = vst [vmem:[%s270 + $0x20] sm:$0xf] %v2094
        %2223 = vst [vmem:[%s270 + $0x24] sm:$0xf] %v2095
        %2224 = vst [vmem:[%s270 + $0x28] sm:$0xf] %v2096
        %2225 = vst [vmem:[%s270 + $0x2c] sm:$0xf] %v2097
        %2226 = vst [vmem:[%s270 + $0x30] sm:$0xf] %v2098
        %2227 = vst [vmem:[%s270 + $0x34] sm:$0xf] %v2099
        %2228 = vst [vmem:[%s270 + $0x38] sm:$0xf] %v2100
        %2229 = vst [vmem:[%s270 + $0x3c] sm:$0xf] %v2101
        %2230 = vst [vmem:[%s270 + $0x40] sm:$0xf] %v2102
        %2231 = vst [vmem:[%s270 + $0x44] sm:$0xf] %v2103
        %2232 = vst [vmem:[%s270 + $0x48] sm:$0xf] %v2104
        %2233 = vst [vmem:[%s270 + $0x4c] sm:$0xf] %v2105
        %2234 = vst [vmem:[%s270 + $0x50] sm:$0xf] %v2106
        %2235 = vst [vmem:[%s270 + $0x54] sm:$0xf] %v2107
        %2236 = vst [vmem:[%s270 + $0x58] sm:$0xf] %v2108
        %2237 = vst [vmem:[%s270 + $0x5c] sm:$0xf] %v2109
        %2238 = vst [vmem:[%s270 + $0x60] sm:$0xf] %v2110
        %2239 = vst [vmem:[%s270 + $0x64] sm:$0xf] %v2111
        %2240 = vst [vmem:[%s270 + $0x68] sm:$0xf] %v2112
        %2241 = vst [vmem:[%s270 + $0x6c] sm:$0xf] %v2113
        %2242 = vst [vmem:[%s270 + $0x70] sm:$0xf] %v2114
        %2243 = vst [vmem:[%s270 + $0x74] sm:$0xf] %v2115
        %2244 = vst [vmem:[%s270 + $0x78] sm:$0xf] %v2116
        %2245 = vst [vmem:[%s270 + $0x7c] sm:$0xf] %v2117
        %2246 = vst [vmem:[%s270 + $0x80] sm:$0xf] %v2118
        %2247 = vst [vmem:[%s270 + $0x84] sm:$0xf] %v2119
        %2248 = vst [vmem:[%s270 + $0x88] sm:$0xf] %v2120
        %2249 = vst [vmem:[%s270 + $0x8c] sm:$0xf] %v2121
        %2250 = vst [vmem:[%s270 + $0x90] sm:$0xf] %v2122
        %2251 = vst [vmem:[%s270 + $0x94] sm:$0xf] %v2123
        %2252 = vst [vmem:[%s270 + $0x98] sm:$0xf] %v2124
        %2253 = vst [vmem:[%s270 + $0x9c] sm:$0xf] %v2125
        %2254 = vst [vmem:[%s270 + $0xa0] sm:$0xf] %v2126
        %2255 = vst [vmem:[%s270 + $0xa4] sm:$0xf] %v2127
        %2256 = vst [vmem:[%s270 + $0xa8] sm:$0xf] %v2128
        %2257 = vst [vmem:[%s270 + $0xac] sm:$0xf] %v2129
        %2258 = vst [vmem:[%s270 + $0xb0] sm:$0xf] %v2130
        %2259 = vst [vmem:[%s270 + $0xb4] sm:$0xf] %v2131
        %2260 = vst [vmem:[%s270 + $0xb8] sm:$0xf] %v2132
        %2261 = vst [vmem:[%s270 + $0xbc] sm:$0xf] %v2133
        %2262 = vst [vmem:[%s270 + $0xc0] sm:$0xf] %v2134
        %2263 = vst [vmem:[%s270 + $0xc4] sm:$0xf] %v2135
        %2264 = vst [vmem:[%s270 + $0xc8] sm:$0xf] %v2136
        %2265 = vst [vmem:[%s270 + $0xcc] sm:$0xf] %v2137
        %2266 = vst [vmem:[%s270 + $0xd0] sm:$0xf] %v2138
        %2267 = vst [vmem:[%s270 + $0xd4] sm:$0xf] %v2139
        %2268 = vst [vmem:[%s270 + $0xd8] sm:$0xf] %v2140
        %2269 = vst [vmem:[%s270 + $0xdc] sm:$0xf] %v2141
        %2270 = vst [vmem:[%s270 + $0xe0] sm:$0xf] %v2142
        %2271 = vst [vmem:[%s270 + $0xe4] sm:$0xf] %v2143
        %2272 = vst [vmem:[%s270 + $0xe8] sm:$0xf] %v2144
        %2273 = vst [vmem:[%s270 + $0xec] sm:$0xf] %v2145
        %2274 = vst [vmem:[%s270 + $0xf0] sm:$0xf] %v2146
        %2275 = vst [vmem:[%s270 + $0xf4] sm:$0xf] %v2147
        %2276 = vst [vmem:[%s270 + $0xf8] sm:$0xf] %v2148
        %2277 = vst [vmem:[%s270 + $0xfc] sm:$0xf] %v2149
      $region52: #{autoencoder_forward.6} parent=39 // pred_fallthru
        _
      %s2278 = smul.u32 %s20, %s21
      %s2279 = smul.u32 64, %s2278
      %p2280 = scmp.lt.s32.totalorder %s2279, 255
      %s2281 = scalar_select %p2280, %s2279, 255
      %s2282 = smul.addr %s2281, 4
      %s2283 = scalar_lea.vmem %s5, %s2282
      // Predicated region
      $region53: #{autoencoder_forward.6} parent=39 // pred_check
        %p2284 = pneg %p166
      $region54: #{autoencoder_forward.6} parent=39 // pred_check_branch
        %2286 = sbr.rel (%p2284) target = $region56
      $region55: #{autoencoder_forward.6} parent=39 // pred_region
        %s2287 = smul.u32 %s20, %s21
        %s2288 = smul.u32 64, %s2287
      $region56: #{autoencoder_forward.6} parent=39 // pred_fallthru
        _
    $region40: #{autoencoder_forward.6} parent=5 // pred_fallthru
      _
    %p2289 = scmp.le.s32.totalorder 2, %s11
    // Predicated region
    $region57: #{autoencoder_forward.6} parent=5 // pred_check
      %p2290 = pneg %p2289
    $region58: #{autoencoder_forward.6} parent=5 // pred_check_branch
      %2292 = sbr.rel (%p2290) target = $region60
    $region59: #{autoencoder_forward.6} parent=5 // pred_region
      %s2293 = ssub.s32 %s11, 2
      // Predicated region
      $region61: #{autoencoder_forward.6} parent=59 // pred_check
        %p2294 = pneg %p172
      $region62: #{autoencoder_forward.6} parent=59 // pred_check_branch
        %2296 = sbr.rel (%p2294) target = $region64
      $region63: #{autoencoder_forward.6} parent=59 // pred_region
        %s2297 = smul.u32 %s22, %s23
        %s2298 = smul.u32 64, %s2297
        %p2299 = scmp.lt.s32.totalorder %s2298, 255
        %s2300 = scalar_select %p2299, %s2298, 255
        %s2301 = smul.addr %s2300, 4
        %s2302 = scalar_lea.vmem %s5, %s2301
      $region64: #{autoencoder_forward.6} parent=59 // pred_fallthru
        _
    $region60: #{autoencoder_forward.6} parent=5 // pred_fallthru
      _
  $region6: #{autoencoder_forward.6} parent=0 // loop_footer
    %s15 = sadd.s32 1, %s11
  $region7: #{autoencoder_forward.6} parent=0 // loop_footer_branch
    %10 = sbr.rel target = $region3
  $region8: #{autoencoder_forward.6} parent=0 // loop_exit
    _

// kernel: autoencoder_forward.7
$region0: #{autoencoder_forward.7}
  #allocation0 [shape = 'u32[]', space=smem, size = 0x4, offset = 0x4, fixed_abs, tag = 'smem constant byte address 0x4 - core index']
  #allocation1 [shape = 'u32[144,128]{1,0:T(1,128)}', space=vmem, size = 0x12000, scoped, tag = 'internal scratch']
  #allocation2 [shape = 'bf16[4,128,128]{2,1,0:T(8,128)(2,1)}', space=vmem, size = 0x20000, scoped, tag = 'scratch operand']
  #allocation3 [shape = 'f32[8,128]{1,0:T(8,128)}', space=vmem, size = 0x1000, scoped, tag = 'scratch operand']
  #allocation4 [shape = 'f32[8,128]{1,0:T(8,128)}', space=vmem, size = 0x1000, scoped, tag = 'scratch operand']
  %s0 = inlined_call_operand.vmem [shape: bf16[512,192], index: 0, kind: input, shape index: {}]
  %s1 = inlined_call_operand.vmem [shape: bf16[192,128], index: 1, kind: input, shape index: {}]
  %s2 = inlined_call_operand.vmem [shape: f32[128,128], index: 2, kind: input, shape index: {}]
  %s3 = inlined_call_operand.vmem [shape: f32[1,128], index: 3, kind: input, shape index: {}]
  %s4 = inlined_call_operand.vmem [shape: f32[1,128], index: 4, kind: input, shape index: {}]
  %s5 = inlined_call_operand.vmem [shape: bf16[512,128], index: 5, kind: output, shape index: {}]
  %s6 = sld [smem:[#allocation0]]
  $region65: #{autoencoder_forward.7} parent=0
    _
  %s8 = ssub.s32 1, %s6
  %s9 = scalar_select 0, %s8, %s6
  loop: start=0, step=1, limit=10
  $region2: #{autoencoder_forward.7} parent=0 // loop_pre_header
    _
  $region3: #{autoencoder_forward.7} parent=0 // loop_header
    %s11 = sphi 0, %s15
    %p12 = scmp.ge.s32.totalorder %s11, 10
    %s18 = sphi 0, %s30
    %s19 = sphi 0, %s26
    %s20 = sphi 0, %s18
    %s21 = sphi 0, %s19
    %s22 = sphi 0, %s20
    %s23 = sphi 0, %s21
    %s41 = sphi 0, %s43
    %s44 = sphi 0, %s41
    %s45 = sphi 0, %s44
    %s61 = sphi 0, %s45
    %s65 = sphi 0, %s65
    %s67 = sphi 0, %s65
    %s68 = sphi 0, %s67
    %s82 = sphi 0, %s68
    %s86 = sphi 0, %s86
    %s88 = sphi 0, %s86
    %s89 = sphi 0, %s88
    %s103 = sphi 0, %s89
    %s107 = sphi 0, %s107
    %s109 = sphi 0, %s107
    %s110 = sphi 0, %s109
    %s124 = sphi 0, %s110
    %s128 = sphi 0, %s128
    %s130 = sphi 0, %s128
    %s131 = sphi 0, %s130
    %s145 = sphi 0, %s131
    %s153 = sphi 0, %s155
    %s156 = sphi 0, %s153
    %s157 = sphi 0, %s156
    %s173 = sphi 0, %s157
  $region4: #{autoencoder_forward.7} parent=0 // loop_header_branch
    %14 = sbr.rel (%p12) target = $region8
  $region5: #{autoencoder_forward.7} parent=0 // loop_body
    %s16 = ssub.s32 %s11, 1
    %s17 = ssub.s32 %s11, 2
    %s24 = sadd.s32 1, %s19
    %p25 = scmp.ge.s32.totalorder %s24, 4
    %s26 = scalar_select %p25, 0, %s24
    %s27 = sadd.s32 1, %s18
    %s28 = scalar_select %p25, %s27, %s18
    %p29 = scmp.ge.s32.totalorder %s28, 2
    %s30 = scalar_select %p29, 0, %s28
    %s31 = ssub.s32 1, %s18
    %s32 = smul.u32 %s19, %s31
    %s33 = smul.u32 %s18, 3
    %s34 = sadd.s32 %s32, %s33
    %s35 = ssub.s32 1, %s30
    %s36 = smul.u32 %s26, %s35
    %s37 = smul.u32 %s30, 3
    %s38 = sadd.s32 %s36, %s37
    %s39 = ssub.s32 %s34, %s38
    %p40 = scmp.eq.s32.totalorder %s39, 0
    %s42 = sadd.s32 %s41, 1
    %s43 = scalar_select %p40, %s41, %s42
    %p46 = pneg %p40
    %p47 = scmp.eq.s32.totalorder %s11, 7
    %p48 = por %p46, %p47
    %p49 = scmp.ne.s32.totalorder %s41, %s44
    %p50 = scmp.eq.s32.totalorder %s11, 0
    %p51 = por %p49, %p50
    %p52 = scmp.ne.s32.totalorder %s41, %s44
    %p53 = scmp.eq.s32.totalorder %s16, 7
    %p54 = por %p52, %p53
    %p55 = scmp.ne.s32.totalorder %s44, %s45
    %p56 = scmp.eq.s32.totalorder %s16, 0
    %p57 = por %p55, %p56
    %p58 = scmp.ne.s32.totalorder %s44, %s45
    %p59 = scmp.eq.s32.totalorder %s17, 7
    %p60 = por %p58, %p59
    %p62 = scmp.ne.s32.totalorder %s45, %s61
    %p63 = scmp.eq.s32.totalorder %s17, 0
    %p64 = por %p62, %p63
    %s66 = sadd.s32 %s65, 1
    %p69 = scmp.eq.s32.totalorder %s11, 7
    %p70 = scmp.ne.s32.totalorder %s65, %s67
    %p71 = scmp.eq.s32.totalorder %s11, 0
    %p72 = por %p70, %p71
    %p73 = scmp.ne.s32.totalorder %s65, %s67
    %p74 = scmp.eq.s32.totalorder %s16, 7
    %p75 = por %p73, %p74
    %p76 = scmp.ne.s32.totalorder %s67, %s68
    %p77 = scmp.eq.s32.totalorder %s16, 0
    %p78 = por %p76, %p77
    %p79 = scmp.ne.s32.totalorder %s67, %s68
    %p80 = scmp.eq.s32.totalorder %s17, 7
    %p81 = por %p79, %p80
    %p83 = scmp.ne.s32.totalorder %s68, %s82
    %p84 = scmp.eq.s32.totalorder %s17, 0
    %p85 = por %p83, %p84
    %s87 = sadd.s32 %s86, 1
    %p90 = scmp.eq.s32.totalorder %s11, 7
    %p91 = scmp.ne.s32.totalorder %s86, %s88
    %p92 = scmp.eq.s32.totalorder %s11, 0
    %p93 = por %p91, %p92
    %p94 = scmp.ne.s32.totalorder %s86, %s88
    %p95 = scmp.eq.s32.totalorder %s16, 7
    %p96 = por %p94, %p95
    %p97 = scmp.ne.s32.totalorder %s88, %s89
    %p98 = scmp.eq.s32.totalorder %s16, 0
    %p99 = por %p97, %p98
    %p100 = scmp.ne.s32.totalorder %s88, %s89
    %p101 = scmp.eq.s32.totalorder %s17, 7
    %p102 = por %p100, %p101
    %p104 = scmp.ne.s32.totalorder %s89, %s103
    %p105 = scmp.eq.s32.totalorder %s17, 0
    %p106 = por %p104, %p105
    %s108 = sadd.s32 %s107, 1
    %p111 = scmp.eq.s32.totalorder %s11, 7
    %p112 = scmp.ne.s32.totalorder %s107, %s109
    %p113 = scmp.eq.s32.totalorder %s11, 0
    %p114 = por %p112, %p113
    %p115 = scmp.ne.s32.totalorder %s107, %s109
    %p116 = scmp.eq.s32.totalorder %s16, 7
    %p117 = por %p115, %p116
    %p118 = scmp.ne.s32.totalorder %s109, %s110
    %p119 = scmp.eq.s32.totalorder %s16, 0
    %p120 = por %p118, %p119
    %p121 = scmp.ne.s32.totalorder %s109, %s110
    %p122 = scmp.eq.s32.totalorder %s17, 7
    %p123 = por %p121, %p122
    %p125 = scmp.ne.s32.totalorder %s110, %s124
    %p126 = scmp.eq.s32.totalorder %s17, 0
    %p127 = por %p125, %p126
    %s129 = sadd.s32 %s128, 1
    %p132 = scmp.eq.s32.totalorder %s11, 7
    %p133 = scmp.ne.s32.totalorder %s128, %s130
    %p134 = scmp.eq.s32.totalorder %s11, 0
    %p135 = por %p133, %p134
    %p136 = scmp.ne.s32.totalorder %s128, %s130
    %p137 = scmp.eq.s32.totalorder %s16, 7
    %p138 = por %p136, %p137
    %p139 = scmp.ne.s32.totalorder %s130, %s131
    %p140 = scmp.eq.s32.totalorder %s16, 0
    %p141 = por %p139, %p140
    %p142 = scmp.ne.s32.totalorder %s130, %s131
    %p143 = scmp.eq.s32.totalorder %s17, 7
    %p144 = por %p142, %p143
    %p146 = scmp.ne.s32.totalorder %s131, %s145
    %p147 = scmp.eq.s32.totalorder %s17, 0
    %p148 = por %p146, %p147
    %s149 = smul.u32 %s18, %s19
    %s150 = smul.u32 %s30, %s26
    %s151 = ssub.s32 %s149, %s150
    %p152 = scmp.eq.s32.totalorder %s151, 0
    %s154 = sadd.s32 %s153, 1
    %s155 = scalar_select %p152, %s153, %s154
    %p158 = pneg %p152
    %p159 = scmp.eq.s32.totalorder %s11, 7
    %p160 = por %p158, %p159
    %p161 = scmp.ne.s32.totalorder %s153, %s156
    %p162 = scmp.eq.s32.totalorder %s11, 0
    %p163 = por %p161, %p162
    %p164 = scmp.ne.s32.totalorder %s153, %s156
    %p165 = scmp.eq.s32.totalorder %s16, 7
    %p166 = por %p164, %p165
    %p167 = scmp.ne.s32.totalorder %s156, %s157
    %p168 = scmp.eq.s32.totalorder %s16, 0
    %p169 = por %p167, %p168
    %p170 = scmp.ne.s32.totalorder %s156, %s157
    %p171 = scmp.eq.s32.totalorder %s17, 7
    %p172 = por %p170, %p171
    %p174 = scmp.ne.s32.totalorder %s157, %s173
    %p175 = scmp.eq.s32.totalorder %s17, 0
    %p176 = por %p174, %p175
    %p177 = scmp.le.s32.totalorder 1, %s11
    %p178 = scmp.lt.s32.totalorder %s11, 9
    %p179 = pnand %p177, %p178
    %p180 = pneg %p179
    // Predicated region
    $region9: #{autoencoder_forward.7} parent=5 // pred_check
      _
    $region10: #{autoencoder_forward.7} parent=5 // pred_check_branch
      %182 = sbr.rel (%p179) target = $region12
    $region11: #{autoencoder_forward.7} parent=5 // pred_region
      %s183 = ssub.s32 %s11, 1
      // Predicated region
      $region13: #{autoencoder_forward.7} parent=11 // pred_check
        %p184 = pneg %p78
      $region14: #{autoencoder_forward.7} parent=11 // pred_check_branch
        %186 = sbr.rel (%p184) target = $region16
      $region15: #{autoencoder_forward.7} parent=11 // pred_region
        _
      $region16: #{autoencoder_forward.7} parent=11 // pred_fallthru
        _
      // Predicated region
      $region17: #{autoencoder_forward.7} parent=11 // pred_check
        %p187 = pneg %p99
      $region18: #{autoencoder_forward.7} parent=11 // pred_check_branch
        %189 = sbr.rel (%p187) target = $region20
      $region19: #{autoencoder_forward.7} parent=11 // pred_region
        _
      $region20: #{autoencoder_forward.7} parent=11 // pred_fallthru
        _
      // Predicated region
      $region21: #{autoencoder_forward.7} parent=11 // pred_check
        %p190 = pneg %p120
      $region22: #{autoencoder_forward.7} parent=11 // pred_check_branch
        %192 = sbr.rel (%p190) target = $region24
      $region23: #{autoencoder_forward.7} parent=11 // pred_region
        _
      $region24: #{autoencoder_forward.7} parent=11 // pred_fallthru
        _
      // Predicated region
      $region25: #{autoencoder_forward.7} parent=11 // pred_check
        %p193 = pneg %p141
      $region26: #{autoencoder_forward.7} parent=11 // pred_check_branch
        %195 = sbr.rel (%p193) target = $region28
      $region27: #{autoencoder_forward.7} parent=11 // pred_region
        _
      $region28: #{autoencoder_forward.7} parent=11 // pred_fallthru
        _
    $region12: #{autoencoder_forward.7} parent=5 // pred_fallthru
      _
    %p196 = scmp.lt.s32.totalorder %s11, 8
    // Predicated region
    $region29: #{autoencoder_forward.7} parent=5 // pred_check
      %p197 = pneg %p196
    $region30: #{autoencoder_forward.7} parent=5 // pred_check_branch
      %199 = sbr.rel (%p197) target = $region32
    $region31: #{autoencoder_forward.7} parent=5 // pred_region
      // Predicated region
      $region33: #{autoencoder_forward.7} parent=31 // pred_check
        %p200 = pneg %p51
      $region34: #{autoencoder_forward.7} parent=31 // pred_check_branch
        %202 = sbr.rel (%p200) target = $region36
      $region35: #{autoencoder_forward.7} parent=31 // pred_region
        %s203 = ssub.s32 1, %s18
        %s204 = smul.u32 %s19, %s203
        %s205 = smul.u32 %s18, 3
        %s206 = sadd.s32 %s204, %s205
        %s207 = smul.u32 16, %s206
        %p208 = scmp.lt.s32.totalorder %s207, 63
        %s209 = scalar_select %p208, %s207, 63
        %s210 = smul.addr %s209, 2
        %s211 = smul.addr %s210, 4
        %s212 = scalar_lea.vmem %s0, %s211
        %s213 = ssub.s32 1, %s18
        %s214 = smul.u32 %s19, %s213
        %s215 = smul.u32 %s18, 3
        %s216 = sadd.s32 %s214, %s215
        %s217 = smul.u32 16, %s216
      $region36: #{autoencoder_forward.7} parent=31 // pred_fallthru
        _
    $region32: #{autoencoder_forward.7} parent=5 // pred_fallthru
      _
    %p218 = scmp.le.s32.totalorder 1, %s11
    %p219 = scmp.lt.s32.totalorder %s11, 9
    %p220 = pnand %p218, %p219
    %p221 = pneg %p220
    // Predicated region
    $region37: #{autoencoder_forward.7} parent=5 // pred_check
      _
    $region38: #{autoencoder_forward.7} parent=5 // pred_check_branch
      %223 = sbr.rel (%p220) target = $region40
    $region39: #{autoencoder_forward.7} parent=5 // pred_region
      %s224 = ssub.s32 %s11, 1
      %s225 = ssub.s32 1, %s20
      %s226 = smul.u32 %s21, %s225
      %s227 = smul.u32 %s20, 3
      %s228 = sadd.s32 %s226, %s227
      %s229 = smul.u32 16, %s228
      %p230 = scmp.lt.s32.totalorder %s229, 63
      %s231 = scalar_select %p230, %s229, 63
      %s232 = smul.addr %s231, 2
      %s233 = smul.addr %s232, 4
      %s234 = scalar_lea.vmem %s0, %s233
      %p235 = pneg %p57
      %p236 = pneg %p54
      %p237 = pneg %p78
      %p238 = pneg %p75
      %p239 = pneg %p99
      %p240 = pneg %p96
      %p241 = pneg %p120
      %p242 = pneg %p117
      %p243 = pneg %p141
      %p244 = pneg %p138
      %p245 = pneg %p169
      %p246 = pneg %p166
      %s247 = smul.u32 %s20, %s21
      %s248 = smul.u32 16, %s247
      %p249 = scmp.lt.s32.totalorder %s248, 63
      %s250 = scalar_select %p249, %s248, 63
      %s251 = smul.addr %s250, 4
      %s252 = scalar_lea.vmem %s5, %s251
      %s253 = ssub.s32 1, %s20
      %s254 = smul.u32 %s21, %s253
      %s255 = smul.u32 %s20, 3
      %s256 = sadd.s32 %s254, %s255
      %s257 = smul.u32 16, %s256
      %p258 = scmp.lt.s32.totalorder %s257, 63
      %s259 = scalar_select %p258, %s257, 63
      %s260 = smul.addr %s259, 2
      %s261 = smul.addr %s260, 4
      %s262 = scalar_lea.vmem %s0, %s261
      %s263 = ssub.s32 1, %s20
      %s264 = smul.u32 %s21, %s263
      %s265 = smul.u32 %s20, 3
      %s266 = sadd.s32 %s264, %s265
      %s267 = smul.u32 16, %s266
      %s268 = smul.u32 %s20, %s21
      %s269 = smul.u32 16, %s268
      %p270 = scmp.lt.s32.totalorder %s269, 63
      %s271 = scalar_select %p270, %s269, 63
      %s272 = smul.addr %s271, 4
      %s273 = scalar_lea.vmem %s5, %s272
      %s274 = smul.u32 %s20, %s21
      %s275 = smul.u32 16, %s274
      %p277 = scmp.eq.s32.totalorder %s20, 0
      // Predicated region
      $region41: #{autoencoder_forward.7} parent=39 // pred_check
        %p278 = pneg %p277
      $region42: #{autoencoder_forward.7} parent=39 // pred_check_branch
        %280 = sbr.rel (%p278) target = $region44
      $region43: #{autoencoder_forward.7} parent=39 // pred_region
        %p281 = scmp.eq.s32.totalorder %s21, 0
        // Predicated region
        $region45: #{autoencoder_forward.7} parent=43 // pred_check
          %p282 = pneg %p281
        $region46: #{autoencoder_forward.7} parent=43 // pred_check_branch
          %284 = sbr.rel (%p282) target = $region48
        $region47: #{autoencoder_forward.7} parent=43 // pred_region
          %285 = vst [vmem:[#allocation3] sm:$0xff] 0.0
          %286 = vst [vmem:[#allocation4] sm:$0xff] 0.0
        $region48: #{autoencoder_forward.7} parent=43 // pred_fallthru
          _
        %v287 = vld [vmem:[%s262] sm:$0xff]
        %v288 = vld [vmem:[%s262 + $0x8] sm:$0xff]
        %v289 = vld [vmem:[%s262 + $0x10] sm:$0xff]
        %v290 = vld [vmem:[%s262 + $0x18] sm:$0xff]
        %v291 = vld [vmem:[%s262 + $0x20] sm:$0xff]
        %v292 = vld [vmem:[%s262 + $0x28] sm:$0xff]
        %v293 = vld [vmem:[%s262 + $0x30] sm:$0xff]
        %v294 = vld [vmem:[%s262 + $0x38] sm:$0xff]
        %v295 = vld [vmem:[%s262 + $0x40] sm:$0xff]
        %v296 = vld [vmem:[%s262 + $0x48] sm:$0xff]
        %v297 = vld [vmem:[%s262 + $0x50] sm:$0xff]
        %v298 = vld [vmem:[%s262 + $0x58] sm:$0xff]
        %v299 = vld [vmem:[%s262 + $0x60] sm:$0xff]
        %v300 = vld [vmem:[%s262 + $0x68] sm:$0xff]
        %v301 = vld [vmem:[%s262 + $0x70] sm:$0xff]
        %v302 = vld [vmem:[%s262 + $0x78] sm:$0xff]
        %v303 = vld [vmem:[%s1] sm:$0xf]
        %v304 = vld [vmem:[%s1 + $0x4] sm:$0xf]
        %v305 = vld [vmem:[%s1 + $0x8] sm:$0xf]
        %v306 = vld [vmem:[%s1 + $0xc] sm:$0xf]
        %v307 = vld [vmem:[%s1 + $0x10] sm:$0xf]
        %v308 = vld [vmem:[%s1 + $0x14] sm:$0xf]
        %v309 = vld [vmem:[%s1 + $0x18] sm:$0xf]
        %v310 = vld [vmem:[%s1 + $0x1c] sm:$0xf]
        %v311 = vld [vmem:[%s1 + $0x20] sm:$0xf]
        %v312 = vld [vmem:[%s1 + $0x24] sm:$0xf]
        %v313 = vld [vmem:[%s1 + $0x28] sm:$0xf]
        %v314 = vld [vmem:[%s1 + $0x2c] sm:$0xf]
        %v315 = vld [vmem:[%s1 + $0x30] sm:$0xf]
        %v316 = vld [vmem:[%s1 + $0x34] sm:$0xf]
        %v317 = vld [vmem:[%s1 + $0x38] sm:$0xf]
        %v318 = vld [vmem:[%s1 + $0x3c] sm:$0xf]
        %v319 = vld [vmem:[%s1 + $0x40] sm:$0xf]
        %v320 = vld [vmem:[%s1 + $0x44] sm:$0xf]
        %v321 = vld [vmem:[%s1 + $0x48] sm:$0xf]
        %v322 = vld [vmem:[%s1 + $0x4c] sm:$0xf]
        %v323 = vld [vmem:[%s1 + $0x50] sm:$0xf]
        %v324 = vld [vmem:[%s1 + $0x54] sm:$0xf]
        %v325 = vld [vmem:[%s1 + $0x58] sm:$0xf]
        %v326 = vld [vmem:[%s1 + $0x5c] sm:$0xf]
        %v343 = vunpack.c.l.b16 %v287
        %v344 = vunpack.c.h.b16 %v287
        %v345 = vunpack.c.l.b16 %v288
        %v346 = vunpack.c.h.b16 %v288
        %v347 = vunpack.c.l.b16 %v289
        %v348 = vunpack.c.h.b16 %v289
        %v349 = vunpack.c.l.b16 %v290
        %v350 = vunpack.c.h.b16 %v290
        %v351 = vunpack.c.l.b16 %v291
        %v352 = vunpack.c.h.b16 %v291
        %v353 = vunpack.c.l.b16 %v292
        %v354 = vunpack.c.h.b16 %v292
        %v355 = vunpack.c.l.b16 %v293
        %v356 = vunpack.c.h.b16 %v293
        %v357 = vunpack.c.l.b16 %v294
        %v358 = vunpack.c.h.b16 %v294
        %v359 = vunpack.c.l.b16 %v295
        %v360 = vunpack.c.h.b16 %v295
        %v361 = vunpack.c.l.b16 %v296
        %v362 = vunpack.c.h.b16 %v296
        %v363 = vunpack.c.l.b16 %v297
        %v364 = vunpack.c.h.b16 %v297
        %v365 = vunpack.c.l.b16 %v298
        %v366 = vunpack.c.h.b16 %v298
        %v367 = vunpack.c.l.b16 %v299
        %v368 = vunpack.c.h.b16 %v299
        %v369 = vunpack.c.l.b16 %v300
        %v370 = vunpack.c.h.b16 %v300
        %v371 = vunpack.c.l.b16 %v301
        %v372 = vunpack.c.h.b16 %v301
        %v373 = vunpack.c.l.b16 %v302
        %v374 = vunpack.c.h.b16 %v302
        %v375 = vpack.c.b16 %v345, %v343
        %v376 = vpack.c.b16 %v346, %v344
        %v377 = vpack.c.b16 %v349, %v347
        %v378 = vpack.c.b16 %v350, %v348
        %v379 = vpack.c.b16 %v353, %v351
        %v380 = vpack.c.b16 %v354, %v352
        %v381 = vpack.c.b16 %v357, %v355
        %v382 = vpack.c.b16 %v358, %v356
        %v383 = vpack.c.b16 %v361, %v359
        %v384 = vpack.c.b16 %v362, %v360
        %v385 = vpack.c.b16 %v365, %v363
        %v386 = vpack.c.b16 %v366, %v364
        %v387 = vpack.c.b16 %v369, %v367
        %v388 = vpack.c.b16 %v370, %v368
        %v389 = vpack.c.b16 %v373, %v371
        %v390 = vpack.c.b16 %v374, %v372
        %v423 = vunpack.c.l.b16 %v303
        %v424 = vunpack.c.l.b16 %v304
        %v425 = vunpack.c.l.b16 %v305
        %v426 = vunpack.c.l.b16 %v306
        %v427 = vunpack.c.l.b16 %v307
        %v428 = vunpack.c.l.b16 %v308
        %v429 = vunpack.c.l.b16 %v309
        %v430 = vunpack.c.l.b16 %v310
        %v431 = vunpack.c.l.b16 %v311
        %v432 = vunpack.c.l.b16 %v312
        %v433 = vunpack.c.l.b16 %v313
        %v434 = vunpack.c.l.b16 %v314
        %v435 = vunpack.c.l.b16 %v315
        %v436 = vunpack.c.l.b16 %v316
        %v437 = vunpack.c.l.b16 %v317
        %v438 = vunpack.c.l.b16 %v318
        %v439 = vunpack.c.l.b16 %v319
        %v440 = vunpack.c.l.b16 %v320
        %v441 = vunpack.c.l.b16 %v321
        %v442 = vunpack.c.l.b16 %v322
        %v443 = vunpack.c.l.b16 %v323
        %v444 = vunpack.c.l.b16 %v324
        %v445 = vunpack.c.l.b16 %v325
        %v446 = vunpack.c.l.b16 %v326
        %v447 = vpack.c.b16 %v424, %v423
        %v448 = vpack.c.b16 %v426, %v425
        %v449 = vpack.c.b16 %v428, %v427
        %v450 = vpack.c.b16 %v430, %v429
        %v451 = vpack.c.b16 %v432, %v431
        %v452 = vpack.c.b16 %v434, %v433
        %v453 = vpack.c.b16 %v436, %v435
        %v454 = vpack.c.b16 %v438, %v437
        %v455 = vpack.c.b16 %v440, %v439
        %v456 = vpack.c.b16 %v442, %v441
        %v457 = vpack.c.b16 %v444, %v443
        %v458 = vpack.c.b16 %v446, %v445
        %vm471 = vcmask 523264
        %v473 = vsel %vm471, %v376, 0
        %v476 = vsel %vm471, %v378, 0
        %v479 = vsel %vm471, %v380, 0
        %v482 = vsel %vm471, %v382, 0
        %v485 = vsel %vm471, %v384, 0
        %v488 = vsel %vm471, %v386, 0
        %v491 = vsel %vm471, %v388, 0
        %v494 = vsel %vm471, %v390, 0
        %496 = vmatprep.subr.bf16.mxu0 0
        %497 = vmatpush1.bf16.msra.mxu0 %v454
        %498 = vmatprep.subr.bf16.mxu0 0
        %499 = vmatpush1.bf16.msra.mxu0 %v453
        %500 = vmatprep.subr.bf16.mxu0 0
        %501 = vmatpush1.bf16.msra.mxu0 %v452
        %502 = vmatprep.subr.bf16.mxu0 0
        %503 = vmatpush1.bf16.msra.mxu0 %v451
        %504 = vmatprep.subr.bf16.mxu0 0
        %505 = vmatpush1.bf16.msra.mxu0 %v450
        %506 = vmatprep.subr.bf16.mxu0 0
        %507 = vmatpush1.bf16.msra.mxu0 %v449
        %508 = vmatprep.subr.bf16.mxu0 0
        %509 = vmatpush1.bf16.msra.mxu0 %v448
        %510 = vmatprep.subr.bf16.mxu0 0
        %511 = vmatpush1.bf16.msra.mxu0 %v447
        %512 = vmatprep.subr.bf16.mxu0 0
        %513 = vmatpush2.bf16.msra.mxu0 0
        %514 = vmatprep.subr.bf16.mxu0 0
        %515 = vmatpush2.bf16.msra.mxu0 0
        %516 = vmatprep.subr.bf16.mxu0 0
        %517 = vmatpush2.bf16.msra.mxu0 0
        %518 = vmatprep.subr.bf16.mxu0 0
        %519 = vmatpush2.bf16.msra.mxu0 0
        %520 = vmatprep.subr.bf16.mxu0 0
        %521 = vmatpush2.bf16.msra.mxu0 %v458
        %522 = vmatprep.subr.bf16.mxu0 0
        %523 = vmatpush2.bf16.msra.mxu0 %v457
        %524 = vmatprep.subr.bf16.mxu0 0
        %525 = vmatpush2.bf16.msra.mxu0 %v456
        %526 = vmatprep.subr.bf16.mxu0 0
        %527 = vmatpush2.bf16.msra.mxu0 %v455
        %528 = vmatprep.mubr.bf16.mxu0 %v473
        %529 = vmatmul.mubr.bf16.gmra.mxu0 %v375
        %v530 = vpop.f32.mrf.mxu0
        %v531 = vadd.f32 0.0, %v530
        %v532 = vpop.f32.mrf.mxu0
        %v533 = vpop.f32.mrf.mxu0
        %v534 = vadd.f32 0.0, %v533
        %v535 = vpop.f32.mrf.mxu0
        %536 = vmatprep.mubr.bf16.mxu0 %v476
        %537 = vmatmul.mubr.bf16.gmra.mxu0 %v377
        %v538 = vpop.f32.mrf.mxu0
        %v539 = vadd.f32 0.0, %v538
        %v540 = vpop.f32.mrf.mxu0
        %v541 = vpop.f32.mrf.mxu0
        %v542 = vadd.f32 0.0, %v541
        %v543 = vpop.f32.mrf.mxu0
        %544 = vmatprep.mubr.bf16.mxu0 %v479
        %545 = vmatmul.mubr.bf16.gmra.mxu0 %v379
        %v546 = vpop.f32.mrf.mxu0
        %v547 = vadd.f32 0.0, %v546
        %v548 = vpop.f32.mrf.mxu0
        %v549 = vpop.f32.mrf.mxu0
        %v550 = vadd.f32 0.0, %v549
        %v551 = vpop.f32.mrf.mxu0
        %552 = vmatprep.mubr.bf16.mxu0 %v482
        %553 = vmatmul.mubr.bf16.gmra.mxu0 %v381
        %v554 = vpop.f32.mrf.mxu0
        %v555 = vadd.f32 0.0, %v554
        %v556 = vpop.f32.mrf.mxu0
        %v557 = vpop.f32.mrf.mxu0
        %v558 = vadd.f32 0.0, %v557
        %v559 = vpop.f32.mrf.mxu0
        %560 = vmatprep.mubr.bf16.mxu0 %v485
        %561 = vmatmul.mubr.bf16.gmra.mxu0 %v383
        %v562 = vpop.f32.mrf.mxu0
        %v563 = vadd.f32 0.0, %v562
        %v564 = vpop.f32.mrf.mxu0
        %v565 = vpop.f32.mrf.mxu0
        %v566 = vadd.f32 0.0, %v565
        %v567 = vpop.f32.mrf.mxu0
        %568 = vmatprep.mubr.bf16.mxu0 %v488
        %569 = vmatmul.mubr.bf16.gmra.mxu0 %v385
        %v570 = vpop.f32.mrf.mxu0
        %v571 = vadd.f32 0.0, %v570
        %v572 = vpop.f32.mrf.mxu0
        %v573 = vpop.f32.mrf.mxu0
        %v574 = vadd.f32 0.0, %v573
        %v575 = vpop.f32.mrf.mxu0
        %576 = vmatprep.mubr.bf16.mxu0 %v491
        %577 = vmatmul.mubr.bf16.gmra.mxu0 %v387
        %v578 = vpop.f32.mrf.mxu0
        %v579 = vadd.f32 0.0, %v578
        %v580 = vpop.f32.mrf.mxu0
        %v581 = vpop.f32.mrf.mxu0
        %v582 = vadd.f32 0.0, %v581
        %v583 = vpop.f32.mrf.mxu0
        %584 = vmatprep.mubr.bf16.mxu0 %v494
        %585 = vmatmul.mubr.bf16.gmra.mxu0 %v389
        %v586 = vpop.f32.mrf.mxu0
        %v587 = vadd.f32 0.0, %v586
        %v588 = vpop.f32.mrf.mxu0
        %v589 = vpop.f32.mrf.mxu0
        %v590 = vadd.f32 0.0, %v589
        %v591 = vpop.f32.mrf.mxu0
        %592 = vdwg.mxu0
        %v593 = vld [vmem:[#allocation3] sm:$0xff]
        %v594 = vadd.f32 %v531, %v534
        %v595 = vadd.f32 %v594, %v539
        %v596 = vadd.f32 %v595, %v542
        %v597 = vadd.f32 %v596, %v547
        %v598 = vadd.f32 %v597, %v550
        %v599 = vadd.f32 %v598, %v555
        %v600 = vadd.f32 %v599, %v558
        %v601 = vadd.f32 %v600, %v563
        %v602 = vadd.f32 %v601, %v566
        %v603 = vadd.f32 %v602, %v571
        %v604 = vadd.f32 %v603, %v574
        %v605 = vadd.f32 %v604, %v579
        %v606 = vadd.f32 %v605, %v582
        %v607 = vadd.f32 %v606, %v587
        %v608 = vadd.f32 %v607, %v590
        %v609 = vadd.f32 %v593, %v608
        %610 = vst [vmem:[#allocation3] sm:$0xff] %v609
        %v611 = vld [vmem:[#allocation4] sm:$0xff]
        %v612 = vmul.f32 %v531, %v531
        %v613 = vmul.f32 %v534, %v534
        %v614 = vmul.f32 %v539, %v539
        %v615 = vmul.f32 %v542, %v542
        %v616 = vmul.f32 %v547, %v547
        %v617 = vmul.f32 %v550, %v550
        %v618 = vmul.f32 %v555, %v555
        %v619 = vmul.f32 %v558, %v558
        %v620 = vmul.f32 %v563, %v563
        %v621 = vmul.f32 %v566, %v566
        %v622 = vmul.f32 %v571, %v571
        %v623 = vmul.f32 %v574, %v574
        %v624 = vmul.f32 %v579, %v579
        %v625 = vmul.f32 %v582, %v582
        %v626 = vmul.f32 %v587, %v587
        %v627 = vmul.f32 %v590, %v590
        %v628 = vadd.f32 %v612, %v613
        %v629 = vadd.f32 %v628, %v614
        %v630 = vadd.f32 %v629, %v615
        %v631 = vadd.f32 %v630, %v616
        %v632 = vadd.f32 %v631, %v617
        %v633 = vadd.f32 %v632, %v618
        %v634 = vadd.f32 %v633, %v619
        %v635 = vadd.f32 %v634, %v620
        %v636 = vadd.f32 %v635, %v621
        %v637 = vadd.f32 %v636, %v622
        %v638 = vadd.f32 %v637, %v623
        %v639 = vadd.f32 %v638, %v624
        %v640 = vadd.f32 %v639, %v625
        %v641 = vadd.f32 %v640, %v626
        %v642 = vadd.f32 %v641, %v627
        %v643 = vadd.f32 %v611, %v642
        %644 = vst [vmem:[#allocation4] sm:$0xff] %v643
        %v645 = vpack.c.bf16 %v534, %v531
        %v646 = vpack.c.bf16 %v542, %v539
        %v647 = vpack.c.bf16 %v550, %v547
        %v648 = vpack.c.bf16 %v558, %v555
        %v649 = vpack.c.bf16 %v566, %v563
        %v650 = vpack.c.bf16 %v574, %v571
        %v651 = vpack.c.bf16 %v582, %v579
        %v652 = vpack.c.bf16 %v590, %v587
        %v661 = vunpack.c.l.b16 %v645
        %v662 = vunpack.c.h.b16 %v645
        %v663 = vunpack.c.l.b16 %v646
        %v664 = vunpack.c.h.b16 %v646
        %v665 = vunpack.c.l.b16 %v647
        %v666 = vunpack.c.h.b16 %v647
        %v667 = vunpack.c.l.b16 %v648
        %v668 = vunpack.c.h.b16 %v648
        %v669 = vunpack.c.l.b16 %v649
        %v670 = vunpack.c.h.b16 %v649
        %v671 = vunpack.c.l.b16 %v650
        %v672 = vunpack.c.h.b16 %v650
        %v673 = vunpack.c.l.b16 %v651
        %v674 = vunpack.c.h.b16 %v651
        %v675 = vunpack.c.l.b16 %v652
        %v676 = vunpack.c.h.b16 %v652
        %v677 = vpack.c.b16 %v661, %v661
        %v678 = vpack.c.b16 %v662, %v662
        %v679 = vpack.c.b16 %v663, %v663
        %v680 = vpack.c.b16 %v664, %v664
        %v681 = vpack.c.b16 %v665, %v665
        %v682 = vpack.c.b16 %v666, %v666
        %v683 = vpack.c.b16 %v667, %v667
        %v684 = vpack.c.b16 %v668, %v668
        %v685 = vpack.c.b16 %v669, %v669
        %v686 = vpack.c.b16 %v670, %v670
        %v687 = vpack.c.b16 %v671, %v671
        %v688 = vpack.c.b16 %v672, %v672
        %v689 = vpack.c.b16 %v673, %v673
        %v690 = vpack.c.b16 %v674, %v674
        %v691 = vpack.c.b16 %v675, %v675
        %v692 = vpack.c.b16 %v676, %v676
        %s709 = smul.u32 %s21, 16
        %s710 = smul.addr %s709, 4
        %s711 = scalar_lea.vmem [#allocation2], %s710
        %712 = vst [vmem:[%s711] sm:$0xf] %v677
        %713 = vst [vmem:[%s711 + $0x4] sm:$0xf] %v678
        %714 = vst [vmem:[%s711 + $0x8] sm:$0xf] %v679
        %715 = vst [vmem:[%s711 + $0xc] sm:$0xf] %v680
        %716 = vst [vmem:[%s711 + $0x10] sm:$0xf] %v681
        %717 = vst [vmem:[%s711 + $0x14] sm:$0xf] %v682
        %718 = vst [vmem:[%s711 + $0x18] sm:$0xf] %v683
        %719 = vst [vmem:[%s711 + $0x1c] sm:$0xf] %v684
        %720 = vst [vmem:[%s711 + $0x20] sm:$0xf] %v685
        %721 = vst [vmem:[%s711 + $0x24] sm:$0xf] %v686
        %722 = vst [vmem:[%s711 + $0x28] sm:$0xf] %v687
        %723 = vst [vmem:[%s711 + $0x2c] sm:$0xf] %v688
        %724 = vst [vmem:[%s711 + $0x30] sm:$0xf] %v689
        %725 = vst [vmem:[%s711 + $0x34] sm:$0xf] %v690
        %726 = vst [vmem:[%s711 + $0x38] sm:$0xf] %v691
        %727 = vst [vmem:[%s711 + $0x3c] sm:$0xf] %v692
      $region44: #{autoencoder_forward.7} parent=39 // pred_fallthru
        _
      %p728 = scmp.eq.s32.totalorder %s20, 1
      // Predicated region
      $region49: #{autoencoder_forward.7} parent=39 // pred_check
        %p729 = pneg %p728
      $region50: #{autoencoder_forward.7} parent=39 // pred_check_branch
        %731 = sbr.rel (%p729) target = $region52
      $region51: #{autoencoder_forward.7} parent=39 // pred_region
        %s732 = smul.u32 %s21, 16
        %s733 = smul.addr %s732, 4
        %s734 = scalar_lea.vmem [#allocation2], %s733
        %v735 = vld [vmem:[%s734] sm:$0xf]
        %v736 = vld [vmem:[%s734 + $0x4] sm:$0xf]
        %v737 = vld [vmem:[%s734 + $0x8] sm:$0xf]
        %v738 = vld [vmem:[%s734 + $0xc] sm:$0xf]
        %v739 = vld [vmem:[%s734 + $0x10] sm:$0xf]
        %v740 = vld [vmem:[%s734 + $0x14] sm:$0xf]
        %v741 = vld [vmem:[%s734 + $0x18] sm:$0xf]
        %v742 = vld [vmem:[%s734 + $0x1c] sm:$0xf]
        %v743 = vld [vmem:[%s734 + $0x20] sm:$0xf]
        %v744 = vld [vmem:[%s734 + $0x24] sm:$0xf]
        %v745 = vld [vmem:[%s734 + $0x28] sm:$0xf]
        %v746 = vld [vmem:[%s734 + $0x2c] sm:$0xf]
        %v747 = vld [vmem:[%s734 + $0x30] sm:$0xf]
        %v748 = vld [vmem:[%s734 + $0x34] sm:$0xf]
        %v749 = vld [vmem:[%s734 + $0x38] sm:$0xf]
        %v750 = vld [vmem:[%s734 + $0x3c] sm:$0xf]
        %v751 = vunpack.c.l.bf16 %v735
        %v752 = vunpack.c.l.bf16 %v736
        %v753 = vunpack.c.l.bf16 %v737
        %v754 = vunpack.c.l.bf16 %v738
        %v755 = vunpack.c.l.bf16 %v739
        %v756 = vunpack.c.l.bf16 %v740
        %v757 = vunpack.c.l.bf16 %v741
        %v758 = vunpack.c.l.bf16 %v742
        %v759 = vunpack.c.l.bf16 %v743
        %v760 = vunpack.c.l.bf16 %v744
        %v761 = vunpack.c.l.bf16 %v745
        %v762 = vunpack.c.l.bf16 %v746
        %v763 = vunpack.c.l.bf16 %v747
        %v764 = vunpack.c.l.bf16 %v748
        %v765 = vunpack.c.l.bf16 %v749
        %v766 = vunpack.c.l.bf16 %v750
        %v767 = vld [vmem:[#allocation3] sm:$0xff]
        %v768 = vld [vmem:[%s2] sm:$0xff]
        %v769 = vld [vmem:[%s2 + $0x8] sm:$0xff]
        %v770 = vld [vmem:[%s2 + $0x10] sm:$0xff]
        %v771 = vld [vmem:[%s2 + $0x18] sm:$0xff]
        %v772 = vld [vmem:[%s2 + $0x20] sm:$0xff]
        %v773 = vld [vmem:[%s2 + $0x28] sm:$0xff]
        %v774 = vld [vmem:[%s2 + $0x30] sm:$0xff]
        %v775 = vld [vmem:[%s2 + $0x38] sm:$0xff]
        %v776 = vld [vmem:[%s2 + $0x40] sm:$0xff]
        %v777 = vld [vmem:[%s2 + $0x48] sm:$0xff]
        %v778 = vld [vmem:[%s2 + $0x50] sm:$0xff]
        %v779 = vld [vmem:[%s2 + $0x58] sm:$0xff]
        %v780 = vld [vmem:[%s2 + $0x60] sm:$0xff]
        %v781 = vld [vmem:[%s2 + $0x68] sm:$0xff]
        %v782 = vld [vmem:[%s2 + $0x70] sm:$0xff]
        %v783 = vld [vmem:[%s2 + $0x78] sm:$0xff]
        %784 = vmatprep.subr.mxu0 0.0
        %785 = vmatpush1.msra.mxu0 %v783
        %786 = vmatprep.subr.mxu0 0.0
        %787 = vmatpush1.msra.mxu0 %v782
        %788 = vmatprep.subr.mxu0 0.0
        %789 = vmatpush1.msra.mxu0 %v781
        %790 = vmatprep.subr.mxu0 0.0
        %791 = vmatpush1.msra.mxu0 %v780
        %792 = vmatprep.subr.mxu0 0.0
        %793 = vmatpush1.msra.mxu0 %v779
        %794 = vmatprep.subr.mxu0 0.0
        %795 = vmatpush1.msra.mxu0 %v778
        %796 = vmatprep.subr.mxu0 0.0
        %797 = vmatpush1.msra.mxu0 %v777
        %798 = vmatprep.subr.mxu0 0.0
        %799 = vmatpush1.msra.mxu0 %v776
        %800 = vmatprep.subr.mxu0 0.0
        %801 = vmatpush1.msra.mxu0 %v775
        %802 = vmatprep.subr.mxu0 0.0
        %803 = vmatpush1.msra.mxu0 %v774
        %804 = vmatprep.subr.mxu0 0.0
        %805 = vmatpush1.msra.mxu0 %v773
        %806 = vmatprep.subr.mxu0 0.0
        %807 = vmatpush1.msra.mxu0 %v772
        %808 = vmatprep.subr.mxu0 0.0
        %809 = vmatpush1.msra.mxu0 %v771
        %810 = vmatprep.subr.mxu0 0.0
        %811 = vmatpush1.msra.mxu0 %v770
        %812 = vmatprep.subr.mxu0 0.0
        %813 = vmatpush1.msra.mxu0 %v769
        %814 = vmatprep.subr.mxu0 0.0
        %815 = vmatpush1.msra.mxu0 %v768
        %816 = vmatprep.subr.mxu0 0.0
        %817 = vmatpush2.msra.mxu0 0.0
        %818 = vmatprep.subr.mxu0 0.0
        %819 = vmatpush2.msra.mxu0 0.0
        %820 = vmatprep.subr.mxu0 0.0
        %821 = vmatpush2.msra.mxu0 0.0
        %822 = vmatprep.subr.mxu0 0.0
        %823 = vmatpush2.msra.mxu0 0.0
        %824 = vmatprep.subr.mxu0 0.0
        %825 = vmatpush2.msra.mxu0 0.0
        %826 = vmatprep.subr.mxu0 0.0
        %827 = vmatpush2.msra.mxu0 0.0
        %828 = vmatprep.subr.mxu0 0.0
        %829 = vmatpush2.msra.mxu0 0.0
        %830 = vmatprep.subr.mxu0 0.0
        %831 = vmatpush2.msra.mxu0 0.0
        %832 = vmatprep.subr.mxu0 0.0
        %833 = vmatpush2.msra.mxu0 0.0
        %834 = vmatprep.subr.mxu0 0.0
        %835 = vmatpush2.msra.mxu0 0.0
        %836 = vmatprep.subr.mxu0 0.0
        %837 = vmatpush2.msra.mxu0 0.0
        %838 = vmatprep.subr.mxu0 0.0
        %839 = vmatpush2.msra.mxu0 0.0
        %840 = vmatprep.subr.mxu0 0.0
        %841 = vmatpush2.msra.mxu0 0.0
        %842 = vmatprep.subr.mxu0 0.0
        %843 = vmatpush2.msra.mxu0 0.0
        %844 = vmatprep.subr.mxu0 0.0
        %845 = vmatpush2.msra.mxu0 0.0
        %846 = vmatprep.subr.mxu0 0.0
        %847 = vmatpush2.msra.mxu0 0.0
        %848 = vmatprep.mubr.f32.mxu0 0.0
        %849 = vmatmul.mubr.f32.gmra.mxu0 %v767
        %v850 = vpop.f32.mrf.mxu0
        %v851 = vadd.f32 0.0, %v850
        %v852 = vpop.f32.mrf.mxu0
        %853 = vdwg.mxu0
        %v854 = vld [vmem:[#allocation4] sm:$0xff]
        %855 = vmatprep.subr.mxu0 0.0
        %856 = vmatpush1.msra.mxu0 %v783
        %857 = vmatprep.subr.mxu0 0.0
        %858 = vmatpush1.msra.mxu0 %v782
        %859 = vmatprep.subr.mxu0 0.0
        %860 = vmatpush1.msra.mxu0 %v781
        %861 = vmatprep.subr.mxu0 0.0
        %862 = vmatpush1.msra.mxu0 %v780
        %863 = vmatprep.subr.mxu0 0.0
        %864 = vmatpush1.msra.mxu0 %v779
        %865 = vmatprep.subr.mxu0 0.0
        %866 = vmatpush1.msra.mxu0 %v778
        %867 = vmatprep.subr.mxu0 0.0
        %868 = vmatpush1.msra.mxu0 %v777
        %869 = vmatprep.subr.mxu0 0.0
        %870 = vmatpush1.msra.mxu0 %v776
        %871 = vmatprep.subr.mxu0 0.0
        %872 = vmatpush1.msra.mxu0 %v775
        %873 = vmatprep.subr.mxu0 0.0
        %874 = vmatpush1.msra.mxu0 %v774
        %875 = vmatprep.subr.mxu0 0.0
        %876 = vmatpush1.msra.mxu0 %v773
        %877 = vmatprep.subr.mxu0 0.0
        %878 = vmatpush1.msra.mxu0 %v772
        %879 = vmatprep.subr.mxu0 0.0
        %880 = vmatpush1.msra.mxu0 %v771
        %881 = vmatprep.subr.mxu0 0.0
        %882 = vmatpush1.msra.mxu0 %v770
        %883 = vmatprep.subr.mxu0 0.0
        %884 = vmatpush1.msra.mxu0 %v769
        %885 = vmatprep.subr.mxu0 0.0
        %886 = vmatpush1.msra.mxu0 %v768
        %887 = vmatprep.subr.mxu0 0.0
        %888 = vmatpush2.msra.mxu0 0.0
        %889 = vmatprep.subr.mxu0 0.0
        %890 = vmatpush2.msra.mxu0 0.0
        %891 = vmatprep.subr.mxu0 0.0
        %892 = vmatpush2.msra.mxu0 0.0
        %893 = vmatprep.subr.mxu0 0.0
        %894 = vmatpush2.msra.mxu0 0.0
        %895 = vmatprep.subr.mxu0 0.0
        %896 = vmatpush2.msra.mxu0 0.0
        %897 = vmatprep.subr.mxu0 0.0
        %898 = vmatpush2.msra.mxu0 0.0
        %899 = vmatprep.subr.mxu0 0.0
        %900 = vmatpush2.msra.mxu0 0.0
        %901 = vmatprep.subr.mxu0 0.0
        %902 = vmatpush2.msra.mxu0 0.0
        %903 = vmatprep.subr.mxu0 0.0
        %904 = vmatpush2.msra.mxu0 0.0
        %905 = vmatprep.subr.mxu0 0.0
        %906 = vmatpush2.msra.mxu0 0.0
        %907 = vmatprep.subr.mxu0 0.0
        %908 = vmatpush2.msra.mxu0 0.0
        %909 = vmatprep.subr.mxu0 0.0
        %910 = vmatpush2.msra.mxu0 0.0
        %911 = vmatprep.subr.mxu0 0.0
        %912 = vmatpush2.msra.mxu0 0.0
        %913 = vmatprep.subr.mxu0 0.0
        %914 = vmatpush2.msra.mxu0 0.0
        %915 = vmatprep.subr.mxu0 0.0
        %916 = vmatpush2.msra.mxu0 0.0
        %917 = vmatprep.subr.mxu0 0.0
        %918 = vmatpush2.msra.mxu0 0.0
        %919 = vmatprep.mubr.f32.mxu0 0.0
        %920 = vmatmul.mubr.f32.gmra.mxu0 %v854
        %v921 = vpop.f32.mrf.mxu0
        %v922 = vadd.f32 0.0, %v921
        %v923 = vpop.f32.mrf.mxu0
        %924 = vdwg.mxu0
        %v925 = vrot.slane %v851, 4
        %v926 = vadd.f32 %v851, %v925
        %v927 = vrot.slane %v926, 2
        %v928 = vadd.f32 %v926, %v927
        %v929 = vrot.slane %v928, 1
        %v930 = vadd.f32 %v928, %v929
        %v931 = vmul.f32 %v930, 0.001953125
        %v932 = vrot.slane %v922, 4
        %v933 = vadd.f32 %v922, %v932
        %v934 = vrot.slane %v933, 2
        %v935 = vadd.f32 %v933, %v934
        %v936 = vrot.slane %v935, 1
        %v937 = vadd.f32 %v935, %v936
        %v938 = vmul.f32 %v937, 0.001953125
        %v939 = vmul.f32 %v931, %v931
        %v940 = vsub.f32 %v938, %v939
        %v941 = vmax.f32 %v940, 0.0
        %v942 = vld [vmem:[%s3] sm:$0x1]
        %v943 = vadd.f32 %v941, 1e-05
        %v944 = vrsqrt.pop %v943
        %v945 = vmul.f32 %v942, %v944
        %v946 = vld [vmem:[%s4] sm:$0x1]
        %v947 = vmul.f32 %v945, %v931
        %v948 = vsub.f32 %v946, %v947
        %v950 = vlaneseq
        %v951 = vshrl.u32 %v950, 7
        %v952 = vsub.s32 0, %v951
        %v953 = vrot.slane %v945, %v952
        %v955 = vmul.f32 %v751, %v953
        %v956 = vmul.f32 %v752, %v953
        %v957 = vmul.f32 %v753, %v953
        %v958 = vmul.f32 %v754, %v953
        %v959 = vmul.f32 %v755, %v953
        %v960 = vmul.f32 %v756, %v953
        %v961 = vmul.f32 %v757, %v953
        %v962 = vmul.f32 %v758, %v953
        %v963 = vmul.f32 %v759, %v953
        %v964 = vmul.f32 %v760, %v953
        %v965 = vmul.f32 %v761, %v953
        %v966 = vmul.f32 %v762, %v953
        %v967 = vmul.f32 %v763, %v953
        %v968 = vmul.f32 %v764, %v953
        %v969 = vmul.f32 %v765, %v953
        %v970 = vmul.f32 %v766, %v953
        %v972 = vlaneseq
        %v973 = vshrl.u32 %v972, 7
        %v974 = vsub.s32 0, %v973
        %v975 = vrot.slane %v948, %v974
        %v977 = vadd.f32 %v955, %v975
        %v978 = vadd.f32 %v956, %v975
        %v979 = vadd.f32 %v957, %v975
        %v980 = vadd.f32 %v958, %v975
        %v981 = vadd.f32 %v959, %v975
        %v982 = vadd.f32 %v960, %v975
        %v983 = vadd.f32 %v961, %v975
        %v984 = vadd.f32 %v962, %v975
        %v985 = vadd.f32 %v963, %v975
        %v986 = vadd.f32 %v964, %v975
        %v987 = vadd.f32 %v965, %v975
        %v988 = vadd.f32 %v966, %v975
        %v989 = vadd.f32 %v967, %v975
        %v990 = vadd.f32 %v968, %v975
        %v991 = vadd.f32 %v969, %v975
        %v992 = vadd.f32 %v970, %v975
        %v993 = vmax.f32 %v977, 0.0
        %v994 = vmax.f32 %v978, 0.0
        %v995 = vmax.f32 %v979, 0.0
        %v996 = vmax.f32 %v980, 0.0
        %v997 = vmax.f32 %v981, 0.0
        %v998 = vmax.f32 %v982, 0.0
        %v999 = vmax.f32 %v983, 0.0
        %v1000 = vmax.f32 %v984, 0.0
        %v1001 = vmax.f32 %v985, 0.0
        %v1002 = vmax.f32 %v986, 0.0
        %v1003 = vmax.f32 %v987, 0.0
        %v1004 = vmax.f32 %v988, 0.0
        %v1005 = vmax.f32 %v989, 0.0
        %v1006 = vmax.f32 %v990, 0.0
        %v1007 = vmax.f32 %v991, 0.0
        %v1008 = vmax.f32 %v992, 0.0
        %v1009 = vpack.c.bf16 %v994, %v993
        %v1010 = vpack.c.bf16 %v996, %v995
        %v1011 = vpack.c.bf16 %v998, %v997
        %v1012 = vpack.c.bf16 %v1000, %v999
        %v1013 = vpack.c.bf16 %v1002, %v1001
        %v1014 = vpack.c.bf16 %v1004, %v1003
        %v1015 = vpack.c.bf16 %v1006, %v1005
        %v1016 = vpack.c.bf16 %v1008, %v1007
        %v1025 = vunpack.c.l.b16 %v1009
        %v1026 = vunpack.c.h.b16 %v1009
        %v1027 = vunpack.c.l.b16 %v1010
        %v1028 = vunpack.c.h.b16 %v1010
        %v1029 = vunpack.c.l.b16 %v1011
        %v1030 = vunpack.c.h.b16 %v1011
        %v1031 = vunpack.c.l.b16 %v1012
        %v1032 = vunpack.c.h.b16 %v1012
        %v1033 = vunpack.c.l.b16 %v1013
        %v1034 = vunpack.c.h.b16 %v1013
        %v1035 = vunpack.c.l.b16 %v1014
        %v1036 = vunpack.c.h.b16 %v1014
        %v1037 = vunpack.c.l.b16 %v1015
        %v1038 = vunpack.c.h.b16 %v1015
        %v1039 = vunpack.c.l.b16 %v1016
        %v1040 = vunpack.c.h.b16 %v1016
        %v1041 = vpack.c.b16 %v1025, %v1025
        %v1042 = vpack.c.b16 %v1026, %v1026
        %v1043 = vpack.c.b16 %v1027, %v1027
        %v1044 = vpack.c.b16 %v1028, %v1028
        %v1045 = vpack.c.b16 %v1029, %v1029
        %v1046 = vpack.c.b16 %v1030, %v1030
        %v1047 = vpack.c.b16 %v1031, %v1031
        %v1048 = vpack.c.b16 %v1032, %v1032
        %v1049 = vpack.c.b16 %v1033, %v1033
        %v1050 = vpack.c.b16 %v1034, %v1034
        %v1051 = vpack.c.b16 %v1035, %v1035
        %v1052 = vpack.c.b16 %v1036, %v1036
        %v1053 = vpack.c.b16 %v1037, %v1037
        %v1054 = vpack.c.b16 %v1038, %v1038
        %v1055 = vpack.c.b16 %v1039, %v1039
        %v1056 = vpack.c.b16 %v1040, %v1040
        %1073 = vst [vmem:[%s273] sm:$0xf] %v1041
        %1074 = vst [vmem:[%s273 + $0x4] sm:$0xf] %v1042
        %1075 = vst [vmem:[%s273 + $0x8] sm:$0xf] %v1043
        %1076 = vst [vmem:[%s273 + $0xc] sm:$0xf] %v1044
        %1077 = vst [vmem:[%s273 + $0x10] sm:$0xf] %v1045
        %1078 = vst [vmem:[%s273 + $0x14] sm:$0xf] %v1046
        %1079 = vst [vmem:[%s273 + $0x18] sm:$0xf] %v1047
        %1080 = vst [vmem:[%s273 + $0x1c] sm:$0xf] %v1048
        %1081 = vst [vmem:[%s273 + $0x20] sm:$0xf] %v1049
        %1082 = vst [vmem:[%s273 + $0x24] sm:$0xf] %v1050
        %1083 = vst [vmem:[%s273 + $0x28] sm:$0xf] %v1051
        %1084 = vst [vmem:[%s273 + $0x2c] sm:$0xf] %v1052
        %1085 = vst [vmem:[%s273 + $0x30] sm:$0xf] %v1053
        %1086 = vst [vmem:[%s273 + $0x34] sm:$0xf] %v1054
        %1087 = vst [vmem:[%s273 + $0x38] sm:$0xf] %v1055
        %1088 = vst [vmem:[%s273 + $0x3c] sm:$0xf] %v1056
      $region52: #{autoencoder_forward.7} parent=39 // pred_fallthru
        _
      %s1089 = smul.u32 %s20, %s21
      %s1090 = smul.u32 16, %s1089
      %p1091 = scmp.lt.s32.totalorder %s1090, 63
      %s1092 = scalar_select %p1091, %s1090, 63
      %s1093 = smul.addr %s1092, 4
      %s1094 = scalar_lea.vmem %s5, %s1093
      // Predicated region
      $region53: #{autoencoder_forward.7} parent=39 // pred_check
        %p1095 = pneg %p166
      $region54: #{autoencoder_forward.7} parent=39 // pred_check_branch
        %1097 = sbr.rel (%p1095) target = $region56
      $region55: #{autoencoder_forward.7} parent=39 // pred_region
        %s1098 = smul.u32 %s20, %s21
        %s1099 = smul.u32 16, %s1098
      $region56: #{autoencoder_forward.7} parent=39 // pred_fallthru
        _
    $region40: #{autoencoder_forward.7} parent=5 // pred_fallthru
      _
    %p1100 = scmp.le.s32.totalorder 2, %s11
    // Predicated region
    $region57: #{autoencoder_forward.7} parent=5 // pred_check
      %p1101 = pneg %p1100
    $region58: #{autoencoder_forward.7} parent=5 // pred_check_branch
      %1103 = sbr.rel (%p1101) target = $region60
    $region59: #{autoencoder_forward.7} parent=5 // pred_region
      %s1104 = ssub.s32 %s11, 2
      // Predicated region
      $region61: #{autoencoder_forward.7} parent=59 // pred_check
        %p1105 = pneg %p172
      $region62: #{autoencoder_forward.7} parent=59 // pred_check_branch
        %1107 = sbr.rel (%p1105) target = $region64
      $region63: #{autoencoder_forward.7} parent=59 // pred_region
        %s1108 = smul.u32 %s22, %s23
        %s1109 = smul.u32 16, %s1108
        %p1110 = scmp.lt.s32.totalorder %s1109, 63
        %s1111 = scalar_select %p1110, %s1109, 63
        %s1112 = smul.addr %s1111, 4
        %s1113 = scalar_lea.vmem %s5, %s1112
      $region64: #{autoencoder_forward.7} parent=59 // pred_fallthru
        _
    $region60: #{autoencoder_forward.7} parent=5 // pred_fallthru
      _
  $region6: #{autoencoder_forward.7} parent=0 // loop_footer
    %s15 = sadd.s32 1, %s11
  $region7: #{autoencoder_forward.7} parent=0 // loop_footer_branch
    %10 = sbr.rel target = $region3
  $region8: #{autoencoder_forward.7} parent=0 // loop_exit
    _

// kernel: autoencoder_forward.8
$region0: #{autoencoder_forward.8}
  #allocation0 [shape = 'u32[]', space=smem, size = 0x4, offset = 0x4, fixed_abs, tag = 'smem constant byte address 0x4 - core index']
  #allocation1 [shape = 'u32[144,128]{1,0:T(1,128)}', space=vmem, size = 0x12000, scoped, tag = 'internal scratch']
  #allocation2 [shape = 'bf16[4,32,128]{2,1,0:T(8,128)(2,1)}', space=vmem, size = 0x8000, scoped, tag = 'scratch operand']
  #allocation3 [shape = 'f32[8,128]{1,0:T(8,128)}', space=vmem, size = 0x1000, scoped, tag = 'scratch operand']
  #allocation4 [shape = 'f32[8,128]{1,0:T(8,128)}', space=vmem, size = 0x1000, scoped, tag = 'scratch operand']
  %s0 = inlined_call_operand.vmem [shape: bf16[128,384], index: 0, kind: input, shape index: {}]
  %s1 = inlined_call_operand.vmem [shape: bf16[384,128], index: 1, kind: input, shape index: {}]
  %s2 = inlined_call_operand.vmem [shape: f32[128,128], index: 2, kind: input, shape index: {}]
  %s3 = inlined_call_operand.vmem [shape: f32[1,128], index: 3, kind: input, shape index: {}]
  %s4 = inlined_call_operand.vmem [shape: f32[1,128], index: 4, kind: input, shape index: {}]
  %s5 = inlined_call_operand.vmem [shape: bf16[128,128], index: 5, kind: output, shape index: {}]
  %s6 = sld [smem:[#allocation0]]
  $region65: #{autoencoder_forward.8} parent=0
    _
  %s8 = ssub.s32 1, %s6
  %s9 = scalar_select 0, %s8, %s6
  loop: start=0, step=1, limit=10
  $region2: #{autoencoder_forward.8} parent=0 // loop_pre_header
    _
  $region3: #{autoencoder_forward.8} parent=0 // loop_header
    %s11 = sphi 0, %s15
    %p12 = scmp.ge.s32.totalorder %s11, 10
    %s18 = sphi 0, %s30
    %s19 = sphi 0, %s26
    %s20 = sphi 0, %s18
    %s21 = sphi 0, %s19
    %s22 = sphi 0, %s20
    %s23 = sphi 0, %s21
    %s41 = sphi 0, %s43
    %s44 = sphi 0, %s41
    %s45 = sphi 0, %s44
    %s61 = sphi 0, %s45
    %s65 = sphi 0, %s65
    %s67 = sphi 0, %s65
    %s68 = sphi 0, %s67
    %s82 = sphi 0, %s68
    %s86 = sphi 0, %s86
    %s88 = sphi 0, %s86
    %s89 = sphi 0, %s88
    %s103 = sphi 0, %s89
    %s107 = sphi 0, %s107
    %s109 = sphi 0, %s107
    %s110 = sphi 0, %s109
    %s124 = sphi 0, %s110
    %s128 = sphi 0, %s128
    %s130 = sphi 0, %s128
    %s131 = sphi 0, %s130
    %s145 = sphi 0, %s131
    %s153 = sphi 0, %s155
    %s156 = sphi 0, %s153
    %s157 = sphi 0, %s156
    %s173 = sphi 0, %s157
  $region4: #{autoencoder_forward.8} parent=0 // loop_header_branch
    %14 = sbr.rel (%p12) target = $region8
  $region5: #{autoencoder_forward.8} parent=0 // loop_body
    %s16 = ssub.s32 %s11, 1
    %s17 = ssub.s32 %s11, 2
    %s24 = sadd.s32 1, %s19
    %p25 = scmp.ge.s32.totalorder %s24, 4
    %s26 = scalar_select %p25, 0, %s24
    %s27 = sadd.s32 1, %s18
    %s28 = scalar_select %p25, %s27, %s18
    %p29 = scmp.ge.s32.totalorder %s28, 2
    %s30 = scalar_select %p29, 0, %s28
    %s31 = ssub.s32 1, %s18
    %s32 = smul.u32 %s19, %s31
    %s33 = smul.u32 %s18, 3
    %s34 = sadd.s32 %s32, %s33
    %s35 = ssub.s32 1, %s30
    %s36 = smul.u32 %s26, %s35
    %s37 = smul.u32 %s30, 3
    %s38 = sadd.s32 %s36, %s37
    %s39 = ssub.s32 %s34, %s38
    %p40 = scmp.eq.s32.totalorder %s39, 0
    %s42 = sadd.s32 %s41, 1
    %s43 = scalar_select %p40, %s41, %s42
    %p46 = pneg %p40
    %p47 = scmp.eq.s32.totalorder %s11, 7
    %p48 = por %p46, %p47
    %p49 = scmp.ne.s32.totalorder %s41, %s44
    %p50 = scmp.eq.s32.totalorder %s11, 0
    %p51 = por %p49, %p50
    %p52 = scmp.ne.s32.totalorder %s41, %s44
    %p53 = scmp.eq.s32.totalorder %s16, 7
    %p54 = por %p52, %p53
    %p55 = scmp.ne.s32.totalorder %s44, %s45
    %p56 = scmp.eq.s32.totalorder %s16, 0
    %p57 = por %p55, %p56
    %p58 = scmp.ne.s32.totalorder %s44, %s45
    %p59 = scmp.eq.s32.totalorder %s17, 7
    %p60 = por %p58, %p59
    %p62 = scmp.ne.s32.totalorder %s45, %s61
    %p63 = scmp.eq.s32.totalorder %s17, 0
    %p64 = por %p62, %p63
    %s66 = sadd.s32 %s65, 1
    %p69 = scmp.eq.s32.totalorder %s11, 7
    %p70 = scmp.ne.s32.totalorder %s65, %s67
    %p71 = scmp.eq.s32.totalorder %s11, 0
    %p72 = por %p70, %p71
    %p73 = scmp.ne.s32.totalorder %s65, %s67
    %p74 = scmp.eq.s32.totalorder %s16, 7
    %p75 = por %p73, %p74
    %p76 = scmp.ne.s32.totalorder %s67, %s68
    %p77 = scmp.eq.s32.totalorder %s16, 0
    %p78 = por %p76, %p77
    %p79 = scmp.ne.s32.totalorder %s67, %s68
    %p80 = scmp.eq.s32.totalorder %s17, 7
    %p81 = por %p79, %p80
    %p83 = scmp.ne.s32.totalorder %s68, %s82
    %p84 = scmp.eq.s32.totalorder %s17, 0
    %p85 = por %p83, %p84
    %s87 = sadd.s32 %s86, 1
    %p90 = scmp.eq.s32.totalorder %s11, 7
    %p91 = scmp.ne.s32.totalorder %s86, %s88
    %p92 = scmp.eq.s32.totalorder %s11, 0
    %p93 = por %p91, %p92
    %p94 = scmp.ne.s32.totalorder %s86, %s88
    %p95 = scmp.eq.s32.totalorder %s16, 7
    %p96 = por %p94, %p95
    %p97 = scmp.ne.s32.totalorder %s88, %s89
    %p98 = scmp.eq.s32.totalorder %s16, 0
    %p99 = por %p97, %p98
    %p100 = scmp.ne.s32.totalorder %s88, %s89
    %p101 = scmp.eq.s32.totalorder %s17, 7
    %p102 = por %p100, %p101
    %p104 = scmp.ne.s32.totalorder %s89, %s103
    %p105 = scmp.eq.s32.totalorder %s17, 0
    %p106 = por %p104, %p105
    %s108 = sadd.s32 %s107, 1
    %p111 = scmp.eq.s32.totalorder %s11, 7
    %p112 = scmp.ne.s32.totalorder %s107, %s109
    %p113 = scmp.eq.s32.totalorder %s11, 0
    %p114 = por %p112, %p113
    %p115 = scmp.ne.s32.totalorder %s107, %s109
    %p116 = scmp.eq.s32.totalorder %s16, 7
    %p117 = por %p115, %p116
    %p118 = scmp.ne.s32.totalorder %s109, %s110
    %p119 = scmp.eq.s32.totalorder %s16, 0
    %p120 = por %p118, %p119
    %p121 = scmp.ne.s32.totalorder %s109, %s110
    %p122 = scmp.eq.s32.totalorder %s17, 7
    %p123 = por %p121, %p122
    %p125 = scmp.ne.s32.totalorder %s110, %s124
    %p126 = scmp.eq.s32.totalorder %s17, 0
    %p127 = por %p125, %p126
    %s129 = sadd.s32 %s128, 1
    %p132 = scmp.eq.s32.totalorder %s11, 7
    %p133 = scmp.ne.s32.totalorder %s128, %s130
    %p134 = scmp.eq.s32.totalorder %s11, 0
    %p135 = por %p133, %p134
    %p136 = scmp.ne.s32.totalorder %s128, %s130
    %p137 = scmp.eq.s32.totalorder %s16, 7
    %p138 = por %p136, %p137
    %p139 = scmp.ne.s32.totalorder %s130, %s131
    %p140 = scmp.eq.s32.totalorder %s16, 0
    %p141 = por %p139, %p140
    %p142 = scmp.ne.s32.totalorder %s130, %s131
    %p143 = scmp.eq.s32.totalorder %s17, 7
    %p144 = por %p142, %p143
    %p146 = scmp.ne.s32.totalorder %s131, %s145
    %p147 = scmp.eq.s32.totalorder %s17, 0
    %p148 = por %p146, %p147
    %s149 = smul.u32 %s18, %s19
    %s150 = smul.u32 %s30, %s26
    %s151 = ssub.s32 %s149, %s150
    %p152 = scmp.eq.s32.totalorder %s151, 0
    %s154 = sadd.s32 %s153, 1
    %s155 = scalar_select %p152, %s153, %s154
    %p158 = pneg %p152
    %p159 = scmp.eq.s32.totalorder %s11, 7
    %p160 = por %p158, %p159
    %p161 = scmp.ne.s32.totalorder %s153, %s156
    %p162 = scmp.eq.s32.totalorder %s11, 0
    %p163 = por %p161, %p162
    %p164 = scmp.ne.s32.totalorder %s153, %s156
    %p165 = scmp.eq.s32.totalorder %s16, 7
    %p166 = por %p164, %p165
    %p167 = scmp.ne.s32.totalorder %s156, %s157
    %p168 = scmp.eq.s32.totalorder %s16, 0
    %p169 = por %p167, %p168
    %p170 = scmp.ne.s32.totalorder %s156, %s157
    %p171 = scmp.eq.s32.totalorder %s17, 7
    %p172 = por %p170, %p171
    %p174 = scmp.ne.s32.totalorder %s157, %s173
    %p175 = scmp.eq.s32.totalorder %s17, 0
    %p176 = por %p174, %p175
    %p177 = scmp.le.s32.totalorder 1, %s11
    %p178 = scmp.lt.s32.totalorder %s11, 9
    %p179 = pnand %p177, %p178
    %p180 = pneg %p179
    // Predicated region
    $region9: #{autoencoder_forward.8} parent=5 // pred_check
      _
    $region10: #{autoencoder_forward.8} parent=5 // pred_check_branch
      %182 = sbr.rel (%p179) target = $region12
    $region11: #{autoencoder_forward.8} parent=5 // pred_region
      %s183 = ssub.s32 %s11, 1
      // Predicated region
      $region13: #{autoencoder_forward.8} parent=11 // pred_check
        %p184 = pneg %p78
      $region14: #{autoencoder_forward.8} parent=11 // pred_check_branch
        %186 = sbr.rel (%p184) target = $region16
      $region15: #{autoencoder_forward.8} parent=11 // pred_region
        _
      $region16: #{autoencoder_forward.8} parent=11 // pred_fallthru
        _
      // Predicated region
      $region17: #{autoencoder_forward.8} parent=11 // pred_check
        %p187 = pneg %p99
      $region18: #{autoencoder_forward.8} parent=11 // pred_check_branch
        %189 = sbr.rel (%p187) target = $region20
      $region19: #{autoencoder_forward.8} parent=11 // pred_region
        _
      $region20: #{autoencoder_forward.8} parent=11 // pred_fallthru
        _
      // Predicated region
      $region21: #{autoencoder_forward.8} parent=11 // pred_check
        %p190 = pneg %p120
      $region22: #{autoencoder_forward.8} parent=11 // pred_check_branch
        %192 = sbr.rel (%p190) target = $region24
      $region23: #{autoencoder_forward.8} parent=11 // pred_region
        _
      $region24: #{autoencoder_forward.8} parent=11 // pred_fallthru
        _
      // Predicated region
      $region25: #{autoencoder_forward.8} parent=11 // pred_check
        %p193 = pneg %p141
      $region26: #{autoencoder_forward.8} parent=11 // pred_check_branch
        %195 = sbr.rel (%p193) target = $region28
      $region27: #{autoencoder_forward.8} parent=11 // pred_region
        _
      $region28: #{autoencoder_forward.8} parent=11 // pred_fallthru
        _
    $region12: #{autoencoder_forward.8} parent=5 // pred_fallthru
      _
    %p196 = scmp.lt.s32.totalorder %s11, 8
    // Predicated region
    $region29: #{autoencoder_forward.8} parent=5 // pred_check
      %p197 = pneg %p196
    $region30: #{autoencoder_forward.8} parent=5 // pred_check_branch
      %199 = sbr.rel (%p197) target = $region32
    $region31: #{autoencoder_forward.8} parent=5 // pred_region
      // Predicated region
      $region33: #{autoencoder_forward.8} parent=31 // pred_check
        %p200 = pneg %p51
      $region34: #{autoencoder_forward.8} parent=31 // pred_check_branch
        %202 = sbr.rel (%p200) target = $region36
      $region35: #{autoencoder_forward.8} parent=31 // pred_region
        %s203 = ssub.s32 1, %s18
        %s204 = smul.u32 %s19, %s203
        %s205 = smul.u32 %s18, 3
        %s206 = sadd.s32 %s204, %s205
        %s207 = smul.u32 4, %s206
        %p208 = scmp.lt.s32.totalorder %s207, 15
        %s209 = scalar_select %p208, %s207, 15
        %s210 = smul.addr %s209, 3
        %s211 = smul.addr %s210, 4
        %s212 = scalar_lea.vmem %s0, %s211
        %s213 = ssub.s32 1, %s18
        %s214 = smul.u32 %s19, %s213
        %s215 = smul.u32 %s18, 3
        %s216 = sadd.s32 %s214, %s215
        %s217 = smul.u32 4, %s216
      $region36: #{autoencoder_forward.8} parent=31 // pred_fallthru
        _
    $region32: #{autoencoder_forward.8} parent=5 // pred_fallthru
      _
    %p218 = scmp.le.s32.totalorder 1, %s11
    %p219 = scmp.lt.s32.totalorder %s11, 9
    %p220 = pnand %p218, %p219
    %p221 = pneg %p220
    // Predicated region
    $region37: #{autoencoder_forward.8} parent=5 // pred_check
      _
    $region38: #{autoencoder_forward.8} parent=5 // pred_check_branch
      %223 = sbr.rel (%p220) target = $region40
    $region39: #{autoencoder_forward.8} parent=5 // pred_region
      %s224 = ssub.s32 %s11, 1
      %s225 = ssub.s32 1, %s20
      %s226 = smul.u32 %s21, %s225
      %s227 = smul.u32 %s20, 3
      %s228 = sadd.s32 %s226, %s227
      %s229 = smul.u32 4, %s228
      %p230 = scmp.lt.s32.totalorder %s229, 15
      %s231 = scalar_select %p230, %s229, 15
      %s232 = smul.addr %s231, 3
      %s233 = smul.addr %s232, 4
      %s234 = scalar_lea.vmem %s0, %s233
      %p235 = pneg %p57
      %p236 = pneg %p54
      %p237 = pneg %p78
      %p238 = pneg %p75
      %p239 = pneg %p99
      %p240 = pneg %p96
      %p241 = pneg %p120
      %p242 = pneg %p117
      %p243 = pneg %p141
      %p244 = pneg %p138
      %p245 = pneg %p169
      %p246 = pneg %p166
      %s247 = smul.u32 %s20, %s21
      %s248 = smul.u32 4, %s247
      %p249 = scmp.lt.s32.totalorder %s248, 15
      %s250 = scalar_select %p249, %s248, 15
      %s251 = smul.addr %s250, 4
      %s252 = scalar_lea.vmem %s5, %s251
      %s253 = ssub.s32 1, %s20
      %s254 = smul.u32 %s21, %s253
      %s255 = smul.u32 %s20, 3
      %s256 = sadd.s32 %s254, %s255
      %s257 = smul.u32 4, %s256
      %p258 = scmp.lt.s32.totalorder %s257, 15
      %s259 = scalar_select %p258, %s257, 15
      %s260 = smul.addr %s259, 3
      %s261 = smul.addr %s260, 4
      %s262 = scalar_lea.vmem %s0, %s261
      %s263 = ssub.s32 1, %s20
      %s264 = smul.u32 %s21, %s263
      %s265 = smul.u32 %s20, 3
      %s266 = sadd.s32 %s264, %s265
      %s267 = smul.u32 4, %s266
      %s268 = smul.u32 %s20, %s21
      %s269 = smul.u32 4, %s268
      %p270 = scmp.lt.s32.totalorder %s269, 15
      %s271 = scalar_select %p270, %s269, 15
      %s272 = smul.addr %s271, 4
      %s273 = scalar_lea.vmem %s5, %s272
      %s274 = smul.u32 %s20, %s21
      %s275 = smul.u32 4, %s274
      %p277 = scmp.eq.s32.totalorder %s20, 0
      // Predicated region
      $region41: #{autoencoder_forward.8} parent=39 // pred_check
        %p278 = pneg %p277
      $region42: #{autoencoder_forward.8} parent=39 // pred_check_branch
        %280 = sbr.rel (%p278) target = $region44
      $region43: #{autoencoder_forward.8} parent=39 // pred_region
        %p281 = scmp.eq.s32.totalorder %s21, 0
        // Predicated region
        $region45: #{autoencoder_forward.8} parent=43 // pred_check
          %p282 = pneg %p281
        $region46: #{autoencoder_forward.8} parent=43 // pred_check_branch
          %284 = sbr.rel (%p282) target = $region48
        $region47: #{autoencoder_forward.8} parent=43 // pred_region
          %285 = vst [vmem:[#allocation3] sm:$0xff] 0.0
          %286 = vst [vmem:[#allocation4] sm:$0xff] 0.0
        $region48: #{autoencoder_forward.8} parent=43 // pred_fallthru
          _
        %v287 = vld [vmem:[%s262] sm:$0xff]
        %v288 = vld [vmem:[%s262 + $0x8] sm:$0xf]
        %v289 = vld [vmem:[%s262 + $0xc] sm:$0xff]
        %v290 = vld [vmem:[%s262 + $0x14] sm:$0xf]
        %v291 = vld [vmem:[%s262 + $0x18] sm:$0xff]
        %v292 = vld [vmem:[%s262 + $0x20] sm:$0xf]
        %v293 = vld [vmem:[%s262 + $0x24] sm:$0xff]
        %v294 = vld [vmem:[%s262 + $0x2c] sm:$0xf]
        %v295 = vld [vmem:[%s1] sm:$0xf]
        %v296 = vld [vmem:[%s1 + $0x4] sm:$0xf]
        %v297 = vld [vmem:[%s1 + $0x8] sm:$0xf]
        %v298 = vld [vmem:[%s1 + $0xc] sm:$0xf]
        %v299 = vld [vmem:[%s1 + $0x10] sm:$0xf]
        %v300 = vld [vmem:[%s1 + $0x14] sm:$0xf]
        %v301 = vld [vmem:[%s1 + $0x18] sm:$0xf]
        %v302 = vld [vmem:[%s1 + $0x1c] sm:$0xf]
        %v303 = vld [vmem:[%s1 + $0x20] sm:$0xf]
        %v304 = vld [vmem:[%s1 + $0x24] sm:$0xf]
        %v305 = vld [vmem:[%s1 + $0x28] sm:$0xf]
        %v306 = vld [vmem:[%s1 + $0x2c] sm:$0xf]
        %v307 = vld [vmem:[%s1 + $0x30] sm:$0xf]
        %v308 = vld [vmem:[%s1 + $0x34] sm:$0xf]
        %v309 = vld [vmem:[%s1 + $0x38] sm:$0xf]
        %v310 = vld [vmem:[%s1 + $0x3c] sm:$0xf]
        %v311 = vld [vmem:[%s1 + $0x40] sm:$0xf]
        %v312 = vld [vmem:[%s1 + $0x44] sm:$0xf]
        %v313 = vld [vmem:[%s1 + $0x48] sm:$0xf]
        %v314 = vld [vmem:[%s1 + $0x4c] sm:$0xf]
        %v315 = vld [vmem:[%s1 + $0x50] sm:$0xf]
        %v316 = vld [vmem:[%s1 + $0x54] sm:$0xf]
        %v317 = vld [vmem:[%s1 + $0x58] sm:$0xf]
        %v318 = vld [vmem:[%s1 + $0x5c] sm:$0xf]
        %v319 = vld [vmem:[%s1 + $0x60] sm:$0xf]
        %v320 = vld [vmem:[%s1 + $0x64] sm:$0xf]
        %v321 = vld [vmem:[%s1 + $0x68] sm:$0xf]
        %v322 = vld [vmem:[%s1 + $0x6c] sm:$0xf]
        %v323 = vld [vmem:[%s1 + $0x70] sm:$0xf]
        %v324 = vld [vmem:[%s1 + $0x74] sm:$0xf]
        %v325 = vld [vmem:[%s1 + $0x78] sm:$0xf]
        %v326 = vld [vmem:[%s1 + $0x7c] sm:$0xf]
        %v327 = vld [vmem:[%s1 + $0x80] sm:$0xf]
        %v328 = vld [vmem:[%s1 + $0x84] sm:$0xf]
        %v329 = vld [vmem:[%s1 + $0x88] sm:$0xf]
        %v330 = vld [vmem:[%s1 + $0x8c] sm:$0xf]
        %v331 = vld [vmem:[%s1 + $0x90] sm:$0xf]
        %v332 = vld [vmem:[%s1 + $0x94] sm:$0xf]
        %v333 = vld [vmem:[%s1 + $0x98] sm:$0xf]
        %v334 = vld [vmem:[%s1 + $0x9c] sm:$0xf]
        %v335 = vld [vmem:[%s1 + $0xa0] sm:$0xf]
        %v336 = vld [vmem:[%s1 + $0xa4] sm:$0xf]
        %v337 = vld [vmem:[%s1 + $0xa8] sm:$0xf]
        %v338 = vld [vmem:[%s1 + $0xac] sm:$0xf]
        %v339 = vld [vmem:[%s1 + $0xb0] sm:$0xf]
        %v340 = vld [vmem:[%s1 + $0xb4] sm:$0xf]
        %v341 = vld [vmem:[%s1 + $0xb8] sm:$0xf]
        %v342 = vld [vmem:[%s1 + $0xbc] sm:$0xf]
        %v351 = vunpack.c.l.b16 %v287
        %v352 = vunpack.c.h.b16 %v287
        %v353 = vunpack.c.l.b16 %v288
        %v354 = vunpack.c.l.b16 %v289
        %v355 = vunpack.c.h.b16 %v289
        %v356 = vunpack.c.l.b16 %v290
        %v357 = vunpack.c.l.b16 %v291
        %v358 = vunpack.c.h.b16 %v291
        %v359 = vunpack.c.l.b16 %v292
        %v360 = vunpack.c.l.b16 %v293
        %v361 = vunpack.c.h.b16 %v293
        %v362 = vunpack.c.l.b16 %v294
        %v363 = vpack.c.b16 %v354, %v351
        %v364 = vpack.c.b16 %v355, %v352
        %v365 = vpack.c.b16 %v356, %v353
        %v366 = vpack.c.b16 %v360, %v357
        %v367 = vpack.c.b16 %v361, %v358
        %v368 = vpack.c.b16 %v362, %v359
        %v423 = vunpack.c.l.b16 %v295
        %v424 = vunpack.c.l.b16 %v296
        %v425 = vunpack.c.l.b16 %v297
        %v426 = vunpack.c.l.b16 %v298
        %v427 = vunpack.c.l.b16 %v299
        %v428 = vunpack.c.l.b16 %v300
        %v429 = vunpack.c.l.b16 %v301
        %v430 = vunpack.c.l.b16 %v302
        %v431 = vunpack.c.l.b16 %v303
        %v432 = vunpack.c.l.b16 %v304
        %v433 = vunpack.c.l.b16 %v305
        %v434 = vunpack.c.l.b16 %v306
        %v435 = vunpack.c.l.b16 %v307
        %v436 = vunpack.c.l.b16 %v308
        %v437 = vunpack.c.l.b16 %v309
        %v438 = vunpack.c.l.b16 %v310
        %v439 = vunpack.c.l.b16 %v311
        %v440 = vunpack.c.l.b16 %v312
        %v441 = vunpack.c.l.b16 %v313
        %v442 = vunpack.c.l.b16 %v314
        %v443 = vunpack.c.l.b16 %v315
        %v444 = vunpack.c.l.b16 %v316
        %v445 = vunpack.c.l.b16 %v317
        %v446 = vunpack.c.l.b16 %v318
        %v447 = vunpack.c.l.b16 %v319
        %v448 = vunpack.c.l.b16 %v320
        %v449 = vunpack.c.l.b16 %v321
        %v450 = vunpack.c.l.b16 %v322
        %v451 = vunpack.c.l.b16 %v323
        %v452 = vunpack.c.l.b16 %v324
        %v453 = vunpack.c.l.b16 %v325
        %v454 = vunpack.c.l.b16 %v326
        %v455 = vunpack.c.l.b16 %v327
        %v456 = vunpack.c.l.b16 %v328
        %v457 = vunpack.c.l.b16 %v329
        %v458 = vunpack.c.l.b16 %v330
        %v459 = vunpack.c.l.b16 %v331
        %v460 = vunpack.c.l.b16 %v332
        %v461 = vunpack.c.l.b16 %v333
        %v462 = vunpack.c.l.b16 %v334
        %v463 = vunpack.c.l.b16 %v335
        %v464 = vunpack.c.l.b16 %v336
        %v465 = vunpack.c.l.b16 %v337
        %v466 = vunpack.c.l.b16 %v338
        %v467 = vunpack.c.l.b16 %v339
        %v468 = vunpack.c.l.b16 %v340
        %v469 = vunpack.c.l.b16 %v341
        %v470 = vunpack.c.l.b16 %v342
        %v471 = vpack.c.b16 %v424, %v423
        %v472 = vpack.c.b16 %v426, %v425
        %v473 = vpack.c.b16 %v428, %v427
        %v474 = vpack.c.b16 %v430, %v429
        %v475 = vpack.c.b16 %v432, %v431
        %v476 = vpack.c.b16 %v434, %v433
        %v477 = vpack.c.b16 %v436, %v435
        %v478 = vpack.c.b16 %v438, %v437
        %v479 = vpack.c.b16 %v440, %v439
        %v480 = vpack.c.b16 %v442, %v441
        %v481 = vpack.c.b16 %v444, %v443
        %v482 = vpack.c.b16 %v446, %v445
        %v483 = vpack.c.b16 %v448, %v447
        %v484 = vpack.c.b16 %v450, %v449
        %v485 = vpack.c.b16 %v452, %v451
        %v486 = vpack.c.b16 %v454, %v453
        %v487 = vpack.c.b16 %v456, %v455
        %v488 = vpack.c.b16 %v458, %v457
        %v489 = vpack.c.b16 %v460, %v459
        %v490 = vpack.c.b16 %v462, %v461
        %v491 = vpack.c.b16 %v464, %v463
        %v492 = vpack.c.b16 %v466, %v465
        %v493 = vpack.c.b16 %v468, %v467
        %v494 = vpack.c.b16 %v470, %v469
        %519 = vmatprep.subr.bf16.mxu0 0
        %520 = vmatpush1.bf16.msra.mxu0 %v478
        %521 = vmatprep.subr.bf16.mxu0 0
        %522 = vmatpush1.bf16.msra.mxu0 %v477
        %523 = vmatprep.subr.bf16.mxu0 0
        %524 = vmatpush1.bf16.msra.mxu0 %v476
        %525 = vmatprep.subr.bf16.mxu0 0
        %526 = vmatpush1.bf16.msra.mxu0 %v475
        %527 = vmatprep.subr.bf16.mxu0 0
        %528 = vmatpush1.bf16.msra.mxu0 %v474
        %529 = vmatprep.subr.bf16.mxu0 0
        %530 = vmatpush1.bf16.msra.mxu0 %v473
        %531 = vmatprep.subr.bf16.mxu0 0
        %532 = vmatpush1.bf16.msra.mxu0 %v472
        %533 = vmatprep.subr.bf16.mxu0 0
        %534 = vmatpush1.bf16.msra.mxu0 %v471
        %535 = vmatprep.subr.bf16.mxu0 0
        %536 = vmatpush2.bf16.msra.mxu0 %v486
        %537 = vmatprep.subr.bf16.mxu0 0
        %538 = vmatpush2.bf16.msra.mxu0 %v485
        %539 = vmatprep.subr.bf16.mxu0 0
        %540 = vmatpush2.bf16.msra.mxu0 %v484
        %541 = vmatprep.subr.bf16.mxu0 0
        %542 = vmatpush2.bf16.msra.mxu0 %v483
        %543 = vmatprep.subr.bf16.mxu0 0
        %544 = vmatpush2.bf16.msra.mxu0 %v482
        %545 = vmatprep.subr.bf16.mxu0 0
        %546 = vmatpush2.bf16.msra.mxu0 %v481
        %547 = vmatprep.subr.bf16.mxu0 0
        %548 = vmatpush2.bf16.msra.mxu0 %v480
        %549 = vmatprep.subr.bf16.mxu0 0
        %550 = vmatpush2.bf16.msra.mxu0 %v479
        %551 = vmatprep.mubr.bf16.mxu0 %v364
        %552 = vmatmul.mubr.bf16.gmra.mxu0 %v363
        %v553 = vpop.f32.mrf.mxu0
        %v554 = vadd.f32 0.0, %v553
        %v555 = vpop.f32.mrf.mxu0
        %v556 = vpop.f32.mrf.mxu0
        %v557 = vadd.f32 0.0, %v556
        %v558 = vpop.f32.mrf.mxu0
        %559 = vmatprep.mubr.bf16.mxu0 %v367
        %560 = vmatmul.mubr.bf16.gmra.mxu0 %v366
        %v561 = vpop.f32.mrf.mxu0
        %v562 = vadd.f32 0.0, %v561
        %v563 = vpop.f32.mrf.mxu0
        %v564 = vpop.f32.mrf.mxu0
        %v565 = vadd.f32 0.0, %v564
        %v566 = vpop.f32.mrf.mxu0
        %567 = vdwg.mxu0
        %568 = vmatprep.subr.bf16.mxu0 0
        %569 = vmatpush1.bf16.msra.mxu0 %v494
        %570 = vmatprep.subr.bf16.mxu0 0
        %571 = vmatpush1.bf16.msra.mxu0 %v493
        %572 = vmatprep.subr.bf16.mxu0 0
        %573 = vmatpush1.bf16.msra.mxu0 %v492
        %574 = vmatprep.subr.bf16.mxu0 0
        %575 = vmatpush1.bf16.msra.mxu0 %v491
        %576 = vmatprep.subr.bf16.mxu0 0
        %577 = vmatpush1.bf16.msra.mxu0 %v490
        %578 = vmatprep.subr.bf16.mxu0 0
        %579 = vmatpush1.bf16.msra.mxu0 %v489
        %580 = vmatprep.subr.bf16.mxu0 0
        %581 = vmatpush1.bf16.msra.mxu0 %v488
        %582 = vmatprep.subr.bf16.mxu0 0
        %583 = vmatpush1.bf16.msra.mxu0 %v487
        %584 = vmatprep.subr.bf16.mxu0 0
        %585 = vmatpush2.bf16.msra.mxu0 0
        %586 = vmatprep.subr.bf16.mxu0 0
        %587 = vmatpush2.bf16.msra.mxu0 0
        %588 = vmatprep.subr.bf16.mxu0 0
        %589 = vmatpush2.bf16.msra.mxu0 0
        %590 = vmatprep.subr.bf16.mxu0 0
        %591 = vmatpush2.bf16.msra.mxu0 0
        %592 = vmatprep.subr.bf16.mxu0 0
        %593 = vmatpush2.bf16.msra.mxu0 0
        %594 = vmatprep.subr.bf16.mxu0 0
        %595 = vmatpush2.bf16.msra.mxu0 0
        %596 = vmatprep.subr.bf16.mxu0 0
        %597 = vmatpush2.bf16.msra.mxu0 0
        %598 = vmatprep.subr.bf16.mxu0 0
        %599 = vmatpush2.bf16.msra.mxu0 0
        %600 = vmatprep.mubr.bf16.mxu0 0
        %601 = vmatmul.mubr.bf16.gmra.mxu0 %v365
        %v602 = vpop.f32.mrf.mxu0
        %v603 = vadd.f32 %v554, %v602
        %v604 = vpop.f32.mrf.mxu0
        %v605 = vpop.f32.mrf.mxu0
        %v606 = vadd.f32 %v557, %v605
        %v607 = vpop.f32.mrf.mxu0
        %608 = vmatprep.mubr.bf16.mxu0 0
        %609 = vmatmul.mubr.bf16.gmra.mxu0 %v368
        %v610 = vpop.f32.mrf.mxu0
        %v611 = vadd.f32 %v562, %v610
        %v612 = vpop.f32.mrf.mxu0
        %v613 = vpop.f32.mrf.mxu0
        %v614 = vadd.f32 %v565, %v613
        %v615 = vpop.f32.mrf.mxu0
        %616 = vdwg.mxu0
        %v617 = vld [vmem:[#allocation3] sm:$0xff]
        %v618 = vadd.f32 %v603, %v606
        %v619 = vadd.f32 %v618, %v611
        %v620 = vadd.f32 %v619, %v614
        %v621 = vadd.f32 %v617, %v620
        %622 = vst [vmem:[#allocation3] sm:$0xff] %v621
        %v623 = vld [vmem:[#allocation4] sm:$0xff]
        %v624 = vmul.f32 %v603, %v603
        %v625 = vmul.f32 %v606, %v606
        %v626 = vmul.f32 %v611, %v611
        %v627 = vmul.f32 %v614, %v614
        %v628 = vadd.f32 %v624, %v625
        %v629 = vadd.f32 %v628, %v626
        %v630 = vadd.f32 %v629, %v627
        %v631 = vadd.f32 %v623, %v630
        %632 = vst [vmem:[#allocation4] sm:$0xff] %v631
        %v633 = vpack.c.bf16 %v606, %v603
        %v634 = vpack.c.bf16 %v614, %v611
        %v637 = vunpack.c.l.b16 %v633
        %v638 = vunpack.c.h.b16 %v633
        %v639 = vunpack.c.l.b16 %v634
        %v640 = vunpack.c.h.b16 %v634
        %v641 = vpack.c.b16 %v637, %v637
        %v642 = vpack.c.b16 %v638, %v638
        %v643 = vpack.c.b16 %v639, %v639
        %v644 = vpack.c.b16 %v640, %v640
        %s649 = smul.u32 %s21, 4
        %s650 = smul.addr %s649, 4
        %s651 = scalar_lea.vmem [#allocation2], %s650
        %652 = vst [vmem:[%s651] sm:$0xf] %v641
        %653 = vst [vmem:[%s651 + $0x4] sm:$0xf] %v642
        %654 = vst [vmem:[%s651 + $0x8] sm:$0xf] %v643
        %655 = vst [vmem:[%s651 + $0xc] sm:$0xf] %v644
      $region44: #{autoencoder_forward.8} parent=39 // pred_fallthru
        _
      %p656 = scmp.eq.s32.totalorder %s20, 1
      // Predicated region
      $region49: #{autoencoder_forward.8} parent=39 // pred_check
        %p657 = pneg %p656
      $region50: #{autoencoder_forward.8} parent=39 // pred_check_branch
        %659 = sbr.rel (%p657) target = $region52
      $region51: #{autoencoder_forward.8} parent=39 // pred_region
        %s660 = smul.u32 %s21, 4
        %s661 = smul.addr %s660, 4
        %s662 = scalar_lea.vmem [#allocation2], %s661
        %v663 = vld [vmem:[%s662] sm:$0xf]
        %v664 = vld [vmem:[%s662 + $0x4] sm:$0xf]
        %v665 = vld [vmem:[%s662 + $0x8] sm:$0xf]
        %v666 = vld [vmem:[%s662 + $0xc] sm:$0xf]
        %v667 = vunpack.c.l.bf16 %v663
        %v668 = vunpack.c.l.bf16 %v664
        %v669 = vunpack.c.l.bf16 %v665
        %v670 = vunpack.c.l.bf16 %v666
        %v671 = vld [vmem:[#allocation3] sm:$0xff]
        %v672 = vld [vmem:[%s2] sm:$0xff]
        %v673 = vld [vmem:[%s2 + $0x8] sm:$0xff]
        %v674 = vld [vmem:[%s2 + $0x10] sm:$0xff]
        %v675 = vld [vmem:[%s2 + $0x18] sm:$0xff]
        %v676 = vld [vmem:[%s2 + $0x20] sm:$0xff]
        %v677 = vld [vmem:[%s2 + $0x28] sm:$0xff]
        %v678 = vld [vmem:[%s2 + $0x30] sm:$0xff]
        %v679 = vld [vmem:[%s2 + $0x38] sm:$0xff]
        %v680 = vld [vmem:[%s2 + $0x40] sm:$0xff]
        %v681 = vld [vmem:[%s2 + $0x48] sm:$0xff]
        %v682 = vld [vmem:[%s2 + $0x50] sm:$0xff]
        %v683 = vld [vmem:[%s2 + $0x58] sm:$0xff]
        %v684 = vld [vmem:[%s2 + $0x60] sm:$0xff]
        %v685 = vld [vmem:[%s2 + $0x68] sm:$0xff]
        %v686 = vld [vmem:[%s2 + $0x70] sm:$0xff]
        %v687 = vld [vmem:[%s2 + $0x78] sm:$0xff]
        %688 = vmatprep.subr.mxu0 0.0
        %689 = vmatpush1.msra.mxu0 %v687
        %690 = vmatprep.subr.mxu0 0.0
        %691 = vmatpush1.msra.mxu0 %v686
        %692 = vmatprep.subr.mxu0 0.0
        %693 = vmatpush1.msra.mxu0 %v685
        %694 = vmatprep.subr.mxu0 0.0
        %695 = vmatpush1.msra.mxu0 %v684
        %696 = vmatprep.subr.mxu0 0.0
        %697 = vmatpush1.msra.mxu0 %v683
        %698 = vmatprep.subr.mxu0 0.0
        %699 = vmatpush1.msra.mxu0 %v682
        %700 = vmatprep.subr.mxu0 0.0
        %701 = vmatpush1.msra.mxu0 %v681
        %702 = vmatprep.subr.mxu0 0.0
        %703 = vmatpush1.msra.mxu0 %v680
        %704 = vmatprep.subr.mxu0 0.0
        %705 = vmatpush1.msra.mxu0 %v679
        %706 = vmatprep.subr.mxu0 0.0
        %707 = vmatpush1.msra.mxu0 %v678
        %708 = vmatprep.subr.mxu0 0.0
        %709 = vmatpush1.msra.mxu0 %v677
        %710 = vmatprep.subr.mxu0 0.0
        %711 = vmatpush1.msra.mxu0 %v676
        %712 = vmatprep.subr.mxu0 0.0
        %713 = vmatpush1.msra.mxu0 %v675
        %714 = vmatprep.subr.mxu0 0.0
        %715 = vmatpush1.msra.mxu0 %v674
        %716 = vmatprep.subr.mxu0 0.0
        %717 = vmatpush1.msra.mxu0 %v673
        %718 = vmatprep.subr.mxu0 0.0
        %719 = vmatpush1.msra.mxu0 %v672
        %720 = vmatprep.subr.mxu0 0.0
        %721 = vmatpush2.msra.mxu0 0.0
        %722 = vmatprep.subr.mxu0 0.0
        %723 = vmatpush2.msra.mxu0 0.0
        %724 = vmatprep.subr.mxu0 0.0
        %725 = vmatpush2.msra.mxu0 0.0
        %726 = vmatprep.subr.mxu0 0.0
        %727 = vmatpush2.msra.mxu0 0.0
        %728 = vmatprep.subr.mxu0 0.0
        %729 = vmatpush2.msra.mxu0 0.0
        %730 = vmatprep.subr.mxu0 0.0
        %731 = vmatpush2.msra.mxu0 0.0
        %732 = vmatprep.subr.mxu0 0.0
        %733 = vmatpush2.msra.mxu0 0.0
        %734 = vmatprep.subr.mxu0 0.0
        %735 = vmatpush2.msra.mxu0 0.0
        %736 = vmatprep.subr.mxu0 0.0
        %737 = vmatpush2.msra.mxu0 0.0
        %738 = vmatprep.subr.mxu0 0.0
        %739 = vmatpush2.msra.mxu0 0.0
        %740 = vmatprep.subr.mxu0 0.0
        %741 = vmatpush2.msra.mxu0 0.0
        %742 = vmatprep.subr.mxu0 0.0
        %743 = vmatpush2.msra.mxu0 0.0
        %744 = vmatprep.subr.mxu0 0.0
        %745 = vmatpush2.msra.mxu0 0.0
        %746 = vmatprep.subr.mxu0 0.0
        %747 = vmatpush2.msra.mxu0 0.0
        %748 = vmatprep.subr.mxu0 0.0
        %749 = vmatpush2.msra.mxu0 0.0
        %750 = vmatprep.subr.mxu0 0.0
        %751 = vmatpush2.msra.mxu0 0.0
        %752 = vmatprep.mubr.f32.mxu0 0.0
        %753 = vmatmul.mubr.f32.gmra.mxu0 %v671
        %v754 = vpop.f32.mrf.mxu0
        %v755 = vadd.f32 0.0, %v754
        %v756 = vpop.f32.mrf.mxu0
        %757 = vdwg.mxu0
        %v758 = vld [vmem:[#allocation4] sm:$0xff]
        %759 = vmatprep.subr.mxu0 0.0
        %760 = vmatpush1.msra.mxu0 %v687
        %761 = vmatprep.subr.mxu0 0.0
        %762 = vmatpush1.msra.mxu0 %v686
        %763 = vmatprep.subr.mxu0 0.0
        %764 = vmatpush1.msra.mxu0 %v685
        %765 = vmatprep.subr.mxu0 0.0
        %766 = vmatpush1.msra.mxu0 %v684
        %767 = vmatprep.subr.mxu0 0.0
        %768 = vmatpush1.msra.mxu0 %v683
        %769 = vmatprep.subr.mxu0 0.0
        %770 = vmatpush1.msra.mxu0 %v682
        %771 = vmatprep.subr.mxu0 0.0
        %772 = vmatpush1.msra.mxu0 %v681
        %773 = vmatprep.subr.mxu0 0.0
        %774 = vmatpush1.msra.mxu0 %v680
        %775 = vmatprep.subr.mxu0 0.0
        %776 = vmatpush1.msra.mxu0 %v679
        %777 = vmatprep.subr.mxu0 0.0
        %778 = vmatpush1.msra.mxu0 %v678
        %779 = vmatprep.subr.mxu0 0.0
        %780 = vmatpush1.msra.mxu0 %v677
        %781 = vmatprep.subr.mxu0 0.0
        %782 = vmatpush1.msra.mxu0 %v676
        %783 = vmatprep.subr.mxu0 0.0
        %784 = vmatpush1.msra.mxu0 %v675
        %785 = vmatprep.subr.mxu0 0.0
        %786 = vmatpush1.msra.mxu0 %v674
        %787 = vmatprep.subr.mxu0 0.0
        %788 = vmatpush1.msra.mxu0 %v673
        %789 = vmatprep.subr.mxu0 0.0
        %790 = vmatpush1.msra.mxu0 %v672
        %791 = vmatprep.subr.mxu0 0.0
        %792 = vmatpush2.msra.mxu0 0.0
        %793 = vmatprep.subr.mxu0 0.0
        %794 = vmatpush2.msra.mxu0 0.0
        %795 = vmatprep.subr.mxu0 0.0
        %796 = vmatpush2.msra.mxu0 0.0
        %797 = vmatprep.subr.mxu0 0.0
        %798 = vmatpush2.msra.mxu0 0.0
        %799 = vmatprep.subr.mxu0 0.0
        %800 = vmatpush2.msra.mxu0 0.0
        %801 = vmatprep.subr.mxu0 0.0
        %802 = vmatpush2.msra.mxu0 0.0
        %803 = vmatprep.subr.mxu0 0.0
        %804 = vmatpush2.msra.mxu0 0.0
        %805 = vmatprep.subr.mxu0 0.0
        %806 = vmatpush2.msra.mxu0 0.0
        %807 = vmatprep.subr.mxu0 0.0
        %808 = vmatpush2.msra.mxu0 0.0
        %809 = vmatprep.subr.mxu0 0.0
        %810 = vmatpush2.msra.mxu0 0.0
        %811 = vmatprep.subr.mxu0 0.0
        %812 = vmatpush2.msra.mxu0 0.0
        %813 = vmatprep.subr.mxu0 0.0
        %814 = vmatpush2.msra.mxu0 0.0
        %815 = vmatprep.subr.mxu0 0.0
        %816 = vmatpush2.msra.mxu0 0.0
        %817 = vmatprep.subr.mxu0 0.0
        %818 = vmatpush2.msra.mxu0 0.0
        %819 = vmatprep.subr.mxu0 0.0
        %820 = vmatpush2.msra.mxu0 0.0
        %821 = vmatprep.subr.mxu0 0.0
        %822 = vmatpush2.msra.mxu0 0.0
        %823 = vmatprep.mubr.f32.mxu0 0.0
        %824 = vmatmul.mubr.f32.gmra.mxu0 %v758
        %v825 = vpop.f32.mrf.mxu0
        %v826 = vadd.f32 0.0, %v825
        %v827 = vpop.f32.mrf.mxu0
        %828 = vdwg.mxu0
        %v829 = vrot.slane %v755, 4
        %v830 = vadd.f32 %v755, %v829
        %v831 = vrot.slane %v830, 2
        %v832 = vadd.f32 %v830, %v831
        %v833 = vrot.slane %v832, 1
        %v834 = vadd.f32 %v832, %v833
        %v835 = vmul.f32 %v834, 0.0078125
        %v836 = vrot.slane %v826, 4
        %v837 = vadd.f32 %v826, %v836
        %v838 = vrot.slane %v837, 2
        %v839 = vadd.f32 %v837, %v838
        %v840 = vrot.slane %v839, 1
        %v841 = vadd.f32 %v839, %v840
        %v842 = vmul.f32 %v841, 0.0078125
        %v843 = vmul.f32 %v835, %v835
        %v844 = vsub.f32 %v842, %v843
        %v845 = vmax.f32 %v844, 0.0
        %v846 = vld [vmem:[%s3] sm:$0x1]
        %v847 = vadd.f32 %v845, 1e-05
        %v848 = vrsqrt.pop %v847
        %v849 = vmul.f32 %v846, %v848
        %v850 = vld [vmem:[%s4] sm:$0x1]
        %v851 = vmul.f32 %v849, %v835
        %v852 = vsub.f32 %v850, %v851
        %v854 = vlaneseq
        %v855 = vshrl.u32 %v854, 7
        %v856 = vsub.s32 0, %v855
        %v857 = vrot.slane %v849, %v856
        %v859 = vmul.f32 %v667, %v857
        %v860 = vmul.f32 %v668, %v857
        %v861 = vmul.f32 %v669, %v857
        %v862 = vmul.f32 %v670, %v857
        %v864 = vlaneseq
        %v865 = vshrl.u32 %v864, 7
        %v866 = vsub.s32 0, %v865
        %v867 = vrot.slane %v852, %v866
        %v869 = vadd.f32 %v859, %v867
        %v870 = vadd.f32 %v860, %v867
        %v871 = vadd.f32 %v861, %v867
        %v872 = vadd.f32 %v862, %v867
        %v873 = vmax.f32 %v869, 0.0
        %v874 = vmax.f32 %v870, 0.0
        %v875 = vmax.f32 %v871, 0.0
        %v876 = vmax.f32 %v872, 0.0
        %v877 = vpack.c.bf16 %v874, %v873
        %v878 = vpack.c.bf16 %v876, %v875
        %v881 = vunpack.c.l.b16 %v877
        %v882 = vunpack.c.h.b16 %v877
        %v883 = vunpack.c.l.b16 %v878
        %v884 = vunpack.c.h.b16 %v878
        %v885 = vpack.c.b16 %v881, %v881
        %v886 = vpack.c.b16 %v882, %v882
        %v887 = vpack.c.b16 %v883, %v883
        %v888 = vpack.c.b16 %v884, %v884
        %893 = vst [vmem:[%s273] sm:$0xf] %v885
        %894 = vst [vmem:[%s273 + $0x4] sm:$0xf] %v886
        %895 = vst [vmem:[%s273 + $0x8] sm:$0xf] %v887
        %896 = vst [vmem:[%s273 + $0xc] sm:$0xf] %v888
      $region52: #{autoencoder_forward.8} parent=39 // pred_fallthru
        _
      %s897 = smul.u32 %s20, %s21
      %s898 = smul.u32 4, %s897
      %p899 = scmp.lt.s32.totalorder %s898, 15
      %s900 = scalar_select %p899, %s898, 15
      %s901 = smul.addr %s900, 4
      %s902 = scalar_lea.vmem %s5, %s901
      // Predicated region
      $region53: #{autoencoder_forward.8} parent=39 // pred_check
        %p903 = pneg %p166
      $region54: #{autoencoder_forward.8} parent=39 // pred_check_branch
        %905 = sbr.rel (%p903) target = $region56
      $region55: #{autoencoder_forward.8} parent=39 // pred_region
        %s906 = smul.u32 %s20, %s21
        %s907 = smul.u32 4, %s906
      $region56: #{autoencoder_forward.8} parent=39 // pred_fallthru
        _
    $region40: #{autoencoder_forward.8} parent=5 // pred_fallthru
      _
    %p908 = scmp.le.s32.totalorder 2, %s11
    // Predicated region
    $region57: #{autoencoder_forward.8} parent=5 // pred_check
      %p909 = pneg %p908
    $region58: #{autoencoder_forward.8} parent=5 // pred_check_branch
      %911 = sbr.rel (%p909) target = $region60
    $region59: #{autoencoder_forward.8} parent=5 // pred_region
      %s912 = ssub.s32 %s11, 2
      // Predicated region
      $region61: #{autoencoder_forward.8} parent=59 // pred_check
        %p913 = pneg %p172
      $region62: #{autoencoder_forward.8} parent=59 // pred_check_branch
        %915 = sbr.rel (%p913) target = $region64
      $region63: #{autoencoder_forward.8} parent=59 // pred_region
        %s916 = smul.u32 %s22, %s23
        %s917 = smul.u32 4, %s916
        %p918 = scmp.lt.s32.totalorder %s917, 15
        %s919 = scalar_select %p918, %s917, 15
        %s920 = smul.addr %s919, 4
        %s921 = scalar_lea.vmem %s5, %s920
      $region64: #{autoencoder_forward.8} parent=59 // pred_fallthru
        _
    $region60: #{autoencoder_forward.8} parent=5 // pred_fallthru
      _
  $region6: #{autoencoder_forward.8} parent=0 // loop_footer
    %s15 = sadd.s32 1, %s11
  $region7: #{autoencoder_forward.8} parent=0 // loop_footer_branch
    %10 = sbr.rel target = $region3
  $region8: #{autoencoder_forward.8} parent=0 // loop_exit
    _

// kernel: tile.28
$region0: #{tile.28}
  #allocation0 [shape = 's32[1]{0}', space=sflag, size = 0x4, scoped, tag = 'scoped memory for tile.28']
  %s0 = inlined_call_operand.vmem [shape: f32[24], index: 0, kind: input, shape index: {}]
  %s1 = inlined_call_operand.vmem [shape: f32[4,24], index: 1, kind: output, shape index: {}]
  // Predicated region
  $region2: #{tile.28} parent=0 // pred_check
    _
  $region3: #{tile.28} parent=0 // pred_check_branch
    %3 = sbr.rel (0) target = $region5
  $region4: #{tile.28} parent=0 // pred_region
    _
  $region5: #{tile.28} parent=0 // pred_fallthru
    _
  %v4 = vld [vmem:[%s0] ss:$0 sm:$0xff]
  %5 = vst [vmem:[%s1] sm:$0xf] %v4

// kernel: tile.29
$region0: #{tile.29}
  %s0 = inlined_call_operand.vmem [shape: f32[4,24], index: 0, kind: input, shape index: {}]
  %s1 = inlined_call_operand.vmem [shape: f32[1,96], index: 1, kind: output, shape index: {}]
  $region1: #{tile.29} parent=0
    #allocation0 [shape = 'u8[4096]{0}', space=vmem, size = 0x1000, scoped, tag = 'scoped mem for output reshape']
    #allocation1 [shape = 'u8[4096]{0}', space=vmem, size = 0x1000, scoped, tag = 'scoped mem for input reshape']
    %s3 = sshll.u32 1, 4
    %s4 = ssub.s32 %s3, 1
    %v5 = vld [vmem:[%s0] sm:%s4]
    %6 = vst [vmem:[#allocation1] sm:%s4] %v5
    %v7 = vld [vmem:[#allocation1] sm:$0x1]
    %vm8 = vcmask 195584
    %9 = vst.msk [vmem:[#allocation0] sm:$0x1] %vm8, %v7
    %s10 = scalar_lea.vmem [#allocation1], 3
    %v11 = vld [vmem:[%s10] sm:$0x1]
    %12 = vrot.lane.b32.xlu0 %v11, 72
    %v13 = vpop.permute.xlu0 %12
    %vm14 = vcmask 785984
    %15 = vst.msk [vmem:[#allocation0] sm:$0x1] %vm14, %v13
    %s16 = scalar_lea.vmem [#allocation1], 2
    %v17 = vld [vmem:[%s16] sm:$0x1]
    %18 = vrot.lane.b32.xlu0 %v17, 48
    %v19 = vpop.permute.xlu0 %18
    %vm20 = vcmask 589184
    %21 = vst.msk [vmem:[#allocation0] sm:$0x1] %vm20, %v19
    %s22 = scalar_lea.vmem [#allocation1], 1
    %v23 = vld [vmem:[%s22] sm:$0x1]
    %24 = vrot.lane.b32.xlu0 %v23, 24
    %v25 = vpop.permute.xlu0 %24
    %vm26 = vcmask 392384
    %27 = vst.msk [vmem:[#allocation0] sm:$0x1] %vm26, %v25
    %s29 = sshll.u32 1, 1
    %s30 = ssub.s32 %s29, 1
    %v32 = vld [vmem:[#allocation0] sm:%s30]
    %s33 = sshll.u32 1, 1
    %s34 = ssub.s32 %s33, 1
    %35 = vst [vmem:[%s1] sm:%s34] %v32

// kernel: autoencoder_forward.9
$region0: #{autoencoder_forward.9}
  #allocation0 [shape = 'u32[]', space=smem, size = 0x4, offset = 0x4, fixed_abs, tag = 'smem constant byte address 0x4 - core index']
  #allocation1 [shape = 'u32[144,128]{1,0:T(1,128)}', space=vmem, size = 0x12000, scoped, tag = 'internal scratch']
  #allocation2 [shape = 'bf16[4,32,128]{2,1,0:T(8,128)(2,1)}', space=vmem, size = 0x8000, scoped, tag = 'scratch operand']
  #allocation3 [shape = 'f32[8,128]{1,0:T(8,128)}', space=vmem, size = 0x1000, scoped, tag = 'scratch operand']
  #allocation4 [shape = 'f32[8,128]{1,0:T(8,128)}', space=vmem, size = 0x1000, scoped, tag = 'scratch operand']
  %s0 = inlined_call_operand.vmem [shape: bf16[128,432], index: 0, kind: input, shape index: {}]
  %s1 = inlined_call_operand.vmem [shape: bf16[432,128], index: 1, kind: input, shape index: {}]
  %s2 = inlined_call_operand.vmem [shape: f32[128,128], index: 2, kind: input, shape index: {}]
  %s3 = inlined_call_operand.vmem [shape: f32[1,128], index: 3, kind: input, shape index: {}]
  %s4 = inlined_call_operand.vmem [shape: f32[1,128], index: 4, kind: input, shape index: {}]
  %s5 = inlined_call_operand.vmem [shape: bf16[128,128], index: 5, kind: output, shape index: {}]
  %s6 = sld [smem:[#allocation0]]
  $region65: #{autoencoder_forward.9} parent=0
    _
  %s8 = ssub.s32 1, %s6
  %s9 = scalar_select 0, %s8, %s6
  loop: start=0, step=1, limit=10
  $region2: #{autoencoder_forward.9} parent=0 // loop_pre_header
    _
  $region3: #{autoencoder_forward.9} parent=0 // loop_header
    %s11 = sphi 0, %s15
    %p12 = scmp.ge.s32.totalorder %s11, 10
    %s18 = sphi 0, %s30
    %s19 = sphi 0, %s26
    %s20 = sphi 0, %s18
    %s21 = sphi 0, %s19
    %s22 = sphi 0, %s20
    %s23 = sphi 0, %s21
    %s41 = sphi 0, %s43
    %s44 = sphi 0, %s41
    %s45 = sphi 0, %s44
    %s61 = sphi 0, %s45
    %s65 = sphi 0, %s65
    %s67 = sphi 0, %s65
    %s68 = sphi 0, %s67
    %s82 = sphi 0, %s68
    %s86 = sphi 0, %s86
    %s88 = sphi 0, %s86
    %s89 = sphi 0, %s88
    %s103 = sphi 0, %s89
    %s107 = sphi 0, %s107
    %s109 = sphi 0, %s107
    %s110 = sphi 0, %s109
    %s124 = sphi 0, %s110
    %s128 = sphi 0, %s128
    %s130 = sphi 0, %s128
    %s131 = sphi 0, %s130
    %s145 = sphi 0, %s131
    %s153 = sphi 0, %s155
    %s156 = sphi 0, %s153
    %s157 = sphi 0, %s156
    %s173 = sphi 0, %s157
  $region4: #{autoencoder_forward.9} parent=0 // loop_header_branch
    %14 = sbr.rel (%p12) target = $region8
  $region5: #{autoencoder_forward.9} parent=0 // loop_body
    %s16 = ssub.s32 %s11, 1
    %s17 = ssub.s32 %s11, 2
    %s24 = sadd.s32 1, %s19
    %p25 = scmp.ge.s32.totalorder %s24, 4
    %s26 = scalar_select %p25, 0, %s24
    %s27 = sadd.s32 1, %s18
    %s28 = scalar_select %p25, %s27, %s18
    %p29 = scmp.ge.s32.totalorder %s28, 2
    %s30 = scalar_select %p29, 0, %s28
    %s31 = ssub.s32 1, %s18
    %s32 = smul.u32 %s19, %s31
    %s33 = smul.u32 %s18, 3
    %s34 = sadd.s32 %s32, %s33
    %s35 = ssub.s32 1, %s30
    %s36 = smul.u32 %s26, %s35
    %s37 = smul.u32 %s30, 3
    %s38 = sadd.s32 %s36, %s37
    %s39 = ssub.s32 %s34, %s38
    %p40 = scmp.eq.s32.totalorder %s39, 0
    %s42 = sadd.s32 %s41, 1
    %s43 = scalar_select %p40, %s41, %s42
    %p46 = pneg %p40
    %p47 = scmp.eq.s32.totalorder %s11, 7
    %p48 = por %p46, %p47
    %p49 = scmp.ne.s32.totalorder %s41, %s44
    %p50 = scmp.eq.s32.totalorder %s11, 0
    %p51 = por %p49, %p50
    %p52 = scmp.ne.s32.totalorder %s41, %s44
    %p53 = scmp.eq.s32.totalorder %s16, 7
    %p54 = por %p52, %p53
    %p55 = scmp.ne.s32.totalorder %s44, %s45
    %p56 = scmp.eq.s32.totalorder %s16, 0
    %p57 = por %p55, %p56
    %p58 = scmp.ne.s32.totalorder %s44, %s45
    %p59 = scmp.eq.s32.totalorder %s17, 7
    %p60 = por %p58, %p59
    %p62 = scmp.ne.s32.totalorder %s45, %s61
    %p63 = scmp.eq.s32.totalorder %s17, 0
    %p64 = por %p62, %p63
    %s66 = sadd.s32 %s65, 1
    %p69 = scmp.eq.s32.totalorder %s11, 7
    %p70 = scmp.ne.s32.totalorder %s65, %s67
    %p71 = scmp.eq.s32.totalorder %s11, 0
    %p72 = por %p70, %p71
    %p73 = scmp.ne.s32.totalorder %s65, %s67
    %p74 = scmp.eq.s32.totalorder %s16, 7
    %p75 = por %p73, %p74
    %p76 = scmp.ne.s32.totalorder %s67, %s68
    %p77 = scmp.eq.s32.totalorder %s16, 0
    %p78 = por %p76, %p77
    %p79 = scmp.ne.s32.totalorder %s67, %s68
    %p80 = scmp.eq.s32.totalorder %s17, 7
    %p81 = por %p79, %p80
    %p83 = scmp.ne.s32.totalorder %s68, %s82
    %p84 = scmp.eq.s32.totalorder %s17, 0
    %p85 = por %p83, %p84
    %s87 = sadd.s32 %s86, 1
    %p90 = scmp.eq.s32.totalorder %s11, 7
    %p91 = scmp.ne.s32.totalorder %s86, %s88
    %p92 = scmp.eq.s32.totalorder %s11, 0
    %p93 = por %p91, %p92
    %p94 = scmp.ne.s32.totalorder %s86, %s88
    %p95 = scmp.eq.s32.totalorder %s16, 7
    %p96 = por %p94, %p95
    %p97 = scmp.ne.s32.totalorder %s88, %s89
    %p98 = scmp.eq.s32.totalorder %s16, 0
    %p99 = por %p97, %p98
    %p100 = scmp.ne.s32.totalorder %s88, %s89
    %p101 = scmp.eq.s32.totalorder %s17, 7
    %p102 = por %p100, %p101
    %p104 = scmp.ne.s32.totalorder %s89, %s103
    %p105 = scmp.eq.s32.totalorder %s17, 0
    %p106 = por %p104, %p105
    %s108 = sadd.s32 %s107, 1
    %p111 = scmp.eq.s32.totalorder %s11, 7
    %p112 = scmp.ne.s32.totalorder %s107, %s109
    %p113 = scmp.eq.s32.totalorder %s11, 0
    %p114 = por %p112, %p113
    %p115 = scmp.ne.s32.totalorder %s107, %s109
    %p116 = scmp.eq.s32.totalorder %s16, 7
    %p117 = por %p115, %p116
    %p118 = scmp.ne.s32.totalorder %s109, %s110
    %p119 = scmp.eq.s32.totalorder %s16, 0
    %p120 = por %p118, %p119
    %p121 = scmp.ne.s32.totalorder %s109, %s110
    %p122 = scmp.eq.s32.totalorder %s17, 7
    %p123 = por %p121, %p122
    %p125 = scmp.ne.s32.totalorder %s110, %s124
    %p126 = scmp.eq.s32.totalorder %s17, 0
    %p127 = por %p125, %p126
    %s129 = sadd.s32 %s128, 1
    %p132 = scmp.eq.s32.totalorder %s11, 7
    %p133 = scmp.ne.s32.totalorder %s128, %s130
    %p134 = scmp.eq.s32.totalorder %s11, 0
    %p135 = por %p133, %p134
    %p136 = scmp.ne.s32.totalorder %s128, %s130
    %p137 = scmp.eq.s32.totalorder %s16, 7
    %p138 = por %p136, %p137
    %p139 = scmp.ne.s32.totalorder %s130, %s131
    %p140 = scmp.eq.s32.totalorder %s16, 0
    %p141 = por %p139, %p140
    %p142 = scmp.ne.s32.totalorder %s130, %s131
    %p143 = scmp.eq.s32.totalorder %s17, 7
    %p144 = por %p142, %p143
    %p146 = scmp.ne.s32.totalorder %s131, %s145
    %p147 = scmp.eq.s32.totalorder %s17, 0
    %p148 = por %p146, %p147
    %s149 = smul.u32 %s18, %s19
    %s150 = smul.u32 %s30, %s26
    %s151 = ssub.s32 %s149, %s150
    %p152 = scmp.eq.s32.totalorder %s151, 0
    %s154 = sadd.s32 %s153, 1
    %s155 = scalar_select %p152, %s153, %s154
    %p158 = pneg %p152
    %p159 = scmp.eq.s32.totalorder %s11, 7
    %p160 = por %p158, %p159
    %p161 = scmp.ne.s32.totalorder %s153, %s156
    %p162 = scmp.eq.s32.totalorder %s11, 0
    %p163 = por %p161, %p162
    %p164 = scmp.ne.s32.totalorder %s153, %s156
    %p165 = scmp.eq.s32.totalorder %s16, 7
    %p166 = por %p164, %p165
    %p167 = scmp.ne.s32.totalorder %s156, %s157
    %p168 = scmp.eq.s32.totalorder %s16, 0
    %p169 = por %p167, %p168
    %p170 = scmp.ne.s32.totalorder %s156, %s157
    %p171 = scmp.eq.s32.totalorder %s17, 7
    %p172 = por %p170, %p171
    %p174 = scmp.ne.s32.totalorder %s157, %s173
    %p175 = scmp.eq.s32.totalorder %s17, 0
    %p176 = por %p174, %p175
    %p177 = scmp.le.s32.totalorder 1, %s11
    %p178 = scmp.lt.s32.totalorder %s11, 9
    %p179 = pnand %p177, %p178
    %p180 = pneg %p179
    // Predicated region
    $region9: #{autoencoder_forward.9} parent=5 // pred_check
      _
    $region10: #{autoencoder_forward.9} parent=5 // pred_check_branch
      %182 = sbr.rel (%p179) target = $region12
    $region11: #{autoencoder_forward.9} parent=5 // pred_region
      %s183 = ssub.s32 %s11, 1
      // Predicated region
      $region13: #{autoencoder_forward.9} parent=11 // pred_check
        %p184 = pneg %p78
      $region14: #{autoencoder_forward.9} parent=11 // pred_check_branch
        %186 = sbr.rel (%p184) target = $region16
      $region15: #{autoencoder_forward.9} parent=11 // pred_region
        _
      $region16: #{autoencoder_forward.9} parent=11 // pred_fallthru
        _
      // Predicated region
      $region17: #{autoencoder_forward.9} parent=11 // pred_check
        %p187 = pneg %p99
      $region18: #{autoencoder_forward.9} parent=11 // pred_check_branch
        %189 = sbr.rel (%p187) target = $region20
      $region19: #{autoencoder_forward.9} parent=11 // pred_region
        _
      $region20: #{autoencoder_forward.9} parent=11 // pred_fallthru
        _
      // Predicated region
      $region21: #{autoencoder_forward.9} parent=11 // pred_check
        %p190 = pneg %p120
      $region22: #{autoencoder_forward.9} parent=11 // pred_check_branch
        %192 = sbr.rel (%p190) target = $region24
      $region23: #{autoencoder_forward.9} parent=11 // pred_region
        _
      $region24: #{autoencoder_forward.9} parent=11 // pred_fallthru
        _
      // Predicated region
      $region25: #{autoencoder_forward.9} parent=11 // pred_check
        %p193 = pneg %p141
      $region26: #{autoencoder_forward.9} parent=11 // pred_check_branch
        %195 = sbr.rel (%p193) target = $region28
      $region27: #{autoencoder_forward.9} parent=11 // pred_region
        _
      $region28: #{autoencoder_forward.9} parent=11 // pred_fallthru
        _
    $region12: #{autoencoder_forward.9} parent=5 // pred_fallthru
      _
    %p196 = scmp.lt.s32.totalorder %s11, 8
    // Predicated region
    $region29: #{autoencoder_forward.9} parent=5 // pred_check
      %p197 = pneg %p196
    $region30: #{autoencoder_forward.9} parent=5 // pred_check_branch
      %199 = sbr.rel (%p197) target = $region32
    $region31: #{autoencoder_forward.9} parent=5 // pred_region
      // Predicated region
      $region33: #{autoencoder_forward.9} parent=31 // pred_check
        %p200 = pneg %p51
      $region34: #{autoencoder_forward.9} parent=31 // pred_check_branch
        %202 = sbr.rel (%p200) target = $region36
      $region35: #{autoencoder_forward.9} parent=31 // pred_region
        %s203 = ssub.s32 1, %s18
        %s204 = smul.u32 %s19, %s203
        %s205 = smul.u32 %s18, 3
        %s206 = sadd.s32 %s204, %s205
        %s207 = smul.u32 4, %s206
        %p208 = scmp.lt.s32.totalorder %s207, 15
        %s209 = scalar_select %p208, %s207, 15
        %s210 = smul.addr %s209, 4
        %s211 = smul.addr %s210, 4
        %s212 = scalar_lea.vmem %s0, %s211
        %s213 = ssub.s32 1, %s18
        %s214 = smul.u32 %s19, %s213
        %s215 = smul.u32 %s18, 3
        %s216 = sadd.s32 %s214, %s215
        %s217 = smul.u32 4, %s216
      $region36: #{autoencoder_forward.9} parent=31 // pred_fallthru
        _
    $region32: #{autoencoder_forward.9} parent=5 // pred_fallthru
      _
    %p218 = scmp.le.s32.totalorder 1, %s11
    %p219 = scmp.lt.s32.totalorder %s11, 9
    %p220 = pnand %p218, %p219
    %p221 = pneg %p220
    // Predicated region
    $region37: #{autoencoder_forward.9} parent=5 // pred_check
      _
    $region38: #{autoencoder_forward.9} parent=5 // pred_check_branch
      %223 = sbr.rel (%p220) target = $region40
    $region39: #{autoencoder_forward.9} parent=5 // pred_region
      %s224 = ssub.s32 %s11, 1
      %s225 = ssub.s32 1, %s20
      %s226 = smul.u32 %s21, %s225
      %s227 = smul.u32 %s20, 3
      %s228 = sadd.s32 %s226, %s227
      %s229 = smul.u32 4, %s228
      %p230 = scmp.lt.s32.totalorder %s229, 15
      %s231 = scalar_select %p230, %s229, 15
      %s232 = smul.addr %s231, 4
      %s233 = smul.addr %s232, 4
      %s234 = scalar_lea.vmem %s0, %s233
      %p235 = pneg %p57
      %p236 = pneg %p54
      %p237 = pneg %p78
      %p238 = pneg %p75
      %p239 = pneg %p99
      %p240 = pneg %p96
      %p241 = pneg %p120
      %p242 = pneg %p117
      %p243 = pneg %p141
      %p244 = pneg %p138
      %p245 = pneg %p169
      %p246 = pneg %p166
      %s247 = smul.u32 %s20, %s21
      %s248 = smul.u32 4, %s247
      %p249 = scmp.lt.s32.totalorder %s248, 15
      %s250 = scalar_select %p249, %s248, 15
      %s251 = smul.addr %s250, 4
      %s252 = scalar_lea.vmem %s5, %s251
      %s253 = ssub.s32 1, %s20
      %s254 = smul.u32 %s21, %s253
      %s255 = smul.u32 %s20, 3
      %s256 = sadd.s32 %s254, %s255
      %s257 = smul.u32 4, %s256
      %p258 = scmp.lt.s32.totalorder %s257, 15
      %s259 = scalar_select %p258, %s257, 15
      %s260 = smul.addr %s259, 4
      %s261 = smul.addr %s260, 4
      %s262 = scalar_lea.vmem %s0, %s261
      %s263 = ssub.s32 1, %s20
      %s264 = smul.u32 %s21, %s263
      %s265 = smul.u32 %s20, 3
      %s266 = sadd.s32 %s264, %s265
      %s267 = smul.u32 4, %s266
      %s268 = smul.u32 %s20, %s21
      %s269 = smul.u32 4, %s268
      %p270 = scmp.lt.s32.totalorder %s269, 15
      %s271 = scalar_select %p270, %s269, 15
      %s272 = smul.addr %s271, 4
      %s273 = scalar_lea.vmem %s5, %s272
      %s274 = smul.u32 %s20, %s21
      %s275 = smul.u32 4, %s274
      %p277 = scmp.eq.s32.totalorder %s20, 0
      // Predicated region
      $region41: #{autoencoder_forward.9} parent=39 // pred_check
        %p278 = pneg %p277
      $region42: #{autoencoder_forward.9} parent=39 // pred_check_branch
        %280 = sbr.rel (%p278) target = $region44
      $region43: #{autoencoder_forward.9} parent=39 // pred_region
        %p281 = scmp.eq.s32.totalorder %s21, 0
        // Predicated region
        $region45: #{autoencoder_forward.9} parent=43 // pred_check
          %p282 = pneg %p281
        $region46: #{autoencoder_forward.9} parent=43 // pred_check_branch
          %284 = sbr.rel (%p282) target = $region48
        $region47: #{autoencoder_forward.9} parent=43 // pred_region
          %285 = vst [vmem:[#allocation3] sm:$0xff] 0.0
          %286 = vst [vmem:[#allocation4] sm:$0xff] 0.0
        $region48: #{autoencoder_forward.9} parent=43 // pred_fallthru
          _
        %v287 = vld [vmem:[%s262] sm:$0xff]
        %v288 = vld [vmem:[%s262 + $0x8] sm:$0xff]
        %v289 = vld [vmem:[%s262 + $0x10] sm:$0xff]
        %v290 = vld [vmem:[%s262 + $0x18] sm:$0xff]
        %v291 = vld [vmem:[%s262 + $0x20] sm:$0xff]
        %v292 = vld [vmem:[%s262 + $0x28] sm:$0xff]
        %v293 = vld [vmem:[%s262 + $0x30] sm:$0xff]
        %v294 = vld [vmem:[%s262 + $0x38] sm:$0xff]
        %v295 = vld [vmem:[%s1] sm:$0xf]
        %v296 = vld [vmem:[%s1 + $0x4] sm:$0xf]
        %v297 = vld [vmem:[%s1 + $0x8] sm:$0xf]
        %v298 = vld [vmem:[%s1 + $0xc] sm:$0xf]
        %v299 = vld [vmem:[%s1 + $0x10] sm:$0xf]
        %v300 = vld [vmem:[%s1 + $0x14] sm:$0xf]
        %v301 = vld [vmem:[%s1 + $0x18] sm:$0xf]
        %v302 = vld [vmem:[%s1 + $0x1c] sm:$0xf]
        %v303 = vld [vmem:[%s1 + $0x20] sm:$0xf]
        %v304 = vld [vmem:[%s1 + $0x24] sm:$0xf]
        %v305 = vld [vmem:[%s1 + $0x28] sm:$0xf]
        %v306 = vld [vmem:[%s1 + $0x2c] sm:$0xf]
        %v307 = vld [vmem:[%s1 + $0x30] sm:$0xf]
        %v308 = vld [vmem:[%s1 + $0x34] sm:$0xf]
        %v309 = vld [vmem:[%s1 + $0x38] sm:$0xf]
        %v310 = vld [vmem:[%s1 + $0x3c] sm:$0xf]
        %v311 = vld [vmem:[%s1 + $0x40] sm:$0xf]
        %v312 = vld [vmem:[%s1 + $0x44] sm:$0xf]
        %v313 = vld [vmem:[%s1 + $0x48] sm:$0xf]
        %v314 = vld [vmem:[%s1 + $0x4c] sm:$0xf]
        %v315 = vld [vmem:[%s1 + $0x50] sm:$0xf]
        %v316 = vld [vmem:[%s1 + $0x54] sm:$0xf]
        %v317 = vld [vmem:[%s1 + $0x58] sm:$0xf]
        %v318 = vld [vmem:[%s1 + $0x5c] sm:$0xf]
        %v319 = vld [vmem:[%s1 + $0x60] sm:$0xf]
        %v320 = vld [vmem:[%s1 + $0x64] sm:$0xf]
        %v321 = vld [vmem:[%s1 + $0x68] sm:$0xf]
        %v322 = vld [vmem:[%s1 + $0x6c] sm:$0xf]
        %v323 = vld [vmem:[%s1 + $0x70] sm:$0xf]
        %v324 = vld [vmem:[%s1 + $0x74] sm:$0xf]
        %v325 = vld [vmem:[%s1 + $0x78] sm:$0xf]
        %v326 = vld [vmem:[%s1 + $0x7c] sm:$0xf]
        %v327 = vld [vmem:[%s1 + $0x80] sm:$0xf]
        %v328 = vld [vmem:[%s1 + $0x84] sm:$0xf]
        %v329 = vld [vmem:[%s1 + $0x88] sm:$0xf]
        %v330 = vld [vmem:[%s1 + $0x8c] sm:$0xf]
        %v331 = vld [vmem:[%s1 + $0x90] sm:$0xf]
        %v332 = vld [vmem:[%s1 + $0x94] sm:$0xf]
        %v333 = vld [vmem:[%s1 + $0x98] sm:$0xf]
        %v334 = vld [vmem:[%s1 + $0x9c] sm:$0xf]
        %v335 = vld [vmem:[%s1 + $0xa0] sm:$0xf]
        %v336 = vld [vmem:[%s1 + $0xa4] sm:$0xf]
        %v337 = vld [vmem:[%s1 + $0xa8] sm:$0xf]
        %v338 = vld [vmem:[%s1 + $0xac] sm:$0xf]
        %v339 = vld [vmem:[%s1 + $0xb0] sm:$0xf]
        %v340 = vld [vmem:[%s1 + $0xb4] sm:$0xf]
        %v341 = vld [vmem:[%s1 + $0xb8] sm:$0xf]
        %v342 = vld [vmem:[%s1 + $0xbc] sm:$0xf]
        %v343 = vld [vmem:[%s1 + $0xc0] sm:$0xf]
        %v344 = vld [vmem:[%s1 + $0xc4] sm:$0xf]
        %v345 = vld [vmem:[%s1 + $0xc8] sm:$0xf]
        %v346 = vld [vmem:[%s1 + $0xcc] sm:$0xf]
        %v347 = vld [vmem:[%s1 + $0xd0] sm:$0xf]
        %v348 = vld [vmem:[%s1 + $0xd4] sm:$0xf]
        %v357 = vunpack.c.l.b16 %v287
        %v358 = vunpack.c.h.b16 %v287
        %v359 = vunpack.c.l.b16 %v288
        %v360 = vunpack.c.h.b16 %v288
        %v361 = vunpack.c.l.b16 %v289
        %v362 = vunpack.c.h.b16 %v289
        %v363 = vunpack.c.l.b16 %v290
        %v364 = vunpack.c.h.b16 %v290
        %v365 = vunpack.c.l.b16 %v291
        %v366 = vunpack.c.h.b16 %v291
        %v367 = vunpack.c.l.b16 %v292
        %v368 = vunpack.c.h.b16 %v292
        %v369 = vunpack.c.l.b16 %v293
        %v370 = vunpack.c.h.b16 %v293
        %v371 = vunpack.c.l.b16 %v294
        %v372 = vunpack.c.h.b16 %v294
        %v373 = vpack.c.b16 %v361, %v357
        %v374 = vpack.c.b16 %v362, %v358
        %v375 = vpack.c.b16 %v363, %v359
        %v376 = vpack.c.b16 %v364, %v360
        %v377 = vpack.c.b16 %v369, %v365
        %v378 = vpack.c.b16 %v370, %v366
        %v379 = vpack.c.b16 %v371, %v367
        %v380 = vpack.c.b16 %v372, %v368
        %v441 = vunpack.c.l.b16 %v295
        %v442 = vunpack.c.l.b16 %v296
        %v443 = vunpack.c.l.b16 %v297
        %v444 = vunpack.c.l.b16 %v298
        %v445 = vunpack.c.l.b16 %v299
        %v446 = vunpack.c.l.b16 %v300
        %v447 = vunpack.c.l.b16 %v301
        %v448 = vunpack.c.l.b16 %v302
        %v449 = vunpack.c.l.b16 %v303
        %v450 = vunpack.c.l.b16 %v304
        %v451 = vunpack.c.l.b16 %v305
        %v452 = vunpack.c.l.b16 %v306
        %v453 = vunpack.c.l.b16 %v307
        %v454 = vunpack.c.l.b16 %v308
        %v455 = vunpack.c.l.b16 %v309
        %v456 = vunpack.c.l.b16 %v310
        %v457 = vunpack.c.l.b16 %v311
        %v458 = vunpack.c.l.b16 %v312
        %v459 = vunpack.c.l.b16 %v313
        %v460 = vunpack.c.l.b16 %v314
        %v461 = vunpack.c.l.b16 %v315
        %v462 = vunpack.c.l.b16 %v316
        %v463 = vunpack.c.l.b16 %v317
        %v464 = vunpack.c.l.b16 %v318
        %v465 = vunpack.c.l.b16 %v319
        %v466 = vunpack.c.l.b16 %v320
        %v467 = vunpack.c.l.b16 %v321
        %v468 = vunpack.c.l.b16 %v322
        %v469 = vunpack.c.l.b16 %v323
        %v470 = vunpack.c.l.b16 %v324
        %v471 = vunpack.c.l.b16 %v325
        %v472 = vunpack.c.l.b16 %v326
        %v473 = vunpack.c.l.b16 %v327
        %v474 = vunpack.c.l.b16 %v328
        %v475 = vunpack.c.l.b16 %v329
        %v476 = vunpack.c.l.b16 %v330
        %v477 = vunpack.c.l.b16 %v331
        %v478 = vunpack.c.l.b16 %v332
        %v479 = vunpack.c.l.b16 %v333
        %v480 = vunpack.c.l.b16 %v334
        %v481 = vunpack.c.l.b16 %v335
        %v482 = vunpack.c.l.b16 %v336
        %v483 = vunpack.c.l.b16 %v337
        %v484 = vunpack.c.l.b16 %v338
        %v485 = vunpack.c.l.b16 %v339
        %v486 = vunpack.c.l.b16 %v340
        %v487 = vunpack.c.l.b16 %v341
        %v488 = vunpack.c.l.b16 %v342
        %v489 = vunpack.c.l.b16 %v343
        %v490 = vunpack.c.l.b16 %v344
        %v491 = vunpack.c.l.b16 %v345
        %v492 = vunpack.c.l.b16 %v346
        %v493 = vunpack.c.l.b16 %v347
        %v494 = vunpack.c.l.b16 %v348
        %v495 = vpack.c.b16 %v442, %v441
        %v496 = vpack.c.b16 %v444, %v443
        %v497 = vpack.c.b16 %v446, %v445
        %v498 = vpack.c.b16 %v448, %v447
        %v499 = vpack.c.b16 %v450, %v449
        %v500 = vpack.c.b16 %v452, %v451
        %v501 = vpack.c.b16 %v454, %v453
        %v502 = vpack.c.b16 %v456, %v455
        %v503 = vpack.c.b16 %v458, %v457
        %v504 = vpack.c.b16 %v460, %v459
        %v505 = vpack.c.b16 %v462, %v461
        %v506 = vpack.c.b16 %v464, %v463
        %v507 = vpack.c.b16 %v466, %v465
        %v508 = vpack.c.b16 %v468, %v467
        %v509 = vpack.c.b16 %v470, %v469
        %v510 = vpack.c.b16 %v472, %v471
        %v511 = vpack.c.b16 %v474, %v473
        %v512 = vpack.c.b16 %v476, %v475
        %v513 = vpack.c.b16 %v478, %v477
        %v514 = vpack.c.b16 %v480, %v479
        %v515 = vpack.c.b16 %v482, %v481
        %v516 = vpack.c.b16 %v484, %v483
        %v517 = vpack.c.b16 %v486, %v485
        %v518 = vpack.c.b16 %v488, %v487
        %v519 = vpack.c.b16 %v490, %v489
        %v520 = vpack.c.b16 %v492, %v491
        %v521 = vpack.c.b16 %v494, %v493
        %vm549 = vcmask 392192
        %v551 = vsel %vm549, %v376, 0
        %v554 = vsel %vm549, %v380, 0
        %556 = vmatprep.subr.bf16.mxu0 0
        %557 = vmatpush1.bf16.msra.mxu0 %v502
        %558 = vmatprep.subr.bf16.mxu0 0
        %559 = vmatpush1.bf16.msra.mxu0 %v501
        %560 = vmatprep.subr.bf16.mxu0 0
        %561 = vmatpush1.bf16.msra.mxu0 %v500
        %562 = vmatprep.subr.bf16.mxu0 0
        %563 = vmatpush1.bf16.msra.mxu0 %v499
        %564 = vmatprep.subr.bf16.mxu0 0
        %565 = vmatpush1.bf16.msra.mxu0 %v498
        %566 = vmatprep.subr.bf16.mxu0 0
        %567 = vmatpush1.bf16.msra.mxu0 %v497
        %568 = vmatprep.subr.bf16.mxu0 0
        %569 = vmatpush1.bf16.msra.mxu0 %v496
        %570 = vmatprep.subr.bf16.mxu0 0
        %571 = vmatpush1.bf16.msra.mxu0 %v495
        %572 = vmatprep.subr.bf16.mxu0 0
        %573 = vmatpush2.bf16.msra.mxu0 %v510
        %574 = vmatprep.subr.bf16.mxu0 0
        %575 = vmatpush2.bf16.msra.mxu0 %v509
        %576 = vmatprep.subr.bf16.mxu0 0
        %577 = vmatpush2.bf16.msra.mxu0 %v508
        %578 = vmatprep.subr.bf16.mxu0 0
        %579 = vmatpush2.bf16.msra.mxu0 %v507
        %580 = vmatprep.subr.bf16.mxu0 0
        %581 = vmatpush2.bf16.msra.mxu0 %v506
        %582 = vmatprep.subr.bf16.mxu0 0
        %583 = vmatpush2.bf16.msra.mxu0 %v505
        %584 = vmatprep.subr.bf16.mxu0 0
        %585 = vmatpush2.bf16.msra.mxu0 %v504
        %586 = vmatprep.subr.bf16.mxu0 0
        %587 = vmatpush2.bf16.msra.mxu0 %v503
        %588 = vmatprep.mubr.bf16.mxu0 %v374
        %589 = vmatmul.mubr.bf16.gmra.mxu0 %v373
        %v590 = vpop.f32.mrf.mxu0
        %v591 = vadd.f32 0.0, %v590
        %v592 = vpop.f32.mrf.mxu0
        %v593 = vpop.f32.mrf.mxu0
        %v594 = vadd.f32 0.0, %v593
        %v595 = vpop.f32.mrf.mxu0
        %596 = vmatprep.mubr.bf16.mxu0 %v378
        %597 = vmatmul.mubr.bf16.gmra.mxu0 %v377
        %v598 = vpop.f32.mrf.mxu0
        %v599 = vadd.f32 0.0, %v598
        %v600 = vpop.f32.mrf.mxu0
        %v601 = vpop.f32.mrf.mxu0
        %v602 = vadd.f32 0.0, %v601
        %v603 = vpop.f32.mrf.mxu0
        %604 = vdwg.mxu0
        %605 = vmatprep.subr.bf16.mxu0 0
        %606 = vmatpush1.bf16.msra.mxu0 %v518
        %607 = vmatprep.subr.bf16.mxu0 0
        %608 = vmatpush1.bf16.msra.mxu0 %v517
        %609 = vmatprep.subr.bf16.mxu0 0
        %610 = vmatpush1.bf16.msra.mxu0 %v516
        %611 = vmatprep.subr.bf16.mxu0 0
        %612 = vmatpush1.bf16.msra.mxu0 %v515
        %613 = vmatprep.subr.bf16.mxu0 0
        %614 = vmatpush1.bf16.msra.mxu0 %v514
        %615 = vmatprep.subr.bf16.mxu0 0
        %616 = vmatpush1.bf16.msra.mxu0 %v513
        %617 = vmatprep.subr.bf16.mxu0 0
        %618 = vmatpush1.bf16.msra.mxu0 %v512
        %619 = vmatprep.subr.bf16.mxu0 0
        %620 = vmatpush1.bf16.msra.mxu0 %v511
        %621 = vmatprep.subr.bf16.mxu0 0
        %622 = vmatpush2.bf16.msra.mxu0 0
        %623 = vmatprep.subr.bf16.mxu0 0
        %624 = vmatpush2.bf16.msra.mxu0 0
        %625 = vmatprep.subr.bf16.mxu0 0
        %626 = vmatpush2.bf16.msra.mxu0 0
        %627 = vmatprep.subr.bf16.mxu0 0
        %628 = vmatpush2.bf16.msra.mxu0 0
        %629 = vmatprep.subr.bf16.mxu0 0
        %630 = vmatpush2.bf16.msra.mxu0 0
        %631 = vmatprep.subr.bf16.mxu0 0
        %632 = vmatpush2.bf16.msra.mxu0 %v521
        %633 = vmatprep.subr.bf16.mxu0 0
        %634 = vmatpush2.bf16.msra.mxu0 %v520
        %635 = vmatprep.subr.bf16.mxu0 0
        %636 = vmatpush2.bf16.msra.mxu0 %v519
        %637 = vmatprep.mubr.bf16.mxu0 %v551
        %638 = vmatmul.mubr.bf16.gmra.mxu0 %v375
        %v639 = vpop.f32.mrf.mxu0
        %v640 = vadd.f32 %v591, %v639
        %v641 = vpop.f32.mrf.mxu0
        %v642 = vpop.f32.mrf.mxu0
        %v643 = vadd.f32 %v594, %v642
        %v644 = vpop.f32.mrf.mxu0
        %645 = vmatprep.mubr.bf16.mxu0 %v554
        %646 = vmatmul.mubr.bf16.gmra.mxu0 %v379
        %v647 = vpop.f32.mrf.mxu0
        %v648 = vadd.f32 %v599, %v647
        %v649 = vpop.f32.mrf.mxu0
        %v650 = vpop.f32.mrf.mxu0
        %v651 = vadd.f32 %v602, %v650
        %v652 = vpop.f32.mrf.mxu0
        %653 = vdwg.mxu0
        %v654 = vld [vmem:[#allocation3] sm:$0xff]
        %v655 = vadd.f32 %v640, %v643
        %v656 = vadd.f32 %v655, %v648
        %v657 = vadd.f32 %v656, %v651
        %v658 = vadd.f32 %v654, %v657
        %659 = vst [vmem:[#allocation3] sm:$0xff] %v658
        %v660 = vld [vmem:[#allocation4] sm:$0xff]
        %v661 = vmul.f32 %v640, %v640
        %v662 = vmul.f32 %v643, %v643
        %v663 = vmul.f32 %v648, %v648
        %v664 = vmul.f32 %v651, %v651
        %v665 = vadd.f32 %v661, %v662
        %v666 = vadd.f32 %v665, %v663
        %v667 = vadd.f32 %v666, %v664
        %v668 = vadd.f32 %v660, %v667
        %669 = vst [vmem:[#allocation4] sm:$0xff] %v668
        %v670 = vpack.c.bf16 %v643, %v640
        %v671 = vpack.c.bf16 %v651, %v648
        %v674 = vunpack.c.l.b16 %v670
        %v675 = vunpack.c.h.b16 %v670
        %v676 = vunpack.c.l.b16 %v671
        %v677 = vunpack.c.h.b16 %v671
        %v678 = vpack.c.b16 %v674, %v674
        %v679 = vpack.c.b16 %v675, %v675
        %v680 = vpack.c.b16 %v676, %v676
        %v681 = vpack.c.b16 %v677, %v677
        %s686 = smul.u32 %s21, 4
        %s687 = smul.addr %s686, 4
        %s688 = scalar_lea.vmem [#allocation2], %s687
        %689 = vst [vmem:[%s688] sm:$0xf] %v678
        %690 = vst [vmem:[%s688 + $0x4] sm:$0xf] %v679
        %691 = vst [vmem:[%s688 + $0x8] sm:$0xf] %v680
        %692 = vst [vmem:[%s688 + $0xc] sm:$0xf] %v681
      $region44: #{autoencoder_forward.9} parent=39 // pred_fallthru
        _
      %p693 = scmp.eq.s32.totalorder %s20, 1
      // Predicated region
      $region49: #{autoencoder_forward.9} parent=39 // pred_check
        %p694 = pneg %p693
      $region50: #{autoencoder_forward.9} parent=39 // pred_check_branch
        %696 = sbr.rel (%p694) target = $region52
      $region51: #{autoencoder_forward.9} parent=39 // pred_region
        %s697 = smul.u32 %s21, 4
        %s698 = smul.addr %s697, 4
        %s699 = scalar_lea.vmem [#allocation2], %s698
        %v700 = vld [vmem:[%s699] sm:$0xf]
        %v701 = vld [vmem:[%s699 + $0x4] sm:$0xf]
        %v702 = vld [vmem:[%s699 + $0x8] sm:$0xf]
        %v703 = vld [vmem:[%s699 + $0xc] sm:$0xf]
        %v704 = vunpack.c.l.bf16 %v700
        %v705 = vunpack.c.l.bf16 %v701
        %v706 = vunpack.c.l.bf16 %v702
        %v707 = vunpack.c.l.bf16 %v703
        %v708 = vld [vmem:[#allocation3] sm:$0xff]
        %v709 = vld [vmem:[%s2] sm:$0xff]
        %v710 = vld [vmem:[%s2 + $0x8] sm:$0xff]
        %v711 = vld [vmem:[%s2 + $0x10] sm:$0xff]
        %v712 = vld [vmem:[%s2 + $0x18] sm:$0xff]
        %v713 = vld [vmem:[%s2 + $0x20] sm:$0xff]
        %v714 = vld [vmem:[%s2 + $0x28] sm:$0xff]
        %v715 = vld [vmem:[%s2 + $0x30] sm:$0xff]
        %v716 = vld [vmem:[%s2 + $0x38] sm:$0xff]
        %v717 = vld [vmem:[%s2 + $0x40] sm:$0xff]
        %v718 = vld [vmem:[%s2 + $0x48] sm:$0xff]
        %v719 = vld [vmem:[%s2 + $0x50] sm:$0xff]
        %v720 = vld [vmem:[%s2 + $0x58] sm:$0xff]
        %v721 = vld [vmem:[%s2 + $0x60] sm:$0xff]
        %v722 = vld [vmem:[%s2 + $0x68] sm:$0xff]
        %v723 = vld [vmem:[%s2 + $0x70] sm:$0xff]
        %v724 = vld [vmem:[%s2 + $0x78] sm:$0xff]
        %725 = vmatprep.subr.mxu0 0.0
        %726 = vmatpush1.msra.mxu0 %v724
        %727 = vmatprep.subr.mxu0 0.0
        %728 = vmatpush1.msra.mxu0 %v723
        %729 = vmatprep.subr.mxu0 0.0
        %730 = vmatpush1.msra.mxu0 %v722
        %731 = vmatprep.subr.mxu0 0.0
        %732 = vmatpush1.msra.mxu0 %v721
        %733 = vmatprep.subr.mxu0 0.0
        %734 = vmatpush1.msra.mxu0 %v720
        %735 = vmatprep.subr.mxu0 0.0
        %736 = vmatpush1.msra.mxu0 %v719
        %737 = vmatprep.subr.mxu0 0.0
        %738 = vmatpush1.msra.mxu0 %v718
        %739 = vmatprep.subr.mxu0 0.0
        %740 = vmatpush1.msra.mxu0 %v717
        %741 = vmatprep.subr.mxu0 0.0
        %742 = vmatpush1.msra.mxu0 %v716
        %743 = vmatprep.subr.mxu0 0.0
        %744 = vmatpush1.msra.mxu0 %v715
        %745 = vmatprep.subr.mxu0 0.0
        %746 = vmatpush1.msra.mxu0 %v714
        %747 = vmatprep.subr.mxu0 0.0
        %748 = vmatpush1.msra.mxu0 %v713
        %749 = vmatprep.subr.mxu0 0.0
        %750 = vmatpush1.msra.mxu0 %v712
        %751 = vmatprep.subr.mxu0 0.0
        %752 = vmatpush1.msra.mxu0 %v711
        %753 = vmatprep.subr.mxu0 0.0
        %754 = vmatpush1.msra.mxu0 %v710
        %755 = vmatprep.subr.mxu0 0.0
        %756 = vmatpush1.msra.mxu0 %v709
        %757 = vmatprep.subr.mxu0 0.0
        %758 = vmatpush2.msra.mxu0 0.0
        %759 = vmatprep.subr.mxu0 0.0
        %760 = vmatpush2.msra.mxu0 0.0
        %761 = vmatprep.subr.mxu0 0.0
        %762 = vmatpush2.msra.mxu0 0.0
        %763 = vmatprep.subr.mxu0 0.0
        %764 = vmatpush2.msra.mxu0 0.0
        %765 = vmatprep.subr.mxu0 0.0
        %766 = vmatpush2.msra.mxu0 0.0
        %767 = vmatprep.subr.mxu0 0.0
        %768 = vmatpush2.msra.mxu0 0.0
        %769 = vmatprep.subr.mxu0 0.0
        %770 = vmatpush2.msra.mxu0 0.0
        %771 = vmatprep.subr.mxu0 0.0
        %772 = vmatpush2.msra.mxu0 0.0
        %773 = vmatprep.subr.mxu0 0.0
        %774 = vmatpush2.msra.mxu0 0.0
        %775 = vmatprep.subr.mxu0 0.0
        %776 = vmatpush2.msra.mxu0 0.0
        %777 = vmatprep.subr.mxu0 0.0
        %778 = vmatpush2.msra.mxu0 0.0
        %779 = vmatprep.subr.mxu0 0.0
        %780 = vmatpush2.msra.mxu0 0.0
        %781 = vmatprep.subr.mxu0 0.0
        %782 = vmatpush2.msra.mxu0 0.0
        %783 = vmatprep.subr.mxu0 0.0
        %784 = vmatpush2.msra.mxu0 0.0
        %785 = vmatprep.subr.mxu0 0.0
        %786 = vmatpush2.msra.mxu0 0.0
        %787 = vmatprep.subr.mxu0 0.0
        %788 = vmatpush2.msra.mxu0 0.0
        %789 = vmatprep.mubr.f32.mxu0 0.0
        %790 = vmatmul.mubr.f32.gmra.mxu0 %v708
        %v791 = vpop.f32.mrf.mxu0
        %v792 = vadd.f32 0.0, %v791
        %v793 = vpop.f32.mrf.mxu0
        %794 = vdwg.mxu0
        %v795 = vld [vmem:[#allocation4] sm:$0xff]
        %796 = vmatprep.subr.mxu0 0.0
        %797 = vmatpush1.msra.mxu0 %v724
        %798 = vmatprep.subr.mxu0 0.0
        %799 = vmatpush1.msra.mxu0 %v723
        %800 = vmatprep.subr.mxu0 0.0
        %801 = vmatpush1.msra.mxu0 %v722
        %802 = vmatprep.subr.mxu0 0.0
        %803 = vmatpush1.msra.mxu0 %v721
        %804 = vmatprep.subr.mxu0 0.0
        %805 = vmatpush1.msra.mxu0 %v720
        %806 = vmatprep.subr.mxu0 0.0
        %807 = vmatpush1.msra.mxu0 %v719
        %808 = vmatprep.subr.mxu0 0.0
        %809 = vmatpush1.msra.mxu0 %v718
        %810 = vmatprep.subr.mxu0 0.0
        %811 = vmatpush1.msra.mxu0 %v717
        %812 = vmatprep.subr.mxu0 0.0
        %813 = vmatpush1.msra.mxu0 %v716
        %814 = vmatprep.subr.mxu0 0.0
        %815 = vmatpush1.msra.mxu0 %v715
        %816 = vmatprep.subr.mxu0 0.0
        %817 = vmatpush1.msra.mxu0 %v714
        %818 = vmatprep.subr.mxu0 0.0
        %819 = vmatpush1.msra.mxu0 %v713
        %820 = vmatprep.subr.mxu0 0.0
        %821 = vmatpush1.msra.mxu0 %v712
        %822 = vmatprep.subr.mxu0 0.0
        %823 = vmatpush1.msra.mxu0 %v711
        %824 = vmatprep.subr.mxu0 0.0
        %825 = vmatpush1.msra.mxu0 %v710
        %826 = vmatprep.subr.mxu0 0.0
        %827 = vmatpush1.msra.mxu0 %v709
        %828 = vmatprep.subr.mxu0 0.0
        %829 = vmatpush2.msra.mxu0 0.0
        %830 = vmatprep.subr.mxu0 0.0
        %831 = vmatpush2.msra.mxu0 0.0
        %832 = vmatprep.subr.mxu0 0.0
        %833 = vmatpush2.msra.mxu0 0.0
        %834 = vmatprep.subr.mxu0 0.0
        %835 = vmatpush2.msra.mxu0 0.0
        %836 = vmatprep.subr.mxu0 0.0
        %837 = vmatpush2.msra.mxu0 0.0
        %838 = vmatprep.subr.mxu0 0.0
        %839 = vmatpush2.msra.mxu0 0.0
        %840 = vmatprep.subr.mxu0 0.0
        %841 = vmatpush2.msra.mxu0 0.0
        %842 = vmatprep.subr.mxu0 0.0
        %843 = vmatpush2.msra.mxu0 0.0
        %844 = vmatprep.subr.mxu0 0.0
        %845 = vmatpush2.msra.mxu0 0.0
        %846 = vmatprep.subr.mxu0 0.0
        %847 = vmatpush2.msra.mxu0 0.0
        %848 = vmatprep.subr.mxu0 0.0
        %849 = vmatpush2.msra.mxu0 0.0
        %850 = vmatprep.subr.mxu0 0.0
        %851 = vmatpush2.msra.mxu0 0.0
        %852 = vmatprep.subr.mxu0 0.0
        %853 = vmatpush2.msra.mxu0 0.0
        %854 = vmatprep.subr.mxu0 0.0
        %855 = vmatpush2.msra.mxu0 0.0
        %856 = vmatprep.subr.mxu0 0.0
        %857 = vmatpush2.msra.mxu0 0.0
        %858 = vmatprep.subr.mxu0 0.0
        %859 = vmatpush2.msra.mxu0 0.0
        %860 = vmatprep.mubr.f32.mxu0 0.0
        %861 = vmatmul.mubr.f32.gmra.mxu0 %v795
        %v862 = vpop.f32.mrf.mxu0
        %v863 = vadd.f32 0.0, %v862
        %v864 = vpop.f32.mrf.mxu0
        %865 = vdwg.mxu0
        %v866 = vrot.slane %v792, 4
        %v867 = vadd.f32 %v792, %v866
        %v868 = vrot.slane %v867, 2
        %v869 = vadd.f32 %v867, %v868
        %v870 = vrot.slane %v869, 1
        %v871 = vadd.f32 %v869, %v870
        %v872 = vmul.f32 %v871, 0.001953125
        %v873 = vrot.slane %v863, 4
        %v874 = vadd.f32 %v863, %v873
        %v875 = vrot.slane %v874, 2
        %v876 = vadd.f32 %v874, %v875
        %v877 = vrot.slane %v876, 1
        %v878 = vadd.f32 %v876, %v877
        %v879 = vmul.f32 %v878, 0.001953125
        %v880 = vmul.f32 %v872, %v872
        %v881 = vsub.f32 %v879, %v880
        %v882 = vmax.f32 %v881, 0.0
        %v883 = vld [vmem:[%s3] sm:$0x1]
        %v884 = vadd.f32 %v882, 1e-05
        %v885 = vrsqrt.pop %v884
        %v886 = vmul.f32 %v883, %v885
        %v887 = vld [vmem:[%s4] sm:$0x1]
        %v888 = vmul.f32 %v886, %v872
        %v889 = vsub.f32 %v887, %v888
        %v891 = vlaneseq
        %v892 = vshrl.u32 %v891, 7
        %v893 = vsub.s32 0, %v892
        %v894 = vrot.slane %v886, %v893
        %v896 = vmul.f32 %v704, %v894
        %v897 = vmul.f32 %v705, %v894
        %v898 = vmul.f32 %v706, %v894
        %v899 = vmul.f32 %v707, %v894
        %v901 = vlaneseq
        %v902 = vshrl.u32 %v901, 7
        %v903 = vsub.s32 0, %v902
        %v904 = vrot.slane %v889, %v903
        %v906 = vadd.f32 %v896, %v904
        %v907 = vadd.f32 %v897, %v904
        %v908 = vadd.f32 %v898, %v904
        %v909 = vadd.f32 %v899, %v904
        %v910 = vmax.f32 %v906, 0.0
        %v911 = vmax.f32 %v907, 0.0
        %v912 = vmax.f32 %v908, 0.0
        %v913 = vmax.f32 %v909, 0.0
        %v914 = vpack.c.bf16 %v911, %v910
        %v915 = vpack.c.bf16 %v913, %v912
        %v918 = vunpack.c.l.b16 %v914
        %v919 = vunpack.c.h.b16 %v914
        %v920 = vunpack.c.l.b16 %v915
        %v921 = vunpack.c.h.b16 %v915
        %v922 = vpack.c.b16 %v918, %v918
        %v923 = vpack.c.b16 %v919, %v919
        %v924 = vpack.c.b16 %v920, %v920
        %v925 = vpack.c.b16 %v921, %v921
        %930 = vst [vmem:[%s273] sm:$0xf] %v922
        %931 = vst [vmem:[%s273 + $0x4] sm:$0xf] %v923
        %932 = vst [vmem:[%s273 + $0x8] sm:$0xf] %v924
        %933 = vst [vmem:[%s273 + $0xc] sm:$0xf] %v925
      $region52: #{autoencoder_forward.9} parent=39 // pred_fallthru
        _
      %s934 = smul.u32 %s20, %s21
      %s935 = smul.u32 4, %s934
      %p936 = scmp.lt.s32.totalorder %s935, 15
      %s937 = scalar_select %p936, %s935, 15
      %s938 = smul.addr %s937, 4
      %s939 = scalar_lea.vmem %s5, %s938
      // Predicated region
      $region53: #{autoencoder_forward.9} parent=39 // pred_check
        %p940 = pneg %p166
      $region54: #{autoencoder_forward.9} parent=39 // pred_check_branch
        %942 = sbr.rel (%p940) target = $region56
      $region55: #{autoencoder_forward.9} parent=39 // pred_region
        %s943 = smul.u32 %s20, %s21
        %s944 = smul.u32 4, %s943
      $region56: #{autoencoder_forward.9} parent=39 // pred_fallthru
        _
    $region40: #{autoencoder_forward.9} parent=5 // pred_fallthru
      _
    %p945 = scmp.le.s32.totalorder 2, %s11
    // Predicated region
    $region57: #{autoencoder_forward.9} parent=5 // pred_check
      %p946 = pneg %p945
    $region58: #{autoencoder_forward.9} parent=5 // pred_check_branch
      %948 = sbr.rel (%p946) target = $region60
    $region59: #{autoencoder_forward.9} parent=5 // pred_region
      %s949 = ssub.s32 %s11, 2
      // Predicated region
      $region61: #{autoencoder_forward.9} parent=59 // pred_check
        %p950 = pneg %p172
      $region62: #{autoencoder_forward.9} parent=59 // pred_check_branch
        %952 = sbr.rel (%p950) target = $region64
      $region63: #{autoencoder_forward.9} parent=59 // pred_region
        %s953 = smul.u32 %s22, %s23
        %s954 = smul.u32 4, %s953
        %p955 = scmp.lt.s32.totalorder %s954, 15
        %s956 = scalar_select %p955, %s954, 15
        %s957 = smul.addr %s956, 4
        %s958 = scalar_lea.vmem %s5, %s957
      $region64: #{autoencoder_forward.9} parent=59 // pred_fallthru
        _
    $region60: #{autoencoder_forward.9} parent=5 // pred_fallthru
      _
  $region6: #{autoencoder_forward.9} parent=0 // loop_footer
    %s15 = sadd.s32 1, %s11
  $region7: #{autoencoder_forward.9} parent=0 // loop_footer_branch
    %10 = sbr.rel target = $region3
  $region8: #{autoencoder_forward.9} parent=0 // loop_exit
    _

// kernel: tile.38
$region0: #{tile.38}
  #allocation0 [shape = 's32[1]{0}', space=sflag, size = 0x4, scoped, tag = 'scoped memory for tile.38']
  %s0 = inlined_call_operand.vmem [shape: f32[12], index: 0, kind: input, shape index: {}]
  %s1 = inlined_call_operand.vmem [shape: f32[4,12], index: 1, kind: output, shape index: {}]
  // Predicated region
  $region2: #{tile.38} parent=0 // pred_check
    _
  $region3: #{tile.38} parent=0 // pred_check_branch
    %3 = sbr.rel (0) target = $region5
  $region4: #{tile.38} parent=0 // pred_region
    _
  $region5: #{tile.38} parent=0 // pred_fallthru
    _
  %v4 = vld [vmem:[%s0] ss:$0 sm:$0xff]
  %5 = vst [vmem:[%s1] sm:$0xf] %v4

// kernel: tile.39
$region0: #{tile.39}
  %s0 = inlined_call_operand.vmem [shape: f32[4,12], index: 0, kind: input, shape index: {}]
  %s1 = inlined_call_operand.vmem [shape: f32[1,48], index: 1, kind: output, shape index: {}]
  $region1: #{tile.39} parent=0
    #allocation0 [shape = 'u8[4096]{0}', space=vmem, size = 0x1000, scoped, tag = 'scoped mem for output reshape']
    #allocation1 [shape = 'u8[4096]{0}', space=vmem, size = 0x1000, scoped, tag = 'scoped mem for input reshape']
    %s3 = sshll.u32 1, 4
    %s4 = ssub.s32 %s3, 1
    %v5 = vld [vmem:[%s0] sm:%s4]
    %6 = vst [vmem:[#allocation1] sm:%s4] %v5
    %v7 = vld [vmem:[#allocation1] sm:$0x1]
    %vm8 = vcmask 97280
    %9 = vst.msk [vmem:[#allocation0] sm:$0x1] %vm8, %v7
    %s10 = scalar_lea.vmem [#allocation1], 3
    %v11 = vld [vmem:[%s10] sm:$0x1]
    %12 = vrot.lane.b32.xlu0 %v11, 36
    %v13 = vpop.permute.xlu0 %12
    %vm14 = vcmask 392480
    %15 = vst.msk [vmem:[#allocation0] sm:$0x1] %vm14, %v13
    %s16 = scalar_lea.vmem [#allocation1], 2
    %v17 = vld [vmem:[%s16] sm:$0x1]
    %18 = vrot.lane.b32.xlu0 %v17, 24
    %v19 = vpop.permute.xlu0 %18
    %vm20 = vcmask 294080
    %21 = vst.msk [vmem:[#allocation0] sm:$0x1] %vm20, %v19
    %s22 = scalar_lea.vmem [#allocation1], 1
    %v23 = vld [vmem:[%s22] sm:$0x1]
    %24 = vrot.lane.b32.xlu0 %v23, 12
    %v25 = vpop.permute.xlu0 %24
    %vm26 = vcmask 195680
    %27 = vst.msk [vmem:[#allocation0] sm:$0x1] %vm26, %v25
    %s29 = sshll.u32 1, 1
    %s30 = ssub.s32 %s29, 1
    %v32 = vld [vmem:[#allocation0] sm:%s30]
    %s33 = sshll.u32 1, 1
    %s34 = ssub.s32 %s33, 1
    %35 = vst [vmem:[%s1] sm:%s34] %v32

// kernel: autoencoder_forward.10
$region0: #{autoencoder_forward.10}
  #allocation0 [shape = 'u32[]', space=smem, size = 0x4, offset = 0x4, fixed_abs, tag = 'smem constant byte address 0x4 - core index']
  #allocation1 [shape = 'u32[144,128]{1,0:T(1,128)}', space=vmem, size = 0x12000, scoped, tag = 'internal scratch']
  #allocation2 [shape = 'bf16[4,128,128]{2,1,0:T(8,128)(2,1)}', space=vmem, size = 0x20000, scoped, tag = 'scratch operand']
  #allocation3 [shape = 'f32[8,128]{1,0:T(8,128)}', space=vmem, size = 0x1000, scoped, tag = 'scratch operand']
  #allocation4 [shape = 'f32[8,128]{1,0:T(8,128)}', space=vmem, size = 0x1000, scoped, tag = 'scratch operand']
  %s0 = inlined_call_operand.vmem [shape: bf16[512,216], index: 0, kind: input, shape index: {}]
  %s1 = inlined_call_operand.vmem [shape: bf16[216,128], index: 1, kind: input, shape index: {}]
  %s2 = inlined_call_operand.vmem [shape: f32[128,128], index: 2, kind: input, shape index: {}]
  %s3 = inlined_call_operand.vmem [shape: f32[1,128], index: 3, kind: input, shape index: {}]
  %s4 = inlined_call_operand.vmem [shape: f32[1,128], index: 4, kind: input, shape index: {}]
  %s5 = inlined_call_operand.vmem [shape: bf16[512,128], index: 5, kind: output, shape index: {}]
  %s6 = sld [smem:[#allocation0]]
  $region65: #{autoencoder_forward.10} parent=0
    _
  %s8 = ssub.s32 1, %s6
  %s9 = scalar_select 0, %s8, %s6
  loop: start=0, step=1, limit=10
  $region2: #{autoencoder_forward.10} parent=0 // loop_pre_header
    _
  $region3: #{autoencoder_forward.10} parent=0 // loop_header
    %s11 = sphi 0, %s15
    %p12 = scmp.ge.s32.totalorder %s11, 10
    %s18 = sphi 0, %s30
    %s19 = sphi 0, %s26
    %s20 = sphi 0, %s18
    %s21 = sphi 0, %s19
    %s22 = sphi 0, %s20
    %s23 = sphi 0, %s21
    %s41 = sphi 0, %s43
    %s44 = sphi 0, %s41
    %s45 = sphi 0, %s44
    %s61 = sphi 0, %s45
    %s65 = sphi 0, %s65
    %s67 = sphi 0, %s65
    %s68 = sphi 0, %s67
    %s82 = sphi 0, %s68
    %s86 = sphi 0, %s86
    %s88 = sphi 0, %s86
    %s89 = sphi 0, %s88
    %s103 = sphi 0, %s89
    %s107 = sphi 0, %s107
    %s109 = sphi 0, %s107
    %s110 = sphi 0, %s109
    %s124 = sphi 0, %s110
    %s128 = sphi 0, %s128
    %s130 = sphi 0, %s128
    %s131 = sphi 0, %s130
    %s145 = sphi 0, %s131
    %s153 = sphi 0, %s155
    %s156 = sphi 0, %s153
    %s157 = sphi 0, %s156
    %s173 = sphi 0, %s157
  $region4: #{autoencoder_forward.10} parent=0 // loop_header_branch
    %14 = sbr.rel (%p12) target = $region8
  $region5: #{autoencoder_forward.10} parent=0 // loop_body
    %s16 = ssub.s32 %s11, 1
    %s17 = ssub.s32 %s11, 2
    %s24 = sadd.s32 1, %s19
    %p25 = scmp.ge.s32.totalorder %s24, 4
    %s26 = scalar_select %p25, 0, %s24
    %s27 = sadd.s32 1, %s18
    %s28 = scalar_select %p25, %s27, %s18
    %p29 = scmp.ge.s32.totalorder %s28, 2
    %s30 = scalar_select %p29, 0, %s28
    %s31 = ssub.s32 1, %s18
    %s32 = smul.u32 %s19, %s31
    %s33 = smul.u32 %s18, 3
    %s34 = sadd.s32 %s32, %s33
    %s35 = ssub.s32 1, %s30
    %s36 = smul.u32 %s26, %s35
    %s37 = smul.u32 %s30, 3
    %s38 = sadd.s32 %s36, %s37
    %s39 = ssub.s32 %s34, %s38
    %p40 = scmp.eq.s32.totalorder %s39, 0
    %s42 = sadd.s32 %s41, 1
    %s43 = scalar_select %p40, %s41, %s42
    %p46 = pneg %p40
    %p47 = scmp.eq.s32.totalorder %s11, 7
    %p48 = por %p46, %p47
    %p49 = scmp.ne.s32.totalorder %s41, %s44
    %p50 = scmp.eq.s32.totalorder %s11, 0
    %p51 = por %p49, %p50
    %p52 = scmp.ne.s32.totalorder %s41, %s44
    %p53 = scmp.eq.s32.totalorder %s16, 7
    %p54 = por %p52, %p53
    %p55 = scmp.ne.s32.totalorder %s44, %s45
    %p56 = scmp.eq.s32.totalorder %s16, 0
    %p57 = por %p55, %p56
    %p58 = scmp.ne.s32.totalorder %s44, %s45
    %p59 = scmp.eq.s32.totalorder %s17, 7
    %p60 = por %p58, %p59
    %p62 = scmp.ne.s32.totalorder %s45, %s61
    %p63 = scmp.eq.s32.totalorder %s17, 0
    %p64 = por %p62, %p63
    %s66 = sadd.s32 %s65, 1
    %p69 = scmp.eq.s32.totalorder %s11, 7
    %p70 = scmp.ne.s32.totalorder %s65, %s67
    %p71 = scmp.eq.s32.totalorder %s11, 0
    %p72 = por %p70, %p71
    %p73 = scmp.ne.s32.totalorder %s65, %s67
    %p74 = scmp.eq.s32.totalorder %s16, 7
    %p75 = por %p73, %p74
    %p76 = scmp.ne.s32.totalorder %s67, %s68
    %p77 = scmp.eq.s32.totalorder %s16, 0
    %p78 = por %p76, %p77
    %p79 = scmp.ne.s32.totalorder %s67, %s68
    %p80 = scmp.eq.s32.totalorder %s17, 7
    %p81 = por %p79, %p80
    %p83 = scmp.ne.s32.totalorder %s68, %s82
    %p84 = scmp.eq.s32.totalorder %s17, 0
    %p85 = por %p83, %p84
    %s87 = sadd.s32 %s86, 1
    %p90 = scmp.eq.s32.totalorder %s11, 7
    %p91 = scmp.ne.s32.totalorder %s86, %s88
    %p92 = scmp.eq.s32.totalorder %s11, 0
    %p93 = por %p91, %p92
    %p94 = scmp.ne.s32.totalorder %s86, %s88
    %p95 = scmp.eq.s32.totalorder %s16, 7
    %p96 = por %p94, %p95
    %p97 = scmp.ne.s32.totalorder %s88, %s89
    %p98 = scmp.eq.s32.totalorder %s16, 0
    %p99 = por %p97, %p98
    %p100 = scmp.ne.s32.totalorder %s88, %s89
    %p101 = scmp.eq.s32.totalorder %s17, 7
    %p102 = por %p100, %p101
    %p104 = scmp.ne.s32.totalorder %s89, %s103
    %p105 = scmp.eq.s32.totalorder %s17, 0
    %p106 = por %p104, %p105
    %s108 = sadd.s32 %s107, 1
    %p111 = scmp.eq.s32.totalorder %s11, 7
    %p112 = scmp.ne.s32.totalorder %s107, %s109
    %p113 = scmp.eq.s32.totalorder %s11, 0
    %p114 = por %p112, %p113
    %p115 = scmp.ne.s32.totalorder %s107, %s109
    %p116 = scmp.eq.s32.totalorder %s16, 7
    %p117 = por %p115, %p116
    %p118 = scmp.ne.s32.totalorder %s109, %s110
    %p119 = scmp.eq.s32.totalorder %s16, 0
    %p120 = por %p118, %p119
    %p121 = scmp.ne.s32.totalorder %s109, %s110
    %p122 = scmp.eq.s32.totalorder %s17, 7
    %p123 = por %p121, %p122
    %p125 = scmp.ne.s32.totalorder %s110, %s124
    %p126 = scmp.eq.s32.totalorder %s17, 0
    %p127 = por %p125, %p126
    %s129 = sadd.s32 %s128, 1
    %p132 = scmp.eq.s32.totalorder %s11, 7
    %p133 = scmp.ne.s32.totalorder %s128, %s130
    %p134 = scmp.eq.s32.totalorder %s11, 0
    %p135 = por %p133, %p134
    %p136 = scmp.ne.s32.totalorder %s128, %s130
    %p137 = scmp.eq.s32.totalorder %s16, 7
    %p138 = por %p136, %p137
    %p139 = scmp.ne.s32.totalorder %s130, %s131
    %p140 = scmp.eq.s32.totalorder %s16, 0
    %p141 = por %p139, %p140
    %p142 = scmp.ne.s32.totalorder %s130, %s131
    %p143 = scmp.eq.s32.totalorder %s17, 7
    %p144 = por %p142, %p143
    %p146 = scmp.ne.s32.totalorder %s131, %s145
    %p147 = scmp.eq.s32.totalorder %s17, 0
    %p148 = por %p146, %p147
    %s149 = smul.u32 %s18, %s19
    %s150 = smul.u32 %s30, %s26
    %s151 = ssub.s32 %s149, %s150
    %p152 = scmp.eq.s32.totalorder %s151, 0
    %s154 = sadd.s32 %s153, 1
    %s155 = scalar_select %p152, %s153, %s154
    %p158 = pneg %p152
    %p159 = scmp.eq.s32.totalorder %s11, 7
    %p160 = por %p158, %p159
    %p161 = scmp.ne.s32.totalorder %s153, %s156
    %p162 = scmp.eq.s32.totalorder %s11, 0
    %p163 = por %p161, %p162
    %p164 = scmp.ne.s32.totalorder %s153, %s156
    %p165 = scmp.eq.s32.totalorder %s16, 7
    %p166 = por %p164, %p165
    %p167 = scmp.ne.s32.totalorder %s156, %s157
    %p168 = scmp.eq.s32.totalorder %s16, 0
    %p169 = por %p167, %p168
    %p170 = scmp.ne.s32.totalorder %s156, %s157
    %p171 = scmp.eq.s32.totalorder %s17, 7
    %p172 = por %p170, %p171
    %p174 = scmp.ne.s32.totalorder %s157, %s173
    %p175 = scmp.eq.s32.totalorder %s17, 0
    %p176 = por %p174, %p175
    %p177 = scmp.le.s32.totalorder 1, %s11
    %p178 = scmp.lt.s32.totalorder %s11, 9
    %p179 = pnand %p177, %p178
    %p180 = pneg %p179
    // Predicated region
    $region9: #{autoencoder_forward.10} parent=5 // pred_check
      _
    $region10: #{autoencoder_forward.10} parent=5 // pred_check_branch
      %182 = sbr.rel (%p179) target = $region12
    $region11: #{autoencoder_forward.10} parent=5 // pred_region
      %s183 = ssub.s32 %s11, 1
      // Predicated region
      $region13: #{autoencoder_forward.10} parent=11 // pred_check
        %p184 = pneg %p78
      $region14: #{autoencoder_forward.10} parent=11 // pred_check_branch
        %186 = sbr.rel (%p184) target = $region16
      $region15: #{autoencoder_forward.10} parent=11 // pred_region
        _
      $region16: #{autoencoder_forward.10} parent=11 // pred_fallthru
        _
      // Predicated region
      $region17: #{autoencoder_forward.10} parent=11 // pred_check
        %p187 = pneg %p99
      $region18: #{autoencoder_forward.10} parent=11 // pred_check_branch
        %189 = sbr.rel (%p187) target = $region20
      $region19: #{autoencoder_forward.10} parent=11 // pred_region
        _
      $region20: #{autoencoder_forward.10} parent=11 // pred_fallthru
        _
      // Predicated region
      $region21: #{autoencoder_forward.10} parent=11 // pred_check
        %p190 = pneg %p120
      $region22: #{autoencoder_forward.10} parent=11 // pred_check_branch
        %192 = sbr.rel (%p190) target = $region24
      $region23: #{autoencoder_forward.10} parent=11 // pred_region
        _
      $region24: #{autoencoder_forward.10} parent=11 // pred_fallthru
        _
      // Predicated region
      $region25: #{autoencoder_forward.10} parent=11 // pred_check
        %p193 = pneg %p141
      $region26: #{autoencoder_forward.10} parent=11 // pred_check_branch
        %195 = sbr.rel (%p193) target = $region28
      $region27: #{autoencoder_forward.10} parent=11 // pred_region
        _
      $region28: #{autoencoder_forward.10} parent=11 // pred_fallthru
        _
    $region12: #{autoencoder_forward.10} parent=5 // pred_fallthru
      _
    %p196 = scmp.lt.s32.totalorder %s11, 8
    // Predicated region
    $region29: #{autoencoder_forward.10} parent=5 // pred_check
      %p197 = pneg %p196
    $region30: #{autoencoder_forward.10} parent=5 // pred_check_branch
      %199 = sbr.rel (%p197) target = $region32
    $region31: #{autoencoder_forward.10} parent=5 // pred_region
      // Predicated region
      $region33: #{autoencoder_forward.10} parent=31 // pred_check
        %p200 = pneg %p51
      $region34: #{autoencoder_forward.10} parent=31 // pred_check_branch
        %202 = sbr.rel (%p200) target = $region36
      $region35: #{autoencoder_forward.10} parent=31 // pred_region
        %s203 = ssub.s32 1, %s18
        %s204 = smul.u32 %s19, %s203
        %s205 = smul.u32 %s18, 3
        %s206 = sadd.s32 %s204, %s205
        %s207 = smul.u32 16, %s206
        %p208 = scmp.lt.s32.totalorder %s207, 63
        %s209 = scalar_select %p208, %s207, 63
        %s210 = smul.addr %s209, 2
        %s211 = smul.addr %s210, 4
        %s212 = scalar_lea.vmem %s0, %s211
        %s213 = ssub.s32 1, %s18
        %s214 = smul.u32 %s19, %s213
        %s215 = smul.u32 %s18, 3
        %s216 = sadd.s32 %s214, %s215
        %s217 = smul.u32 16, %s216
      $region36: #{autoencoder_forward.10} parent=31 // pred_fallthru
        _
    $region32: #{autoencoder_forward.10} parent=5 // pred_fallthru
      _
    %p218 = scmp.le.s32.totalorder 1, %s11
    %p219 = scmp.lt.s32.totalorder %s11, 9
    %p220 = pnand %p218, %p219
    %p221 = pneg %p220
    // Predicated region
    $region37: #{autoencoder_forward.10} parent=5 // pred_check
      _
    $region38: #{autoencoder_forward.10} parent=5 // pred_check_branch
      %223 = sbr.rel (%p220) target = $region40
    $region39: #{autoencoder_forward.10} parent=5 // pred_region
      %s224 = ssub.s32 %s11, 1
      %s225 = ssub.s32 1, %s20
      %s226 = smul.u32 %s21, %s225
      %s227 = smul.u32 %s20, 3
      %s228 = sadd.s32 %s226, %s227
      %s229 = smul.u32 16, %s228
      %p230 = scmp.lt.s32.totalorder %s229, 63
      %s231 = scalar_select %p230, %s229, 63
      %s232 = smul.addr %s231, 2
      %s233 = smul.addr %s232, 4
      %s234 = scalar_lea.vmem %s0, %s233
      %p235 = pneg %p57
      %p236 = pneg %p54
      %p237 = pneg %p78
      %p238 = pneg %p75
      %p239 = pneg %p99
      %p240 = pneg %p96
      %p241 = pneg %p120
      %p242 = pneg %p117
      %p243 = pneg %p141
      %p244 = pneg %p138
      %p245 = pneg %p169
      %p246 = pneg %p166
      %s247 = smul.u32 %s20, %s21
      %s248 = smul.u32 16, %s247
      %p249 = scmp.lt.s32.totalorder %s248, 63
      %s250 = scalar_select %p249, %s248, 63
      %s251 = smul.addr %s250, 4
      %s252 = scalar_lea.vmem %s5, %s251
      %s253 = ssub.s32 1, %s20
      %s254 = smul.u32 %s21, %s253
      %s255 = smul.u32 %s20, 3
      %s256 = sadd.s32 %s254, %s255
      %s257 = smul.u32 16, %s256
      %p258 = scmp.lt.s32.totalorder %s257, 63
      %s259 = scalar_select %p258, %s257, 63
      %s260 = smul.addr %s259, 2
      %s261 = smul.addr %s260, 4
      %s262 = scalar_lea.vmem %s0, %s261
      %s263 = ssub.s32 1, %s20
      %s264 = smul.u32 %s21, %s263
      %s265 = smul.u32 %s20, 3
      %s266 = sadd.s32 %s264, %s265
      %s267 = smul.u32 16, %s266
      %s268 = smul.u32 %s20, %s21
      %s269 = smul.u32 16, %s268
      %p270 = scmp.lt.s32.totalorder %s269, 63
      %s271 = scalar_select %p270, %s269, 63
      %s272 = smul.addr %s271, 4
      %s273 = scalar_lea.vmem %s5, %s272
      %s274 = smul.u32 %s20, %s21
      %s275 = smul.u32 16, %s274
      %p277 = scmp.eq.s32.totalorder %s20, 0
      // Predicated region
      $region41: #{autoencoder_forward.10} parent=39 // pred_check
        %p278 = pneg %p277
      $region42: #{autoencoder_forward.10} parent=39 // pred_check_branch
        %280 = sbr.rel (%p278) target = $region44
      $region43: #{autoencoder_forward.10} parent=39 // pred_region
        %p281 = scmp.eq.s32.totalorder %s21, 0
        // Predicated region
        $region45: #{autoencoder_forward.10} parent=43 // pred_check
          %p282 = pneg %p281
        $region46: #{autoencoder_forward.10} parent=43 // pred_check_branch
          %284 = sbr.rel (%p282) target = $region48
        $region47: #{autoencoder_forward.10} parent=43 // pred_region
          %285 = vst [vmem:[#allocation3] sm:$0xff] 0.0
          %286 = vst [vmem:[#allocation4] sm:$0xff] 0.0
        $region48: #{autoencoder_forward.10} parent=43 // pred_fallthru
          _
        %v287 = vld [vmem:[%s262] sm:$0xff]
        %v288 = vld [vmem:[%s262 + $0x8] sm:$0xff]
        %v289 = vld [vmem:[%s262 + $0x10] sm:$0xff]
        %v290 = vld [vmem:[%s262 + $0x18] sm:$0xff]
        %v291 = vld [vmem:[%s262 + $0x20] sm:$0xff]
        %v292 = vld [vmem:[%s262 + $0x28] sm:$0xff]
        %v293 = vld [vmem:[%s262 + $0x30] sm:$0xff]
        %v294 = vld [vmem:[%s262 + $0x38] sm:$0xff]
        %v295 = vld [vmem:[%s262 + $0x40] sm:$0xff]
        %v296 = vld [vmem:[%s262 + $0x48] sm:$0xff]
        %v297 = vld [vmem:[%s262 + $0x50] sm:$0xff]
        %v298 = vld [vmem:[%s262 + $0x58] sm:$0xff]
        %v299 = vld [vmem:[%s262 + $0x60] sm:$0xff]
        %v300 = vld [vmem:[%s262 + $0x68] sm:$0xff]
        %v301 = vld [vmem:[%s262 + $0x70] sm:$0xff]
        %v302 = vld [vmem:[%s262 + $0x78] sm:$0xff]
        %v303 = vld [vmem:[%s1] sm:$0xf]
        %v304 = vld [vmem:[%s1 + $0x4] sm:$0xf]
        %v305 = vld [vmem:[%s1 + $0x8] sm:$0xf]
        %v306 = vld [vmem:[%s1 + $0xc] sm:$0xf]
        %v307 = vld [vmem:[%s1 + $0x10] sm:$0xf]
        %v308 = vld [vmem:[%s1 + $0x14] sm:$0xf]
        %v309 = vld [vmem:[%s1 + $0x18] sm:$0xf]
        %v310 = vld [vmem:[%s1 + $0x1c] sm:$0xf]
        %v311 = vld [vmem:[%s1 + $0x20] sm:$0xf]
        %v312 = vld [vmem:[%s1 + $0x24] sm:$0xf]
        %v313 = vld [vmem:[%s1 + $0x28] sm:$0xf]
        %v314 = vld [vmem:[%s1 + $0x2c] sm:$0xf]
        %v315 = vld [vmem:[%s1 + $0x30] sm:$0xf]
        %v316 = vld [vmem:[%s1 + $0x34] sm:$0xf]
        %v317 = vld [vmem:[%s1 + $0x38] sm:$0xf]
        %v318 = vld [vmem:[%s1 + $0x3c] sm:$0xf]
        %v319 = vld [vmem:[%s1 + $0x40] sm:$0xf]
        %v320 = vld [vmem:[%s1 + $0x44] sm:$0xf]
        %v321 = vld [vmem:[%s1 + $0x48] sm:$0xf]
        %v322 = vld [vmem:[%s1 + $0x4c] sm:$0xf]
        %v323 = vld [vmem:[%s1 + $0x50] sm:$0xf]
        %v324 = vld [vmem:[%s1 + $0x54] sm:$0xf]
        %v325 = vld [vmem:[%s1 + $0x58] sm:$0xf]
        %v326 = vld [vmem:[%s1 + $0x5c] sm:$0xf]
        %v327 = vld [vmem:[%s1 + $0x60] sm:$0xf]
        %v328 = vld [vmem:[%s1 + $0x64] sm:$0xf]
        %v329 = vld [vmem:[%s1 + $0x68] sm:$0xf]
        %v346 = vunpack.c.l.b16 %v287
        %v347 = vunpack.c.h.b16 %v287
        %v348 = vunpack.c.l.b16 %v288
        %v349 = vunpack.c.h.b16 %v288
        %v350 = vunpack.c.l.b16 %v289
        %v351 = vunpack.c.h.b16 %v289
        %v352 = vunpack.c.l.b16 %v290
        %v353 = vunpack.c.h.b16 %v290
        %v354 = vunpack.c.l.b16 %v291
        %v355 = vunpack.c.h.b16 %v291
        %v356 = vunpack.c.l.b16 %v292
        %v357 = vunpack.c.h.b16 %v292
        %v358 = vunpack.c.l.b16 %v293
        %v359 = vunpack.c.h.b16 %v293
        %v360 = vunpack.c.l.b16 %v294
        %v361 = vunpack.c.h.b16 %v294
        %v362 = vunpack.c.l.b16 %v295
        %v363 = vunpack.c.h.b16 %v295
        %v364 = vunpack.c.l.b16 %v296
        %v365 = vunpack.c.h.b16 %v296
        %v366 = vunpack.c.l.b16 %v297
        %v367 = vunpack.c.h.b16 %v297
        %v368 = vunpack.c.l.b16 %v298
        %v369 = vunpack.c.h.b16 %v298
        %v370 = vunpack.c.l.b16 %v299
        %v371 = vunpack.c.h.b16 %v299
        %v372 = vunpack.c.l.b16 %v300
        %v373 = vunpack.c.h.b16 %v300
        %v374 = vunpack.c.l.b16 %v301
        %v375 = vunpack.c.h.b16 %v301
        %v376 = vunpack.c.l.b16 %v302
        %v377 = vunpack.c.h.b16 %v302
        %v378 = vpack.c.b16 %v348, %v346
        %v379 = vpack.c.b16 %v349, %v347
        %v380 = vpack.c.b16 %v352, %v350
        %v381 = vpack.c.b16 %v353, %v351
        %v382 = vpack.c.b16 %v356, %v354
        %v383 = vpack.c.b16 %v357, %v355
        %v384 = vpack.c.b16 %v360, %v358
        %v385 = vpack.c.b16 %v361, %v359
        %v386 = vpack.c.b16 %v364, %v362
        %v387 = vpack.c.b16 %v365, %v363
        %v388 = vpack.c.b16 %v368, %v366
        %v389 = vpack.c.b16 %v369, %v367
        %v390 = vpack.c.b16 %v372, %v370
        %v391 = vpack.c.b16 %v373, %v371
        %v392 = vpack.c.b16 %v376, %v374
        %v393 = vpack.c.b16 %v377, %v375
        %v429 = vunpack.c.l.b16 %v303
        %v430 = vunpack.c.l.b16 %v304
        %v431 = vunpack.c.l.b16 %v305
        %v432 = vunpack.c.l.b16 %v306
        %v433 = vunpack.c.l.b16 %v307
        %v434 = vunpack.c.l.b16 %v308
        %v435 = vunpack.c.l.b16 %v309
        %v436 = vunpack.c.l.b16 %v310
        %v437 = vunpack.c.l.b16 %v311
        %v438 = vunpack.c.l.b16 %v312
        %v439 = vunpack.c.l.b16 %v313
        %v440 = vunpack.c.l.b16 %v314
        %v441 = vunpack.c.l.b16 %v315
        %v442 = vunpack.c.l.b16 %v316
        %v443 = vunpack.c.l.b16 %v317
        %v444 = vunpack.c.l.b16 %v318
        %v445 = vunpack.c.l.b16 %v319
        %v446 = vunpack.c.l.b16 %v320
        %v447 = vunpack.c.l.b16 %v321
        %v448 = vunpack.c.l.b16 %v322
        %v449 = vunpack.c.l.b16 %v323
        %v450 = vunpack.c.l.b16 %v324
        %v451 = vunpack.c.l.b16 %v325
        %v452 = vunpack.c.l.b16 %v326
        %v453 = vunpack.c.l.b16 %v327
        %v454 = vunpack.c.l.b16 %v328
        %v455 = vunpack.c.l.b16 %v329
        %v456 = vpack.c.b16 %v430, %v429
        %v457 = vpack.c.b16 %v432, %v431
        %v458 = vpack.c.b16 %v434, %v433
        %v459 = vpack.c.b16 %v436, %v435
        %v460 = vpack.c.b16 %v438, %v437
        %v461 = vpack.c.b16 %v440, %v439
        %v462 = vpack.c.b16 %v442, %v441
        %v463 = vpack.c.b16 %v444, %v443
        %v464 = vpack.c.b16 %v446, %v445
        %v465 = vpack.c.b16 %v448, %v447
        %v466 = vpack.c.b16 %v450, %v449
        %v467 = vpack.c.b16 %v452, %v451
        %v468 = vpack.c.b16 %v454, %v453
        %v469 = vpack.c.b16 %v455, %v455
        %vm483 = vcmask 719872
        %v485 = vsel %vm483, %v379, 0
        %v488 = vsel %vm483, %v381, 0
        %v491 = vsel %vm483, %v383, 0
        %v494 = vsel %vm483, %v385, 0
        %v497 = vsel %vm483, %v387, 0
        %v500 = vsel %vm483, %v389, 0
        %v503 = vsel %vm483, %v391, 0
        %v506 = vsel %vm483, %v393, 0
        %vm508 = vcmask 1043456
        %v510 = vsel %vm508, %v469, 0
        %512 = vmatprep.subr.bf16.mxu0 0
        %513 = vmatpush1.bf16.msra.mxu0 %v463
        %514 = vmatprep.subr.bf16.mxu0 0
        %515 = vmatpush1.bf16.msra.mxu0 %v462
        %516 = vmatprep.subr.bf16.mxu0 0
        %517 = vmatpush1.bf16.msra.mxu0 %v461
        %518 = vmatprep.subr.bf16.mxu0 0
        %519 = vmatpush1.bf16.msra.mxu0 %v460
        %520 = vmatprep.subr.bf16.mxu0 0
        %521 = vmatpush1.bf16.msra.mxu0 %v459
        %522 = vmatprep.subr.bf16.mxu0 0
        %523 = vmatpush1.bf16.msra.mxu0 %v458
        %524 = vmatprep.subr.bf16.mxu0 0
        %525 = vmatpush1.bf16.msra.mxu0 %v457
        %526 = vmatprep.subr.bf16.mxu0 0
        %527 = vmatpush1.bf16.msra.mxu0 %v456
        %528 = vmatprep.subr.bf16.mxu0 0
        %529 = vmatpush2.bf16.msra.mxu0 0
        %530 = vmatprep.subr.bf16.mxu0 0
        %531 = vmatpush2.bf16.msra.mxu0 0
        %532 = vmatprep.subr.bf16.mxu0 0
        %533 = vmatpush2.bf16.msra.mxu0 %v510
        %534 = vmatprep.subr.bf16.mxu0 0
        %535 = vmatpush2.bf16.msra.mxu0 %v468
        %536 = vmatprep.subr.bf16.mxu0 0
        %537 = vmatpush2.bf16.msra.mxu0 %v467
        %538 = vmatprep.subr.bf16.mxu0 0
        %539 = vmatpush2.bf16.msra.mxu0 %v466
        %540 = vmatprep.subr.bf16.mxu0 0
        %541 = vmatpush2.bf16.msra.mxu0 %v465
        %542 = vmatprep.subr.bf16.mxu0 0
        %543 = vmatpush2.bf16.msra.mxu0 %v464
        %544 = vmatprep.mubr.bf16.mxu0 %v485
        %545 = vmatmul.mubr.bf16.gmra.mxu0 %v378
        %v546 = vpop.f32.mrf.mxu0
        %v547 = vadd.f32 0.0, %v546
        %v548 = vpop.f32.mrf.mxu0
        %v549 = vpop.f32.mrf.mxu0
        %v550 = vadd.f32 0.0, %v549
        %v551 = vpop.f32.mrf.mxu0
        %552 = vmatprep.mubr.bf16.mxu0 %v488
        %553 = vmatmul.mubr.bf16.gmra.mxu0 %v380
        %v554 = vpop.f32.mrf.mxu0
        %v555 = vadd.f32 0.0, %v554
        %v556 = vpop.f32.mrf.mxu0
        %v557 = vpop.f32.mrf.mxu0
        %v558 = vadd.f32 0.0, %v557
        %v559 = vpop.f32.mrf.mxu0
        %560 = vmatprep.mubr.bf16.mxu0 %v491
        %561 = vmatmul.mubr.bf16.gmra.mxu0 %v382
        %v562 = vpop.f32.mrf.mxu0
        %v563 = vadd.f32 0.0, %v562
        %v564 = vpop.f32.mrf.mxu0
        %v565 = vpop.f32.mrf.mxu0
        %v566 = vadd.f32 0.0, %v565
        %v567 = vpop.f32.mrf.mxu0
        %568 = vmatprep.mubr.bf16.mxu0 %v494
        %569 = vmatmul.mubr.bf16.gmra.mxu0 %v384
        %v570 = vpop.f32.mrf.mxu0
        %v571 = vadd.f32 0.0, %v570
        %v572 = vpop.f32.mrf.mxu0
        %v573 = vpop.f32.mrf.mxu0
        %v574 = vadd.f32 0.0, %v573
        %v575 = vpop.f32.mrf.mxu0
        %576 = vmatprep.mubr.bf16.mxu0 %v497
        %577 = vmatmul.mubr.bf16.gmra.mxu0 %v386
        %v578 = vpop.f32.mrf.mxu0
        %v579 = vadd.f32 0.0, %v578
        %v580 = vpop.f32.mrf.mxu0
        %v581 = vpop.f32.mrf.mxu0
        %v582 = vadd.f32 0.0, %v581
        %v583 = vpop.f32.mrf.mxu0
        %584 = vmatprep.mubr.bf16.mxu0 %v500
        %585 = vmatmul.mubr.bf16.gmra.mxu0 %v388
        %v586 = vpop.f32.mrf.mxu0
        %v587 = vadd.f32 0.0, %v586
        %v588 = vpop.f32.mrf.mxu0
        %v589 = vpop.f32.mrf.mxu0
        %v590 = vadd.f32 0.0, %v589
        %v591 = vpop.f32.mrf.mxu0
        %592 = vmatprep.mubr.bf16.mxu0 %v503
        %593 = vmatmul.mubr.bf16.gmra.mxu0 %v390
        %v594 = vpop.f32.mrf.mxu0
        %v595 = vadd.f32 0.0, %v594
        %v596 = vpop.f32.mrf.mxu0
        %v597 = vpop.f32.mrf.mxu0
        %v598 = vadd.f32 0.0, %v597
        %v599 = vpop.f32.mrf.mxu0
        %600 = vmatprep.mubr.bf16.mxu0 %v506
        %601 = vmatmul.mubr.bf16.gmra.mxu0 %v392
        %v602 = vpop.f32.mrf.mxu0
        %v603 = vadd.f32 0.0, %v602
        %v604 = vpop.f32.mrf.mxu0
        %v605 = vpop.f32.mrf.mxu0
        %v606 = vadd.f32 0.0, %v605
        %v607 = vpop.f32.mrf.mxu0
        %608 = vdwg.mxu0
        %v609 = vld [vmem:[#allocation3] sm:$0xff]
        %v610 = vadd.f32 %v547, %v550
        %v611 = vadd.f32 %v610, %v555
        %v612 = vadd.f32 %v611, %v558
        %v613 = vadd.f32 %v612, %v563
        %v614 = vadd.f32 %v613, %v566
        %v615 = vadd.f32 %v614, %v571
        %v616 = vadd.f32 %v615, %v574
        %v617 = vadd.f32 %v616, %v579
        %v618 = vadd.f32 %v617, %v582
        %v619 = vadd.f32 %v618, %v587
        %v620 = vadd.f32 %v619, %v590
        %v621 = vadd.f32 %v620, %v595
        %v622 = vadd.f32 %v621, %v598
        %v623 = vadd.f32 %v622, %v603
        %v624 = vadd.f32 %v623, %v606
        %v625 = vadd.f32 %v609, %v624
        %626 = vst [vmem:[#allocation3] sm:$0xff] %v625
        %v627 = vld [vmem:[#allocation4] sm:$0xff]
        %v628 = vmul.f32 %v547, %v547
        %v629 = vmul.f32 %v550, %v550
        %v630 = vmul.f32 %v555, %v555
        %v631 = vmul.f32 %v558, %v558
        %v632 = vmul.f32 %v563, %v563
        %v633 = vmul.f32 %v566, %v566
        %v634 = vmul.f32 %v571, %v571
        %v635 = vmul.f32 %v574, %v574
        %v636 = vmul.f32 %v579, %v579
        %v637 = vmul.f32 %v582, %v582
        %v638 = vmul.f32 %v587, %v587
        %v639 = vmul.f32 %v590, %v590
        %v640 = vmul.f32 %v595, %v595
        %v641 = vmul.f32 %v598, %v598
        %v642 = vmul.f32 %v603, %v603
        %v643 = vmul.f32 %v606, %v606
        %v644 = vadd.f32 %v628, %v629
        %v645 = vadd.f32 %v644, %v630
        %v646 = vadd.f32 %v645, %v631
        %v647 = vadd.f32 %v646, %v632
        %v648 = vadd.f32 %v647, %v633
        %v649 = vadd.f32 %v648, %v634
        %v650 = vadd.f32 %v649, %v635
        %v651 = vadd.f32 %v650, %v636
        %v652 = vadd.f32 %v651, %v637
        %v653 = vadd.f32 %v652, %v638
        %v654 = vadd.f32 %v653, %v639
        %v655 = vadd.f32 %v654, %v640
        %v656 = vadd.f32 %v655, %v641
        %v657 = vadd.f32 %v656, %v642
        %v658 = vadd.f32 %v657, %v643
        %v659 = vadd.f32 %v627, %v658
        %660 = vst [vmem:[#allocation4] sm:$0xff] %v659
        %v661 = vpack.c.bf16 %v550, %v547
        %v662 = vpack.c.bf16 %v558, %v555
        %v663 = vpack.c.bf16 %v566, %v563
        %v664 = vpack.c.bf16 %v574, %v571
        %v665 = vpack.c.bf16 %v582, %v579
        %v666 = vpack.c.bf16 %v590, %v587
        %v667 = vpack.c.bf16 %v598, %v595
        %v668 = vpack.c.bf16 %v606, %v603
        %v677 = vunpack.c.l.b16 %v661
        %v678 = vunpack.c.h.b16 %v661
        %v679 = vunpack.c.l.b16 %v662
        %v680 = vunpack.c.h.b16 %v662
        %v681 = vunpack.c.l.b16 %v663
        %v682 = vunpack.c.h.b16 %v663
        %v683 = vunpack.c.l.b16 %v664
        %v684 = vunpack.c.h.b16 %v664
        %v685 = vunpack.c.l.b16 %v665
        %v686 = vunpack.c.h.b16 %v665
        %v687 = vunpack.c.l.b16 %v666
        %v688 = vunpack.c.h.b16 %v666
        %v689 = vunpack.c.l.b16 %v667
        %v690 = vunpack.c.h.b16 %v667
        %v691 = vunpack.c.l.b16 %v668
        %v692 = vunpack.c.h.b16 %v668
        %v693 = vpack.c.b16 %v677, %v677
        %v694 = vpack.c.b16 %v678, %v678
        %v695 = vpack.c.b16 %v679, %v679
        %v696 = vpack.c.b16 %v680, %v680
        %v697 = vpack.c.b16 %v681, %v681
        %v698 = vpack.c.b16 %v682, %v682
        %v699 = vpack.c.b16 %v683, %v683
        %v700 = vpack.c.b16 %v684, %v684
        %v701 = vpack.c.b16 %v685, %v685
        %v702 = vpack.c.b16 %v686, %v686
        %v703 = vpack.c.b16 %v687, %v687
        %v704 = vpack.c.b16 %v688, %v688
        %v705 = vpack.c.b16 %v689, %v689
        %v706 = vpack.c.b16 %v690, %v690
        %v707 = vpack.c.b16 %v691, %v691
        %v708 = vpack.c.b16 %v692, %v692
        %s725 = smul.u32 %s21, 16
        %s726 = smul.addr %s725, 4
        %s727 = scalar_lea.vmem [#allocation2], %s726
        %728 = vst [vmem:[%s727] sm:$0xf] %v693
        %729 = vst [vmem:[%s727 + $0x4] sm:$0xf] %v694
        %730 = vst [vmem:[%s727 + $0x8] sm:$0xf] %v695
        %731 = vst [vmem:[%s727 + $0xc] sm:$0xf] %v696
        %732 = vst [vmem:[%s727 + $0x10] sm:$0xf] %v697
        %733 = vst [vmem:[%s727 + $0x14] sm:$0xf] %v698
        %734 = vst [vmem:[%s727 + $0x18] sm:$0xf] %v699
        %735 = vst [vmem:[%s727 + $0x1c] sm:$0xf] %v700
        %736 = vst [vmem:[%s727 + $0x20] sm:$0xf] %v701
        %737 = vst [vmem:[%s727 + $0x24] sm:$0xf] %v702
        %738 = vst [vmem:[%s727 + $0x28] sm:$0xf] %v703
        %739 = vst [vmem:[%s727 + $0x2c] sm:$0xf] %v704
        %740 = vst [vmem:[%s727 + $0x30] sm:$0xf] %v705
        %741 = vst [vmem:[%s727 + $0x34] sm:$0xf] %v706
        %742 = vst [vmem:[%s727 + $0x38] sm:$0xf] %v707
        %743 = vst [vmem:[%s727 + $0x3c] sm:$0xf] %v708
      $region44: #{autoencoder_forward.10} parent=39 // pred_fallthru
        _
      %p744 = scmp.eq.s32.totalorder %s20, 1
      // Predicated region
      $region49: #{autoencoder_forward.10} parent=39 // pred_check
        %p745 = pneg %p744
      $region50: #{autoencoder_forward.10} parent=39 // pred_check_branch
        %747 = sbr.rel (%p745) target = $region52
      $region51: #{autoencoder_forward.10} parent=39 // pred_region
        %s748 = smul.u32 %s21, 16
        %s749 = smul.addr %s748, 4
        %s750 = scalar_lea.vmem [#allocation2], %s749
        %v751 = vld [vmem:[%s750] sm:$0xf]
        %v752 = vld [vmem:[%s750 + $0x4] sm:$0xf]
        %v753 = vld [vmem:[%s750 + $0x8] sm:$0xf]
        %v754 = vld [vmem:[%s750 + $0xc] sm:$0xf]
        %v755 = vld [vmem:[%s750 + $0x10] sm:$0xf]
        %v756 = vld [vmem:[%s750 + $0x14] sm:$0xf]
        %v757 = vld [vmem:[%s750 + $0x18] sm:$0xf]
        %v758 = vld [vmem:[%s750 + $0x1c] sm:$0xf]
        %v759 = vld [vmem:[%s750 + $0x20] sm:$0xf]
        %v760 = vld [vmem:[%s750 + $0x24] sm:$0xf]
        %v761 = vld [vmem:[%s750 + $0x28] sm:$0xf]
        %v762 = vld [vmem:[%s750 + $0x2c] sm:$0xf]
        %v763 = vld [vmem:[%s750 + $0x30] sm:$0xf]
        %v764 = vld [vmem:[%s750 + $0x34] sm:$0xf]
        %v765 = vld [vmem:[%s750 + $0x38] sm:$0xf]
        %v766 = vld [vmem:[%s750 + $0x3c] sm:$0xf]
        %v767 = vunpack.c.l.bf16 %v751
        %v768 = vunpack.c.l.bf16 %v752
        %v769 = vunpack.c.l.bf16 %v753
        %v770 = vunpack.c.l.bf16 %v754
        %v771 = vunpack.c.l.bf16 %v755
        %v772 = vunpack.c.l.bf16 %v756
        %v773 = vunpack.c.l.bf16 %v757
        %v774 = vunpack.c.l.bf16 %v758
        %v775 = vunpack.c.l.bf16 %v759
        %v776 = vunpack.c.l.bf16 %v760
        %v777 = vunpack.c.l.bf16 %v761
        %v778 = vunpack.c.l.bf16 %v762
        %v779 = vunpack.c.l.bf16 %v763
        %v780 = vunpack.c.l.bf16 %v764
        %v781 = vunpack.c.l.bf16 %v765
        %v782 = vunpack.c.l.bf16 %v766
        %v783 = vld [vmem:[#allocation3] sm:$0xff]
        %v784 = vld [vmem:[%s2] sm:$0xff]
        %v785 = vld [vmem:[%s2 + $0x8] sm:$0xff]
        %v786 = vld [vmem:[%s2 + $0x10] sm:$0xff]
        %v787 = vld [vmem:[%s2 + $0x18] sm:$0xff]
        %v788 = vld [vmem:[%s2 + $0x20] sm:$0xff]
        %v789 = vld [vmem:[%s2 + $0x28] sm:$0xff]
        %v790 = vld [vmem:[%s2 + $0x30] sm:$0xff]
        %v791 = vld [vmem:[%s2 + $0x38] sm:$0xff]
        %v792 = vld [vmem:[%s2 + $0x40] sm:$0xff]
        %v793 = vld [vmem:[%s2 + $0x48] sm:$0xff]
        %v794 = vld [vmem:[%s2 + $0x50] sm:$0xff]
        %v795 = vld [vmem:[%s2 + $0x58] sm:$0xff]
        %v796 = vld [vmem:[%s2 + $0x60] sm:$0xff]
        %v797 = vld [vmem:[%s2 + $0x68] sm:$0xff]
        %v798 = vld [vmem:[%s2 + $0x70] sm:$0xff]
        %v799 = vld [vmem:[%s2 + $0x78] sm:$0xff]
        %800 = vmatprep.subr.mxu0 0.0
        %801 = vmatpush1.msra.mxu0 %v799
        %802 = vmatprep.subr.mxu0 0.0
        %803 = vmatpush1.msra.mxu0 %v798
        %804 = vmatprep.subr.mxu0 0.0
        %805 = vmatpush1.msra.mxu0 %v797
        %806 = vmatprep.subr.mxu0 0.0
        %807 = vmatpush1.msra.mxu0 %v796
        %808 = vmatprep.subr.mxu0 0.0
        %809 = vmatpush1.msra.mxu0 %v795
        %810 = vmatprep.subr.mxu0 0.0
        %811 = vmatpush1.msra.mxu0 %v794
        %812 = vmatprep.subr.mxu0 0.0
        %813 = vmatpush1.msra.mxu0 %v793
        %814 = vmatprep.subr.mxu0 0.0
        %815 = vmatpush1.msra.mxu0 %v792
        %816 = vmatprep.subr.mxu0 0.0
        %817 = vmatpush1.msra.mxu0 %v791
        %818 = vmatprep.subr.mxu0 0.0
        %819 = vmatpush1.msra.mxu0 %v790
        %820 = vmatprep.subr.mxu0 0.0
        %821 = vmatpush1.msra.mxu0 %v789
        %822 = vmatprep.subr.mxu0 0.0
        %823 = vmatpush1.msra.mxu0 %v788
        %824 = vmatprep.subr.mxu0 0.0
        %825 = vmatpush1.msra.mxu0 %v787
        %826 = vmatprep.subr.mxu0 0.0
        %827 = vmatpush1.msra.mxu0 %v786
        %828 = vmatprep.subr.mxu0 0.0
        %829 = vmatpush1.msra.mxu0 %v785
        %830 = vmatprep.subr.mxu0 0.0
        %831 = vmatpush1.msra.mxu0 %v784
        %832 = vmatprep.subr.mxu0 0.0
        %833 = vmatpush2.msra.mxu0 0.0
        %834 = vmatprep.subr.mxu0 0.0
        %835 = vmatpush2.msra.mxu0 0.0
        %836 = vmatprep.subr.mxu0 0.0
        %837 = vmatpush2.msra.mxu0 0.0
        %838 = vmatprep.subr.mxu0 0.0
        %839 = vmatpush2.msra.mxu0 0.0
        %840 = vmatprep.subr.mxu0 0.0
        %841 = vmatpush2.msra.mxu0 0.0
        %842 = vmatprep.subr.mxu0 0.0
        %843 = vmatpush2.msra.mxu0 0.0
        %844 = vmatprep.subr.mxu0 0.0
        %845 = vmatpush2.msra.mxu0 0.0
        %846 = vmatprep.subr.mxu0 0.0
        %847 = vmatpush2.msra.mxu0 0.0
        %848 = vmatprep.subr.mxu0 0.0
        %849 = vmatpush2.msra.mxu0 0.0
        %850 = vmatprep.subr.mxu0 0.0
        %851 = vmatpush2.msra.mxu0 0.0
        %852 = vmatprep.subr.mxu0 0.0
        %853 = vmatpush2.msra.mxu0 0.0
        %854 = vmatprep.subr.mxu0 0.0
        %855 = vmatpush2.msra.mxu0 0.0
        %856 = vmatprep.subr.mxu0 0.0
        %857 = vmatpush2.msra.mxu0 0.0
        %858 = vmatprep.subr.mxu0 0.0
        %859 = vmatpush2.msra.mxu0 0.0
        %860 = vmatprep.subr.mxu0 0.0
        %861 = vmatpush2.msra.mxu0 0.0
        %862 = vmatprep.subr.mxu0 0.0
        %863 = vmatpush2.msra.mxu0 0.0
        %864 = vmatprep.mubr.f32.mxu0 0.0
        %865 = vmatmul.mubr.f32.gmra.mxu0 %v783
        %v866 = vpop.f32.mrf.mxu0
        %v867 = vadd.f32 0.0, %v866
        %v868 = vpop.f32.mrf.mxu0
        %869 = vdwg.mxu0
        %v870 = vld [vmem:[#allocation4] sm:$0xff]
        %871 = vmatprep.subr.mxu0 0.0
        %872 = vmatpush1.msra.mxu0 %v799
        %873 = vmatprep.subr.mxu0 0.0
        %874 = vmatpush1.msra.mxu0 %v798
        %875 = vmatprep.subr.mxu0 0.0
        %876 = vmatpush1.msra.mxu0 %v797
        %877 = vmatprep.subr.mxu0 0.0
        %878 = vmatpush1.msra.mxu0 %v796
        %879 = vmatprep.subr.mxu0 0.0
        %880 = vmatpush1.msra.mxu0 %v795
        %881 = vmatprep.subr.mxu0 0.0
        %882 = vmatpush1.msra.mxu0 %v794
        %883 = vmatprep.subr.mxu0 0.0
        %884 = vmatpush1.msra.mxu0 %v793
        %885 = vmatprep.subr.mxu0 0.0
        %886 = vmatpush1.msra.mxu0 %v792
        %887 = vmatprep.subr.mxu0 0.0
        %888 = vmatpush1.msra.mxu0 %v791
        %889 = vmatprep.subr.mxu0 0.0
        %890 = vmatpush1.msra.mxu0 %v790
        %891 = vmatprep.subr.mxu0 0.0
        %892 = vmatpush1.msra.mxu0 %v789
        %893 = vmatprep.subr.mxu0 0.0
        %894 = vmatpush1.msra.mxu0 %v788
        %895 = vmatprep.subr.mxu0 0.0
        %896 = vmatpush1.msra.mxu0 %v787
        %897 = vmatprep.subr.mxu0 0.0
        %898 = vmatpush1.msra.mxu0 %v786
        %899 = vmatprep.subr.mxu0 0.0
        %900 = vmatpush1.msra.mxu0 %v785
        %901 = vmatprep.subr.mxu0 0.0
        %902 = vmatpush1.msra.mxu0 %v784
        %903 = vmatprep.subr.mxu0 0.0
        %904 = vmatpush2.msra.mxu0 0.0
        %905 = vmatprep.subr.mxu0 0.0
        %906 = vmatpush2.msra.mxu0 0.0
        %907 = vmatprep.subr.mxu0 0.0
        %908 = vmatpush2.msra.mxu0 0.0
        %909 = vmatprep.subr.mxu0 0.0
        %910 = vmatpush2.msra.mxu0 0.0
        %911 = vmatprep.subr.mxu0 0.0
        %912 = vmatpush2.msra.mxu0 0.0
        %913 = vmatprep.subr.mxu0 0.0
        %914 = vmatpush2.msra.mxu0 0.0
        %915 = vmatprep.subr.mxu0 0.0
        %916 = vmatpush2.msra.mxu0 0.0
        %917 = vmatprep.subr.mxu0 0.0
        %918 = vmatpush2.msra.mxu0 0.0
        %919 = vmatprep.subr.mxu0 0.0
        %920 = vmatpush2.msra.mxu0 0.0
        %921 = vmatprep.subr.mxu0 0.0
        %922 = vmatpush2.msra.mxu0 0.0
        %923 = vmatprep.subr.mxu0 0.0
        %924 = vmatpush2.msra.mxu0 0.0
        %925 = vmatprep.subr.mxu0 0.0
        %926 = vmatpush2.msra.mxu0 0.0
        %927 = vmatprep.subr.mxu0 0.0
        %928 = vmatpush2.msra.mxu0 0.0
        %929 = vmatprep.subr.mxu0 0.0
        %930 = vmatpush2.msra.mxu0 0.0
        %931 = vmatprep.subr.mxu0 0.0
        %932 = vmatpush2.msra.mxu0 0.0
        %933 = vmatprep.subr.mxu0 0.0
        %934 = vmatpush2.msra.mxu0 0.0
        %935 = vmatprep.mubr.f32.mxu0 0.0
        %936 = vmatmul.mubr.f32.gmra.mxu0 %v870
        %v937 = vpop.f32.mrf.mxu0
        %v938 = vadd.f32 0.0, %v937
        %v939 = vpop.f32.mrf.mxu0
        %940 = vdwg.mxu0
        %v941 = vrot.slane %v867, 4
        %v942 = vadd.f32 %v867, %v941
        %v943 = vrot.slane %v942, 2
        %v944 = vadd.f32 %v942, %v943
        %v945 = vrot.slane %v944, 1
        %v946 = vadd.f32 %v944, %v945
        %v947 = vmul.f32 %v946, 0.00048828125
        %v948 = vrot.slane %v938, 4
        %v949 = vadd.f32 %v938, %v948
        %v950 = vrot.slane %v949, 2
        %v951 = vadd.f32 %v949, %v950
        %v952 = vrot.slane %v951, 1
        %v953 = vadd.f32 %v951, %v952
        %v954 = vmul.f32 %v953, 0.00048828125
        %v955 = vmul.f32 %v947, %v947
        %v956 = vsub.f32 %v954, %v955
        %v957 = vmax.f32 %v956, 0.0
        %v958 = vld [vmem:[%s3] sm:$0x1]
        %v959 = vadd.f32 %v957, 1e-05
        %v960 = vrsqrt.pop %v959
        %v961 = vmul.f32 %v958, %v960
        %v962 = vld [vmem:[%s4] sm:$0x1]
        %v963 = vmul.f32 %v961, %v947
        %v964 = vsub.f32 %v962, %v963
        %v966 = vlaneseq
        %v967 = vshrl.u32 %v966, 7
        %v968 = vsub.s32 0, %v967
        %v969 = vrot.slane %v961, %v968
        %v971 = vmul.f32 %v767, %v969
        %v972 = vmul.f32 %v768, %v969
        %v973 = vmul.f32 %v769, %v969
        %v974 = vmul.f32 %v770, %v969
        %v975 = vmul.f32 %v771, %v969
        %v976 = vmul.f32 %v772, %v969
        %v977 = vmul.f32 %v773, %v969
        %v978 = vmul.f32 %v774, %v969
        %v979 = vmul.f32 %v775, %v969
        %v980 = vmul.f32 %v776, %v969
        %v981 = vmul.f32 %v777, %v969
        %v982 = vmul.f32 %v778, %v969
        %v983 = vmul.f32 %v779, %v969
        %v984 = vmul.f32 %v780, %v969
        %v985 = vmul.f32 %v781, %v969
        %v986 = vmul.f32 %v782, %v969
        %v988 = vlaneseq
        %v989 = vshrl.u32 %v988, 7
        %v990 = vsub.s32 0, %v989
        %v991 = vrot.slane %v964, %v990
        %v993 = vadd.f32 %v971, %v991
        %v994 = vadd.f32 %v972, %v991
        %v995 = vadd.f32 %v973, %v991
        %v996 = vadd.f32 %v974, %v991
        %v997 = vadd.f32 %v975, %v991
        %v998 = vadd.f32 %v976, %v991
        %v999 = vadd.f32 %v977, %v991
        %v1000 = vadd.f32 %v978, %v991
        %v1001 = vadd.f32 %v979, %v991
        %v1002 = vadd.f32 %v980, %v991
        %v1003 = vadd.f32 %v981, %v991
        %v1004 = vadd.f32 %v982, %v991
        %v1005 = vadd.f32 %v983, %v991
        %v1006 = vadd.f32 %v984, %v991
        %v1007 = vadd.f32 %v985, %v991
        %v1008 = vadd.f32 %v986, %v991
        %v1009 = vmax.f32 %v993, 0.0
        %v1010 = vmax.f32 %v994, 0.0
        %v1011 = vmax.f32 %v995, 0.0
        %v1012 = vmax.f32 %v996, 0.0
        %v1013 = vmax.f32 %v997, 0.0
        %v1014 = vmax.f32 %v998, 0.0
        %v1015 = vmax.f32 %v999, 0.0
        %v1016 = vmax.f32 %v1000, 0.0
        %v1017 = vmax.f32 %v1001, 0.0
        %v1018 = vmax.f32 %v1002, 0.0
        %v1019 = vmax.f32 %v1003, 0.0
        %v1020 = vmax.f32 %v1004, 0.0
        %v1021 = vmax.f32 %v1005, 0.0
        %v1022 = vmax.f32 %v1006, 0.0
        %v1023 = vmax.f32 %v1007, 0.0
        %v1024 = vmax.f32 %v1008, 0.0
        %v1025 = vpack.c.bf16 %v1010, %v1009
        %v1026 = vpack.c.bf16 %v1012, %v1011
        %v1027 = vpack.c.bf16 %v1014, %v1013
        %v1028 = vpack.c.bf16 %v1016, %v1015
        %v1029 = vpack.c.bf16 %v1018, %v1017
        %v1030 = vpack.c.bf16 %v1020, %v1019
        %v1031 = vpack.c.bf16 %v1022, %v1021
        %v1032 = vpack.c.bf16 %v1024, %v1023
        %v1041 = vunpack.c.l.b16 %v1025
        %v1042 = vunpack.c.h.b16 %v1025
        %v1043 = vunpack.c.l.b16 %v1026
        %v1044 = vunpack.c.h.b16 %v1026
        %v1045 = vunpack.c.l.b16 %v1027
        %v1046 = vunpack.c.h.b16 %v1027
        %v1047 = vunpack.c.l.b16 %v1028
        %v1048 = vunpack.c.h.b16 %v1028
        %v1049 = vunpack.c.l.b16 %v1029
        %v1050 = vunpack.c.h.b16 %v1029
        %v1051 = vunpack.c.l.b16 %v1030
        %v1052 = vunpack.c.h.b16 %v1030
        %v1053 = vunpack.c.l.b16 %v1031
        %v1054 = vunpack.c.h.b16 %v1031
        %v1055 = vunpack.c.l.b16 %v1032
        %v1056 = vunpack.c.h.b16 %v1032
        %v1057 = vpack.c.b16 %v1041, %v1041
        %v1058 = vpack.c.b16 %v1042, %v1042
        %v1059 = vpack.c.b16 %v1043, %v1043
        %v1060 = vpack.c.b16 %v1044, %v1044
        %v1061 = vpack.c.b16 %v1045, %v1045
        %v1062 = vpack.c.b16 %v1046, %v1046
        %v1063 = vpack.c.b16 %v1047, %v1047
        %v1064 = vpack.c.b16 %v1048, %v1048
        %v1065 = vpack.c.b16 %v1049, %v1049
        %v1066 = vpack.c.b16 %v1050, %v1050
        %v1067 = vpack.c.b16 %v1051, %v1051
        %v1068 = vpack.c.b16 %v1052, %v1052
        %v1069 = vpack.c.b16 %v1053, %v1053
        %v1070 = vpack.c.b16 %v1054, %v1054
        %v1071 = vpack.c.b16 %v1055, %v1055
        %v1072 = vpack.c.b16 %v1056, %v1056
        %1089 = vst [vmem:[%s273] sm:$0xf] %v1057
        %1090 = vst [vmem:[%s273 + $0x4] sm:$0xf] %v1058
        %1091 = vst [vmem:[%s273 + $0x8] sm:$0xf] %v1059
        %1092 = vst [vmem:[%s273 + $0xc] sm:$0xf] %v1060
        %1093 = vst [vmem:[%s273 + $0x10] sm:$0xf] %v1061
        %1094 = vst [vmem:[%s273 + $0x14] sm:$0xf] %v1062
        %1095 = vst [vmem:[%s273 + $0x18] sm:$0xf] %v1063
        %1096 = vst [vmem:[%s273 + $0x1c] sm:$0xf] %v1064
        %1097 = vst [vmem:[%s273 + $0x20] sm:$0xf] %v1065
        %1098 = vst [vmem:[%s273 + $0x24] sm:$0xf] %v1066
        %1099 = vst [vmem:[%s273 + $0x28] sm:$0xf] %v1067
        %1100 = vst [vmem:[%s273 + $0x2c] sm:$0xf] %v1068
        %1101 = vst [vmem:[%s273 + $0x30] sm:$0xf] %v1069
        %1102 = vst [vmem:[%s273 + $0x34] sm:$0xf] %v1070
        %1103 = vst [vmem:[%s273 + $0x38] sm:$0xf] %v1071
        %1104 = vst [vmem:[%s273 + $0x3c] sm:$0xf] %v1072
      $region52: #{autoencoder_forward.10} parent=39 // pred_fallthru
        _
      %s1105 = smul.u32 %s20, %s21
      %s1106 = smul.u32 16, %s1105
      %p1107 = scmp.lt.s32.totalorder %s1106, 63
      %s1108 = scalar_select %p1107, %s1106, 63
      %s1109 = smul.addr %s1108, 4
      %s1110 = scalar_lea.vmem %s5, %s1109
      // Predicated region
      $region53: #{autoencoder_forward.10} parent=39 // pred_check
        %p1111 = pneg %p166
      $region54: #{autoencoder_forward.10} parent=39 // pred_check_branch
        %1113 = sbr.rel (%p1111) target = $region56
      $region55: #{autoencoder_forward.10} parent=39 // pred_region
        %s1114 = smul.u32 %s20, %s21
        %s1115 = smul.u32 16, %s1114
      $region56: #{autoencoder_forward.10} parent=39 // pred_fallthru
        _
    $region40: #{autoencoder_forward.10} parent=5 // pred_fallthru
      _
    %p1116 = scmp.le.s32.totalorder 2, %s11
    // Predicated region
    $region57: #{autoencoder_forward.10} parent=5 // pred_check
      %p1117 = pneg %p1116
    $region58: #{autoencoder_forward.10} parent=5 // pred_check_branch
      %1119 = sbr.rel (%p1117) target = $region60
    $region59: #{autoencoder_forward.10} parent=5 // pred_region
      %s1120 = ssub.s32 %s11, 2
      // Predicated region
      $region61: #{autoencoder_forward.10} parent=59 // pred_check
        %p1121 = pneg %p172
      $region62: #{autoencoder_forward.10} parent=59 // pred_check_branch
        %1123 = sbr.rel (%p1121) target = $region64
      $region63: #{autoencoder_forward.10} parent=59 // pred_region
        %s1124 = smul.u32 %s22, %s23
        %s1125 = smul.u32 16, %s1124
        %p1126 = scmp.lt.s32.totalorder %s1125, 63
        %s1127 = scalar_select %p1126, %s1125, 63
        %s1128 = smul.addr %s1127, 4
        %s1129 = scalar_lea.vmem %s5, %s1128
      $region64: #{autoencoder_forward.10} parent=59 // pred_fallthru
        _
    $region60: #{autoencoder_forward.10} parent=5 // pred_fallthru
      _
  $region6: #{autoencoder_forward.10} parent=0 // loop_footer
    %s15 = sadd.s32 1, %s11
  $region7: #{autoencoder_forward.10} parent=0 // loop_footer_branch
    %10 = sbr.rel target = $region3
  $region8: #{autoencoder_forward.10} parent=0 // loop_exit
    _

// kernel: tile.48
$region0: #{tile.48}
  #allocation0 [shape = 's32[1]{0}', space=sflag, size = 0x4, scoped, tag = 'scoped memory for tile.48']
  %s0 = inlined_call_operand.vmem [shape: f32[3], index: 0, kind: input, shape index: {}]
  %s1 = inlined_call_operand.vmem [shape: f32[4,3], index: 1, kind: output, shape index: {}]
  // Predicated region
  $region2: #{tile.48} parent=0 // pred_check
    _
  $region3: #{tile.48} parent=0 // pred_check_branch
    %3 = sbr.rel (0) target = $region5
  $region4: #{tile.48} parent=0 // pred_region
    _
  $region5: #{tile.48} parent=0 // pred_fallthru
    _
  %v4 = vld [vmem:[%s0] ss:$0 sm:$0xff]
  %5 = vst [vmem:[%s1] sm:$0xf] %v4

// kernel: tile.49
$region0: #{tile.49}
  %s0 = inlined_call_operand.vmem [shape: f32[4,3], index: 0, kind: input, shape index: {}]
  %s1 = inlined_call_operand.vmem [shape: f32[1,12], index: 1, kind: output, shape index: {}]
  $region1: #{tile.49} parent=0
    #allocation0 [shape = 'u8[4096]{0}', space=vmem, size = 0x1000, scoped, tag = 'scoped mem for output reshape']
    #allocation1 [shape = 'u8[4096]{0}', space=vmem, size = 0x1000, scoped, tag = 'scoped mem for input reshape']
    %s3 = sshll.u32 1, 4
    %s4 = ssub.s32 %s3, 1
    %v5 = vld [vmem:[%s0] sm:%s4]
    %6 = vst [vmem:[#allocation1] sm:%s4] %v5
    %v7 = vld [vmem:[#allocation1] sm:$0x1]
    %vm8 = vcmask 23552
    %9 = vst.msk [vmem:[#allocation0] sm:$0x1] %vm8, %v7
    %s10 = scalar_lea.vmem [#allocation1], 3
    %v11 = vld [vmem:[%s10] sm:$0x1]
    %12 = vrot.lane.b32.xlu0 %v11, 9
    %v13 = vpop.permute.xlu0 %12
    %vm14 = vcmask 97352
    %15 = vst.msk [vmem:[#allocation0] sm:$0x1] %vm14, %v13
    %s16 = scalar_lea.vmem [#allocation1], 2
    %v17 = vld [vmem:[%s16] sm:$0x1]
    %18 = vrot.lane.b32.xlu0 %v17, 6
    %v19 = vpop.permute.xlu0 %18
    %vm20 = vcmask 72752
    %21 = vst.msk [vmem:[#allocation0] sm:$0x1] %vm20, %v19
    %s22 = scalar_lea.vmem [#allocation1], 1
    %v23 = vld [vmem:[%s22] sm:$0x1]
    %24 = vrot.lane.b32.xlu0 %v23, 3
    %v25 = vpop.permute.xlu0 %24
    %vm26 = vcmask 48152
    %27 = vst.msk [vmem:[#allocation0] sm:$0x1] %vm26, %v25
    %s29 = sshll.u32 1, 1
    %s30 = ssub.s32 %s29, 1
    %v32 = vld [vmem:[#allocation0] sm:%s30]
    %s33 = sshll.u32 1, 1
    %s34 = ssub.s32 %s33, 1
    %35 = vst [vmem:[%s1] sm:%s34] %v32

// kernel: autoencoder_forward.11
$region0: #{autoencoder_forward.11}
  #allocation0 [shape = 'u32[]', space=smem, size = 0x4, offset = 0x4, fixed_abs, tag = 'smem constant byte address 0x4 - core index']
  #allocation1 [shape = 'u32[144,128]{1,0:T(1,128)}', space=vmem, size = 0x12000, scoped, tag = 'internal scratch']
  %s0 = inlined_call_operand.vmem [shape: bf16[2048,108], index: 0, kind: input, shape index: {}]
  %s1 = inlined_call_operand.vmem [shape: bf16[108,128], index: 1, kind: input, shape index: {}]
  %s2 = inlined_call_operand.vmem [shape: f32[1,128], index: 2, kind: input, shape index: {}]
  %s3 = inlined_call_operand.vmem [shape: f32[2048,128], index: 3, kind: output, shape index: {}]
  %s4 = sld [smem:[#allocation0]]
  $region45: #{autoencoder_forward.11} parent=0
    _
  %s6 = ssub.s32 1, %s4
  %s7 = scalar_select 0, %s6, %s4
  loop: start=0, step=1, limit=6
  $region2: #{autoencoder_forward.11} parent=0 // loop_pre_header
    _
  $region3: #{autoencoder_forward.11} parent=0 // loop_header
    %s9 = sphi 0, %s13
    %p10 = scmp.ge.s32.totalorder %s9, 6
    %s19 = sphi 0, %s21
    %s22 = sphi 0, %s19
    %s23 = sphi 0, %s22
    %s39 = sphi 0, %s23
    %s43 = sphi 0, %s43
    %s45 = sphi 0, %s43
    %s46 = sphi 0, %s45
    %s60 = sphi 0, %s46
    %s64 = sphi 0, %s64
    %s66 = sphi 0, %s64
    %s67 = sphi 0, %s66
    %s81 = sphi 0, %s67
    %s87 = sphi 0, %s89
    %s90 = sphi 0, %s87
    %s91 = sphi 0, %s90
    %s107 = sphi 0, %s91
  $region4: #{autoencoder_forward.11} parent=0 // loop_header_branch
    %12 = sbr.rel (%p10) target = $region8
  $region5: #{autoencoder_forward.11} parent=0 // loop_body
    %s14 = ssub.s32 %s9, 1
    %s15 = ssub.s32 %s9, 2
    %s16 = sadd.s32 %s9, 1
    %s17 = ssub.s32 %s9, %s16
    %p18 = scmp.eq.s32.totalorder %s17, 0
    %s20 = sadd.s32 %s19, 1
    %s21 = scalar_select %p18, %s19, %s20
    %p24 = pneg %p18
    %p25 = scmp.eq.s32.totalorder %s9, 3
    %p26 = por %p24, %p25
    %p27 = scmp.ne.s32.totalorder %s19, %s22
    %p28 = scmp.eq.s32.totalorder %s9, 0
    %p29 = por %p27, %p28
    %p30 = scmp.ne.s32.totalorder %s19, %s22
    %p31 = scmp.eq.s32.totalorder %s14, 3
    %p32 = por %p30, %p31
    %p33 = scmp.ne.s32.totalorder %s22, %s23
    %p34 = scmp.eq.s32.totalorder %s14, 0
    %p35 = por %p33, %p34
    %p36 = scmp.ne.s32.totalorder %s22, %s23
    %p37 = scmp.eq.s32.totalorder %s15, 3
    %p38 = por %p36, %p37
    %p40 = scmp.ne.s32.totalorder %s23, %s39
    %p41 = scmp.eq.s32.totalorder %s15, 0
    %p42 = por %p40, %p41
    %s44 = sadd.s32 %s43, 1
    %p47 = scmp.eq.s32.totalorder %s9, 3
    %p48 = scmp.ne.s32.totalorder %s43, %s45
    %p49 = scmp.eq.s32.totalorder %s9, 0
    %p50 = por %p48, %p49
    %p51 = scmp.ne.s32.totalorder %s43, %s45
    %p52 = scmp.eq.s32.totalorder %s14, 3
    %p53 = por %p51, %p52
    %p54 = scmp.ne.s32.totalorder %s45, %s46
    %p55 = scmp.eq.s32.totalorder %s14, 0
    %p56 = por %p54, %p55
    %p57 = scmp.ne.s32.totalorder %s45, %s46
    %p58 = scmp.eq.s32.totalorder %s15, 3
    %p59 = por %p57, %p58
    %p61 = scmp.ne.s32.totalorder %s46, %s60
    %p62 = scmp.eq.s32.totalorder %s15, 0
    %p63 = por %p61, %p62
    %s65 = sadd.s32 %s64, 1
    %p68 = scmp.eq.s32.totalorder %s9, 3
    %p69 = scmp.ne.s32.totalorder %s64, %s66
    %p70 = scmp.eq.s32.totalorder %s9, 0
    %p71 = por %p69, %p70
    %p72 = scmp.ne.s32.totalorder %s64, %s66
    %p73 = scmp.eq.s32.totalorder %s14, 3
    %p74 = por %p72, %p73
    %p75 = scmp.ne.s32.totalorder %s66, %s67
    %p76 = scmp.eq.s32.totalorder %s14, 0
    %p77 = por %p75, %p76
    %p78 = scmp.ne.s32.totalorder %s66, %s67
    %p79 = scmp.eq.s32.totalorder %s15, 3
    %p80 = por %p78, %p79
    %p82 = scmp.ne.s32.totalorder %s67, %s81
    %p83 = scmp.eq.s32.totalorder %s15, 0
    %p84 = por %p82, %p83
    %s85 = ssub.s32 %s9, %s16
    %p86 = scmp.eq.s32.totalorder %s85, 0
    %s88 = sadd.s32 %s87, 1
    %s89 = scalar_select %p86, %s87, %s88
    %p92 = pneg %p86
    %p93 = scmp.eq.s32.totalorder %s9, 3
    %p94 = por %p92, %p93
    %p95 = scmp.ne.s32.totalorder %s87, %s90
    %p96 = scmp.eq.s32.totalorder %s9, 0
    %p97 = por %p95, %p96
    %p98 = scmp.ne.s32.totalorder %s87, %s90
    %p99 = scmp.eq.s32.totalorder %s14, 3
    %p100 = por %p98, %p99
    %p101 = scmp.ne.s32.totalorder %s90, %s91
    %p102 = scmp.eq.s32.totalorder %s14, 0
    %p103 = por %p101, %p102
    %p104 = scmp.ne.s32.totalorder %s90, %s91
    %p105 = scmp.eq.s32.totalorder %s15, 3
    %p106 = por %p104, %p105
    %p108 = scmp.ne.s32.totalorder %s91, %s107
    %p109 = scmp.eq.s32.totalorder %s15, 0
    %p110 = por %p108, %p109
    %p111 = scmp.le.s32.totalorder 1, %s9
    %p112 = scmp.lt.s32.totalorder %s9, 5
    %p113 = pnand %p111, %p112
    %p114 = pneg %p113
    // Predicated region
    $region9: #{autoencoder_forward.11} parent=5 // pred_check
      _
    $region10: #{autoencoder_forward.11} parent=5 // pred_check_branch
      %116 = sbr.rel (%p113) target = $region12
    $region11: #{autoencoder_forward.11} parent=5 // pred_region
      %s117 = ssub.s32 %s9, 1
      // Predicated region
      $region13: #{autoencoder_forward.11} parent=11 // pred_check
        %p118 = pneg %p56
      $region14: #{autoencoder_forward.11} parent=11 // pred_check_branch
        %120 = sbr.rel (%p118) target = $region16
      $region15: #{autoencoder_forward.11} parent=11 // pred_region
        _
      $region16: #{autoencoder_forward.11} parent=11 // pred_fallthru
        _
      // Predicated region
      $region17: #{autoencoder_forward.11} parent=11 // pred_check
        %p121 = pneg %p77
      $region18: #{autoencoder_forward.11} parent=11 // pred_check_branch
        %123 = sbr.rel (%p121) target = $region20
      $region19: #{autoencoder_forward.11} parent=11 // pred_region
        _
      $region20: #{autoencoder_forward.11} parent=11 // pred_fallthru
        _
    $region12: #{autoencoder_forward.11} parent=5 // pred_fallthru
      _
    %p124 = scmp.lt.s32.totalorder %s9, 4
    // Predicated region
    $region21: #{autoencoder_forward.11} parent=5 // pred_check
      %p125 = pneg %p124
    $region22: #{autoencoder_forward.11} parent=5 // pred_check_branch
      %127 = sbr.rel (%p125) target = $region24
    $region23: #{autoencoder_forward.11} parent=5 // pred_region
      // Predicated region
      $region25: #{autoencoder_forward.11} parent=23 // pred_check
        %p128 = pneg %p29
      $region26: #{autoencoder_forward.11} parent=23 // pred_check_branch
        %130 = sbr.rel (%p128) target = $region28
      $region27: #{autoencoder_forward.11} parent=23 // pred_region
        %s131 = smul.u32 64, %s9
        %p132 = scmp.lt.s32.totalorder %s131, 255
        %s133 = scalar_select %p132, %s131, 255
        %s134 = smul.addr %s133, 4
        %s135 = scalar_lea.vmem %s0, %s134
        %s136 = smul.u32 64, %s9
      $region28: #{autoencoder_forward.11} parent=23 // pred_fallthru
        _
    $region24: #{autoencoder_forward.11} parent=5 // pred_fallthru
      _
    %p137 = scmp.le.s32.totalorder 1, %s9
    %p138 = scmp.lt.s32.totalorder %s9, 5
    %p139 = pnand %p137, %p138
    %p140 = pneg %p139
    // Predicated region
    $region29: #{autoencoder_forward.11} parent=5 // pred_check
      _
    $region30: #{autoencoder_forward.11} parent=5 // pred_check_branch
      %142 = sbr.rel (%p139) target = $region32
    $region31: #{autoencoder_forward.11} parent=5 // pred_region
      %s143 = ssub.s32 %s9, 1
      %s144 = smul.u32 64, %s14
      %p145 = scmp.lt.s32.totalorder %s144, 255
      %s146 = scalar_select %p145, %s144, 255
      %s147 = smul.addr %s146, 4
      %s148 = scalar_lea.vmem %s0, %s147
      %p149 = pneg %p35
      %p150 = pneg %p32
      %p151 = pneg %p56
      %p152 = pneg %p53
      %p153 = pneg %p77
      %p154 = pneg %p74
      %p155 = pneg %p103
      %p156 = pneg %p100
      %s157 = smul.u32 64, %s14
      %p158 = scmp.lt.s32.totalorder %s157, 255
      %s159 = scalar_select %p158, %s157, 255
      %s160 = smul.addr %s159, 8
      %s161 = scalar_lea.vmem %s3, %s160
      %s162 = smul.u32 64, %s14
      %p163 = scmp.lt.s32.totalorder %s162, 255
      %s164 = scalar_select %p163, %s162, 255
      %s165 = smul.addr %s164, 4
      %s166 = scalar_lea.vmem %s0, %s165
      %s167 = smul.u32 64, %s14
      %s168 = smul.u32 64, %s14
      %p169 = scmp.lt.s32.totalorder %s168, 255
      %s170 = scalar_select %p169, %s168, 255
      %s171 = smul.addr %s170, 8
      %s172 = scalar_lea.vmem %s3, %s171
      %s173 = smul.u32 64, %s14
      %v175 = vld [vmem:[%s166] sm:$0xf]
      %v176 = vld [vmem:[%s166 + $0x4] sm:$0xf]
      %v177 = vld [vmem:[%s166 + $0x8] sm:$0xf]
      %v178 = vld [vmem:[%s166 + $0xc] sm:$0xf]
      %v179 = vld [vmem:[%s166 + $0x10] sm:$0xf]
      %v180 = vld [vmem:[%s166 + $0x14] sm:$0xf]
      %v181 = vld [vmem:[%s166 + $0x18] sm:$0xf]
      %v182 = vld [vmem:[%s166 + $0x1c] sm:$0xf]
      %v183 = vld [vmem:[%s166 + $0x20] sm:$0xf]
      %v184 = vld [vmem:[%s166 + $0x24] sm:$0xf]
      %v185 = vld [vmem:[%s166 + $0x28] sm:$0xf]
      %v186 = vld [vmem:[%s166 + $0x2c] sm:$0xf]
      %v187 = vld [vmem:[%s166 + $0x30] sm:$0xf]
      %v188 = vld [vmem:[%s166 + $0x34] sm:$0xf]
      %v189 = vld [vmem:[%s166 + $0x38] sm:$0xf]
      %v190 = vld [vmem:[%s166 + $0x3c] sm:$0xf]
      %v191 = vld [vmem:[%s166 + $0x40] sm:$0xf]
      %v192 = vld [vmem:[%s166 + $0x44] sm:$0xf]
      %v193 = vld [vmem:[%s166 + $0x48] sm:$0xf]
      %v194 = vld [vmem:[%s166 + $0x4c] sm:$0xf]
      %v195 = vld [vmem:[%s166 + $0x50] sm:$0xf]
      %v196 = vld [vmem:[%s166 + $0x54] sm:$0xf]
      %v197 = vld [vmem:[%s166 + $0x58] sm:$0xf]
      %v198 = vld [vmem:[%s166 + $0x5c] sm:$0xf]
      %v199 = vld [vmem:[%s166 + $0x60] sm:$0xf]
      %v200 = vld [vmem:[%s166 + $0x64] sm:$0xf]
      %v201 = vld [vmem:[%s166 + $0x68] sm:$0xf]
      %v202 = vld [vmem:[%s166 + $0x6c] sm:$0xf]
      %v203 = vld [vmem:[%s166 + $0x70] sm:$0xf]
      %v204 = vld [vmem:[%s166 + $0x74] sm:$0xf]
      %v205 = vld [vmem:[%s166 + $0x78] sm:$0xf]
      %v206 = vld [vmem:[%s166 + $0x7c] sm:$0xf]
      %v207 = vld [vmem:[%s166 + $0x80] sm:$0xf]
      %v208 = vld [vmem:[%s166 + $0x84] sm:$0xf]
      %v209 = vld [vmem:[%s166 + $0x88] sm:$0xf]
      %v210 = vld [vmem:[%s166 + $0x8c] sm:$0xf]
      %v211 = vld [vmem:[%s166 + $0x90] sm:$0xf]
      %v212 = vld [vmem:[%s166 + $0x94] sm:$0xf]
      %v213 = vld [vmem:[%s166 + $0x98] sm:$0xf]
      %v214 = vld [vmem:[%s166 + $0x9c] sm:$0xf]
      %v215 = vld [vmem:[%s166 + $0xa0] sm:$0xf]
      %v216 = vld [vmem:[%s166 + $0xa4] sm:$0xf]
      %v217 = vld [vmem:[%s166 + $0xa8] sm:$0xf]
      %v218 = vld [vmem:[%s166 + $0xac] sm:$0xf]
      %v219 = vld [vmem:[%s166 + $0xb0] sm:$0xf]
      %v220 = vld [vmem:[%s166 + $0xb4] sm:$0xf]
      %v221 = vld [vmem:[%s166 + $0xb8] sm:$0xf]
      %v222 = vld [vmem:[%s166 + $0xbc] sm:$0xf]
      %v223 = vld [vmem:[%s166 + $0xc0] sm:$0xf]
      %v224 = vld [vmem:[%s166 + $0xc4] sm:$0xf]
      %v225 = vld [vmem:[%s166 + $0xc8] sm:$0xf]
      %v226 = vld [vmem:[%s166 + $0xcc] sm:$0xf]
      %v227 = vld [vmem:[%s166 + $0xd0] sm:$0xf]
      %v228 = vld [vmem:[%s166 + $0xd4] sm:$0xf]
      %v229 = vld [vmem:[%s166 + $0xd8] sm:$0xf]
      %v230 = vld [vmem:[%s166 + $0xdc] sm:$0xf]
      %v231 = vld [vmem:[%s166 + $0xe0] sm:$0xf]
      %v232 = vld [vmem:[%s166 + $0xe4] sm:$0xf]
      %v233 = vld [vmem:[%s166 + $0xe8] sm:$0xf]
      %v234 = vld [vmem:[%s166 + $0xec] sm:$0xf]
      %v235 = vld [vmem:[%s166 + $0xf0] sm:$0xf]
      %v236 = vld [vmem:[%s166 + $0xf4] sm:$0xf]
      %v237 = vld [vmem:[%s166 + $0xf8] sm:$0xf]
      %v238 = vld [vmem:[%s166 + $0xfc] sm:$0xf]
      %v239 = vld [vmem:[%s1] sm:$0xf]
      %v240 = vld [vmem:[%s1 + $0x4] sm:$0xf]
      %v241 = vld [vmem:[%s1 + $0x8] sm:$0xf]
      %v242 = vld [vmem:[%s1 + $0xc] sm:$0xf]
      %v243 = vld [vmem:[%s1 + $0x10] sm:$0xf]
      %v244 = vld [vmem:[%s1 + $0x14] sm:$0xf]
      %v245 = vld [vmem:[%s1 + $0x18] sm:$0xf]
      %v246 = vld [vmem:[%s1 + $0x1c] sm:$0xf]
      %v247 = vld [vmem:[%s1 + $0x20] sm:$0xf]
      %v248 = vld [vmem:[%s1 + $0x24] sm:$0xf]
      %v249 = vld [vmem:[%s1 + $0x28] sm:$0xf]
      %v250 = vld [vmem:[%s1 + $0x2c] sm:$0xf]
      %v251 = vld [vmem:[%s1 + $0x30] sm:$0xf]
      %v252 = vld [vmem:[%s1 + $0x34] sm:$0x3]
      %v253 = vld [vmem:[%s2] sm:$0x1]
      %v255 = vlaneseq
      %v256 = vshrl.u32 %v255, 7
      %v257 = vsub.s32 0, %v256
      %v258 = vrot.slane %v253, %v257
      %v324 = vunpack.c.l.b16 %v175
      %v325 = vunpack.c.l.b16 %v176
      %v326 = vunpack.c.l.b16 %v177
      %v327 = vunpack.c.l.b16 %v178
      %v328 = vunpack.c.l.b16 %v179
      %v329 = vunpack.c.l.b16 %v180
      %v330 = vunpack.c.l.b16 %v181
      %v331 = vunpack.c.l.b16 %v182
      %v332 = vunpack.c.l.b16 %v183
      %v333 = vunpack.c.l.b16 %v184
      %v334 = vunpack.c.l.b16 %v185
      %v335 = vunpack.c.l.b16 %v186
      %v336 = vunpack.c.l.b16 %v187
      %v337 = vunpack.c.l.b16 %v188
      %v338 = vunpack.c.l.b16 %v189
      %v339 = vunpack.c.l.b16 %v190
      %v340 = vunpack.c.l.b16 %v191
      %v341 = vunpack.c.l.b16 %v192
      %v342 = vunpack.c.l.b16 %v193
      %v343 = vunpack.c.l.b16 %v194
      %v344 = vunpack.c.l.b16 %v195
      %v345 = vunpack.c.l.b16 %v196
      %v346 = vunpack.c.l.b16 %v197
      %v347 = vunpack.c.l.b16 %v198
      %v348 = vunpack.c.l.b16 %v199
      %v349 = vunpack.c.l.b16 %v200
      %v350 = vunpack.c.l.b16 %v201
      %v351 = vunpack.c.l.b16 %v202
      %v352 = vunpack.c.l.b16 %v203
      %v353 = vunpack.c.l.b16 %v204
      %v354 = vunpack.c.l.b16 %v205
      %v355 = vunpack.c.l.b16 %v206
      %v356 = vunpack.c.l.b16 %v207
      %v357 = vunpack.c.l.b16 %v208
      %v358 = vunpack.c.l.b16 %v209
      %v359 = vunpack.c.l.b16 %v210
      %v360 = vunpack.c.l.b16 %v211
      %v361 = vunpack.c.l.b16 %v212
      %v362 = vunpack.c.l.b16 %v213
      %v363 = vunpack.c.l.b16 %v214
      %v364 = vunpack.c.l.b16 %v215
      %v365 = vunpack.c.l.b16 %v216
      %v366 = vunpack.c.l.b16 %v217
      %v367 = vunpack.c.l.b16 %v218
      %v368 = vunpack.c.l.b16 %v219
      %v369 = vunpack.c.l.b16 %v220
      %v370 = vunpack.c.l.b16 %v221
      %v371 = vunpack.c.l.b16 %v222
      %v372 = vunpack.c.l.b16 %v223
      %v373 = vunpack.c.l.b16 %v224
      %v374 = vunpack.c.l.b16 %v225
      %v375 = vunpack.c.l.b16 %v226
      %v376 = vunpack.c.l.b16 %v227
      %v377 = vunpack.c.l.b16 %v228
      %v378 = vunpack.c.l.b16 %v229
      %v379 = vunpack.c.l.b16 %v230
      %v380 = vunpack.c.l.b16 %v231
      %v381 = vunpack.c.l.b16 %v232
      %v382 = vunpack.c.l.b16 %v233
      %v383 = vunpack.c.l.b16 %v234
      %v384 = vunpack.c.l.b16 %v235
      %v385 = vunpack.c.l.b16 %v236
      %v386 = vunpack.c.l.b16 %v237
      %v387 = vunpack.c.l.b16 %v238
      %v388 = vpack.c.b16 %v325, %v324
      %v389 = vpack.c.b16 %v327, %v326
      %v390 = vpack.c.b16 %v329, %v328
      %v391 = vpack.c.b16 %v331, %v330
      %v392 = vpack.c.b16 %v333, %v332
      %v393 = vpack.c.b16 %v335, %v334
      %v394 = vpack.c.b16 %v337, %v336
      %v395 = vpack.c.b16 %v339, %v338
      %v396 = vpack.c.b16 %v341, %v340
      %v397 = vpack.c.b16 %v343, %v342
      %v398 = vpack.c.b16 %v345, %v344
      %v399 = vpack.c.b16 %v347, %v346
      %v400 = vpack.c.b16 %v349, %v348
      %v401 = vpack.c.b16 %v351, %v350
      %v402 = vpack.c.b16 %v353, %v352
      %v403 = vpack.c.b16 %v355, %v354
      %v404 = vpack.c.b16 %v357, %v356
      %v405 = vpack.c.b16 %v359, %v358
      %v406 = vpack.c.b16 %v361, %v360
      %v407 = vpack.c.b16 %v363, %v362
      %v408 = vpack.c.b16 %v365, %v364
      %v409 = vpack.c.b16 %v367, %v366
      %v410 = vpack.c.b16 %v369, %v368
      %v411 = vpack.c.b16 %v371, %v370
      %v412 = vpack.c.b16 %v373, %v372
      %v413 = vpack.c.b16 %v375, %v374
      %v414 = vpack.c.b16 %v377, %v376
      %v415 = vpack.c.b16 %v379, %v378
      %v416 = vpack.c.b16 %v381, %v380
      %v417 = vpack.c.b16 %v383, %v382
      %v418 = vpack.c.b16 %v385, %v384
      %v419 = vpack.c.b16 %v387, %v386
      %v434 = vunpack.c.l.b16 %v239
      %v435 = vunpack.c.l.b16 %v240
      %v436 = vunpack.c.l.b16 %v241
      %v437 = vunpack.c.l.b16 %v242
      %v438 = vunpack.c.l.b16 %v243
      %v439 = vunpack.c.l.b16 %v244
      %v440 = vunpack.c.l.b16 %v245
      %v441 = vunpack.c.l.b16 %v246
      %v442 = vunpack.c.l.b16 %v247
      %v443 = vunpack.c.l.b16 %v248
      %v444 = vunpack.c.l.b16 %v249
      %v445 = vunpack.c.l.b16 %v250
      %v446 = vunpack.c.l.b16 %v251
      %v447 = vunpack.c.l.b16 %v252
      %v448 = vpack.c.b16 %v435, %v434
      %v449 = vpack.c.b16 %v437, %v436
      %v450 = vpack.c.b16 %v439, %v438
      %v451 = vpack.c.b16 %v441, %v440
      %v452 = vpack.c.b16 %v443, %v442
      %v453 = vpack.c.b16 %v445, %v444
      %v454 = vpack.c.b16 %v447, %v446
      %vm461 = vcmask 883712
      %v463 = vsel %vm461, %v388, 0
      %v466 = vsel %vm461, %v389, 0
      %v469 = vsel %vm461, %v390, 0
      %v472 = vsel %vm461, %v391, 0
      %v475 = vsel %vm461, %v392, 0
      %v478 = vsel %vm461, %v393, 0
      %v481 = vsel %vm461, %v394, 0
      %v484 = vsel %vm461, %v395, 0
      %v487 = vsel %vm461, %v396, 0
      %v490 = vsel %vm461, %v397, 0
      %v493 = vsel %vm461, %v398, 0
      %v496 = vsel %vm461, %v399, 0
      %v499 = vsel %vm461, %v400, 0
      %v502 = vsel %vm461, %v401, 0
      %v505 = vsel %vm461, %v402, 0
      %v508 = vsel %vm461, %v403, 0
      %v511 = vsel %vm461, %v404, 0
      %v514 = vsel %vm461, %v405, 0
      %v517 = vsel %vm461, %v406, 0
      %v520 = vsel %vm461, %v407, 0
      %v523 = vsel %vm461, %v408, 0
      %v526 = vsel %vm461, %v409, 0
      %v529 = vsel %vm461, %v410, 0
      %v532 = vsel %vm461, %v411, 0
      %v535 = vsel %vm461, %v412, 0
      %v538 = vsel %vm461, %v413, 0
      %v541 = vsel %vm461, %v414, 0
      %v544 = vsel %vm461, %v415, 0
      %v547 = vsel %vm461, %v416, 0
      %v550 = vsel %vm461, %v417, 0
      %v553 = vsel %vm461, %v418, 0
      %v556 = vsel %vm461, %v419, 0
      %vm558 = vcmask 1045504
      %v560 = vsel %vm558, %v454, 0
      %562 = vmatprep.subr.bf16.mxu0 0
      %563 = vmatpush1.bf16.msra.mxu0 0
      %564 = vmatprep.subr.bf16.mxu0 0
      %565 = vmatpush1.bf16.msra.mxu0 %v560
      %566 = vmatprep.subr.bf16.mxu0 0
      %567 = vmatpush1.bf16.msra.mxu0 %v453
      %568 = vmatprep.subr.bf16.mxu0 0
      %569 = vmatpush1.bf16.msra.mxu0 %v452
      %570 = vmatprep.subr.bf16.mxu0 0
      %571 = vmatpush1.bf16.msra.mxu0 %v451
      %572 = vmatprep.subr.bf16.mxu0 0
      %573 = vmatpush1.bf16.msra.mxu0 %v450
      %574 = vmatprep.subr.bf16.mxu0 0
      %575 = vmatpush1.bf16.msra.mxu0 %v449
      %576 = vmatprep.subr.bf16.mxu0 0
      %577 = vmatpush1.bf16.msra.mxu0 %v448
      %578 = vmatprep.subr.bf16.mxu0 0
      %579 = vmatpush2.bf16.msra.mxu0 0
      %580 = vmatprep.subr.bf16.mxu0 0
      %581 = vmatpush2.bf16.msra.mxu0 0
      %582 = vmatprep.subr.bf16.mxu0 0
      %583 = vmatpush2.bf16.msra.mxu0 0
      %584 = vmatprep.subr.bf16.mxu0 0
      %585 = vmatpush2.bf16.msra.mxu0 0
      %586 = vmatprep.subr.bf16.mxu0 0
      %587 = vmatpush2.bf16.msra.mxu0 0
      %588 = vmatprep.subr.bf16.mxu0 0
      %589 = vmatpush2.bf16.msra.mxu0 0
      %590 = vmatprep.subr.bf16.mxu0 0
      %591 = vmatpush2.bf16.msra.mxu0 0
      %592 = vmatprep.subr.bf16.mxu0 0
      %593 = vmatpush2.bf16.msra.mxu0 0
      %594 = vmatprep.mubr.bf16.mxu0 0
      %595 = vmatmul.mubr.bf16.gmra.mxu0 %v463
      %v596 = vpop.f32.mrf.mxu0
      %v597 = vadd.f32 %v258, %v596
      %v598 = vpop.f32.mrf.mxu0
      %v599 = vpop.f32.mrf.mxu0
      %v600 = vadd.f32 %v258, %v599
      %v601 = vpop.f32.mrf.mxu0
      %602 = vmatprep.mubr.bf16.mxu0 0
      %603 = vmatmul.mubr.bf16.gmra.mxu0 %v466
      %v604 = vpop.f32.mrf.mxu0
      %v605 = vadd.f32 %v258, %v604
      %v606 = vpop.f32.mrf.mxu0
      %v607 = vpop.f32.mrf.mxu0
      %v608 = vadd.f32 %v258, %v607
      %v609 = vpop.f32.mrf.mxu0
      %610 = vmatprep.mubr.bf16.mxu0 0
      %611 = vmatmul.mubr.bf16.gmra.mxu0 %v469
      %v612 = vpop.f32.mrf.mxu0
      %v613 = vadd.f32 %v258, %v612
      %v614 = vpop.f32.mrf.mxu0
      %v615 = vpop.f32.mrf.mxu0
      %v616 = vadd.f32 %v258, %v615
      %v617 = vpop.f32.mrf.mxu0
      %618 = vmatprep.mubr.bf16.mxu0 0
      %619 = vmatmul.mubr.bf16.gmra.mxu0 %v472
      %v620 = vpop.f32.mrf.mxu0
      %v621 = vadd.f32 %v258, %v620
      %v622 = vpop.f32.mrf.mxu0
      %v623 = vpop.f32.mrf.mxu0
      %v624 = vadd.f32 %v258, %v623
      %v625 = vpop.f32.mrf.mxu0
      %626 = vmatprep.mubr.bf16.mxu0 0
      %627 = vmatmul.mubr.bf16.gmra.mxu0 %v475
      %v628 = vpop.f32.mrf.mxu0
      %v629 = vadd.f32 %v258, %v628
      %v630 = vpop.f32.mrf.mxu0
      %v631 = vpop.f32.mrf.mxu0
      %v632 = vadd.f32 %v258, %v631
      %v633 = vpop.f32.mrf.mxu0
      %634 = vmatprep.mubr.bf16.mxu0 0
      %635 = vmatmul.mubr.bf16.gmra.mxu0 %v478
      %v636 = vpop.f32.mrf.mxu0
      %v637 = vadd.f32 %v258, %v636
      %v638 = vpop.f32.mrf.mxu0
      %v639 = vpop.f32.mrf.mxu0
      %v640 = vadd.f32 %v258, %v639
      %v641 = vpop.f32.mrf.mxu0
      %642 = vmatprep.mubr.bf16.mxu0 0
      %643 = vmatmul.mubr.bf16.gmra.mxu0 %v481
      %v644 = vpop.f32.mrf.mxu0
      %v645 = vadd.f32 %v258, %v644
      %v646 = vpop.f32.mrf.mxu0
      %v647 = vpop.f32.mrf.mxu0
      %v648 = vadd.f32 %v258, %v647
      %v649 = vpop.f32.mrf.mxu0
      %650 = vmatprep.mubr.bf16.mxu0 0
      %651 = vmatmul.mubr.bf16.gmra.mxu0 %v484
      %v652 = vpop.f32.mrf.mxu0
      %v653 = vadd.f32 %v258, %v652
      %v654 = vpop.f32.mrf.mxu0
      %v655 = vpop.f32.mrf.mxu0
      %v656 = vadd.f32 %v258, %v655
      %v657 = vpop.f32.mrf.mxu0
      %658 = vmatprep.mubr.bf16.mxu0 0
      %659 = vmatmul.mubr.bf16.gmra.mxu0 %v487
      %v660 = vpop.f32.mrf.mxu0
      %v661 = vadd.f32 %v258, %v660
      %v662 = vpop.f32.mrf.mxu0
      %v663 = vpop.f32.mrf.mxu0
      %v664 = vadd.f32 %v258, %v663
      %v665 = vpop.f32.mrf.mxu0
      %666 = vmatprep.mubr.bf16.mxu0 0
      %667 = vmatmul.mubr.bf16.gmra.mxu0 %v490
      %v668 = vpop.f32.mrf.mxu0
      %v669 = vadd.f32 %v258, %v668
      %v670 = vpop.f32.mrf.mxu0
      %v671 = vpop.f32.mrf.mxu0
      %v672 = vadd.f32 %v258, %v671
      %v673 = vpop.f32.mrf.mxu0
      %674 = vmatprep.mubr.bf16.mxu0 0
      %675 = vmatmul.mubr.bf16.gmra.mxu0 %v493
      %v676 = vpop.f32.mrf.mxu0
      %v677 = vadd.f32 %v258, %v676
      %v678 = vpop.f32.mrf.mxu0
      %v679 = vpop.f32.mrf.mxu0
      %v680 = vadd.f32 %v258, %v679
      %v681 = vpop.f32.mrf.mxu0
      %682 = vmatprep.mubr.bf16.mxu0 0
      %683 = vmatmul.mubr.bf16.gmra.mxu0 %v496
      %v684 = vpop.f32.mrf.mxu0
      %v685 = vadd.f32 %v258, %v684
      %v686 = vpop.f32.mrf.mxu0
      %v687 = vpop.f32.mrf.mxu0
      %v688 = vadd.f32 %v258, %v687
      %v689 = vpop.f32.mrf.mxu0
      %690 = vmatprep.mubr.bf16.mxu0 0
      %691 = vmatmul.mubr.bf16.gmra.mxu0 %v499
      %v692 = vpop.f32.mrf.mxu0
      %v693 = vadd.f32 %v258, %v692
      %v694 = vpop.f32.mrf.mxu0
      %v695 = vpop.f32.mrf.mxu0
      %v696 = vadd.f32 %v258, %v695
      %v697 = vpop.f32.mrf.mxu0
      %698 = vmatprep.mubr.bf16.mxu0 0
      %699 = vmatmul.mubr.bf16.gmra.mxu0 %v502
      %v700 = vpop.f32.mrf.mxu0
      %v701 = vadd.f32 %v258, %v700
      %v702 = vpop.f32.mrf.mxu0
      %v703 = vpop.f32.mrf.mxu0
      %v704 = vadd.f32 %v258, %v703
      %v705 = vpop.f32.mrf.mxu0
      %706 = vmatprep.mubr.bf16.mxu0 0
      %707 = vmatmul.mubr.bf16.gmra.mxu0 %v505
      %v708 = vpop.f32.mrf.mxu0
      %v709 = vadd.f32 %v258, %v708
      %v710 = vpop.f32.mrf.mxu0
      %v711 = vpop.f32.mrf.mxu0
      %v712 = vadd.f32 %v258, %v711
      %v713 = vpop.f32.mrf.mxu0
      %714 = vmatprep.mubr.bf16.mxu0 0
      %715 = vmatmul.mubr.bf16.gmra.mxu0 %v508
      %v716 = vpop.f32.mrf.mxu0
      %v717 = vadd.f32 %v258, %v716
      %v718 = vpop.f32.mrf.mxu0
      %v719 = vpop.f32.mrf.mxu0
      %v720 = vadd.f32 %v258, %v719
      %v721 = vpop.f32.mrf.mxu0
      %722 = vmatprep.mubr.bf16.mxu0 0
      %723 = vmatmul.mubr.bf16.gmra.mxu0 %v511
      %v724 = vpop.f32.mrf.mxu0
      %v725 = vadd.f32 %v258, %v724
      %v726 = vpop.f32.mrf.mxu0
      %v727 = vpop.f32.mrf.mxu0
      %v728 = vadd.f32 %v258, %v727
      %v729 = vpop.f32.mrf.mxu0
      %730 = vmatprep.mubr.bf16.mxu0 0
      %731 = vmatmul.mubr.bf16.gmra.mxu0 %v514
      %v732 = vpop.f32.mrf.mxu0
      %v733 = vadd.f32 %v258, %v732
      %v734 = vpop.f32.mrf.mxu0
      %v735 = vpop.f32.mrf.mxu0
      %v736 = vadd.f32 %v258, %v735
      %v737 = vpop.f32.mrf.mxu0
      %738 = vmatprep.mubr.bf16.mxu0 0
      %739 = vmatmul.mubr.bf16.gmra.mxu0 %v517
      %v740 = vpop.f32.mrf.mxu0
      %v741 = vadd.f32 %v258, %v740
      %v742 = vpop.f32.mrf.mxu0
      %v743 = vpop.f32.mrf.mxu0
      %v744 = vadd.f32 %v258, %v743
      %v745 = vpop.f32.mrf.mxu0
      %746 = vmatprep.mubr.bf16.mxu0 0
      %747 = vmatmul.mubr.bf16.gmra.mxu0 %v520
      %v748 = vpop.f32.mrf.mxu0
      %v749 = vadd.f32 %v258, %v748
      %v750 = vpop.f32.mrf.mxu0
      %v751 = vpop.f32.mrf.mxu0
      %v752 = vadd.f32 %v258, %v751
      %v753 = vpop.f32.mrf.mxu0
      %754 = vmatprep.mubr.bf16.mxu0 0
      %755 = vmatmul.mubr.bf16.gmra.mxu0 %v523
      %v756 = vpop.f32.mrf.mxu0
      %v757 = vadd.f32 %v258, %v756
      %v758 = vpop.f32.mrf.mxu0
      %v759 = vpop.f32.mrf.mxu0
      %v760 = vadd.f32 %v258, %v759
      %v761 = vpop.f32.mrf.mxu0
      %762 = vmatprep.mubr.bf16.mxu0 0
      %763 = vmatmul.mubr.bf16.gmra.mxu0 %v526
      %v764 = vpop.f32.mrf.mxu0
      %v765 = vadd.f32 %v258, %v764
      %v766 = vpop.f32.mrf.mxu0
      %v767 = vpop.f32.mrf.mxu0
      %v768 = vadd.f32 %v258, %v767
      %v769 = vpop.f32.mrf.mxu0
      %770 = vmatprep.mubr.bf16.mxu0 0
      %771 = vmatmul.mubr.bf16.gmra.mxu0 %v529
      %v772 = vpop.f32.mrf.mxu0
      %v773 = vadd.f32 %v258, %v772
      %v774 = vpop.f32.mrf.mxu0
      %v775 = vpop.f32.mrf.mxu0
      %v776 = vadd.f32 %v258, %v775
      %v777 = vpop.f32.mrf.mxu0
      %778 = vmatprep.mubr.bf16.mxu0 0
      %779 = vmatmul.mubr.bf16.gmra.mxu0 %v532
      %v780 = vpop.f32.mrf.mxu0
      %v781 = vadd.f32 %v258, %v780
      %v782 = vpop.f32.mrf.mxu0
      %v783 = vpop.f32.mrf.mxu0
      %v784 = vadd.f32 %v258, %v783
      %v785 = vpop.f32.mrf.mxu0
      %786 = vmatprep.mubr.bf16.mxu0 0
      %787 = vmatmul.mubr.bf16.gmra.mxu0 %v535
      %v788 = vpop.f32.mrf.mxu0
      %v789 = vadd.f32 %v258, %v788
      %v790 = vpop.f32.mrf.mxu0
      %v791 = vpop.f32.mrf.mxu0
      %v792 = vadd.f32 %v258, %v791
      %v793 = vpop.f32.mrf.mxu0
      %794 = vmatprep.mubr.bf16.mxu0 0
      %795 = vmatmul.mubr.bf16.gmra.mxu0 %v538
      %v796 = vpop.f32.mrf.mxu0
      %v797 = vadd.f32 %v258, %v796
      %v798 = vpop.f32.mrf.mxu0
      %v799 = vpop.f32.mrf.mxu0
      %v800 = vadd.f32 %v258, %v799
      %v801 = vpop.f32.mrf.mxu0
      %802 = vmatprep.mubr.bf16.mxu0 0
      %803 = vmatmul.mubr.bf16.gmra.mxu0 %v541
      %v804 = vpop.f32.mrf.mxu0
      %v805 = vadd.f32 %v258, %v804
      %v806 = vpop.f32.mrf.mxu0
      %v807 = vpop.f32.mrf.mxu0
      %v808 = vadd.f32 %v258, %v807
      %v809 = vpop.f32.mrf.mxu0
      %810 = vmatprep.mubr.bf16.mxu0 0
      %811 = vmatmul.mubr.bf16.gmra.mxu0 %v544
      %v812 = vpop.f32.mrf.mxu0
      %v813 = vadd.f32 %v258, %v812
      %v814 = vpop.f32.mrf.mxu0
      %v815 = vpop.f32.mrf.mxu0
      %v816 = vadd.f32 %v258, %v815
      %v817 = vpop.f32.mrf.mxu0
      %818 = vmatprep.mubr.bf16.mxu0 0
      %819 = vmatmul.mubr.bf16.gmra.mxu0 %v547
      %v820 = vpop.f32.mrf.mxu0
      %v821 = vadd.f32 %v258, %v820
      %v822 = vpop.f32.mrf.mxu0
      %v823 = vpop.f32.mrf.mxu0
      %v824 = vadd.f32 %v258, %v823
      %v825 = vpop.f32.mrf.mxu0
      %826 = vmatprep.mubr.bf16.mxu0 0
      %827 = vmatmul.mubr.bf16.gmra.mxu0 %v550
      %v828 = vpop.f32.mrf.mxu0
      %v829 = vadd.f32 %v258, %v828
      %v830 = vpop.f32.mrf.mxu0
      %v831 = vpop.f32.mrf.mxu0
      %v832 = vadd.f32 %v258, %v831
      %v833 = vpop.f32.mrf.mxu0
      %834 = vmatprep.mubr.bf16.mxu0 0
      %835 = vmatmul.mubr.bf16.gmra.mxu0 %v553
      %v836 = vpop.f32.mrf.mxu0
      %v837 = vadd.f32 %v258, %v836
      %v838 = vpop.f32.mrf.mxu0
      %v839 = vpop.f32.mrf.mxu0
      %v840 = vadd.f32 %v258, %v839
      %v841 = vpop.f32.mrf.mxu0
      %842 = vmatprep.mubr.bf16.mxu0 0
      %843 = vmatmul.mubr.bf16.gmra.mxu0 %v556
      %v844 = vpop.f32.mrf.mxu0
      %v845 = vadd.f32 %v258, %v844
      %v846 = vpop.f32.mrf.mxu0
      %v847 = vpop.f32.mrf.mxu0
      %v848 = vadd.f32 %v258, %v847
      %v849 = vpop.f32.mrf.mxu0
      %850 = vdwg.mxu0
      %v851 = vtanh.pop %v597
      %v852 = vtanh.pop %v600
      %v853 = vtanh.pop %v605
      %v854 = vtanh.pop %v608
      %v855 = vtanh.pop %v613
      %v856 = vtanh.pop %v616
      %v857 = vtanh.pop %v621
      %v858 = vtanh.pop %v624
      %v859 = vtanh.pop %v629
      %v860 = vtanh.pop %v632
      %v861 = vtanh.pop %v637
      %v862 = vtanh.pop %v640
      %v863 = vtanh.pop %v645
      %v864 = vtanh.pop %v648
      %v865 = vtanh.pop %v653
      %v866 = vtanh.pop %v656
      %v867 = vtanh.pop %v661
      %v868 = vtanh.pop %v664
      %v869 = vtanh.pop %v669
      %v870 = vtanh.pop %v672
      %v871 = vtanh.pop %v677
      %v872 = vtanh.pop %v680
      %v873 = vtanh.pop %v685
      %v874 = vtanh.pop %v688
      %v875 = vtanh.pop %v693
      %v876 = vtanh.pop %v696
      %v877 = vtanh.pop %v701
      %v878 = vtanh.pop %v704
      %v879 = vtanh.pop %v709
      %v880 = vtanh.pop %v712
      %v881 = vtanh.pop %v717
      %v882 = vtanh.pop %v720
      %v883 = vtanh.pop %v725
      %v884 = vtanh.pop %v728
      %v885 = vtanh.pop %v733
      %v886 = vtanh.pop %v736
      %v887 = vtanh.pop %v741
      %v888 = vtanh.pop %v744
      %v889 = vtanh.pop %v749
      %v890 = vtanh.pop %v752
      %v891 = vtanh.pop %v757
      %v892 = vtanh.pop %v760
      %v893 = vtanh.pop %v765
      %v894 = vtanh.pop %v768
      %v895 = vtanh.pop %v773
      %v896 = vtanh.pop %v776
      %v897 = vtanh.pop %v781
      %v898 = vtanh.pop %v784
      %v899 = vtanh.pop %v789
      %v900 = vtanh.pop %v792
      %v901 = vtanh.pop %v797
      %v902 = vtanh.pop %v800
      %v903 = vtanh.pop %v805
      %v904 = vtanh.pop %v808
      %v905 = vtanh.pop %v813
      %v906 = vtanh.pop %v816
      %v907 = vtanh.pop %v821
      %v908 = vtanh.pop %v824
      %v909 = vtanh.pop %v829
      %v910 = vtanh.pop %v832
      %v911 = vtanh.pop %v837
      %v912 = vtanh.pop %v840
      %v913 = vtanh.pop %v845
      %v914 = vtanh.pop %v848
      %915 = vst [vmem:[%s172] sm:$0xff] %v851
      %916 = vst [vmem:[%s172 + $0x8] sm:$0xff] %v852
      %917 = vst [vmem:[%s172 + $0x10] sm:$0xff] %v853
      %918 = vst [vmem:[%s172 + $0x18] sm:$0xff] %v854
      %919 = vst [vmem:[%s172 + $0x20] sm:$0xff] %v855
      %920 = vst [vmem:[%s172 + $0x28] sm:$0xff] %v856
      %921 = vst [vmem:[%s172 + $0x30] sm:$0xff] %v857
      %922 = vst [vmem:[%s172 + $0x38] sm:$0xff] %v858
      %923 = vst [vmem:[%s172 + $0x40] sm:$0xff] %v859
      %924 = vst [vmem:[%s172 + $0x48] sm:$0xff] %v860
      %925 = vst [vmem:[%s172 + $0x50] sm:$0xff] %v861
      %926 = vst [vmem:[%s172 + $0x58] sm:$0xff] %v862
      %927 = vst [vmem:[%s172 + $0x60] sm:$0xff] %v863
      %928 = vst [vmem:[%s172 + $0x68] sm:$0xff] %v864
      %929 = vst [vmem:[%s172 + $0x70] sm:$0xff] %v865
      %930 = vst [vmem:[%s172 + $0x78] sm:$0xff] %v866
      %931 = vst [vmem:[%s172 + $0x80] sm:$0xff] %v867
      %932 = vst [vmem:[%s172 + $0x88] sm:$0xff] %v868
      %933 = vst [vmem:[%s172 + $0x90] sm:$0xff] %v869
      %934 = vst [vmem:[%s172 + $0x98] sm:$0xff] %v870
      %935 = vst [vmem:[%s172 + $0xa0] sm:$0xff] %v871
      %936 = vst [vmem:[%s172 + $0xa8] sm:$0xff] %v872
      %937 = vst [vmem:[%s172 + $0xb0] sm:$0xff] %v873
      %938 = vst [vmem:[%s172 + $0xb8] sm:$0xff] %v874
      %939 = vst [vmem:[%s172 + $0xc0] sm:$0xff] %v875
      %940 = vst [vmem:[%s172 + $0xc8] sm:$0xff] %v876
      %941 = vst [vmem:[%s172 + $0xd0] sm:$0xff] %v877
      %942 = vst [vmem:[%s172 + $0xd8] sm:$0xff] %v878
      %943 = vst [vmem:[%s172 + $0xe0] sm:$0xff] %v879
      %944 = vst [vmem:[%s172 + $0xe8] sm:$0xff] %v880
      %945 = vst [vmem:[%s172 + $0xf0] sm:$0xff] %v881
      %946 = vst [vmem:[%s172 + $0xf8] sm:$0xff] %v882
      %947 = vst [vmem:[%s172 + $0x100] sm:$0xff] %v883
      %948 = vst [vmem:[%s172 + $0x108] sm:$0xff] %v884
      %949 = vst [vmem:[%s172 + $0x110] sm:$0xff] %v885
      %950 = vst [vmem:[%s172 + $0x118] sm:$0xff] %v886
      %951 = vst [vmem:[%s172 + $0x120] sm:$0xff] %v887
      %952 = vst [vmem:[%s172 + $0x128] sm:$0xff] %v888
      %953 = vst [vmem:[%s172 + $0x130] sm:$0xff] %v889
      %954 = vst [vmem:[%s172 + $0x138] sm:$0xff] %v890
      %955 = vst [vmem:[%s172 + $0x140] sm:$0xff] %v891
      %956 = vst [vmem:[%s172 + $0x148] sm:$0xff] %v892
      %957 = vst [vmem:[%s172 + $0x150] sm:$0xff] %v893
      %958 = vst [vmem:[%s172 + $0x158] sm:$0xff] %v894
      %959 = vst [vmem:[%s172 + $0x160] sm:$0xff] %v895
      %960 = vst [vmem:[%s172 + $0x168] sm:$0xff] %v896
      %961 = vst [vmem:[%s172 + $0x170] sm:$0xff] %v897
      %962 = vst [vmem:[%s172 + $0x178] sm:$0xff] %v898
      %963 = vst [vmem:[%s172 + $0x180] sm:$0xff] %v899
      %964 = vst [vmem:[%s172 + $0x188] sm:$0xff] %v900
      %965 = vst [vmem:[%s172 + $0x190] sm:$0xff] %v901
      %966 = vst [vmem:[%s172 + $0x198] sm:$0xff] %v902
      %967 = vst [vmem:[%s172 + $0x1a0] sm:$0xff] %v903
      %968 = vst [vmem:[%s172 + $0x1a8] sm:$0xff] %v904
      %969 = vst [vmem:[%s172 + $0x1b0] sm:$0xff] %v905
      %970 = vst [vmem:[%s172 + $0x1b8] sm:$0xff] %v906
      %971 = vst [vmem:[%s172 + $0x1c0] sm:$0xff] %v907
      %972 = vst [vmem:[%s172 + $0x1c8] sm:$0xff] %v908
      %973 = vst [vmem:[%s172 + $0x1d0] sm:$0xff] %v909
      %974 = vst [vmem:[%s172 + $0x1d8] sm:$0xff] %v910
      %975 = vst [vmem:[%s172 + $0x1e0] sm:$0xff] %v911
      %976 = vst [vmem:[%s172 + $0x1e8] sm:$0xff] %v912
      %977 = vst [vmem:[%s172 + $0x1f0] sm:$0xff] %v913
      %978 = vst [vmem:[%s172 + $0x1f8] sm:$0xff] %v914
      %s979 = smul.u32 64, %s14
      %p980 = scmp.lt.s32.totalorder %s979, 255
      %s981 = scalar_select %p980, %s979, 255
      %s982 = smul.addr %s981, 8
      %s983 = scalar_lea.vmem %s3, %s982
      // Predicated region
      $region33: #{autoencoder_forward.11} parent=31 // pred_check
        %p984 = pneg %p100
      $region34: #{autoencoder_forward.11} parent=31 // pred_check_branch
        %986 = sbr.rel (%p984) target = $region36
      $region35: #{autoencoder_forward.11} parent=31 // pred_region
        %s987 = smul.u32 64, %s14
      $region36: #{autoencoder_forward.11} parent=31 // pred_fallthru
        _
    $region32: #{autoencoder_forward.11} parent=5 // pred_fallthru
      _
    %p988 = scmp.le.s32.totalorder 2, %s9
    // Predicated region
    $region37: #{autoencoder_forward.11} parent=5 // pred_check
      %p989 = pneg %p988
    $region38: #{autoencoder_forward.11} parent=5 // pred_check_branch
      %991 = sbr.rel (%p989) target = $region40
    $region39: #{autoencoder_forward.11} parent=5 // pred_region
      %s992 = ssub.s32 %s9, 2
      // Predicated region
      $region41: #{autoencoder_forward.11} parent=39 // pred_check
        %p993 = pneg %p106
      $region42: #{autoencoder_forward.11} parent=39 // pred_check_branch
        %995 = sbr.rel (%p993) target = $region44
      $region43: #{autoencoder_forward.11} parent=39 // pred_region
        %s996 = smul.u32 64, %s15
        %p997 = scmp.lt.s32.totalorder %s996, 255
        %s998 = scalar_select %p997, %s996, 255
        %s999 = smul.addr %s998, 8
        %s1000 = scalar_lea.vmem %s3, %s999
      $region44: #{autoencoder_forward.11} parent=39 // pred_fallthru
        _
    $region40: #{autoencoder_forward.11} parent=5 // pred_fallthru
      _
  $region6: #{autoencoder_forward.11} parent=0 // loop_footer
    %s13 = sadd.s32 1, %s9
  $region7: #{autoencoder_forward.11} parent=0 // loop_footer_branch
    %8 = sbr.rel target = $region3
  $region8: #{autoencoder_forward.11} parent=0 // loop_exit
    _

</llo_original>
